<compile_context>
chip_gen: v7x
topology: tpu7x:2x2x1
jax: 0.10.0
libtpu: 0.0.40
codegen_flags: <defaults>
</compile_context>

<pallas_src>
import functools

import jax
import jax.numpy as jnp
from jax import lax
from jax.experimental import pallas as pl
from jax.experimental.pallas import tpu as pltpu

_BN_EPS = 1e-5
_PAD = 3                      # zero padding that covers the largest dilation (3)
_DILATIONS = (1, 2, 3)        # conv2, conv3, conv4


def _lsa_kernel(x_ref, w1_ref, b1_ref, wd_ref, bd_ref, w5_ref, b5_ref,
                o_ref, pad_ref, *, H, W, rd_pad):
    HW = H * W
    Wp = W + 2 * _PAD

    # ---- conv1: 1x1 conv (+ folded BN) + ReLU ---------------------------------------
    # x is (C, HW): channels on sublanes, spatial on lanes -> bf16 MXU matmul, f32 acc.
    x = x_ref[0].astype(jnp.bfloat16)                                    # (C, HW)
    h1 = jnp.dot(w1_ref[...], x, preferred_element_type=jnp.float32)     # (rd_pad, HW)
    h1 = jnp.maximum(h1 + b1_ref[...], 0.0)

    # ---- fused conv5: lane-dense accumulator, single reduce at the end ---------------
    acc5 = h1 * w5_ref[0]                                                # (rd_pad, HW)

    # ---- refresh the persistent padded scratch (f32) ---------------------------------
    # Zero only the 3-row top/bottom borders; interior rows are stored full-lane-width
    # together with the left/right zero borders (no per-image full-scratch re-zero).
    zrows = jnp.zeros((rd_pad, _PAD, Wp), jnp.float32)
    pad_ref[:, pl.ds(0, _PAD), :] = zrows
    pad_ref[:, pl.ds(H + _PAD, _PAD), :] = zrows
    zcols = jnp.zeros((rd_pad, H, _PAD), jnp.float32)
    h1_img = h1.reshape(rd_pad, H, W)
    pad_ref[:, pl.ds(_PAD, H), :] = jnp.concatenate([zcols, h1_img, zcols], axis=2)

    # ---- dilated 3x3 branches: im2col -> one large-K bf16 matmul per dilation --------
    for di, d in enumerate(_DILATIONS):                                  # static unroll
        wins = []
        for tap in range(9):
            ky, kx = tap // 3, tap % 3
            oy = _PAD + (ky - 1) * d                                     # static offsets
            ox = _PAD + (kx - 1) * d
            wins.append(pad_ref[:, pl.ds(oy, H), pl.ds(ox, W)])          # (rd_pad, H, W)
        im2col = (jnp.concatenate(wins, axis=0)                          # (9*rd_pad,H,W)
                  .reshape(9 * rd_pad, HW).astype(jnp.bfloat16))         # (9*rd_pad, HW)
        hb = jnp.dot(wd_ref[di], im2col, preferred_element_type=jnp.float32)
        hb = jnp.maximum(hb + bd_ref[di], 0.0)                           # (rd_pad, HW)
        acc5 = acc5 + hb * w5_ref[di + 1]

    # ---- conv5: one cross-sublane reduce + folded-BN bias + ReLU, lane-dense store ---
    out = jnp.sum(acc5, axis=0, keepdims=True) + b5_ref[...]             # (1, HW)
    o_ref[0] = jnp.maximum(out, 0.0).astype(o_ref.dtype)


def fold_lsa_params(p, rd_pad, eps=_BN_EPS):
    """Fold eval-mode BN into conv weights/biases; pad rd -> rd_pad with zero channels."""
    rd, C = p["w1"].shape[0], p["w1"].shape[1]

    def scale(g, v):
        return g / jnp.sqrt(v + eps)

    s1 = scale(p["g1"], p["v1"])                                          # (rd,)
    w1 = p["w1"][:, :, 0, 0] * s1[:, None]                                # (rd, C)
    w1 = jnp.pad(w1, ((0, rd_pad - rd), (0, 0))).astype(jnp.bfloat16)     # (rd_pad, C)
    b1 = jnp.pad(p["b1"] - p["m1"] * s1, (0, rd_pad - rd)
                 ).reshape(rd_pad, 1).astype(jnp.float32)

    wds, bds = [], []
    for i in range(3):                                                    # conv2..conv4
        w = p[f"w{i + 2}"]                                                # (rd, rd, 3, 3) OIHW
        sc = scale(p[f"g{i + 2}"], p[f"v{i + 2}"])                        # (rd,)
        w_eff = w * sc[:, None, None, None]                               # (co, ci, ky, kx)
        w_eff = jnp.transpose(w_eff, (0, 2, 3, 1)).reshape(rd, 9, rd)     # (co, tap, ci)
        w_eff = jnp.pad(w_eff, ((0, rd_pad - rd), (0, 0), (0, rd_pad - rd)))
        wds.append(w_eff.reshape(rd_pad, 9 * rd_pad))                     # col = tap*rd_pad+ci
        bds.append(jnp.pad(p[f"b{i + 2}"] - p[f"m{i + 2}"] * sc,
                           (0, rd_pad - rd)).reshape(rd_pad, 1))
    wd = jnp.stack(wds, axis=0).astype(jnp.bfloat16)                      # (3, rd_pad, 9*rd_pad)
    bd = jnp.stack(bds, axis=0).astype(jnp.float32)                       # (3, rd_pad, 1)

    s5 = scale(p["g5"], p["v5"])                                          # (1,)
    w5 = (p["w5"][0, :, 0, 0] * s5[0]).reshape(4, rd)                     # (4, rd) branch-major
    w5 = jnp.pad(w5, ((0, 0), (0, rd_pad - rd))
                 ).reshape(4, rd_pad, 1).astype(jnp.float32)              # (4, rd_pad, 1)
    b5 = (p["b5"] - p["m5"] * s5).reshape(1, 1).astype(jnp.float32)       # (1, 1)
    return w1, b1, wd, bd, w5, b5


def _device_vmem_bytes():
    try:
        return int(pltpu.get_tpu_info().vmem_capacity_bytes)
    except Exception:
        return 64 * 1024 * 1024        # conservative (v7x-sized) fallback


def lsa_forward(x, params):
    """x: (B, C, H, W) NCHW (PyTorch layout). Returns (B, 1, H, W)."""
    B, C, H, W = x.shape
    rd = params["w1"].shape[0]
    rd_pad = max(8, ((rd + 7) // 8) * 8)          # sublane-align reduced channels
    HW = H * W

    w1, b1, wd, bd, w5, b5 = fold_lsa_params(params, rd_pad)

    # Free reshape only — the NCHW->NHWC transpose pass over HBM is gone.
    x_flat = x.reshape(B, C, HW)

    kernel = functools.partial(_lsa_kernel, H=H, W=W, rd_pad=rd_pad)

    in_block = C * HW * x_flat.dtype.itemsize
    out_block = HW * 4
    scratch_bytes = rd_pad * (H + 2 * _PAD) * (W + 2 * _PAD) * 4
    param_bytes = int(sum(int(a.size) * a.dtype.itemsize for a in (w1, b1, wd, bd, w5, b5)))
    inter_bytes = 4 * rd_pad * HW * 4 + 9 * rd_pad * HW * 6   # h1/acc/hb (f32) + im2col slack
    need = 2 * (in_block + out_block) + scratch_bytes + 2 * param_bytes \
        + 2 * inter_bytes + (4 << 20)
    phys = _device_vmem_bytes()
    vmem_limit = int(max(16 << 20, min(need, (phys * 3) // 4)))

    flops = int(2 * B * HW * (C * rd_pad + 27 * rd_pad * rd_pad + 5 * rd_pad))
    bytes_accessed = int(x_flat.size * x_flat.dtype.itemsize + B * HW * 4 + param_bytes)

    out = pl.pallas_call(
        kernel,
        out_shape=jax.ShapeDtypeStruct((B, 1, HW), jnp.float32),
        grid=(B,),
        in_specs=[
            pl.BlockSpec((1, C, HW), lambda b: (b, 0, 0)),           # one image per step
            pl.BlockSpec((rd_pad, C), lambda b: (0, 0)),             # conv1 weight (BN folded)
            pl.BlockSpec((rd_pad, 1), lambda b: (0, 0)),             # conv1 bias
            pl.BlockSpec((3, rd_pad, 9 * rd_pad), lambda b: (0, 0, 0)),  # conv2..4 im2col weights
            pl.BlockSpec((3, rd_pad, 1), lambda b: (0, 0, 0)),       # conv2..4 biases
            pl.BlockSpec((4, rd_pad, 1), lambda b: (0, 0, 0)),       # conv5 weight (BN folded)
            pl.BlockSpec((1, 1), lambda b: (0, 0)),                  # conv5 bias
        ],
        out_specs=pl.BlockSpec((1, 1, HW), lambda b: (b, 0, 0)),     # lane-dense output row
        scratch_shapes=[pltpu.VMEM((rd_pad, H + 2 * _PAD, W + 2 * _PAD), jnp.float32)],
        compiler_params=pltpu.CompilerParams(
            dimension_semantics=("parallel",),
            vmem_limit_bytes=vmem_limit),
        cost_estimate=pl.CostEstimate(flops=flops, transcendentals=0,
                                      bytes_accessed=bytes_accessed),
    )(x_flat, w1, b1, wd, bd, w5, b5)

    return out.reshape(B, 1, H, W)


# --------------------------- pure-JAX reference & test harness ---------------------------

def _conv_bn_relu_ref(h, w, gamma, beta, mean, var, *, dilation, padding):
    y = lax.conv_general_dilated(
        h, w, window_strides=(1, 1),
        padding=((padding, padding), (padding, padding)),
        rhs_dilation=(dilation, dilation),
        dimension_numbers=("NCHW", "OIHW", "NCHW"),
        precision=lax.Precision.HIGHEST)
    s = gamma / jnp.sqrt(var + _BN_EPS)
    y = y * s[None, :, None, None] + (beta - mean * s)[None, :, None, None]
    return jnp.maximum(y, 0.0)


def _reference(x, p):
    x1 = _conv_bn_relu_ref(x, p["w1"], p["g1"], p["b1"], p["m1"], p["v1"], dilation=1, padding=0)
    x2 = _conv_bn_relu_ref(x1, p["w2"], p["g2"], p["b2"], p["m2"], p["v2"], dilation=1, padding=1)
    x3 = _conv_bn_relu_ref(x1, p["w3"], p["g3"], p["b3"], p["m3"], p["v3"], dilation=2, padding=2)
    x4 = _conv_bn_relu_ref(x1, p["w4"], p["g4"], p["b4"], p["m4"], p["v4"], dilation=3, padding=3)
    merged = jnp.concatenate([x1, x2, x3, x4], axis=1)
    return _conv_bn_relu_ref(merged, p["w5"], p["g5"], p["b5"], p["m5"], p["v5"],
                             dilation=1, padding=0)


def init_lsa_params(key, channels, rd_ratio=8):
    rd = channels // rd_ratio
    assert rd >= 1, "channels must be >= rd_ratio"
    ks = jax.random.split(key, 10)

    def conv(k, co, ci, kh, kw):
        fan_in = ci * kh * kw
        return jax.random.normal(k, (co, ci, kh, kw), jnp.float32) / jnp.sqrt(float(fan_in))

    def bn(k, n):
        k1, k2, k3, k4 = jax.random.split(k, 4)
        return (jax.random.uniform(k1, (n,), jnp.float32, 0.5, 1.5),    # gamma
                jax.random.normal(k2, (n,), jnp.float32) * 0.1,         # beta
                jax.random.normal(k3, (n,), jnp.float32) * 0.1,         # running mean
                jax.random.uniform(k4, (n,), jnp.float32, 0.5, 1.5))    # running var

    p = {"w1": conv(ks[0], rd, channels, 1, 1),
         "w2": conv(ks[1], rd, rd, 3, 3),
         "w3": conv(ks[2], rd, rd, 3, 3),
         "w4": conv(ks[3], rd, rd, 3, 3),
         "w5": conv(ks[4], 1, 4 * rd, 1, 1)}
    for i, n in zip(range(1, 6), (rd, rd, rd, rd, 1)):
        g, b, m, v = bn(ks[4 + i], n)
        p[f"g{i}"], p[f"b{i}"], p[f"m{i}"], p[f"v{i}"] = g, b, m, v
    return p


if __name__ == "__main__":
    key = jax.random.PRNGKey(0)
    kx, kp = jax.random.split(key)

    B, C, H, W = 2, 32, 16, 16            # rd_ratio=8 -> rd_channels=4 (padded to 8)
    x = jax.random.normal(kx, (B, C, H, W), dtype=jnp.float32)
    params = init_lsa_params(kp, C, rd_ratio=8)

    out = jax.block_until_ready(lsa_forward(x, params))
    assert out.shape == (B, 1, H, W), out.shape

    ref = jax.block_until_ready(_reference(x, params))
    max_err = float(jnp.max(jnp.abs(out - ref)))
    # bf16 matmul inputs with f32 accumulation -> relaxed tolerance vs. f32 reference.
    assert jnp.allclose(out, ref, atol=5e-2, rtol=5e-2), max_err

    print("KERNEL_OK")
</pallas_src>

<mosaic_0001>
module attributes {stable_mosaic.version = 11 : i64} {
  func.func @_lsa_kernel(%arg0: i32, %arg1: memref<1x32x256xf32, #tpu.memory_space<vmem>>, %arg2: memref<8x32xbf16, #tpu.memory_space<vmem>>, %arg3: memref<8x1xf32, #tpu.memory_space<vmem>>, %arg4: memref<3x8x72xbf16, #tpu.memory_space<vmem>>, %arg5: memref<3x8x1xf32, #tpu.memory_space<vmem>>, %arg6: memref<4x8x1xf32, #tpu.memory_space<vmem>>, %arg7: memref<1x1xf32, #tpu.memory_space<vmem>>, %arg8: memref<1x1x256xf32, #tpu.memory_space<vmem>>, %arg9: memref<8x22x22xf32, #tpu.memory_space<vmem>>) attributes {dimension_semantics = [#tpu.dimension_semantics<parallel>], iteration_bounds = array<i64: 2>, scalar_prefetch = 0 : i64, scratch_operands = 1 : i64, tpu.core_type = #tpu.core_type<tc>, window_params = [{transform_indices = @transform_0, window_bounds = array<i64: 1, 32, 256>}, {pipeline_mode = #tpu.pipeline_mode<synchronous>, transform_indices = @transform_1, window_bounds = array<i64: 8, 32>}, {pipeline_mode = #tpu.pipeline_mode<synchronous>, transform_indices = @transform_2, window_bounds = array<i64: 8, 1>}, {pipeline_mode = #tpu.pipeline_mode<synchronous>, transform_indices = @transform_3, window_bounds = array<i64: 3, 8, 72>}, {pipeline_mode = #tpu.pipeline_mode<synchronous>, transform_indices = @transform_4, window_bounds = array<i64: 3, 8, 1>}, {pipeline_mode = #tpu.pipeline_mode<synchronous>, transform_indices = @transform_5, window_bounds = array<i64: 4, 8, 1>}, {pipeline_mode = #tpu.pipeline_mode<synchronous>, transform_indices = @transform_6, window_bounds = array<i64: 1, 1>}, {transform_indices = @transform_7, window_bounds = array<i64: 1, 1, 256>}]} {
    %c0 = arith.constant 0 : index
    %c0_0 = arith.constant 0 : index
    %c0_1 = arith.constant 0 : index
    %0 = vector.load %arg1[%c0, %c0_0, %c0_1] : memref<1x32x256xf32, #tpu.memory_space<vmem>>, vector<1x32x256xf32>
    %1 = vector.shape_cast %0 : vector<1x32x256xf32> to vector<32x256xf32>
    %2 = arith.truncf %1 : vector<32x256xf32> to vector<32x256xbf16>
    %c0_2 = arith.constant 0 : index
    %c0_3 = arith.constant 0 : index
    %3 = vector.load %arg2[%c0_2, %c0_3] : memref<8x32xbf16, #tpu.memory_space<vmem>>, vector<8x32xbf16>
    %cst = arith.constant dense<0.000000e+00> : vector<8x256xf32>
    %4 = tpu.matmul %3, %2, %cst {dimension_numbers = #tpu.dot_dimension_numbers<[1], [0], [0], [1], [0, 0, 1, 1], [], []>} : vector<8x32xbf16>, vector<32x256xbf16>, vector<8x256xf32> -> vector<8x256xf32>
    %c0_4 = arith.constant 0 : index
    %c0_5 = arith.constant 0 : index
    %5 = vector.load %arg3[%c0_4, %c0_5] : memref<8x1xf32, #tpu.memory_space<vmem>>, vector<8x1xf32>
    %6 = vector.broadcast %5 : vector<8x1xf32> to vector<8x256xf32>
    %7 = arith.addf %4, %6 : vector<8x256xf32>
    %cst_6 = arith.constant 0.000000e+00 : f32
    %8 = vector.broadcast %cst_6 : f32 to vector<8x256xf32>
    %9 = arith.maximumf %7, %8 : vector<8x256xf32>
    %c0_7 = arith.constant 0 : index
    %c0_8 = arith.constant 0 : index
    %c0_9 = arith.constant 0 : index
    %10 = vector.load %arg6[%c0_7, %c0_8, %c0_9] : memref<4x8x1xf32, #tpu.memory_space<vmem>>, vector<1x8x1xf32>
    %11 = vector.shape_cast %10 : vector<1x8x1xf32> to vector<8x1xf32>
    %12 = vector.broadcast %11 : vector<8x1xf32> to vector<8x256xf32>
    %13 = arith.mulf %9, %12 : vector<8x256xf32>
    %cst_10 = arith.constant 0.000000e+00 : f32
    %14 = vector.broadcast %cst_10 : f32 to vector<8x3x22xf32>
    %c0_11 = arith.constant 0 : index
    %c0_12 = arith.constant 0 : index
    %c0_13 = arith.constant 0 : index
    %15 = vector.load %arg9[%c0_11, %c0_12, %c0_13] : memref<8x22x22xf32, #tpu.memory_space<vmem>>, vector<8x3x22xf32>
    tpu.vector_store %arg9[%c0_11, %c0_12, %c0_13], %14 {strides = array<i32>} : memref<8x22x22xf32, #tpu.memory_space<vmem>>, vector<8x3x22xf32>,
    %c0_14 = arith.constant 0 : index
    %c19 = arith.constant 19 : index
    %c0_15 = arith.constant 0 : index
    %16 = vector.load %arg9[%c0_14, %c19, %c0_15] : memref<8x22x22xf32, #tpu.memory_space<vmem>>, vector<8x3x22xf32>
    tpu.vector_store %arg9[%c0_14, %c19, %c0_15], %14 {strides = array<i32>} : memref<8x22x22xf32, #tpu.memory_space<vmem>>, vector<8x3x22xf32>,
    %cst_16 = arith.constant 0.000000e+00 : f32
    %17 = vector.broadcast %cst_16 : f32 to vector<8x16x3xf32>
    %18 = vector.shape_cast %9 : vector<8x256xf32> to vector<8x16x16xf32>
    %19 = tpu.concatenate %17, %18, %17 in 2 : vector<8x16x3xf32>, vector<8x16x16xf32>, vector<8x16x3xf32> -> vector<8x16x22xf32>
    %c0_17 = arith.constant 0 : index
    %c3 = arith.constant 3 : index
    %c0_18 = arith.constant 0 : index
    %20 = vector.load %arg9[%c0_17, %c3, %c0_18] : memref<8x22x22xf32, #tpu.memory_space<vmem>>, vector<8x16x22xf32>
    tpu.vector_store %arg9[%c0_17, %c3, %c0_18], %19 {strides = array<i32>} : memref<8x22x22xf32, #tpu.memory_space<vmem>>, vector<8x16x22xf32>,
    %c0_19 = arith.constant 0 : index
    %c2 = arith.constant 2 : index
    %c2_20 = arith.constant 2 : index
    %21 = vector.load %arg9[%c0_19, %c2, %c2_20] : memref<8x22x22xf32, #tpu.memory_space<vmem>>, vector<8x16x16xf32>
    %c0_21 = arith.constant 0 : index
    %c2_22 = arith.constant 2 : index
    %c3_23 = arith.constant 3 : index
    %22 = vector.load %arg9[%c0_21, %c2_22, %c3_23] : memref<8x22x22xf32, #tpu.memory_space<vmem>>, vector<8x16x16xf32>
    %c0_24 = arith.constant 0 : index
    %c2_25 = arith.constant 2 : index
    %c4 = arith.constant 4 : index
    %23 = vector.load %arg9[%c0_24, %c2_25, %c4] : memref<8x22x22xf32, #tpu.memory_space<vmem>>, vector<8x16x16xf32>
    %c0_26 = arith.constant 0 : index
    %c3_27 = arith.constant 3 : index
    %c2_28 = arith.constant 2 : index
    %24 = vector.load %arg9[%c0_26, %c3_27, %c2_28] : memref<8x22x22xf32, #tpu.memory_space<vmem>>, vector<8x16x16xf32>
    %c0_29 = arith.constant 0 : index
    %c3_30 = arith.constant 3 : index
    %c3_31 = arith.constant 3 : index
    %25 = vector.load %arg9[%c0_29, %c3_30, %c3_31] : memref<8x22x22xf32, #tpu.memory_space<vmem>>, vector<8x16x16xf32>
    %c0_32 = arith.constant 0 : index
    %c3_33 = arith.constant 3 : index
    %c4_34 = arith.constant 4 : index
    %26 = vector.load %arg9[%c0_32, %c3_33, %c4_34] : memref<8x22x22xf32, #tpu.memory_space<vmem>>, vector<8x16x16xf32>
    %c0_35 = arith.constant 0 : index
    %c4_36 = arith.constant 4 : index
    %c2_37 = arith.constant 2 : index
    %27 = vector.load %arg9[%c0_35, %c4_36, %c2_37] : memref<8x22x22xf32, #tpu.memory_space<vmem>>, vector<8x16x16xf32>
    %c0_38 = arith.constant 0 : index
    %c4_39 = arith.constant 4 : index
    %c3_40 = arith.constant 3 : index
    %28 = vector.load %arg9[%c0_38, %c4_39, %c3_40] : memref<8x22x22xf32, #tpu.memory_space<vmem>>, vector<8x16x16xf32>
    %c0_41 = arith.constant 0 : index
    %c4_42 = arith.constant 4 : index
    %c4_43 = arith.constant 4 : index
    %29 = vector.load %arg9[%c0_41, %c4_42, %c4_43] : memref<8x22x22xf32, #tpu.memory_space<vmem>>, vector<8x16x16xf32>
    %30 = tpu.concatenate %21, %22, %23, %24, %25, %26, %27, %28, %29 in 0 : vector<8x16x16xf32>, vector<8x16x16xf32>, vector<8x16x16xf32>, vector<8x16x16xf32>, vector<8x16x16xf32>, vector<8x16x16xf32>, vector<8x16x16xf32>, vector<8x16x16xf32>, vector<8x16x16xf32> -> vector<72x16x16xf32>
    %31 = vector.shape_cast %30 : vector<72x16x16xf32> to vector<72x256xf32>
    %32 = arith.truncf %31 : vector<72x256xf32> to vector<72x256xbf16>
    %c0_44 = arith.constant 0 : index
    %c0_45 = arith.constant 0 : index
    %c0_46 = arith.constant 0 : index
    %33 = vector.load %arg4[%c0_44, %c0_45, %c0_46] : memref<3x8x72xbf16, #tpu.memory_space<vmem>>, vector<1x8x72xbf16>
    %34 = vector.shape_cast %33 : vector<1x8x72xbf16> to vector<8x72xbf16>
    %cst_47 = arith.constant dense<0.000000e+00> : vector<8x256xf32>
    %35 = tpu.matmul %34, %32, %cst_47 {dimension_numbers = #tpu.dot_dimension_numbers<[1], [0], [0], [1], [0, 0, 1, 1], [], []>} : vector<8x72xbf16>, vector<72x256xbf16>, vector<8x256xf32> -> vector<8x256xf32>
    %c0_48 = arith.constant 0 : index
    %c0_49 = arith.constant 0 : index
    %c0_50 = arith.constant 0 : index
    %36 = vector.load %arg5[%c0_48, %c0_49, %c0_50] : memref<3x8x1xf32, #tpu.memory_space<vmem>>, vector<1x8x1xf32>
    %37 = vector.shape_cast %36 : vector<1x8x1xf32> to vector<8x1xf32>
    %38 = vector.broadcast %37 : vector<8x1xf32> to vector<8x256xf32>
    %39 = arith.addf %35, %38 : vector<8x256xf32>
    %cst_51 = arith.constant 0.000000e+00 : f32
    %40 = vector.broadcast %cst_51 : f32 to vector<8x256xf32>
    %41 = arith.maximumf %39, %40 : vector<8x256xf32>
    %c1 = arith.constant 1 : index
    %c0_52 = arith.constant 0 : index
    %c0_53 = arith.constant 0 : index
    %42 = vector.load %arg6[%c1, %c0_52, %c0_53] : memref<4x8x1xf32, #tpu.memory_space<vmem>>, vector<1x8x1xf32>
    %43 = vector.shape_cast %42 : vector<1x8x1xf32> to vector<8x1xf32>
    %44 = vector.broadcast %43 : vector<8x1xf32> to vector<8x256xf32>
    %45 = arith.mulf %41, %44 : vector<8x256xf32>
    %46 = arith.addf %13, %45 : vector<8x256xf32>
    %c0_54 = arith.constant 0 : index
    %c1_55 = arith.constant 1 : index
    %c1_56 = arith.constant 1 : index
    %47 = vector.load %arg9[%c0_54, %c1_55, %c1_56] : memref<8x22x22xf32, #tpu.memory_space<vmem>>, vector<8x16x16xf32>
    %c0_57 = arith.constant 0 : index
    %c1_58 = arith.constant 1 : index
    %c3_59 = arith.constant 3 : index
    %48 = vector.load %arg9[%c0_57, %c1_58, %c3_59] : memref<8x22x22xf32, #tpu.memory_space<vmem>>, vector<8x16x16xf32>
    %c0_60 = arith.constant 0 : index
    %c1_61 = arith.constant 1 : index
    %c5 = arith.constant 5 : index
    %49 = vector.load %arg9[%c0_60, %c1_61, %c5] : memref<8x22x22xf32, #tpu.memory_space<vmem>>, vector<8x16x16xf32>
    %c0_62 = arith.constant 0 : index
    %c3_63 = arith.constant 3 : index
    %c1_64 = arith.constant 1 : index
    %50 = vector.load %arg9[%c0_62, %c3_63, %c1_64] : memref<8x22x22xf32, #tpu.memory_space<vmem>>, vector<8x16x16xf32>
    %c0_65 = arith.constant 0 : index
    %c3_66 = arith.constant 3 : index
    %c3_67 = arith.constant 3 : index
    %51 = vector.load %arg9[%c0_65, %c3_66, %c3_67] : memref<8x22x22xf32, #tpu.memory_space<vmem>>, vector<8x16x16xf32>
    %c0_68 = arith.constant 0 : index
    %c3_69 = arith.constant 3 : index
    %c5_70 = arith.constant 5 : index
    %52 = vector.load %arg9[%c0_68, %c3_69, %c5_70] : memref<8x22x22xf32, #tpu.memory_space<vmem>>, vector<8x16x16xf32>
    %c0_71 = arith.constant 0 : index
    %c5_72 = arith.constant 5 : index
    %c1_73 = arith.constant 1 : index
    %53 = vector.load %arg9[%c0_71, %c5_72, %c1_73] : memref<8x22x22xf32, #tpu.memory_space<vmem>>, vector<8x16x16xf32>
    %c0_74 = arith.constant 0 : index
    %c5_75 = arith.constant 5 : index
    %c3_76 = arith.constant 3 : index
    %54 = vector.load %arg9[%c0_74, %c5_75, %c3_76] : memref<8x22x22xf32, #tpu.memory_space<vmem>>, vector<8x16x16xf32>
    %c0_77 = arith.constant 0 : index
    %c5_78 = arith.constant 5 : index
    %c5_79 = arith.constant 5 : index
    %55 = vector.load %arg9[%c0_77, %c5_78, %c5_79] : memref<8x22x22xf32, #tpu.memory_space<vmem>>, vector<8x16x16xf32>
    %56 = tpu.concatenate %47, %48, %49, %50, %51, %52, %53, %54, %55 in 0 : vector<8x16x16xf32>, vector<8x16x16xf32>, vector<8x16x16xf32>, vector<8x16x16xf32>, vector<8x16x16xf32>, vector<8x16x16xf32>, vector<8x16x16xf32>, vector<8x16x16xf32>, vector<8x16x16xf32> -> vector<72x16x16xf32>
    %57 = vector.shape_cast %56 : vector<72x16x16xf32> to vector<72x256xf32>
    %58 = arith.truncf %57 : vector<72x256xf32> to vector<72x256xbf16>
    %c1_80 = arith.constant 1 : index
    %c0_81 = arith.constant 0 : index
    %c0_82 = arith.constant 0 : index
    %59 = vector.load %arg4[%c1_80, %c0_81, %c0_82] : memref<3x8x72xbf16, #tpu.memory_space<vmem>>, vector<1x8x72xbf16>
    %60 = vector.shape_cast %59 : vector<1x8x72xbf16> to vector<8x72xbf16>
    %cst_83 = arith.constant dense<0.000000e+00> : vector<8x256xf32>
    %61 = tpu.matmul %60, %58, %cst_83 {dimension_numbers = #tpu.dot_dimension_numbers<[1], [0], [0], [1], [0, 0, 1, 1], [], []>} : vector<8x72xbf16>, vector<72x256xbf16>, vector<8x256xf32> -> vector<8x256xf32>
    %c1_84 = arith.constant 1 : index
    %c0_85 = arith.constant 0 : index
    %c0_86 = arith.constant 0 : index
    %62 = vector.load %arg5[%c1_84, %c0_85, %c0_86] : memref<3x8x1xf32, #tpu.memory_space<vmem>>, vector<1x8x1xf32>
    %63 = vector.shape_cast %62 : vector<1x8x1xf32> to vector<8x1xf32>
    %64 = vector.broadcast %63 : vector<8x1xf32> to vector<8x256xf32>
    %65 = arith.addf %61, %64 : vector<8x256xf32>
    %cst_87 = arith.constant 0.000000e+00 : f32
    %66 = vector.broadcast %cst_87 : f32 to vector<8x256xf32>
    %67 = arith.maximumf %65, %66 : vector<8x256xf32>
    %c2_88 = arith.constant 2 : index
    %c0_89 = arith.constant 0 : index
    %c0_90 = arith.constant 0 : index
    %68 = vector.load %arg6[%c2_88, %c0_89, %c0_90] : memref<4x8x1xf32, #tpu.memory_space<vmem>>, vector<1x8x1xf32>
    %69 = vector.shape_cast %68 : vector<1x8x1xf32> to vector<8x1xf32>
    %70 = vector.broadcast %69 : vector<8x1xf32> to vector<8x256xf32>
    %71 = arith.mulf %67, %70 : vector<8x256xf32>
    %72 = arith.addf %46, %71 : vector<8x256xf32>
    %c0_91 = arith.constant 0 : index
    %c0_92 = arith.constant 0 : index
    %c0_93 = arith.constant 0 : index
    %73 = vector.load %arg9[%c0_91, %c0_92, %c0_93] : memref<8x22x22xf32, #tpu.memory_space<vmem>>, vector<8x16x16xf32>
    %c0_94 = arith.constant 0 : index
    %c0_95 = arith.constant 0 : index
    %c3_96 = arith.constant 3 : index
    %74 = vector.load %arg9[%c0_94, %c0_95, %c3_96] : memref<8x22x22xf32, #tpu.memory_space<vmem>>, vector<8x16x16xf32>
    %c0_97 = arith.constant 0 : index
    %c0_98 = arith.constant 0 : index
    %c6 = arith.constant 6 : index
    %75 = vector.load %arg9[%c0_97, %c0_98, %c6] : memref<8x22x22xf32, #tpu.memory_space<vmem>>, vector<8x16x16xf32>
    %c0_99 = arith.constant 0 : index
    %c3_100 = arith.constant 3 : index
    %c0_101 = arith.constant 0 : index
    %76 = vector.load %arg9[%c0_99, %c3_100, %c0_101] : memref<8x22x22xf32, #tpu.memory_space<vmem>>, vector<8x16x16xf32>
    %c0_102 = arith.constant 0 : index
    %c3_103 = arith.constant 3 : index
    %c3_104 = arith.constant 3 : index
    %77 = vector.load %arg9[%c0_102, %c3_103, %c3_104] : memref<8x22x22xf32, #tpu.memory_space<vmem>>, vector<8x16x16xf32>
    %c0_105 = arith.constant 0 : index
    %c3_106 = arith.constant 3 : index
    %c6_107 = arith.constant 6 : index
    %78 = vector.load %arg9[%c0_105, %c3_106, %c6_107] : memref<8x22x22xf32, #tpu.memory_space<vmem>>, vector<8x16x16xf32>
    %c0_108 = arith.constant 0 : index
    %c6_109 = arith.constant 6 : index
    %c0_110 = arith.constant 0 : index
    %79 = vector.load %arg9[%c0_108, %c6_109, %c0_110] : memref<8x22x22xf32, #tpu.memory_space<vmem>>, vector<8x16x16xf32>
    %c0_111 = arith.constant 0 : index
    %c6_112 = arith.constant 6 : index
    %c3_113 = arith.constant 3 : index
    %80 = vector.load %arg9[%c0_111, %c6_112, %c3_113] : memref<8x22x22xf32, #tpu.memory_space<vmem>>, vector<8x16x16xf32>
    %c0_114 = arith.constant 0 : index
    %c6_115 = arith.constant 6 : index
    %c6_116 = arith.constant 6 : index
    %81 = vector.load %arg9[%c0_114, %c6_115, %c6_116] : memref<8x22x22xf32, #tpu.memory_space<vmem>>, vector<8x16x16xf32>
    %82 = tpu.concatenate %73, %74, %75, %76, %77, %78, %79, %80, %81 in 0 : vector<8x16x16xf32>, vector<8x16x16xf32>, vector<8x16x16xf32>, vector<8x16x16xf32>, vector<8x16x16xf32>, vector<8x16x16xf32>, vector<8x16x16xf32>, vector<8x16x16xf32>, vector<8x16x16xf32> -> vector<72x16x16xf32>
    %83 = vector.shape_cast %82 : vector<72x16x16xf32> to vector<72x256xf32>
    %84 = arith.truncf %83 : vector<72x256xf32> to vector<72x256xbf16>
    %c2_117 = arith.constant 2 : index
    %c0_118 = arith.constant 0 : index
    %c0_119 = arith.constant 0 : index
    %85 = vector.load %arg4[%c2_117, %c0_118, %c0_119] : memref<3x8x72xbf16, #tpu.memory_space<vmem>>, vector<1x8x72xbf16>
    %86 = vector.shape_cast %85 : vector<1x8x72xbf16> to vector<8x72xbf16>
    %cst_120 = arith.constant dense<0.000000e+00> : vector<8x256xf32>
    %87 = tpu.matmul %86, %84, %cst_120 {dimension_numbers = #tpu.dot_dimension_numbers<[1], [0], [0], [1], [0, 0, 1, 1], [], []>} : vector<8x72xbf16>, vector<72x256xbf16>, vector<8x256xf32> -> vector<8x256xf32>
    %c2_121 = arith.constant 2 : index
    %c0_122 = arith.constant 0 : index
    %c0_123 = arith.constant 0 : index
    %88 = vector.load %arg5[%c2_121, %c0_122, %c0_123] : memref<3x8x1xf32, #tpu.memory_space<vmem>>, vector<1x8x1xf32>
    %89 = vector.shape_cast %88 : vector<1x8x1xf32> to vector<8x1xf32>
    %90 = vector.broadcast %89 : vector<8x1xf32> to vector<8x256xf32>
    %91 = arith.addf %87, %90 : vector<8x256xf32>
    %cst_124 = arith.constant 0.000000e+00 : f32
    %92 = vector.broadcast %cst_124 : f32 to vector<8x256xf32>
    %93 = arith.maximumf %91, %92 : vector<8x256xf32>
    %c3_125 = arith.constant 3 : index
    %c0_126 = arith.constant 0 : index
    %c0_127 = arith.constant 0 : index
    %94 = vector.load %arg6[%c3_125, %c0_126, %c0_127] : memref<4x8x1xf32, #tpu.memory_space<vmem>>, vector<1x8x1xf32>
    %95 = vector.shape_cast %94 : vector<1x8x1xf32> to vector<8x1xf32>
    %96 = vector.broadcast %95 : vector<8x1xf32> to vector<8x256xf32>
    %97 = arith.mulf %93, %96 : vector<8x256xf32>
    %98 = arith.addf %72, %97 : vector<8x256xf32>
    %cst_128 = arith.constant dense<0.000000e+00> : vector<256xf32>
    %99 = vector.multi_reduction <add>, %98, %cst_128 [0] : vector<8x256xf32> to vector<256xf32>
    %100 = vector.shape_cast %99 : vector<256xf32> to vector<1x256xf32>
    %c0_129 = arith.constant 0 : index
    %c0_130 = arith.constant 0 : index
    %101 = vector.load %arg7[%c0_129, %c0_130] : memref<1x1xf32, #tpu.memory_space<vmem>>, vector<1x1xf32>
    %102 = vector.broadcast %101 : vector<1x1xf32> to vector<1x256xf32>
    %103 = arith.addf %100, %102 : vector<1x256xf32>
    %cst_131 = arith.constant 0.000000e+00 : f32
    %104 = vector.broadcast %cst_131 : f32 to vector<1x256xf32>
    %105 = arith.maximumf %103, %104 : vector<1x256xf32>
    %c0_132 = arith.constant 0 : index
    %c0_133 = arith.constant 0 : index
    %c0_134 = arith.constant 0 : index
    %106 = vector.load %arg8[%c0_132, %c0_133, %c0_134] : memref<1x1x256xf32, #tpu.memory_space<vmem>>, vector<1x1x256xf32>
    %107 = vector.shape_cast %106 : vector<1x1x256xf32> to vector<1x256xf32>
    %108 = vector.shape_cast %105 : vector<1x256xf32> to vector<1x1x256xf32>
    tpu.vector_store %arg8[%c0_132, %c0_133, %c0_134], %108 {strides = array<i32>} : memref<1x1x256xf32, #tpu.memory_space<vmem>>, vector<1x1x256xf32>,
    return
  }
  func.func @transform_0(%arg0: i32) -> (i32, i32, i32) {
    %c0_i32 = arith.constant 0 : i32
    %c0_i32_0 = arith.constant 0 : i32
    %c0_i32_1 = arith.constant 0 : i32
    return %arg0, %c0_i32, %c0_i32_0 : i32, i32, i32
  }
  func.func @transform_1(%arg0: i32) -> (i32, i32) {
    %c0_i32 = arith.constant 0 : i32
    %c0_i32_0 = arith.constant 0 : i32
    %c0_i32_1 = arith.constant 0 : i32
    return %c0_i32, %c0_i32_0 : i32, i32
  }
  func.func @transform_2(%arg0: i32) -> (i32, i32) {
    %c0_i32 = arith.constant 0 : i32
    %c0_i32_0 = arith.constant 0 : i32
    %c0_i32_1 = arith.constant 0 : i32
    return %c0_i32, %c0_i32_0 : i32, i32
  }
  func.func @transform_3(%arg0: i32) -> (i32, i32, i32) {
    %c0_i32 = arith.constant 0 : i32
    %c0_i32_0 = arith.constant 0 : i32
    %c0_i32_1 = arith.constant 0 : i32
    %c0_i32_2 = arith.constant 0 : i32
    return %c0_i32, %c0_i32_0, %c0_i32_1 : i32, i32, i32
  }
  func.func @transform_4(%arg0: i32) -> (i32, i32, i32) {
    %c0_i32 = arith.constant 0 : i32
    %c0_i32_0 = arith.constant 0 : i32
    %c0_i32_1 = arith.constant 0 : i32
    %c0_i32_2 = arith.constant 0 : i32
    return %c0_i32, %c0_i32_0, %c0_i32_1 : i32, i32, i32
  }
  func.func @transform_5(%arg0: i32) -> (i32, i32, i32) {
    %c0_i32 = arith.constant 0 : i32
    %c0_i32_0 = arith.constant 0 : i32
    %c0_i32_1 = arith.constant 0 : i32
    %c0_i32_2 = arith.constant 0 : i32
    return %c0_i32, %c0_i32_0, %c0_i32_1 : i32, i32, i32
  }
  func.func @transform_6(%arg0: i32) -> (i32, i32) {
    %c0_i32 = arith.constant 0 : i32
    %c0_i32_0 = arith.constant 0 : i32
    %c0_i32_1 = arith.constant 0 : i32
    return %c0_i32, %c0_i32_0 : i32, i32
  }
  func.func @transform_7(%arg0: i32) -> (i32, i32, i32) {
    %c0_i32 = arith.constant 0 : i32
    %c0_i32_0 = arith.constant 0 : i32
    %c0_i32_1 = arith.constant 0 : i32
    return %arg0, %c0_i32, %c0_i32_0 : i32, i32, i32
  }
}

</mosaic_0001>

<llo_original>
// kernel: tpu_custom_call.1
$region0: #{tpu_custom_call.1}
  #allocation0 [shape = 'u32[]', space=smem, size = 0x4, offset = 0x4, fixed_abs, tag = 'smem constant byte address 0x4 - core index']
  #allocation1 [shape = 'u32[144,128]{1,0:T(1,128)}', space=vmem, size = 0x12000, scoped, tag = 'internal scratch']
  #allocation2 [shape = 'f32[8,22,22]{2,1,0:T(8,128)}', space=vmem, size = 0x18000, scoped, tag = 'scratch operand']
  #allocation3 [shape = 'f32[1,1]{1,0:T(1,128)S(1)}', space=vmem, size = 0x200, scoped, tag = 'scoped memory for tpu_custom_call.1']
  %s0 = inlined_call_operand.hbm [shape: f32[2,32,256], index: 0, kind: input, shape index: {}]
  %s1 = inlined_call_operand.vmem [shape: bf16[8,32], index: 1, kind: input, shape index: {}]
  %s2 = inlined_call_operand.vmem [shape: f32[8,1], index: 2, kind: input, shape index: {}]
  %s3 = inlined_call_operand.vmem [shape: bf16[3,8,72], index: 3, kind: input, shape index: {}]
  %s4 = inlined_call_operand.vmem [shape: f32[3,8,1], index: 4, kind: input, shape index: {}]
  %s5 = inlined_call_operand.vmem [shape: f32[4,8,1], index: 5, kind: input, shape index: {}]
  %s6 = inlined_call_operand.<no memory space> [shape: f32[1,1], index: 6, kind: input, shape index: {}]
  %s7 = inlined_call_operand.hbm [shape: f32[2,1,256], index: 7, kind: output, shape index: {}]
  %s8 = sld [smem:[#allocation0]]
  $region65: #{tpu_custom_call.1} parent=0
    _
  %s10 = ssub.s32 1, %s8
  %s11 = scalar_select 0, %s10, %s8
  %v12 = vstv %s6
  %13 = vst [vmem:[#allocation3] sm:$0x1] %v12
  $region1: #{tpu_custom_call.1} parent=0
    #allocation4 [shape = 'u8[65536]{0}', space=vmem, size = 0x10000, scoped, tag = 'input window, operand 0']
    #allocation5 [shape = 's32[2]{0}', space=sflag, size = 0x8, scoped, tag = 'scoped memory for tpu_custom_call.1']
    #allocation6 [shape = 's32[2]{0}', space=sflag, size = 0x8, scoped, tag = 'scoped memory for tpu_custom_call.1']
    #allocation7 [shape = 'u8[2048]{0}', space=vmem, size = 0x800, scoped, tag = 'output window, operand 0']
    %14 = vsyncpa [#allocation5], 0
    %s15 = scalar_lea.sflag [#allocation5], 1
    %16 = vsyncpa %s15, 0
    %17 = vsyncpa [#allocation6], 0
    %s18 = scalar_lea.sflag [#allocation6], 1
    %19 = vsyncpa %s18, 0
    loop: start=0, step=1, limit=4
    $region2: #{tpu_custom_call.1} parent=1 // loop_pre_header
      _
    $region3: #{tpu_custom_call.1} parent=1 // loop_header
      %s21 = sphi 0, %s25
      %p22 = scmp.ge.s32.totalorder %s21, 4
      %s31 = sphi 0, %s33
      %s34 = sphi 0, %s31
      %s35 = sphi 0, %s34
      %s51 = sphi 0, %s35
      %s55 = sphi 0, %s55
      %s57 = sphi 0, %s55
      %s58 = sphi 0, %s57
      %s72 = sphi 0, %s58
      %s76 = sphi 0, %s76
      %s78 = sphi 0, %s76
      %s79 = sphi 0, %s78
      %s93 = sphi 0, %s79
      %s97 = sphi 0, %s97
      %s99 = sphi 0, %s97
      %s100 = sphi 0, %s99
      %s114 = sphi 0, %s100
      %s118 = sphi 0, %s118
      %s120 = sphi 0, %s118
      %s121 = sphi 0, %s120
      %s135 = sphi 0, %s121
      %s139 = sphi 0, %s139
      %s141 = sphi 0, %s139
      %s142 = sphi 0, %s141
      %s156 = sphi 0, %s142
      %s160 = sphi 0, %s160
      %s162 = sphi 0, %s160
      %s163 = sphi 0, %s162
      %s177 = sphi 0, %s163
      %s183 = sphi 0, %s185
      %s186 = sphi 0, %s183
      %s187 = sphi 0, %s186
      %s203 = sphi 0, %s187
    $region4: #{tpu_custom_call.1} parent=1 // loop_header_branch
      %24 = sbr.rel (%p22) target = $region8
    $region5: #{tpu_custom_call.1} parent=1 // loop_body
      %s26 = ssub.s32 %s21, 1
      %s27 = ssub.s32 %s21, 2
      %s28 = sadd.s32 %s21, 1
      %s29 = ssub.s32 %s21, %s28
      %p30 = scmp.eq.s32.totalorder %s29, 0
      %s32 = sadd.s32 %s31, 1
      %s33 = scalar_select %p30, %s31, %s32
      %p36 = pneg %p30
      %p37 = scmp.eq.s32.totalorder %s21, 1
      %p38 = por %p36, %p37
      %p39 = scmp.ne.s32.totalorder %s31, %s34
      %p40 = scmp.eq.s32.totalorder %s21, 0
      %p41 = por %p39, %p40
      %p42 = scmp.ne.s32.totalorder %s31, %s34
      %p43 = scmp.eq.s32.totalorder %s26, 1
      %p44 = por %p42, %p43
      %p45 = scmp.ne.s32.totalorder %s34, %s35
      %p46 = scmp.eq.s32.totalorder %s26, 0
      %p47 = por %p45, %p46
      %p48 = scmp.ne.s32.totalorder %s34, %s35
      %p49 = scmp.eq.s32.totalorder %s27, 1
      %p50 = por %p48, %p49
      %p52 = scmp.ne.s32.totalorder %s35, %s51
      %p53 = scmp.eq.s32.totalorder %s27, 0
      %p54 = por %p52, %p53
      %s56 = sadd.s32 %s55, 1
      %p59 = scmp.eq.s32.totalorder %s21, 1
      %p60 = scmp.ne.s32.totalorder %s55, %s57
      %p61 = scmp.eq.s32.totalorder %s21, 0
      %p62 = por %p60, %p61
      %p63 = scmp.ne.s32.totalorder %s55, %s57
      %p64 = scmp.eq.s32.totalorder %s26, 1
      %p65 = por %p63, %p64
      %p66 = scmp.ne.s32.totalorder %s57, %s58
      %p67 = scmp.eq.s32.totalorder %s26, 0
      %p68 = por %p66, %p67
      %p69 = scmp.ne.s32.totalorder %s57, %s58
      %p70 = scmp.eq.s32.totalorder %s27, 1
      %p71 = por %p69, %p70
      %p73 = scmp.ne.s32.totalorder %s58, %s72
      %p74 = scmp.eq.s32.totalorder %s27, 0
      %p75 = por %p73, %p74
      %s77 = sadd.s32 %s76, 1
      %p80 = scmp.eq.s32.totalorder %s21, 1
      %p81 = scmp.ne.s32.totalorder %s76, %s78
      %p82 = scmp.eq.s32.totalorder %s21, 0
      %p83 = por %p81, %p82
      %p84 = scmp.ne.s32.totalorder %s76, %s78
      %p85 = scmp.eq.s32.totalorder %s26, 1
      %p86 = por %p84, %p85
      %p87 = scmp.ne.s32.totalorder %s78, %s79
      %p88 = scmp.eq.s32.totalorder %s26, 0
      %p89 = por %p87, %p88
      %p90 = scmp.ne.s32.totalorder %s78, %s79
      %p91 = scmp.eq.s32.totalorder %s27, 1
      %p92 = por %p90, %p91
      %p94 = scmp.ne.s32.totalorder %s79, %s93
      %p95 = scmp.eq.s32.totalorder %s27, 0
      %p96 = por %p94, %p95
      %s98 = sadd.s32 %s97, 1
      %p101 = scmp.eq.s32.totalorder %s21, 1
      %p102 = scmp.ne.s32.totalorder %s97, %s99
      %p103 = scmp.eq.s32.totalorder %s21, 0
      %p104 = por %p102, %p103
      %p105 = scmp.ne.s32.totalorder %s97, %s99
      %p106 = scmp.eq.s32.totalorder %s26, 1
      %p107 = por %p105, %p106
      %p108 = scmp.ne.s32.totalorder %s99, %s100
      %p109 = scmp.eq.s32.totalorder %s26, 0
      %p110 = por %p108, %p109
      %p111 = scmp.ne.s32.totalorder %s99, %s100
      %p112 = scmp.eq.s32.totalorder %s27, 1
      %p113 = por %p111, %p112
      %p115 = scmp.ne.s32.totalorder %s100, %s114
      %p116 = scmp.eq.s32.totalorder %s27, 0
      %p117 = por %p115, %p116
      %s119 = sadd.s32 %s118, 1
      %p122 = scmp.eq.s32.totalorder %s21, 1
      %p123 = scmp.ne.s32.totalorder %s118, %s120
      %p124 = scmp.eq.s32.totalorder %s21, 0
      %p125 = por %p123, %p124
      %p126 = scmp.ne.s32.totalorder %s118, %s120
      %p127 = scmp.eq.s32.totalorder %s26, 1
      %p128 = por %p126, %p127
      %p129 = scmp.ne.s32.totalorder %s120, %s121
      %p130 = scmp.eq.s32.totalorder %s26, 0
      %p131 = por %p129, %p130
      %p132 = scmp.ne.s32.totalorder %s120, %s121
      %p133 = scmp.eq.s32.totalorder %s27, 1
      %p134 = por %p132, %p133
      %p136 = scmp.ne.s32.totalorder %s121, %s135
      %p137 = scmp.eq.s32.totalorder %s27, 0
      %p138 = por %p136, %p137
      %s140 = sadd.s32 %s139, 1
      %p143 = scmp.eq.s32.totalorder %s21, 1
      %p144 = scmp.ne.s32.totalorder %s139, %s141
      %p145 = scmp.eq.s32.totalorder %s21, 0
      %p146 = por %p144, %p145
      %p147 = scmp.ne.s32.totalorder %s139, %s141
      %p148 = scmp.eq.s32.totalorder %s26, 1
      %p149 = por %p147, %p148
      %p150 = scmp.ne.s32.totalorder %s141, %s142
      %p151 = scmp.eq.s32.totalorder %s26, 0
      %p152 = por %p150, %p151
      %p153 = scmp.ne.s32.totalorder %s141, %s142
      %p154 = scmp.eq.s32.totalorder %s27, 1
      %p155 = por %p153, %p154
      %p157 = scmp.ne.s32.totalorder %s142, %s156
      %p158 = scmp.eq.s32.totalorder %s27, 0
      %p159 = por %p157, %p158
      %s161 = sadd.s32 %s160, 1
      %p164 = scmp.eq.s32.totalorder %s21, 1
      %p165 = scmp.ne.s32.totalorder %s160, %s162
      %p166 = scmp.eq.s32.totalorder %s21, 0
      %p167 = por %p165, %p166
      %p168 = scmp.ne.s32.totalorder %s160, %s162
      %p169 = scmp.eq.s32.totalorder %s26, 1
      %p170 = por %p168, %p169
      %p171 = scmp.ne.s32.totalorder %s162, %s163
      %p172 = scmp.eq.s32.totalorder %s26, 0
      %p173 = por %p171, %p172
      %p174 = scmp.ne.s32.totalorder %s162, %s163
      %p175 = scmp.eq.s32.totalorder %s27, 1
      %p176 = por %p174, %p175
      %p178 = scmp.ne.s32.totalorder %s163, %s177
      %p179 = scmp.eq.s32.totalorder %s27, 0
      %p180 = por %p178, %p179
      %s181 = ssub.s32 %s21, %s28
      %p182 = scmp.eq.s32.totalorder %s181, 0
      %s184 = sadd.s32 %s183, 1
      %s185 = scalar_select %p182, %s183, %s184
      %p188 = pneg %p182
      %p189 = scmp.eq.s32.totalorder %s21, 1
      %p190 = por %p188, %p189
      %p191 = scmp.ne.s32.totalorder %s183, %s186
      %p192 = scmp.eq.s32.totalorder %s21, 0
      %p193 = por %p191, %p192
      %p194 = scmp.ne.s32.totalorder %s183, %s186
      %p195 = scmp.eq.s32.totalorder %s26, 1
      %p196 = por %p194, %p195
      %p197 = scmp.ne.s32.totalorder %s186, %s187
      %p198 = scmp.eq.s32.totalorder %s26, 0
      %p199 = por %p197, %p198
      %p200 = scmp.ne.s32.totalorder %s186, %s187
      %p201 = scmp.eq.s32.totalorder %s27, 1
      %p202 = por %p200, %p201
      %p204 = scmp.ne.s32.totalorder %s187, %s203
      %p205 = scmp.eq.s32.totalorder %s27, 0
      %p206 = por %p204, %p205
      %p207 = scmp.le.s32.totalorder 1, %s21
      %p208 = scmp.lt.s32.totalorder %s21, 3
      %p209 = pnand %p207, %p208
      %p210 = pneg %p209
      // Predicated region
      $region9: #{tpu_custom_call.1} parent=5 // pred_check
        _
      $region10: #{tpu_custom_call.1} parent=5 // pred_check_branch
        %212 = sbr.rel (%p209) target = $region12
      $region11: #{tpu_custom_call.1} parent=5 // pred_region
        %s213 = ssub.s32 %s21, 1
        // Predicated region
        $region13: #{tpu_custom_call.1} parent=11 // pred_check
          %p214 = pneg %p68
        $region14: #{tpu_custom_call.1} parent=11 // pred_check_branch
          %216 = sbr.rel (%p214) target = $region16
        $region15: #{tpu_custom_call.1} parent=11 // pred_region
          _
        $region16: #{tpu_custom_call.1} parent=11 // pred_fallthru
          _
        // Predicated region
        $region17: #{tpu_custom_call.1} parent=11 // pred_check
          %p217 = pneg %p89
        $region18: #{tpu_custom_call.1} parent=11 // pred_check_branch
          %219 = sbr.rel (%p217) target = $region20
        $region19: #{tpu_custom_call.1} parent=11 // pred_region
          _
        $region20: #{tpu_custom_call.1} parent=11 // pred_fallthru
          _
        // Predicated region
        $region21: #{tpu_custom_call.1} parent=11 // pred_check
          %p220 = pneg %p110
        $region22: #{tpu_custom_call.1} parent=11 // pred_check_branch
          %222 = sbr.rel (%p220) target = $region24
        $region23: #{tpu_custom_call.1} parent=11 // pred_region
          _
        $region24: #{tpu_custom_call.1} parent=11 // pred_fallthru
          _
        // Predicated region
        $region25: #{tpu_custom_call.1} parent=11 // pred_check
          %p223 = pneg %p131
        $region26: #{tpu_custom_call.1} parent=11 // pred_check_branch
          %225 = sbr.rel (%p223) target = $region28
        $region27: #{tpu_custom_call.1} parent=11 // pred_region
          _
        $region28: #{tpu_custom_call.1} parent=11 // pred_fallthru
          _
        // Predicated region
        $region29: #{tpu_custom_call.1} parent=11 // pred_check
          %p226 = pneg %p152
        $region30: #{tpu_custom_call.1} parent=11 // pred_check_branch
          %228 = sbr.rel (%p226) target = $region32
        $region31: #{tpu_custom_call.1} parent=11 // pred_region
          _
        $region32: #{tpu_custom_call.1} parent=11 // pred_fallthru
          _
        // Predicated region
        $region33: #{tpu_custom_call.1} parent=11 // pred_check
          %p229 = pneg %p173
        $region34: #{tpu_custom_call.1} parent=11 // pred_check_branch
          %231 = sbr.rel (%p229) target = $region36
        $region35: #{tpu_custom_call.1} parent=11 // pred_region
          _
        $region36: #{tpu_custom_call.1} parent=11 // pred_fallthru
          _
      $region12: #{tpu_custom_call.1} parent=5 // pred_fallthru
        _
      %p232 = scmp.lt.s32.totalorder %s21, 2
      // Predicated region
      $region37: #{tpu_custom_call.1} parent=5 // pred_check
        %p233 = pneg %p232
      $region38: #{tpu_custom_call.1} parent=5 // pred_check_branch
        %235 = sbr.rel (%p233) target = $region40
      $region39: #{tpu_custom_call.1} parent=5 // pred_region
        // Predicated region
        $region41: #{tpu_custom_call.1} parent=39 // pred_check
          %p236 = pneg %p41
        $region42: #{tpu_custom_call.1} parent=39 // pred_check_branch
          %238 = sbr.rel (%p236) target = $region44
        $region43: #{tpu_custom_call.1} parent=39 // pred_region
          %s239 = sand.u32 %s31, 1
          %s240 = scalar_lea.sflag [#allocation5], %s239
          %s241 = sand.u32 %s31, 1
          %s242 = smul.addr %s241, 64
          %s243 = scalar_lea.vmem [#allocation4], %s242
          %s245 = ssub.s32 1024, 1024
          %246 = vsyncadd %s240, %s245
          %s247 = smul.addr %s21, 8
          %s248 = smul.addr %s247, 128
          %s249 = scalar_lea.hbm %s0, %s248
          %s250 = sshll.u32 %s243, 4
          %s251 = int_to_ptr.vmem [resolvable:$true] %s250
          %256 = dma.hbm_to_vmem [thread:$0]  %s249, 1024, %s251, %s240, 256, 256, 16
        $region44: #{tpu_custom_call.1} parent=39 // pred_fallthru
          _
      $region40: #{tpu_custom_call.1} parent=5 // pred_fallthru
        _
      %p257 = scmp.le.s32.totalorder 1, %s21
      %p258 = scmp.lt.s32.totalorder %s21, 3
      %p259 = pnand %p257, %p258
      %p260 = pneg %p259
      // Predicated region
      $region45: #{tpu_custom_call.1} parent=5 // pred_check
        _
      $region46: #{tpu_custom_call.1} parent=5 // pred_check_branch
        %262 = sbr.rel (%p259) target = $region48
      $region47: #{tpu_custom_call.1} parent=5 // pred_region
        %s263 = ssub.s32 %s21, 1
        %s264 = sand.u32 %s34, 1
        %s265 = scalar_lea.sflag [#allocation5], %s264
        %s266 = sand.u32 %s34, 1
        %s267 = smul.addr %s266, 64
        %s268 = scalar_lea.vmem [#allocation4], %s267
        // Predicated region
        $region49: #{tpu_custom_call.1} parent=47 // pred_check
          %p269 = pneg %p47
        $region50: #{tpu_custom_call.1} parent=47 // pred_check_branch
          %271 = sbr.rel (%p269) target = $region52
        $region51: #{tpu_custom_call.1} parent=47 // pred_region
          %272 = dma.done %s265, 1024
        $region52: #{tpu_custom_call.1} parent=47 // pred_fallthru
          _
        %s273 = sand.u32 %s34, 1
        %s274 = scalar_lea.sflag [#allocation5], %s273
        %s275 = sand.u32 %s34, 1
        %s276 = smul.addr %s275, 64
        %s277 = scalar_lea.vmem [#allocation4], %s276
        %p278 = pneg %p47
        %p279 = pneg %p44
        %p280 = pneg %p68
        %p281 = pneg %p65
        %p282 = pneg %p89
        %p283 = pneg %p86
        %p284 = pneg %p110
        %p285 = pneg %p107
        %p286 = pneg %p131
        %p287 = pneg %p128
        %p288 = pneg %p152
        %p289 = pneg %p149
        %p290 = pneg %p173
        %p291 = pneg %p170
        %p292 = pneg %p199
        %p293 = pneg %p196
        %s294 = sand.u32 %s186, 1
        %s295 = scalar_lea.sflag [#allocation6], %s294
        %s296 = sand.u32 %s186, 1
        %s297 = smul.addr %s296, 2
        %s298 = scalar_lea.vmem [#allocation7], %s297
        %v300 = vld [vmem:[%s268] sm:$0xff]
        %v301 = vld [vmem:[%s268 + $0x8] sm:$0xff]
        %v302 = vld [vmem:[%s268 + $0x10] sm:$0xff]
        %v303 = vld [vmem:[%s268 + $0x18] sm:$0xff]
        %v304 = vld [vmem:[%s268 + $0x20] sm:$0xff]
        %v305 = vld [vmem:[%s268 + $0x28] sm:$0xff]
        %v306 = vld [vmem:[%s268 + $0x30] sm:$0xff]
        %v307 = vld [vmem:[%s268 + $0x38] sm:$0xff]
        %v308 = vpack.c.bf16 %v302, %v300
        %v309 = vpack.c.bf16 %v303, %v301
        %v310 = vpack.c.bf16 %v306, %v304
        %v311 = vpack.c.bf16 %v307, %v305
        %v312 = vld [vmem:[%s1] sm:$0xf]
        %v313 = vld [vmem:[%s2] sm:$0xff]
        %315 = vset.pattern.permute.xlu0 0
        %316 = vperm.xlu0 %315, %v313
        %v317 = vpop.permute.xlu0 %316
        %vm319 = vcmask 261120
        %v321 = vsel %vm319, %v312, 0
        %323 = vmatprep.subr.bf16.mxu0 %v309
        %324 = vmatpush1.bf16.msra.mxu0 %v308
        %325 = vmatprep.subr.bf16.mxu0 %v311
        %326 = vmatpush1.bf16.msra.mxu0 %v310
        %327 = vmatprep.subr.bf16.mxu0 0
        %328 = vmatpush1.bf16.msra.mxu0 0
        %329 = vmatprep.subr.bf16.mxu0 0
        %330 = vmatpush1.bf16.msra.mxu0 0
        %331 = vmatprep.subr.bf16.mxu0 0
        %332 = vmatpush1.bf16.msra.mxu0 0
        %333 = vmatprep.subr.bf16.mxu0 0
        %334 = vmatpush1.bf16.msra.mxu0 0
        %335 = vmatprep.subr.bf16.mxu0 0
        %336 = vmatpush1.bf16.msra.mxu0 0
        %337 = vmatprep.subr.bf16.mxu0 0
        %338 = vmatpush1.bf16.msra.mxu0 0
        %339 = vmatprep.subr.bf16.mxu0 0
        %340 = vmatpush1.bf16.msra.mxu0 0
        %341 = vmatprep.subr.bf16.mxu0 0
        %342 = vmatpush1.bf16.msra.mxu0 0
        %343 = vmatprep.subr.bf16.mxu0 0
        %344 = vmatpush1.bf16.msra.mxu0 0
        %345 = vmatprep.subr.bf16.mxu0 0
        %346 = vmatpush1.bf16.msra.mxu0 0
        %347 = vmatprep.subr.bf16.mxu0 0
        %348 = vmatpush1.bf16.msra.mxu0 0
        %349 = vmatprep.subr.bf16.mxu0 0
        %350 = vmatpush1.bf16.msra.mxu0 0
        %351 = vmatprep.subr.bf16.mxu0 0
        %352 = vmatpush1.bf16.msra.mxu0 0
        %353 = vmatprep.subr.bf16.mxu0 0
        %354 = vmatpush1.bf16.msra.mxu0 0
        %355 = vmatprep.mubr.bf16.mxu0 0
        %356 = vmatmul.mubr.bf16.gmra.mrb[0].mxu0 %v321
        %v357 = vpop.f32.mrb[0].mxu0
        %v358 = vadd.f32 %v317, %v357
        %v359 = vpop.f32.mrb[0].mxu0
        %v360 = vadd.f32 %v317, %v359
        %v361 = vpop.f32.mrb[0].mxu0
        %v362 = vpop.f32.mrb[0].mxu0
        %363 = vdwg.mxu0
        %v364 = vmax.f32 %v358, 0.0
        %v365 = vmax.f32 %v360, 0.0
        %v366 = vld [vmem:[%s5] sm:$0xff]
        %368 = vset.pattern.permute.xlu0 0
        %369 = vperm.xlu0 %368, %v366
        %v370 = vpop.permute.xlu0 %369
        %v372 = vmul.f32 %v364, %v370
        %v373 = vmul.f32 %v365, %v370
        %vm374 = vcmask 174080
        %375 = vst.msk [vmem:[#allocation2] sm:$0x7] %vm374, 0.0
        %376 = vst.msk [vmem:[#allocation2 + $0x18] sm:$0x7] %vm374, 0.0
        %377 = vst.msk [vmem:[#allocation2 + $0x30] sm:$0x7] %vm374, 0.0
        %378 = vst.msk [vmem:[#allocation2 + $0x48] sm:$0x7] %vm374, 0.0
        %379 = vst.msk [vmem:[#allocation2 + $0x60] sm:$0x7] %vm374, 0.0
        %380 = vst.msk [vmem:[#allocation2 + $0x78] sm:$0x7] %vm374, 0.0
        %381 = vst.msk [vmem:[#allocation2 + $0x90] sm:$0x7] %vm374, 0.0
        %382 = vst.msk [vmem:[#allocation2 + $0xa8] sm:$0x7] %vm374, 0.0
        %383 = vst.msk [vmem:[#allocation2 + $0x13] sm:$0x7] %vm374, 0.0
        %384 = vst.msk [vmem:[#allocation2 + $0x2b] sm:$0x7] %vm374, 0.0
        %385 = vst.msk [vmem:[#allocation2 + $0x43] sm:$0x7] %vm374, 0.0
        %386 = vst.msk [vmem:[#allocation2 + $0x5b] sm:$0x7] %vm374, 0.0
        %387 = vst.msk [vmem:[#allocation2 + $0x73] sm:$0x7] %vm374, 0.0
        %388 = vst.msk [vmem:[#allocation2 + $0x8b] sm:$0x7] %vm374, 0.0
        %389 = vst.msk [vmem:[#allocation2 + $0xa3] sm:$0x7] %vm374, 0.0
        %390 = vst.msk [vmem:[#allocation2 + $0xbb] sm:$0x7] %vm374, 0.0
        %392 = vrot.lane.b32.xlu0 %v364, 112
        %v393 = vpop.permute.xlu0 %392
        %395 = vrot.lane.b32.xlu0 %v364, 96
        %v396 = vpop.permute.xlu0 %395
        %398 = vrot.lane.b32.xlu0 %v364, 80
        %v399 = vpop.permute.xlu0 %398
        %401 = vrot.lane.b32.xlu0 %v364, 64
        %v402 = vpop.permute.xlu0 %401
        %404 = vrot.lane.b32.xlu0 %v364, 48
        %v405 = vpop.permute.xlu0 %404
        %407 = vrot.lane.b32.xlu0 %v364, 32
        %v408 = vpop.permute.xlu0 %407
        %410 = vrot.lane.b32.xlu0 %v364, 16
        %v411 = vpop.permute.xlu0 %410
        %414 = vrot.lane.b32.xlu0 %v365, 112
        %v415 = vpop.permute.xlu0 %414
        %417 = vrot.lane.b32.xlu0 %v365, 96
        %v418 = vpop.permute.xlu0 %417
        %420 = vrot.lane.b32.xlu0 %v365, 80
        %v421 = vpop.permute.xlu0 %420
        %423 = vrot.lane.b32.xlu0 %v365, 64
        %v424 = vpop.permute.xlu0 %423
        %426 = vrot.lane.b32.xlu0 %v365, 48
        %v427 = vpop.permute.xlu0 %426
        %429 = vrot.lane.b32.xlu0 %v365, 32
        %v430 = vpop.permute.xlu0 %429
        %432 = vrot.lane.b32.xlu0 %v365, 16
        %v433 = vpop.permute.xlu0 %432
        %v435 = vcombine.low %v364, %v396
        %v436 = vcombine.high %v364, %v396
        %v438 = vunpack.c.l.s4 1983009808
        %v439 = vunpack.c.0.s8 %v438
        %v440 = vlaneseq
        %v441 = vshrl.u32 %v440, 7
        %v442 = vsub.s32 %v439, %v441
        %v443 = vrot.slane %v435, %v442
        %v445 = vunpack.c.l.s4 1983009808
        %v446 = vunpack.c.0.s8 %v445
        %v447 = vlaneseq
        %v448 = vshrl.u32 %v447, 7
        %v449 = vsub.s32 %v446, %v448
        %v450 = vrot.slane %v436, %v449
        %v451 = vcombine.low %v393, %v399
        %v452 = vcombine.high %v393, %v399
        %v454 = vunpack.c.l.s4 1983009808
        %v455 = vunpack.c.0.s8 %v454
        %v456 = vlaneseq
        %v457 = vshrl.u32 %v456, 7
        %v458 = vsub.s32 %v455, %v457
        %v459 = vrot.slane %v451, %v458
        %v461 = vunpack.c.l.s4 1983009808
        %v462 = vunpack.c.0.s8 %v461
        %v463 = vlaneseq
        %v464 = vshrl.u32 %v463, 7
        %v465 = vsub.s32 %v462, %v464
        %v466 = vrot.slane %v452, %v465
        %v467 = vcombine.low %v402, %v408
        %v468 = vcombine.high %v402, %v408
        %v470 = vunpack.c.l.s4 1983009808
        %v471 = vunpack.c.0.s8 %v470
        %v472 = vlaneseq
        %v473 = vshrl.u32 %v472, 7
        %v474 = vsub.s32 %v471, %v473
        %v475 = vrot.slane %v467, %v474
        %v477 = vunpack.c.l.s4 1983009808
        %v478 = vunpack.c.0.s8 %v477
        %v479 = vlaneseq
        %v480 = vshrl.u32 %v479, 7
        %v481 = vsub.s32 %v478, %v480
        %v482 = vrot.slane %v468, %v481
        %v483 = vcombine.low %v405, %v411
        %v484 = vcombine.high %v405, %v411
        %v486 = vunpack.c.l.s4 1983009808
        %v487 = vunpack.c.0.s8 %v486
        %v488 = vlaneseq
        %v489 = vshrl.u32 %v488, 7
        %v490 = vsub.s32 %v487, %v489
        %v491 = vrot.slane %v483, %v490
        %v493 = vunpack.c.l.s4 1983009808
        %v494 = vunpack.c.0.s8 %v493
        %v495 = vlaneseq
        %v496 = vshrl.u32 %v495, 7
        %v497 = vsub.s32 %v494, %v496
        %v498 = vrot.slane %v484, %v497
        %v499 = vcombine.low %v443, %v459
        %v500 = vcombine.high %v443, %v459
        %v502 = vunpack.c.l.s4 1934713408
        %v503 = vunpack.c.0.s8 %v502
        %v504 = vlaneseq
        %v505 = vshrl.u32 %v504, 7
        %v506 = vsub.s32 %v503, %v505
        %v507 = vrot.slane %v499, %v506
        %v509 = vunpack.c.l.s4 1934713408
        %v510 = vunpack.c.0.s8 %v509
        %v511 = vlaneseq
        %v512 = vshrl.u32 %v511, 7
        %v513 = vsub.s32 %v510, %v512
        %v514 = vrot.slane %v500, %v513
        %v515 = vcombine.low %v450, %v466
        %v516 = vcombine.high %v450, %v466
        %v518 = vunpack.c.l.s4 1934713408
        %v519 = vunpack.c.0.s8 %v518
        %v520 = vlaneseq
        %v521 = vshrl.u32 %v520, 7
        %v522 = vsub.s32 %v519, %v521
        %v523 = vrot.slane %v515, %v522
        %v525 = vunpack.c.l.s4 1934713408
        %v526 = vunpack.c.0.s8 %v525
        %v527 = vlaneseq
        %v528 = vshrl.u32 %v527, 7
        %v529 = vsub.s32 %v526, %v528
        %v530 = vrot.slane %v516, %v529
        %v531 = vcombine.low %v475, %v491
        %v532 = vcombine.high %v475, %v491
        %v534 = vunpack.c.l.s4 1934713408
        %v535 = vunpack.c.0.s8 %v534
        %v536 = vlaneseq
        %v537 = vshrl.u32 %v536, 7
        %v538 = vsub.s32 %v535, %v537
        %v539 = vrot.slane %v531, %v538
        %v541 = vunpack.c.l.s4 1934713408
        %v542 = vunpack.c.0.s8 %v541
        %v543 = vlaneseq
        %v544 = vshrl.u32 %v543, 7
        %v545 = vsub.s32 %v542, %v544
        %v546 = vrot.slane %v532, %v545
        %v547 = vcombine.low %v482, %v498
        %v548 = vcombine.high %v482, %v498
        %v550 = vunpack.c.l.s4 1934713408
        %v551 = vunpack.c.0.s8 %v550
        %v552 = vlaneseq
        %v553 = vshrl.u32 %v552, 7
        %v554 = vsub.s32 %v551, %v553
        %v555 = vrot.slane %v547, %v554
        %v557 = vunpack.c.l.s4 1934713408
        %v558 = vunpack.c.0.s8 %v557
        %v559 = vlaneseq
        %v560 = vshrl.u32 %v559, 7
        %v561 = vsub.s32 %v558, %v560
        %v562 = vrot.slane %v548, %v561
        %v563 = vcombine.low %v507, %v539
        %v564 = vcombine.high %v507, %v539
        %v565 = vcombine.low %v514, %v546
        %v566 = vcombine.high %v514, %v546
        %v567 = vcombine.low %v523, %v555
        %v568 = vcombine.high %v523, %v555
        %v569 = vcombine.low %v530, %v562
        %v570 = vcombine.high %v530, %v562
        %v571 = vcombine.low %v365, %v418
        %v572 = vcombine.high %v365, %v418
        %v574 = vunpack.c.l.s4 1983009808
        %v575 = vunpack.c.0.s8 %v574
        %v576 = vlaneseq
        %v577 = vshrl.u32 %v576, 7
        %v578 = vsub.s32 %v575, %v577
        %v579 = vrot.slane %v571, %v578
        %v581 = vunpack.c.l.s4 1983009808
        %v582 = vunpack.c.0.s8 %v581
        %v583 = vlaneseq
        %v584 = vshrl.u32 %v583, 7
        %v585 = vsub.s32 %v582, %v584
        %v586 = vrot.slane %v572, %v585
        %v587 = vcombine.low %v415, %v421
        %v588 = vcombine.high %v415, %v421
        %v590 = vunpack.c.l.s4 1983009808
        %v591 = vunpack.c.0.s8 %v590
        %v592 = vlaneseq
        %v593 = vshrl.u32 %v592, 7
        %v594 = vsub.s32 %v591, %v593
        %v595 = vrot.slane %v587, %v594
        %v597 = vunpack.c.l.s4 1983009808
        %v598 = vunpack.c.0.s8 %v597
        %v599 = vlaneseq
        %v600 = vshrl.u32 %v599, 7
        %v601 = vsub.s32 %v598, %v600
        %v602 = vrot.slane %v588, %v601
        %v603 = vcombine.low %v424, %v430
        %v604 = vcombine.high %v424, %v430
        %v606 = vunpack.c.l.s4 1983009808
        %v607 = vunpack.c.0.s8 %v606
        %v608 = vlaneseq
        %v609 = vshrl.u32 %v608, 7
        %v610 = vsub.s32 %v607, %v609
        %v611 = vrot.slane %v603, %v610
        %v613 = vunpack.c.l.s4 1983009808
        %v614 = vunpack.c.0.s8 %v613
        %v615 = vlaneseq
        %v616 = vshrl.u32 %v615, 7
        %v617 = vsub.s32 %v614, %v616
        %v618 = vrot.slane %v604, %v617
        %v619 = vcombine.low %v427, %v433
        %v620 = vcombine.high %v427, %v433
        %v622 = vunpack.c.l.s4 1983009808
        %v623 = vunpack.c.0.s8 %v622
        %v624 = vlaneseq
        %v625 = vshrl.u32 %v624, 7
        %v626 = vsub.s32 %v623, %v625
        %v627 = vrot.slane %v619, %v626
        %v629 = vunpack.c.l.s4 1983009808
        %v630 = vunpack.c.0.s8 %v629
        %v631 = vlaneseq
        %v632 = vshrl.u32 %v631, 7
        %v633 = vsub.s32 %v630, %v632
        %v634 = vrot.slane %v620, %v633
        %v635 = vcombine.low %v579, %v595
        %v636 = vcombine.high %v579, %v595
        %v638 = vunpack.c.l.s4 1934713408
        %v639 = vunpack.c.0.s8 %v638
        %v640 = vlaneseq
        %v641 = vshrl.u32 %v640, 7
        %v642 = vsub.s32 %v639, %v641
        %v643 = vrot.slane %v635, %v642
        %v645 = vunpack.c.l.s4 1934713408
        %v646 = vunpack.c.0.s8 %v645
        %v647 = vlaneseq
        %v648 = vshrl.u32 %v647, 7
        %v649 = vsub.s32 %v646, %v648
        %v650 = vrot.slane %v636, %v649
        %v651 = vcombine.low %v586, %v602
        %v652 = vcombine.high %v586, %v602
        %v654 = vunpack.c.l.s4 1934713408
        %v655 = vunpack.c.0.s8 %v654
        %v656 = vlaneseq
        %v657 = vshrl.u32 %v656, 7
        %v658 = vsub.s32 %v655, %v657
        %v659 = vrot.slane %v651, %v658
        %v661 = vunpack.c.l.s4 1934713408
        %v662 = vunpack.c.0.s8 %v661
        %v663 = vlaneseq
        %v664 = vshrl.u32 %v663, 7
        %v665 = vsub.s32 %v662, %v664
        %v666 = vrot.slane %v652, %v665
        %v667 = vcombine.low %v611, %v627
        %v668 = vcombine.high %v611, %v627
        %v670 = vunpack.c.l.s4 1934713408
        %v671 = vunpack.c.0.s8 %v670
        %v672 = vlaneseq
        %v673 = vshrl.u32 %v672, 7
        %v674 = vsub.s32 %v671, %v673
        %v675 = vrot.slane %v667, %v674
        %v677 = vunpack.c.l.s4 1934713408
        %v678 = vunpack.c.0.s8 %v677
        %v679 = vlaneseq
        %v680 = vshrl.u32 %v679, 7
        %v681 = vsub.s32 %v678, %v680
        %v682 = vrot.slane %v668, %v681
        %v683 = vcombine.low %v618, %v634
        %v684 = vcombine.high %v618, %v634
        %v686 = vunpack.c.l.s4 1934713408
        %v687 = vunpack.c.0.s8 %v686
        %v688 = vlaneseq
        %v689 = vshrl.u32 %v688, 7
        %v690 = vsub.s32 %v687, %v689
        %v691 = vrot.slane %v683, %v690
        %v693 = vunpack.c.l.s4 1934713408
        %v694 = vunpack.c.0.s8 %v693
        %v695 = vlaneseq
        %v696 = vshrl.u32 %v695, 7
        %v697 = vsub.s32 %v694, %v696
        %v698 = vrot.slane %v684, %v697
        %v699 = vcombine.low %v643, %v675
        %v700 = vcombine.high %v643, %v675
        %v701 = vcombine.low %v650, %v682
        %v702 = vcombine.high %v650, %v682
        %v703 = vcombine.low %v659, %v691
        %v704 = vcombine.high %v659, %v691
        %v705 = vcombine.low %v666, %v698
        %v706 = vcombine.high %v666, %v698
        %723 = vrot.lane.b32.xlu0 %v563, 3
        %v724 = vpop.permute.xlu0 %723
        %725 = vrot.lane.b32.xlu0 %v699, 3
        %v726 = vpop.permute.xlu0 %725
        %727 = vrot.lane.b32.xlu0 %v564, 3
        %v728 = vpop.permute.xlu0 %727
        %729 = vrot.lane.b32.xlu0 %v700, 3
        %v730 = vpop.permute.xlu0 %729
        %731 = vrot.lane.b32.xlu0 %v565, 3
        %v732 = vpop.permute.xlu0 %731
        %733 = vrot.lane.b32.xlu0 %v701, 3
        %v734 = vpop.permute.xlu0 %733
        %735 = vrot.lane.b32.xlu0 %v566, 3
        %v736 = vpop.permute.xlu0 %735
        %737 = vrot.lane.b32.xlu0 %v702, 3
        %v738 = vpop.permute.xlu0 %737
        %739 = vrot.lane.b32.xlu0 %v567, 3
        %v740 = vpop.permute.xlu0 %739
        %741 = vrot.lane.b32.xlu0 %v703, 3
        %v742 = vpop.permute.xlu0 %741
        %743 = vrot.lane.b32.xlu0 %v568, 3
        %v744 = vpop.permute.xlu0 %743
        %745 = vrot.lane.b32.xlu0 %v704, 3
        %v746 = vpop.permute.xlu0 %745
        %747 = vrot.lane.b32.xlu0 %v569, 3
        %v748 = vpop.permute.xlu0 %747
        %749 = vrot.lane.b32.xlu0 %v705, 3
        %v750 = vpop.permute.xlu0 %749
        %751 = vrot.lane.b32.xlu0 %v570, 3
        %v752 = vpop.permute.xlu0 %751
        %753 = vrot.lane.b32.xlu0 %v706, 3
        %v754 = vpop.permute.xlu0 %753
        %vm771 = vcmask 23552
        %v772 = vsel %vm771, 0.0, %v724
        %v773 = vsel %vm771, 0.0, %v726
        %v774 = vsel %vm771, 0.0, %v728
        %v775 = vsel %vm771, 0.0, %v730
        %v776 = vsel %vm771, 0.0, %v732
        %v777 = vsel %vm771, 0.0, %v734
        %v778 = vsel %vm771, 0.0, %v736
        %v779 = vsel %vm771, 0.0, %v738
        %v780 = vsel %vm771, 0.0, %v740
        %v781 = vsel %vm771, 0.0, %v742
        %v782 = vsel %vm771, 0.0, %v744
        %v783 = vsel %vm771, 0.0, %v746
        %v784 = vsel %vm771, 0.0, %v748
        %v785 = vsel %vm771, 0.0, %v750
        %v786 = vsel %vm771, 0.0, %v752
        %v787 = vsel %vm771, 0.0, %v754
        %vm788 = vcmask 154624
        %v789 = vsel %vm788, %v772, 0.0
        %v790 = vsel %vm788, %v773, 0.0
        %v791 = vsel %vm788, %v774, 0.0
        %v792 = vsel %vm788, %v775, 0.0
        %v793 = vsel %vm788, %v776, 0.0
        %v794 = vsel %vm788, %v777, 0.0
        %v795 = vsel %vm788, %v778, 0.0
        %v796 = vsel %vm788, %v779, 0.0
        %v797 = vsel %vm788, %v780, 0.0
        %v798 = vsel %vm788, %v781, 0.0
        %v799 = vsel %vm788, %v782, 0.0
        %v800 = vsel %vm788, %v783, 0.0
        %v801 = vsel %vm788, %v784, 0.0
        %v802 = vsel %vm788, %v785, 0.0
        %v803 = vsel %vm788, %v786, 0.0
        %v804 = vsel %vm788, %v787, 0.0
        %vm805 = vcmask 179200
        %806 = vst.msk [vmem:[#allocation2 + $0x3] sm:$0xff] %vm805, %v789
        %807 = vst.msk [vmem:[#allocation2 + $0xb] sm:$0xff] %vm805, %v790
        %808 = vst.msk [vmem:[#allocation2 + $0x1b] sm:$0xff] %vm805, %v791
        %809 = vst.msk [vmem:[#allocation2 + $0x23] sm:$0xff] %vm805, %v792
        %810 = vst.msk [vmem:[#allocation2 + $0x33] sm:$0xff] %vm805, %v793
        %811 = vst.msk [vmem:[#allocation2 + $0x3b] sm:$0xff] %vm805, %v794
        %812 = vst.msk [vmem:[#allocation2 + $0x4b] sm:$0xff] %vm805, %v795
        %813 = vst.msk [vmem:[#allocation2 + $0x53] sm:$0xff] %vm805, %v796
        %814 = vst.msk [vmem:[#allocation2 + $0x63] sm:$0xff] %vm805, %v797
        %815 = vst.msk [vmem:[#allocation2 + $0x6b] sm:$0xff] %vm805, %v798
        %816 = vst.msk [vmem:[#allocation2 + $0x7b] sm:$0xff] %vm805, %v799
        %817 = vst.msk [vmem:[#allocation2 + $0x83] sm:$0xff] %vm805, %v800
        %818 = vst.msk [vmem:[#allocation2 + $0x93] sm:$0xff] %vm805, %v801
        %819 = vst.msk [vmem:[#allocation2 + $0x9b] sm:$0xff] %vm805, %v802
        %820 = vst.msk [vmem:[#allocation2 + $0xab] sm:$0xff] %vm805, %v803
        %821 = vst.msk [vmem:[#allocation2 + $0xb3] sm:$0xff] %vm805, %v804
        %v822 = vld [vmem:[#allocation2 + $0x2] sm:$0xff]
        %v823 = vld [vmem:[#allocation2 + $0xa] sm:$0xff]
        %v824 = vld [vmem:[#allocation2 + $0x1a] sm:$0xff]
        %v825 = vld [vmem:[#allocation2 + $0x22] sm:$0xff]
        %v826 = vld [vmem:[#allocation2 + $0x32] sm:$0xff]
        %v827 = vld [vmem:[#allocation2 + $0x3a] sm:$0xff]
        %v828 = vld [vmem:[#allocation2 + $0x4a] sm:$0xff]
        %v829 = vld [vmem:[#allocation2 + $0x52] sm:$0xff]
        %v830 = vld [vmem:[#allocation2 + $0x62] sm:$0xff]
        %v831 = vld [vmem:[#allocation2 + $0x6a] sm:$0xff]
        %v832 = vld [vmem:[#allocation2 + $0x7a] sm:$0xff]
        %v833 = vld [vmem:[#allocation2 + $0x82] sm:$0xff]
        %v834 = vld [vmem:[#allocation2 + $0x92] sm:$0xff]
        %v835 = vld [vmem:[#allocation2 + $0x9a] sm:$0xff]
        %v836 = vld [vmem:[#allocation2 + $0xaa] sm:$0xff]
        %v837 = vld [vmem:[#allocation2 + $0xb2] sm:$0xff]
        %v838 = vld [vmem:[#allocation2 + $0x3] sm:$0xff]
        %v839 = vld [vmem:[#allocation2 + $0xb] sm:$0xff]
        %v840 = vld [vmem:[#allocation2 + $0x1b] sm:$0xff]
        %v841 = vld [vmem:[#allocation2 + $0x23] sm:$0xff]
        %v842 = vld [vmem:[#allocation2 + $0x33] sm:$0xff]
        %v843 = vld [vmem:[#allocation2 + $0x3b] sm:$0xff]
        %v844 = vld [vmem:[#allocation2 + $0x4b] sm:$0xff]
        %v845 = vld [vmem:[#allocation2 + $0x53] sm:$0xff]
        %v846 = vld [vmem:[#allocation2 + $0x63] sm:$0xff]
        %v847 = vld [vmem:[#allocation2 + $0x6b] sm:$0xff]
        %v848 = vld [vmem:[#allocation2 + $0x7b] sm:$0xff]
        %v849 = vld [vmem:[#allocation2 + $0x83] sm:$0xff]
        %v850 = vld [vmem:[#allocation2 + $0x93] sm:$0xff]
        %v851 = vld [vmem:[#allocation2 + $0x9b] sm:$0xff]
        %v852 = vld [vmem:[#allocation2 + $0xab] sm:$0xff]
        %v853 = vld [vmem:[#allocation2 + $0xb3] sm:$0xff]
        %v854 = vld [vmem:[#allocation2 + $0x4] sm:$0xff]
        %v855 = vld [vmem:[#allocation2 + $0xc] sm:$0xff]
        %v856 = vld [vmem:[#allocation2 + $0x1c] sm:$0xff]
        %v857 = vld [vmem:[#allocation2 + $0x24] sm:$0xff]
        %v858 = vld [vmem:[#allocation2 + $0x34] sm:$0xff]
        %v859 = vld [vmem:[#allocation2 + $0x3c] sm:$0xff]
        %v860 = vld [vmem:[#allocation2 + $0x4c] sm:$0xff]
        %v861 = vld [vmem:[#allocation2 + $0x54] sm:$0xff]
        %v862 = vld [vmem:[#allocation2 + $0x64] sm:$0xff]
        %v863 = vld [vmem:[#allocation2 + $0x6c] sm:$0xff]
        %v864 = vld [vmem:[#allocation2 + $0x7c] sm:$0xff]
        %v865 = vld [vmem:[#allocation2 + $0x84] sm:$0xff]
        %v866 = vld [vmem:[#allocation2 + $0x94] sm:$0xff]
        %v867 = vld [vmem:[#allocation2 + $0x9c] sm:$0xff]
        %v868 = vld [vmem:[#allocation2 + $0xac] sm:$0xff]
        %v869 = vld [vmem:[#allocation2 + $0xb4] sm:$0xff]
        %886 = vrot.lane.b32.xlu0 %v822, 127
        %v887 = vpop.permute.xlu0 %886
        %888 = vrot.lane.b32.xlu0 %v823, 127
        %v889 = vpop.permute.xlu0 %888
        %890 = vrot.lane.b32.xlu0 %v824, 127
        %v891 = vpop.permute.xlu0 %890
        %892 = vrot.lane.b32.xlu0 %v825, 127
        %v893 = vpop.permute.xlu0 %892
        %894 = vrot.lane.b32.xlu0 %v826, 127
        %v895 = vpop.permute.xlu0 %894
        %896 = vrot.lane.b32.xlu0 %v827, 127
        %v897 = vpop.permute.xlu0 %896
        %898 = vrot.lane.b32.xlu0 %v828, 127
        %v899 = vpop.permute.xlu0 %898
        %900 = vrot.lane.b32.xlu0 %v829, 127
        %v901 = vpop.permute.xlu0 %900
        %902 = vrot.lane.b32.xlu0 %v830, 127
        %v903 = vpop.permute.xlu0 %902
        %904 = vrot.lane.b32.xlu0 %v831, 127
        %v905 = vpop.permute.xlu0 %904
        %906 = vrot.lane.b32.xlu0 %v832, 127
        %v907 = vpop.permute.xlu0 %906
        %908 = vrot.lane.b32.xlu0 %v833, 127
        %v909 = vpop.permute.xlu0 %908
        %910 = vrot.lane.b32.xlu0 %v834, 127
        %v911 = vpop.permute.xlu0 %910
        %912 = vrot.lane.b32.xlu0 %v835, 127
        %v913 = vpop.permute.xlu0 %912
        %914 = vrot.lane.b32.xlu0 %v836, 127
        %v915 = vpop.permute.xlu0 %914
        %916 = vrot.lane.b32.xlu0 %v837, 127
        %v917 = vpop.permute.xlu0 %916
        %918 = vrot.lane.b32.xlu0 %v822, 126
        %v919 = vpop.permute.xlu0 %918
        %920 = vrot.lane.b32.xlu0 %v823, 126
        %v921 = vpop.permute.xlu0 %920
        %922 = vrot.lane.b32.xlu0 %v824, 126
        %v923 = vpop.permute.xlu0 %922
        %924 = vrot.lane.b32.xlu0 %v825, 126
        %v925 = vpop.permute.xlu0 %924
        %926 = vrot.lane.b32.xlu0 %v826, 126
        %v927 = vpop.permute.xlu0 %926
        %928 = vrot.lane.b32.xlu0 %v827, 126
        %v929 = vpop.permute.xlu0 %928
        %930 = vrot.lane.b32.xlu0 %v828, 126
        %v931 = vpop.permute.xlu0 %930
        %932 = vrot.lane.b32.xlu0 %v829, 126
        %v933 = vpop.permute.xlu0 %932
        %934 = vrot.lane.b32.xlu0 %v830, 126
        %v935 = vpop.permute.xlu0 %934
        %936 = vrot.lane.b32.xlu0 %v831, 126
        %v937 = vpop.permute.xlu0 %936
        %938 = vrot.lane.b32.xlu0 %v832, 126
        %v939 = vpop.permute.xlu0 %938
        %940 = vrot.lane.b32.xlu0 %v833, 126
        %v941 = vpop.permute.xlu0 %940
        %942 = vrot.lane.b32.xlu0 %v834, 126
        %v943 = vpop.permute.xlu0 %942
        %944 = vrot.lane.b32.xlu0 %v835, 126
        %v945 = vpop.permute.xlu0 %944
        %946 = vrot.lane.b32.xlu0 %v836, 126
        %v947 = vpop.permute.xlu0 %946
        %948 = vrot.lane.b32.xlu0 %v837, 126
        %v949 = vpop.permute.xlu0 %948
        %966 = vrot.lane.b32.xlu0 %v838, 127
        %v967 = vpop.permute.xlu0 %966
        %968 = vrot.lane.b32.xlu0 %v839, 127
        %v969 = vpop.permute.xlu0 %968
        %970 = vrot.lane.b32.xlu0 %v840, 127
        %v971 = vpop.permute.xlu0 %970
        %972 = vrot.lane.b32.xlu0 %v841, 127
        %v973 = vpop.permute.xlu0 %972
        %974 = vrot.lane.b32.xlu0 %v842, 127
        %v975 = vpop.permute.xlu0 %974
        %976 = vrot.lane.b32.xlu0 %v843, 127
        %v977 = vpop.permute.xlu0 %976
        %978 = vrot.lane.b32.xlu0 %v844, 127
        %v979 = vpop.permute.xlu0 %978
        %980 = vrot.lane.b32.xlu0 %v845, 127
        %v981 = vpop.permute.xlu0 %980
        %982 = vrot.lane.b32.xlu0 %v846, 127
        %v983 = vpop.permute.xlu0 %982
        %984 = vrot.lane.b32.xlu0 %v847, 127
        %v985 = vpop.permute.xlu0 %984
        %986 = vrot.lane.b32.xlu0 %v848, 127
        %v987 = vpop.permute.xlu0 %986
        %988 = vrot.lane.b32.xlu0 %v849, 127
        %v989 = vpop.permute.xlu0 %988
        %990 = vrot.lane.b32.xlu0 %v850, 127
        %v991 = vpop.permute.xlu0 %990
        %992 = vrot.lane.b32.xlu0 %v851, 127
        %v993 = vpop.permute.xlu0 %992
        %994 = vrot.lane.b32.xlu0 %v852, 127
        %v995 = vpop.permute.xlu0 %994
        %996 = vrot.lane.b32.xlu0 %v853, 127
        %v997 = vpop.permute.xlu0 %996
        %998 = vrot.lane.b32.xlu0 %v838, 126
        %v999 = vpop.permute.xlu0 %998
        %1000 = vrot.lane.b32.xlu0 %v839, 126
        %v1001 = vpop.permute.xlu0 %1000
        %1002 = vrot.lane.b32.xlu0 %v840, 126
        %v1003 = vpop.permute.xlu0 %1002
        %1004 = vrot.lane.b32.xlu0 %v841, 126
        %v1005 = vpop.permute.xlu0 %1004
        %1006 = vrot.lane.b32.xlu0 %v842, 126
        %v1007 = vpop.permute.xlu0 %1006
        %1008 = vrot.lane.b32.xlu0 %v843, 126
        %v1009 = vpop.permute.xlu0 %1008
        %1010 = vrot.lane.b32.xlu0 %v844, 126
        %v1011 = vpop.permute.xlu0 %1010
        %1012 = vrot.lane.b32.xlu0 %v845, 126
        %v1013 = vpop.permute.xlu0 %1012
        %1014 = vrot.lane.b32.xlu0 %v846, 126
        %v1015 = vpop.permute.xlu0 %1014
        %1016 = vrot.lane.b32.xlu0 %v847, 126
        %v1017 = vpop.permute.xlu0 %1016
        %1018 = vrot.lane.b32.xlu0 %v848, 126
        %v1019 = vpop.permute.xlu0 %1018
        %1020 = vrot.lane.b32.xlu0 %v849, 126
        %v1021 = vpop.permute.xlu0 %1020
        %1022 = vrot.lane.b32.xlu0 %v850, 126
        %v1023 = vpop.permute.xlu0 %1022
        %1024 = vrot.lane.b32.xlu0 %v851, 126
        %v1025 = vpop.permute.xlu0 %1024
        %1026 = vrot.lane.b32.xlu0 %v852, 126
        %v1027 = vpop.permute.xlu0 %1026
        %1028 = vrot.lane.b32.xlu0 %v853, 126
        %v1029 = vpop.permute.xlu0 %1028
        %1046 = vrot.lane.b32.xlu0 %v854, 127
        %v1047 = vpop.permute.xlu0 %1046
        %1048 = vrot.lane.b32.xlu0 %v855, 127
        %v1049 = vpop.permute.xlu0 %1048
        %1050 = vrot.lane.b32.xlu0 %v856, 127
        %v1051 = vpop.permute.xlu0 %1050
        %1052 = vrot.lane.b32.xlu0 %v857, 127
        %v1053 = vpop.permute.xlu0 %1052
        %1054 = vrot.lane.b32.xlu0 %v858, 127
        %v1055 = vpop.permute.xlu0 %1054
        %1056 = vrot.lane.b32.xlu0 %v859, 127
        %v1057 = vpop.permute.xlu0 %1056
        %1058 = vrot.lane.b32.xlu0 %v860, 127
        %v1059 = vpop.permute.xlu0 %1058
        %1060 = vrot.lane.b32.xlu0 %v861, 127
        %v1061 = vpop.permute.xlu0 %1060
        %1062 = vrot.lane.b32.xlu0 %v862, 127
        %v1063 = vpop.permute.xlu0 %1062
        %1064 = vrot.lane.b32.xlu0 %v863, 127
        %v1065 = vpop.permute.xlu0 %1064
        %1066 = vrot.lane.b32.xlu0 %v864, 127
        %v1067 = vpop.permute.xlu0 %1066
        %1068 = vrot.lane.b32.xlu0 %v865, 127
        %v1069 = vpop.permute.xlu0 %1068
        %1070 = vrot.lane.b32.xlu0 %v866, 127
        %v1071 = vpop.permute.xlu0 %1070
        %1072 = vrot.lane.b32.xlu0 %v867, 127
        %v1073 = vpop.permute.xlu0 %1072
        %1074 = vrot.lane.b32.xlu0 %v868, 127
        %v1075 = vpop.permute.xlu0 %1074
        %1076 = vrot.lane.b32.xlu0 %v869, 127
        %v1077 = vpop.permute.xlu0 %1076
        %1078 = vrot.lane.b32.xlu0 %v854, 126
        %v1079 = vpop.permute.xlu0 %1078
        %1080 = vrot.lane.b32.xlu0 %v855, 126
        %v1081 = vpop.permute.xlu0 %1080
        %1082 = vrot.lane.b32.xlu0 %v856, 126
        %v1083 = vpop.permute.xlu0 %1082
        %1084 = vrot.lane.b32.xlu0 %v857, 126
        %v1085 = vpop.permute.xlu0 %1084
        %1086 = vrot.lane.b32.xlu0 %v858, 126
        %v1087 = vpop.permute.xlu0 %1086
        %1088 = vrot.lane.b32.xlu0 %v859, 126
        %v1089 = vpop.permute.xlu0 %1088
        %1090 = vrot.lane.b32.xlu0 %v860, 126
        %v1091 = vpop.permute.xlu0 %1090
        %1092 = vrot.lane.b32.xlu0 %v861, 126
        %v1093 = vpop.permute.xlu0 %1092
        %1094 = vrot.lane.b32.xlu0 %v862, 126
        %v1095 = vpop.permute.xlu0 %1094
        %1096 = vrot.lane.b32.xlu0 %v863, 126
        %v1097 = vpop.permute.xlu0 %1096
        %1098 = vrot.lane.b32.xlu0 %v864, 126
        %v1099 = vpop.permute.xlu0 %1098
        %1100 = vrot.lane.b32.xlu0 %v865, 126
        %v1101 = vpop.permute.xlu0 %1100
        %1102 = vrot.lane.b32.xlu0 %v866, 126
        %v1103 = vpop.permute.xlu0 %1102
        %1104 = vrot.lane.b32.xlu0 %v867, 126
        %v1105 = vpop.permute.xlu0 %1104
        %1106 = vrot.lane.b32.xlu0 %v868, 126
        %v1107 = vpop.permute.xlu0 %1106
        %1108 = vrot.lane.b32.xlu0 %v869, 126
        %v1109 = vpop.permute.xlu0 %1108
        %1110 = vrot.lane.b32.xlu0 %v887, 126
        %v1111 = vpop.permute.xlu0 %1110
        %1112 = vrot.lane.b32.xlu0 %v889, 126
        %v1113 = vpop.permute.xlu0 %1112
        %1114 = vrot.lane.b32.xlu0 %v891, 126
        %v1115 = vpop.permute.xlu0 %1114
        %1116 = vrot.lane.b32.xlu0 %v893, 126
        %v1117 = vpop.permute.xlu0 %1116
        %1118 = vrot.lane.b32.xlu0 %v895, 126
        %v1119 = vpop.permute.xlu0 %1118
        %1120 = vrot.lane.b32.xlu0 %v897, 126
        %v1121 = vpop.permute.xlu0 %1120
        %1122 = vrot.lane.b32.xlu0 %v899, 126
        %v1123 = vpop.permute.xlu0 %1122
        %1124 = vrot.lane.b32.xlu0 %v901, 126
        %v1125 = vpop.permute.xlu0 %1124
        %1126 = vrot.lane.b32.xlu0 %v903, 126
        %v1127 = vpop.permute.xlu0 %1126
        %1128 = vrot.lane.b32.xlu0 %v905, 126
        %v1129 = vpop.permute.xlu0 %1128
        %1130 = vrot.lane.b32.xlu0 %v907, 126
        %v1131 = vpop.permute.xlu0 %1130
        %1132 = vrot.lane.b32.xlu0 %v909, 126
        %v1133 = vpop.permute.xlu0 %1132
        %1134 = vrot.lane.b32.xlu0 %v911, 126
        %v1135 = vpop.permute.xlu0 %1134
        %1136 = vrot.lane.b32.xlu0 %v913, 126
        %v1137 = vpop.permute.xlu0 %1136
        %1138 = vrot.lane.b32.xlu0 %v915, 126
        %v1139 = vpop.permute.xlu0 %1138
        %1140 = vrot.lane.b32.xlu0 %v917, 126
        %v1141 = vpop.permute.xlu0 %1140
        %1142 = vrot.lane.b32.xlu0 %v919, 126
        %v1143 = vpop.permute.xlu0 %1142
        %1144 = vrot.lane.b32.xlu0 %v921, 126
        %v1145 = vpop.permute.xlu0 %1144
        %1146 = vrot.lane.b32.xlu0 %v923, 126
        %v1147 = vpop.permute.xlu0 %1146
        %1148 = vrot.lane.b32.xlu0 %v925, 126
        %v1149 = vpop.permute.xlu0 %1148
        %1150 = vrot.lane.b32.xlu0 %v927, 126
        %v1151 = vpop.permute.xlu0 %1150
        %1152 = vrot.lane.b32.xlu0 %v929, 126
        %v1153 = vpop.permute.xlu0 %1152
        %1154 = vrot.lane.b32.xlu0 %v931, 126
        %v1155 = vpop.permute.xlu0 %1154
        %1156 = vrot.lane.b32.xlu0 %v933, 126
        %v1157 = vpop.permute.xlu0 %1156
        %1158 = vrot.lane.b32.xlu0 %v935, 126
        %v1159 = vpop.permute.xlu0 %1158
        %1160 = vrot.lane.b32.xlu0 %v937, 126
        %v1161 = vpop.permute.xlu0 %1160
        %1162 = vrot.lane.b32.xlu0 %v939, 126
        %v1163 = vpop.permute.xlu0 %1162
        %1164 = vrot.lane.b32.xlu0 %v941, 126
        %v1165 = vpop.permute.xlu0 %1164
        %1166 = vrot.lane.b32.xlu0 %v943, 126
        %v1167 = vpop.permute.xlu0 %1166
        %1168 = vrot.lane.b32.xlu0 %v945, 126
        %v1169 = vpop.permute.xlu0 %1168
        %1170 = vrot.lane.b32.xlu0 %v947, 126
        %v1171 = vpop.permute.xlu0 %1170
        %1172 = vrot.lane.b32.xlu0 %v949, 126
        %v1173 = vpop.permute.xlu0 %1172
        %1174 = vrot.lane.b32.xlu0 %v967, 126
        %v1175 = vpop.permute.xlu0 %1174
        %1176 = vrot.lane.b32.xlu0 %v969, 126
        %v1177 = vpop.permute.xlu0 %1176
        %1178 = vrot.lane.b32.xlu0 %v971, 126
        %v1179 = vpop.permute.xlu0 %1178
        %1180 = vrot.lane.b32.xlu0 %v973, 126
        %v1181 = vpop.permute.xlu0 %1180
        %1182 = vrot.lane.b32.xlu0 %v975, 126
        %v1183 = vpop.permute.xlu0 %1182
        %1184 = vrot.lane.b32.xlu0 %v977, 126
        %v1185 = vpop.permute.xlu0 %1184
        %1186 = vrot.lane.b32.xlu0 %v979, 126
        %v1187 = vpop.permute.xlu0 %1186
        %1188 = vrot.lane.b32.xlu0 %v981, 126
        %v1189 = vpop.permute.xlu0 %1188
        %1190 = vrot.lane.b32.xlu0 %v983, 126
        %v1191 = vpop.permute.xlu0 %1190
        %1192 = vrot.lane.b32.xlu0 %v985, 126
        %v1193 = vpop.permute.xlu0 %1192
        %1194 = vrot.lane.b32.xlu0 %v987, 126
        %v1195 = vpop.permute.xlu0 %1194
        %1196 = vrot.lane.b32.xlu0 %v989, 126
        %v1197 = vpop.permute.xlu0 %1196
        %1198 = vrot.lane.b32.xlu0 %v991, 126
        %v1199 = vpop.permute.xlu0 %1198
        %1200 = vrot.lane.b32.xlu0 %v993, 126
        %v1201 = vpop.permute.xlu0 %1200
        %1202 = vrot.lane.b32.xlu0 %v995, 126
        %v1203 = vpop.permute.xlu0 %1202
        %1204 = vrot.lane.b32.xlu0 %v997, 126
        %v1205 = vpop.permute.xlu0 %1204
        %1206 = vrot.lane.b32.xlu0 %v999, 126
        %v1207 = vpop.permute.xlu0 %1206
        %1208 = vrot.lane.b32.xlu0 %v1001, 126
        %v1209 = vpop.permute.xlu0 %1208
        %1210 = vrot.lane.b32.xlu0 %v1003, 126
        %v1211 = vpop.permute.xlu0 %1210
        %1212 = vrot.lane.b32.xlu0 %v1005, 126
        %v1213 = vpop.permute.xlu0 %1212
        %1214 = vrot.lane.b32.xlu0 %v1007, 126
        %v1215 = vpop.permute.xlu0 %1214
        %1216 = vrot.lane.b32.xlu0 %v1009, 126
        %v1217 = vpop.permute.xlu0 %1216
        %1218 = vrot.lane.b32.xlu0 %v1011, 126
        %v1219 = vpop.permute.xlu0 %1218
        %1220 = vrot.lane.b32.xlu0 %v1013, 126
        %v1221 = vpop.permute.xlu0 %1220
        %1222 = vrot.lane.b32.xlu0 %v1015, 126
        %v1223 = vpop.permute.xlu0 %1222
        %1224 = vrot.lane.b32.xlu0 %v1017, 126
        %v1225 = vpop.permute.xlu0 %1224
        %1226 = vrot.lane.b32.xlu0 %v1019, 126
        %v1227 = vpop.permute.xlu0 %1226
        %1228 = vrot.lane.b32.xlu0 %v1021, 126
        %v1229 = vpop.permute.xlu0 %1228
        %1230 = vrot.lane.b32.xlu0 %v1023, 126
        %v1231 = vpop.permute.xlu0 %1230
        %1232 = vrot.lane.b32.xlu0 %v1025, 126
        %v1233 = vpop.permute.xlu0 %1232
        %1234 = vrot.lane.b32.xlu0 %v1027, 126
        %v1235 = vpop.permute.xlu0 %1234
        %1236 = vrot.lane.b32.xlu0 %v1029, 126
        %v1237 = vpop.permute.xlu0 %1236
        %1238 = vrot.lane.b32.xlu0 %v1047, 126
        %v1239 = vpop.permute.xlu0 %1238
        %1240 = vrot.lane.b32.xlu0 %v1049, 126
        %v1241 = vpop.permute.xlu0 %1240
        %1242 = vrot.lane.b32.xlu0 %v1051, 126
        %v1243 = vpop.permute.xlu0 %1242
        %1244 = vrot.lane.b32.xlu0 %v1053, 126
        %v1245 = vpop.permute.xlu0 %1244
        %1246 = vrot.lane.b32.xlu0 %v1055, 126
        %v1247 = vpop.permute.xlu0 %1246
        %1248 = vrot.lane.b32.xlu0 %v1057, 126
        %v1249 = vpop.permute.xlu0 %1248
        %1250 = vrot.lane.b32.xlu0 %v1059, 126
        %v1251 = vpop.permute.xlu0 %1250
        %1252 = vrot.lane.b32.xlu0 %v1061, 126
        %v1253 = vpop.permute.xlu0 %1252
        %1254 = vrot.lane.b32.xlu0 %v1063, 126
        %v1255 = vpop.permute.xlu0 %1254
        %1256 = vrot.lane.b32.xlu0 %v1065, 126
        %v1257 = vpop.permute.xlu0 %1256
        %1258 = vrot.lane.b32.xlu0 %v1067, 126
        %v1259 = vpop.permute.xlu0 %1258
        %1260 = vrot.lane.b32.xlu0 %v1069, 126
        %v1261 = vpop.permute.xlu0 %1260
        %1262 = vrot.lane.b32.xlu0 %v1071, 126
        %v1263 = vpop.permute.xlu0 %1262
        %1264 = vrot.lane.b32.xlu0 %v1073, 126
        %v1265 = vpop.permute.xlu0 %1264
        %1266 = vrot.lane.b32.xlu0 %v1075, 126
        %v1267 = vpop.permute.xlu0 %1266
        %1268 = vrot.lane.b32.xlu0 %v1077, 126
        %v1269 = vpop.permute.xlu0 %1268
        %1270 = vrot.lane.b32.xlu0 %v1079, 126
        %v1271 = vpop.permute.xlu0 %1270
        %1272 = vrot.lane.b32.xlu0 %v1081, 126
        %v1273 = vpop.permute.xlu0 %1272
        %1274 = vrot.lane.b32.xlu0 %v1083, 126
        %v1275 = vpop.permute.xlu0 %1274
        %1276 = vrot.lane.b32.xlu0 %v1085, 126
        %v1277 = vpop.permute.xlu0 %1276
        %1278 = vrot.lane.b32.xlu0 %v1087, 126
        %v1279 = vpop.permute.xlu0 %1278
        %1280 = vrot.lane.b32.xlu0 %v1089, 126
        %v1281 = vpop.permute.xlu0 %1280
        %1282 = vrot.lane.b32.xlu0 %v1091, 126
        %v1283 = vpop.permute.xlu0 %1282
        %1284 = vrot.lane.b32.xlu0 %v1093, 126
        %v1285 = vpop.permute.xlu0 %1284
        %1286 = vrot.lane.b32.xlu0 %v1095, 126
        %v1287 = vpop.permute.xlu0 %1286
        %1288 = vrot.lane.b32.xlu0 %v1097, 126
        %v1289 = vpop.permute.xlu0 %1288
        %1290 = vrot.lane.b32.xlu0 %v1099, 126
        %v1291 = vpop.permute.xlu0 %1290
        %1292 = vrot.lane.b32.xlu0 %v1101, 126
        %v1293 = vpop.permute.xlu0 %1292
        %1294 = vrot.lane.b32.xlu0 %v1103, 126
        %v1295 = vpop.permute.xlu0 %1294
        %1296 = vrot.lane.b32.xlu0 %v1105, 126
        %v1297 = vpop.permute.xlu0 %1296
        %1298 = vrot.lane.b32.xlu0 %v1107, 126
        %v1299 = vpop.permute.xlu0 %1298
        %1300 = vrot.lane.b32.xlu0 %v1109, 126
        %v1301 = vpop.permute.xlu0 %1300
        %v1446 = vcombine.low %v919, %v927
        %v1447 = vcombine.high %v919, %v927
        %v1449 = vunpack.c.l.s4 1983009808
        %v1450 = vunpack.c.0.s8 %v1449
        %v1451 = vlaneseq
        %v1452 = vshrl.u32 %v1451, 7
        %v1453 = vsub.s32 %v1450, %v1452
        %v1454 = vrot.slane %v1446, %v1453
        %v1456 = vunpack.c.l.s4 1983009808
        %v1457 = vunpack.c.0.s8 %v1456
        %v1458 = vlaneseq
        %v1459 = vshrl.u32 %v1458, 7
        %v1460 = vsub.s32 %v1457, %v1459
        %v1461 = vrot.slane %v1447, %v1460
        %v1462 = vcombine.low %v923, %v931
        %v1463 = vcombine.high %v923, %v931
        %v1465 = vunpack.c.l.s4 1983009808
        %v1466 = vunpack.c.0.s8 %v1465
        %v1467 = vlaneseq
        %v1468 = vshrl.u32 %v1467, 7
        %v1469 = vsub.s32 %v1466, %v1468
        %v1470 = vrot.slane %v1462, %v1469
        %v1472 = vunpack.c.l.s4 1983009808
        %v1473 = vunpack.c.0.s8 %v1472
        %v1474 = vlaneseq
        %v1475 = vshrl.u32 %v1474, 7
        %v1476 = vsub.s32 %v1473, %v1475
        %v1477 = vrot.slane %v1463, %v1476
        %v1478 = vcombine.low %v935, %v943
        %v1479 = vcombine.high %v935, %v943
        %v1481 = vunpack.c.l.s4 1983009808
        %v1482 = vunpack.c.0.s8 %v1481
        %v1483 = vlaneseq
        %v1484 = vshrl.u32 %v1483, 7
        %v1485 = vsub.s32 %v1482, %v1484
        %v1486 = vrot.slane %v1478, %v1485
        %v1488 = vunpack.c.l.s4 1983009808
        %v1489 = vunpack.c.0.s8 %v1488
        %v1490 = vlaneseq
        %v1491 = vshrl.u32 %v1490, 7
        %v1492 = vsub.s32 %v1489, %v1491
        %v1493 = vrot.slane %v1479, %v1492
        %v1494 = vcombine.low %v939, %v947
        %v1495 = vcombine.high %v939, %v947
        %v1497 = vunpack.c.l.s4 1983009808
        %v1498 = vunpack.c.0.s8 %v1497
        %v1499 = vlaneseq
        %v1500 = vshrl.u32 %v1499, 7
        %v1501 = vsub.s32 %v1498, %v1500
        %v1502 = vrot.slane %v1494, %v1501
        %v1504 = vunpack.c.l.s4 1983009808
        %v1505 = vunpack.c.0.s8 %v1504
        %v1506 = vlaneseq
        %v1507 = vshrl.u32 %v1506, 7
        %v1508 = vsub.s32 %v1505, %v1507
        %v1509 = vrot.slane %v1495, %v1508
        %v1510 = vcombine.low %v1454, %v1470
        %v1511 = vcombine.high %v1454, %v1470
        %v1513 = vunpack.c.l.s4 1934713408
        %v1514 = vunpack.c.0.s8 %v1513
        %v1515 = vlaneseq
        %v1516 = vshrl.u32 %v1515, 7
        %v1517 = vsub.s32 %v1514, %v1516
        %v1518 = vrot.slane %v1510, %v1517
        %v1520 = vunpack.c.l.s4 1934713408
        %v1521 = vunpack.c.0.s8 %v1520
        %v1522 = vlaneseq
        %v1523 = vshrl.u32 %v1522, 7
        %v1524 = vsub.s32 %v1521, %v1523
        %v1525 = vrot.slane %v1511, %v1524
        %v1526 = vcombine.low %v1461, %v1477
        %v1527 = vcombine.high %v1461, %v1477
        %v1529 = vunpack.c.l.s4 1934713408
        %v1530 = vunpack.c.0.s8 %v1529
        %v1531 = vlaneseq
        %v1532 = vshrl.u32 %v1531, 7
        %v1533 = vsub.s32 %v1530, %v1532
        %v1534 = vrot.slane %v1526, %v1533
        %v1536 = vunpack.c.l.s4 1934713408
        %v1537 = vunpack.c.0.s8 %v1536
        %v1538 = vlaneseq
        %v1539 = vshrl.u32 %v1538, 7
        %v1540 = vsub.s32 %v1537, %v1539
        %v1541 = vrot.slane %v1527, %v1540
        %v1542 = vcombine.low %v1486, %v1502
        %v1543 = vcombine.high %v1486, %v1502
        %v1545 = vunpack.c.l.s4 1934713408
        %v1546 = vunpack.c.0.s8 %v1545
        %v1547 = vlaneseq
        %v1548 = vshrl.u32 %v1547, 7
        %v1549 = vsub.s32 %v1546, %v1548
        %v1550 = vrot.slane %v1542, %v1549
        %v1552 = vunpack.c.l.s4 1934713408
        %v1553 = vunpack.c.0.s8 %v1552
        %v1554 = vlaneseq
        %v1555 = vshrl.u32 %v1554, 7
        %v1556 = vsub.s32 %v1553, %v1555
        %v1557 = vrot.slane %v1543, %v1556
        %v1558 = vcombine.low %v1493, %v1509
        %v1559 = vcombine.high %v1493, %v1509
        %v1561 = vunpack.c.l.s4 1934713408
        %v1562 = vunpack.c.0.s8 %v1561
        %v1563 = vlaneseq
        %v1564 = vshrl.u32 %v1563, 7
        %v1565 = vsub.s32 %v1562, %v1564
        %v1566 = vrot.slane %v1558, %v1565
        %v1568 = vunpack.c.l.s4 1934713408
        %v1569 = vunpack.c.0.s8 %v1568
        %v1570 = vlaneseq
        %v1571 = vshrl.u32 %v1570, 7
        %v1572 = vsub.s32 %v1569, %v1571
        %v1573 = vrot.slane %v1559, %v1572
        %v1574 = vcombine.low %v1518, %v1550
        %v1575 = vcombine.high %v1518, %v1550
        %v1576 = vcombine.low %v1525, %v1557
        %v1577 = vcombine.high %v1525, %v1557
        %v1578 = vcombine.low %v1534, %v1566
        %v1579 = vcombine.high %v1534, %v1566
        %v1580 = vcombine.low %v1541, %v1573
        %v1581 = vcombine.high %v1541, %v1573
        %v1582 = vcombine.low %v1111, %v1119
        %v1583 = vcombine.high %v1111, %v1119
        %v1585 = vunpack.c.l.s4 1983009808
        %v1586 = vunpack.c.0.s8 %v1585
        %v1587 = vlaneseq
        %v1588 = vshrl.u32 %v1587, 7
        %v1589 = vsub.s32 %v1586, %v1588
        %v1590 = vrot.slane %v1582, %v1589
        %v1592 = vunpack.c.l.s4 1983009808
        %v1593 = vunpack.c.0.s8 %v1592
        %v1594 = vlaneseq
        %v1595 = vshrl.u32 %v1594, 7
        %v1596 = vsub.s32 %v1593, %v1595
        %v1597 = vrot.slane %v1583, %v1596
        %v1598 = vcombine.low %v1115, %v1123
        %v1599 = vcombine.high %v1115, %v1123
        %v1601 = vunpack.c.l.s4 1983009808
        %v1602 = vunpack.c.0.s8 %v1601
        %v1603 = vlaneseq
        %v1604 = vshrl.u32 %v1603, 7
        %v1605 = vsub.s32 %v1602, %v1604
        %v1606 = vrot.slane %v1598, %v1605
        %v1608 = vunpack.c.l.s4 1983009808
        %v1609 = vunpack.c.0.s8 %v1608
        %v1610 = vlaneseq
        %v1611 = vshrl.u32 %v1610, 7
        %v1612 = vsub.s32 %v1609, %v1611
        %v1613 = vrot.slane %v1599, %v1612
        %v1614 = vcombine.low %v1127, %v1135
        %v1615 = vcombine.high %v1127, %v1135
        %v1617 = vunpack.c.l.s4 1983009808
        %v1618 = vunpack.c.0.s8 %v1617
        %v1619 = vlaneseq
        %v1620 = vshrl.u32 %v1619, 7
        %v1621 = vsub.s32 %v1618, %v1620
        %v1622 = vrot.slane %v1614, %v1621
        %v1624 = vunpack.c.l.s4 1983009808
        %v1625 = vunpack.c.0.s8 %v1624
        %v1626 = vlaneseq
        %v1627 = vshrl.u32 %v1626, 7
        %v1628 = vsub.s32 %v1625, %v1627
        %v1629 = vrot.slane %v1615, %v1628
        %v1630 = vcombine.low %v1131, %v1139
        %v1631 = vcombine.high %v1131, %v1139
        %v1633 = vunpack.c.l.s4 1983009808
        %v1634 = vunpack.c.0.s8 %v1633
        %v1635 = vlaneseq
        %v1636 = vshrl.u32 %v1635, 7
        %v1637 = vsub.s32 %v1634, %v1636
        %v1638 = vrot.slane %v1630, %v1637
        %v1640 = vunpack.c.l.s4 1983009808
        %v1641 = vunpack.c.0.s8 %v1640
        %v1642 = vlaneseq
        %v1643 = vshrl.u32 %v1642, 7
        %v1644 = vsub.s32 %v1641, %v1643
        %v1645 = vrot.slane %v1631, %v1644
        %v1646 = vcombine.low %v1590, %v1606
        %v1647 = vcombine.high %v1590, %v1606
        %v1649 = vunpack.c.l.s4 1934713408
        %v1650 = vunpack.c.0.s8 %v1649
        %v1651 = vlaneseq
        %v1652 = vshrl.u32 %v1651, 7
        %v1653 = vsub.s32 %v1650, %v1652
        %v1654 = vrot.slane %v1646, %v1653
        %v1656 = vunpack.c.l.s4 1934713408
        %v1657 = vunpack.c.0.s8 %v1656
        %v1658 = vlaneseq
        %v1659 = vshrl.u32 %v1658, 7
        %v1660 = vsub.s32 %v1657, %v1659
        %v1661 = vrot.slane %v1647, %v1660
        %v1662 = vcombine.low %v1597, %v1613
        %v1663 = vcombine.high %v1597, %v1613
        %v1665 = vunpack.c.l.s4 1934713408
        %v1666 = vunpack.c.0.s8 %v1665
        %v1667 = vlaneseq
        %v1668 = vshrl.u32 %v1667, 7
        %v1669 = vsub.s32 %v1666, %v1668
        %v1670 = vrot.slane %v1662, %v1669
        %v1672 = vunpack.c.l.s4 1934713408
        %v1673 = vunpack.c.0.s8 %v1672
        %v1674 = vlaneseq
        %v1675 = vshrl.u32 %v1674, 7
        %v1676 = vsub.s32 %v1673, %v1675
        %v1677 = vrot.slane %v1663, %v1676
        %v1678 = vcombine.low %v1622, %v1638
        %v1679 = vcombine.high %v1622, %v1638
        %v1681 = vunpack.c.l.s4 1934713408
        %v1682 = vunpack.c.0.s8 %v1681
        %v1683 = vlaneseq
        %v1684 = vshrl.u32 %v1683, 7
        %v1685 = vsub.s32 %v1682, %v1684
        %v1686 = vrot.slane %v1678, %v1685
        %v1688 = vunpack.c.l.s4 1934713408
        %v1689 = vunpack.c.0.s8 %v1688
        %v1690 = vlaneseq
        %v1691 = vshrl.u32 %v1690, 7
        %v1692 = vsub.s32 %v1689, %v1691
        %v1693 = vrot.slane %v1679, %v1692
        %v1694 = vcombine.low %v1629, %v1645
        %v1695 = vcombine.high %v1629, %v1645
        %v1697 = vunpack.c.l.s4 1934713408
        %v1698 = vunpack.c.0.s8 %v1697
        %v1699 = vlaneseq
        %v1700 = vshrl.u32 %v1699, 7
        %v1701 = vsub.s32 %v1698, %v1700
        %v1702 = vrot.slane %v1694, %v1701
        %v1704 = vunpack.c.l.s4 1934713408
        %v1705 = vunpack.c.0.s8 %v1704
        %v1706 = vlaneseq
        %v1707 = vshrl.u32 %v1706, 7
        %v1708 = vsub.s32 %v1705, %v1707
        %v1709 = vrot.slane %v1695, %v1708
        %v1710 = vcombine.low %v1654, %v1686
        %v1711 = vcombine.high %v1654, %v1686
        %v1712 = vcombine.low %v1661, %v1693
        %v1713 = vcombine.high %v1661, %v1693
        %v1714 = vcombine.low %v1670, %v1702
        %v1715 = vcombine.high %v1670, %v1702
        %v1716 = vcombine.low %v1677, %v1709
        %v1717 = vcombine.high %v1677, %v1709
        %v1718 = vcombine.low %v1143, %v1151
        %v1719 = vcombine.high %v1143, %v1151
        %v1721 = vunpack.c.l.s4 1983009808
        %v1722 = vunpack.c.0.s8 %v1721
        %v1723 = vlaneseq
        %v1724 = vshrl.u32 %v1723, 7
        %v1725 = vsub.s32 %v1722, %v1724
        %v1726 = vrot.slane %v1718, %v1725
        %v1728 = vunpack.c.l.s4 1983009808
        %v1729 = vunpack.c.0.s8 %v1728
        %v1730 = vlaneseq
        %v1731 = vshrl.u32 %v1730, 7
        %v1732 = vsub.s32 %v1729, %v1731
        %v1733 = vrot.slane %v1719, %v1732
        %v1734 = vcombine.low %v1147, %v1155
        %v1735 = vcombine.high %v1147, %v1155
        %v1737 = vunpack.c.l.s4 1983009808
        %v1738 = vunpack.c.0.s8 %v1737
        %v1739 = vlaneseq
        %v1740 = vshrl.u32 %v1739, 7
        %v1741 = vsub.s32 %v1738, %v1740
        %v1742 = vrot.slane %v1734, %v1741
        %v1744 = vunpack.c.l.s4 1983009808
        %v1745 = vunpack.c.0.s8 %v1744
        %v1746 = vlaneseq
        %v1747 = vshrl.u32 %v1746, 7
        %v1748 = vsub.s32 %v1745, %v1747
        %v1749 = vrot.slane %v1735, %v1748
        %v1750 = vcombine.low %v1159, %v1167
        %v1751 = vcombine.high %v1159, %v1167
        %v1753 = vunpack.c.l.s4 1983009808
        %v1754 = vunpack.c.0.s8 %v1753
        %v1755 = vlaneseq
        %v1756 = vshrl.u32 %v1755, 7
        %v1757 = vsub.s32 %v1754, %v1756
        %v1758 = vrot.slane %v1750, %v1757
        %v1760 = vunpack.c.l.s4 1983009808
        %v1761 = vunpack.c.0.s8 %v1760
        %v1762 = vlaneseq
        %v1763 = vshrl.u32 %v1762, 7
        %v1764 = vsub.s32 %v1761, %v1763
        %v1765 = vrot.slane %v1751, %v1764
        %v1766 = vcombine.low %v1163, %v1171
        %v1767 = vcombine.high %v1163, %v1171
        %v1769 = vunpack.c.l.s4 1983009808
        %v1770 = vunpack.c.0.s8 %v1769
        %v1771 = vlaneseq
        %v1772 = vshrl.u32 %v1771, 7
        %v1773 = vsub.s32 %v1770, %v1772
        %v1774 = vrot.slane %v1766, %v1773
        %v1776 = vunpack.c.l.s4 1983009808
        %v1777 = vunpack.c.0.s8 %v1776
        %v1778 = vlaneseq
        %v1779 = vshrl.u32 %v1778, 7
        %v1780 = vsub.s32 %v1777, %v1779
        %v1781 = vrot.slane %v1767, %v1780
        %v1782 = vcombine.low %v1726, %v1742
        %v1783 = vcombine.high %v1726, %v1742
        %v1785 = vunpack.c.l.s4 1934713408
        %v1786 = vunpack.c.0.s8 %v1785
        %v1787 = vlaneseq
        %v1788 = vshrl.u32 %v1787, 7
        %v1789 = vsub.s32 %v1786, %v1788
        %v1790 = vrot.slane %v1782, %v1789
        %v1792 = vunpack.c.l.s4 1934713408
        %v1793 = vunpack.c.0.s8 %v1792
        %v1794 = vlaneseq
        %v1795 = vshrl.u32 %v1794, 7
        %v1796 = vsub.s32 %v1793, %v1795
        %v1797 = vrot.slane %v1783, %v1796
        %v1798 = vcombine.low %v1733, %v1749
        %v1799 = vcombine.high %v1733, %v1749
        %v1801 = vunpack.c.l.s4 1934713408
        %v1802 = vunpack.c.0.s8 %v1801
        %v1803 = vlaneseq
        %v1804 = vshrl.u32 %v1803, 7
        %v1805 = vsub.s32 %v1802, %v1804
        %v1806 = vrot.slane %v1798, %v1805
        %v1808 = vunpack.c.l.s4 1934713408
        %v1809 = vunpack.c.0.s8 %v1808
        %v1810 = vlaneseq
        %v1811 = vshrl.u32 %v1810, 7
        %v1812 = vsub.s32 %v1809, %v1811
        %v1813 = vrot.slane %v1799, %v1812
        %v1814 = vcombine.low %v1758, %v1774
        %v1815 = vcombine.high %v1758, %v1774
        %v1817 = vunpack.c.l.s4 1934713408
        %v1818 = vunpack.c.0.s8 %v1817
        %v1819 = vlaneseq
        %v1820 = vshrl.u32 %v1819, 7
        %v1821 = vsub.s32 %v1818, %v1820
        %v1822 = vrot.slane %v1814, %v1821
        %v1824 = vunpack.c.l.s4 1934713408
        %v1825 = vunpack.c.0.s8 %v1824
        %v1826 = vlaneseq
        %v1827 = vshrl.u32 %v1826, 7
        %v1828 = vsub.s32 %v1825, %v1827
        %v1829 = vrot.slane %v1815, %v1828
        %v1830 = vcombine.low %v1765, %v1781
        %v1831 = vcombine.high %v1765, %v1781
        %v1833 = vunpack.c.l.s4 1934713408
        %v1834 = vunpack.c.0.s8 %v1833
        %v1835 = vlaneseq
        %v1836 = vshrl.u32 %v1835, 7
        %v1837 = vsub.s32 %v1834, %v1836
        %v1838 = vrot.slane %v1830, %v1837
        %v1840 = vunpack.c.l.s4 1934713408
        %v1841 = vunpack.c.0.s8 %v1840
        %v1842 = vlaneseq
        %v1843 = vshrl.u32 %v1842, 7
        %v1844 = vsub.s32 %v1841, %v1843
        %v1845 = vrot.slane %v1831, %v1844
        %v1846 = vcombine.low %v1790, %v1822
        %v1847 = vcombine.high %v1790, %v1822
        %v1848 = vcombine.low %v1797, %v1829
        %v1849 = vcombine.high %v1797, %v1829
        %v1850 = vcombine.low %v1806, %v1838
        %v1851 = vcombine.high %v1806, %v1838
        %v1852 = vcombine.low %v1813, %v1845
        %v1853 = vcombine.high %v1813, %v1845
        %v1854 = vcombine.low %v999, %v1007
        %v1855 = vcombine.high %v999, %v1007
        %v1857 = vunpack.c.l.s4 1983009808
        %v1858 = vunpack.c.0.s8 %v1857
        %v1859 = vlaneseq
        %v1860 = vshrl.u32 %v1859, 7
        %v1861 = vsub.s32 %v1858, %v1860
        %v1862 = vrot.slane %v1854, %v1861
        %v1864 = vunpack.c.l.s4 1983009808
        %v1865 = vunpack.c.0.s8 %v1864
        %v1866 = vlaneseq
        %v1867 = vshrl.u32 %v1866, 7
        %v1868 = vsub.s32 %v1865, %v1867
        %v1869 = vrot.slane %v1855, %v1868
        %v1870 = vcombine.low %v1003, %v1011
        %v1871 = vcombine.high %v1003, %v1011
        %v1873 = vunpack.c.l.s4 1983009808
        %v1874 = vunpack.c.0.s8 %v1873
        %v1875 = vlaneseq
        %v1876 = vshrl.u32 %v1875, 7
        %v1877 = vsub.s32 %v1874, %v1876
        %v1878 = vrot.slane %v1870, %v1877
        %v1880 = vunpack.c.l.s4 1983009808
        %v1881 = vunpack.c.0.s8 %v1880
        %v1882 = vlaneseq
        %v1883 = vshrl.u32 %v1882, 7
        %v1884 = vsub.s32 %v1881, %v1883
        %v1885 = vrot.slane %v1871, %v1884
        %v1886 = vcombine.low %v1015, %v1023
        %v1887 = vcombine.high %v1015, %v1023
        %v1889 = vunpack.c.l.s4 1983009808
        %v1890 = vunpack.c.0.s8 %v1889
        %v1891 = vlaneseq
        %v1892 = vshrl.u32 %v1891, 7
        %v1893 = vsub.s32 %v1890, %v1892
        %v1894 = vrot.slane %v1886, %v1893
        %v1896 = vunpack.c.l.s4 1983009808
        %v1897 = vunpack.c.0.s8 %v1896
        %v1898 = vlaneseq
        %v1899 = vshrl.u32 %v1898, 7
        %v1900 = vsub.s32 %v1897, %v1899
        %v1901 = vrot.slane %v1887, %v1900
        %v1902 = vcombine.low %v1019, %v1027
        %v1903 = vcombine.high %v1019, %v1027
        %v1905 = vunpack.c.l.s4 1983009808
        %v1906 = vunpack.c.0.s8 %v1905
        %v1907 = vlaneseq
        %v1908 = vshrl.u32 %v1907, 7
        %v1909 = vsub.s32 %v1906, %v1908
        %v1910 = vrot.slane %v1902, %v1909
        %v1912 = vunpack.c.l.s4 1983009808
        %v1913 = vunpack.c.0.s8 %v1912
        %v1914 = vlaneseq
        %v1915 = vshrl.u32 %v1914, 7
        %v1916 = vsub.s32 %v1913, %v1915
        %v1917 = vrot.slane %v1903, %v1916
        %v1918 = vcombine.low %v1862, %v1878
        %v1919 = vcombine.high %v1862, %v1878
        %v1921 = vunpack.c.l.s4 1934713408
        %v1922 = vunpack.c.0.s8 %v1921
        %v1923 = vlaneseq
        %v1924 = vshrl.u32 %v1923, 7
        %v1925 = vsub.s32 %v1922, %v1924
        %v1926 = vrot.slane %v1918, %v1925
        %v1928 = vunpack.c.l.s4 1934713408
        %v1929 = vunpack.c.0.s8 %v1928
        %v1930 = vlaneseq
        %v1931 = vshrl.u32 %v1930, 7
        %v1932 = vsub.s32 %v1929, %v1931
        %v1933 = vrot.slane %v1919, %v1932
        %v1934 = vcombine.low %v1869, %v1885
        %v1935 = vcombine.high %v1869, %v1885
        %v1937 = vunpack.c.l.s4 1934713408
        %v1938 = vunpack.c.0.s8 %v1937
        %v1939 = vlaneseq
        %v1940 = vshrl.u32 %v1939, 7
        %v1941 = vsub.s32 %v1938, %v1940
        %v1942 = vrot.slane %v1934, %v1941
        %v1944 = vunpack.c.l.s4 1934713408
        %v1945 = vunpack.c.0.s8 %v1944
        %v1946 = vlaneseq
        %v1947 = vshrl.u32 %v1946, 7
        %v1948 = vsub.s32 %v1945, %v1947
        %v1949 = vrot.slane %v1935, %v1948
        %v1950 = vcombine.low %v1894, %v1910
        %v1951 = vcombine.high %v1894, %v1910
        %v1953 = vunpack.c.l.s4 1934713408
        %v1954 = vunpack.c.0.s8 %v1953
        %v1955 = vlaneseq
        %v1956 = vshrl.u32 %v1955, 7
        %v1957 = vsub.s32 %v1954, %v1956
        %v1958 = vrot.slane %v1950, %v1957
        %v1960 = vunpack.c.l.s4 1934713408
        %v1961 = vunpack.c.0.s8 %v1960
        %v1962 = vlaneseq
        %v1963 = vshrl.u32 %v1962, 7
        %v1964 = vsub.s32 %v1961, %v1963
        %v1965 = vrot.slane %v1951, %v1964
        %v1966 = vcombine.low %v1901, %v1917
        %v1967 = vcombine.high %v1901, %v1917
        %v1969 = vunpack.c.l.s4 1934713408
        %v1970 = vunpack.c.0.s8 %v1969
        %v1971 = vlaneseq
        %v1972 = vshrl.u32 %v1971, 7
        %v1973 = vsub.s32 %v1970, %v1972
        %v1974 = vrot.slane %v1966, %v1973
        %v1976 = vunpack.c.l.s4 1934713408
        %v1977 = vunpack.c.0.s8 %v1976
        %v1978 = vlaneseq
        %v1979 = vshrl.u32 %v1978, 7
        %v1980 = vsub.s32 %v1977, %v1979
        %v1981 = vrot.slane %v1967, %v1980
        %v1982 = vcombine.low %v1926, %v1958
        %v1983 = vcombine.high %v1926, %v1958
        %v1984 = vcombine.low %v1933, %v1965
        %v1985 = vcombine.high %v1933, %v1965
        %v1986 = vcombine.low %v1942, %v1974
        %v1987 = vcombine.high %v1942, %v1974
        %v1988 = vcombine.low %v1949, %v1981
        %v1989 = vcombine.high %v1949, %v1981
        %v1990 = vcombine.low %v1175, %v1183
        %v1991 = vcombine.high %v1175, %v1183
        %v1993 = vunpack.c.l.s4 1983009808
        %v1994 = vunpack.c.0.s8 %v1993
        %v1995 = vlaneseq
        %v1996 = vshrl.u32 %v1995, 7
        %v1997 = vsub.s32 %v1994, %v1996
        %v1998 = vrot.slane %v1990, %v1997
        %v2000 = vunpack.c.l.s4 1983009808
        %v2001 = vunpack.c.0.s8 %v2000
        %v2002 = vlaneseq
        %v2003 = vshrl.u32 %v2002, 7
        %v2004 = vsub.s32 %v2001, %v2003
        %v2005 = vrot.slane %v1991, %v2004
        %v2006 = vcombine.low %v1179, %v1187
        %v2007 = vcombine.high %v1179, %v1187
        %v2009 = vunpack.c.l.s4 1983009808
        %v2010 = vunpack.c.0.s8 %v2009
        %v2011 = vlaneseq
        %v2012 = vshrl.u32 %v2011, 7
        %v2013 = vsub.s32 %v2010, %v2012
        %v2014 = vrot.slane %v2006, %v2013
        %v2016 = vunpack.c.l.s4 1983009808
        %v2017 = vunpack.c.0.s8 %v2016
        %v2018 = vlaneseq
        %v2019 = vshrl.u32 %v2018, 7
        %v2020 = vsub.s32 %v2017, %v2019
        %v2021 = vrot.slane %v2007, %v2020
        %v2022 = vcombine.low %v1191, %v1199
        %v2023 = vcombine.high %v1191, %v1199
        %v2025 = vunpack.c.l.s4 1983009808
        %v2026 = vunpack.c.0.s8 %v2025
        %v2027 = vlaneseq
        %v2028 = vshrl.u32 %v2027, 7
        %v2029 = vsub.s32 %v2026, %v2028
        %v2030 = vrot.slane %v2022, %v2029
        %v2032 = vunpack.c.l.s4 1983009808
        %v2033 = vunpack.c.0.s8 %v2032
        %v2034 = vlaneseq
        %v2035 = vshrl.u32 %v2034, 7
        %v2036 = vsub.s32 %v2033, %v2035
        %v2037 = vrot.slane %v2023, %v2036
        %v2038 = vcombine.low %v1195, %v1203
        %v2039 = vcombine.high %v1195, %v1203
        %v2041 = vunpack.c.l.s4 1983009808
        %v2042 = vunpack.c.0.s8 %v2041
        %v2043 = vlaneseq
        %v2044 = vshrl.u32 %v2043, 7
        %v2045 = vsub.s32 %v2042, %v2044
        %v2046 = vrot.slane %v2038, %v2045
        %v2048 = vunpack.c.l.s4 1983009808
        %v2049 = vunpack.c.0.s8 %v2048
        %v2050 = vlaneseq
        %v2051 = vshrl.u32 %v2050, 7
        %v2052 = vsub.s32 %v2049, %v2051
        %v2053 = vrot.slane %v2039, %v2052
        %v2054 = vcombine.low %v1998, %v2014
        %v2055 = vcombine.high %v1998, %v2014
        %v2057 = vunpack.c.l.s4 1934713408
        %v2058 = vunpack.c.0.s8 %v2057
        %v2059 = vlaneseq
        %v2060 = vshrl.u32 %v2059, 7
        %v2061 = vsub.s32 %v2058, %v2060
        %v2062 = vrot.slane %v2054, %v2061
        %v2064 = vunpack.c.l.s4 1934713408
        %v2065 = vunpack.c.0.s8 %v2064
        %v2066 = vlaneseq
        %v2067 = vshrl.u32 %v2066, 7
        %v2068 = vsub.s32 %v2065, %v2067
        %v2069 = vrot.slane %v2055, %v2068
        %v2070 = vcombine.low %v2005, %v2021
        %v2071 = vcombine.high %v2005, %v2021
        %v2073 = vunpack.c.l.s4 1934713408
        %v2074 = vunpack.c.0.s8 %v2073
        %v2075 = vlaneseq
        %v2076 = vshrl.u32 %v2075, 7
        %v2077 = vsub.s32 %v2074, %v2076
        %v2078 = vrot.slane %v2070, %v2077
        %v2080 = vunpack.c.l.s4 1934713408
        %v2081 = vunpack.c.0.s8 %v2080
        %v2082 = vlaneseq
        %v2083 = vshrl.u32 %v2082, 7
        %v2084 = vsub.s32 %v2081, %v2083
        %v2085 = vrot.slane %v2071, %v2084
        %v2086 = vcombine.low %v2030, %v2046
        %v2087 = vcombine.high %v2030, %v2046
        %v2089 = vunpack.c.l.s4 1934713408
        %v2090 = vunpack.c.0.s8 %v2089
        %v2091 = vlaneseq
        %v2092 = vshrl.u32 %v2091, 7
        %v2093 = vsub.s32 %v2090, %v2092
        %v2094 = vrot.slane %v2086, %v2093
        %v2096 = vunpack.c.l.s4 1934713408
        %v2097 = vunpack.c.0.s8 %v2096
        %v2098 = vlaneseq
        %v2099 = vshrl.u32 %v2098, 7
        %v2100 = vsub.s32 %v2097, %v2099
        %v2101 = vrot.slane %v2087, %v2100
        %v2102 = vcombine.low %v2037, %v2053
        %v2103 = vcombine.high %v2037, %v2053
        %v2105 = vunpack.c.l.s4 1934713408
        %v2106 = vunpack.c.0.s8 %v2105
        %v2107 = vlaneseq
        %v2108 = vshrl.u32 %v2107, 7
        %v2109 = vsub.s32 %v2106, %v2108
        %v2110 = vrot.slane %v2102, %v2109
        %v2112 = vunpack.c.l.s4 1934713408
        %v2113 = vunpack.c.0.s8 %v2112
        %v2114 = vlaneseq
        %v2115 = vshrl.u32 %v2114, 7
        %v2116 = vsub.s32 %v2113, %v2115
        %v2117 = vrot.slane %v2103, %v2116
        %v2118 = vcombine.low %v2062, %v2094
        %v2119 = vcombine.high %v2062, %v2094
        %v2120 = vcombine.low %v2069, %v2101
        %v2121 = vcombine.high %v2069, %v2101
        %v2122 = vcombine.low %v2078, %v2110
        %v2123 = vcombine.high %v2078, %v2110
        %v2124 = vcombine.low %v2085, %v2117
        %v2125 = vcombine.high %v2085, %v2117
        %v2126 = vcombine.low %v1207, %v1215
        %v2127 = vcombine.high %v1207, %v1215
        %v2129 = vunpack.c.l.s4 1983009808
        %v2130 = vunpack.c.0.s8 %v2129
        %v2131 = vlaneseq
        %v2132 = vshrl.u32 %v2131, 7
        %v2133 = vsub.s32 %v2130, %v2132
        %v2134 = vrot.slane %v2126, %v2133
        %v2136 = vunpack.c.l.s4 1983009808
        %v2137 = vunpack.c.0.s8 %v2136
        %v2138 = vlaneseq
        %v2139 = vshrl.u32 %v2138, 7
        %v2140 = vsub.s32 %v2137, %v2139
        %v2141 = vrot.slane %v2127, %v2140
        %v2142 = vcombine.low %v1211, %v1219
        %v2143 = vcombine.high %v1211, %v1219
        %v2145 = vunpack.c.l.s4 1983009808
        %v2146 = vunpack.c.0.s8 %v2145
        %v2147 = vlaneseq
        %v2148 = vshrl.u32 %v2147, 7
        %v2149 = vsub.s32 %v2146, %v2148
        %v2150 = vrot.slane %v2142, %v2149
        %v2152 = vunpack.c.l.s4 1983009808
        %v2153 = vunpack.c.0.s8 %v2152
        %v2154 = vlaneseq
        %v2155 = vshrl.u32 %v2154, 7
        %v2156 = vsub.s32 %v2153, %v2155
        %v2157 = vrot.slane %v2143, %v2156
        %v2158 = vcombine.low %v1223, %v1231
        %v2159 = vcombine.high %v1223, %v1231
        %v2161 = vunpack.c.l.s4 1983009808
        %v2162 = vunpack.c.0.s8 %v2161
        %v2163 = vlaneseq
        %v2164 = vshrl.u32 %v2163, 7
        %v2165 = vsub.s32 %v2162, %v2164
        %v2166 = vrot.slane %v2158, %v2165
        %v2168 = vunpack.c.l.s4 1983009808
        %v2169 = vunpack.c.0.s8 %v2168
        %v2170 = vlaneseq
        %v2171 = vshrl.u32 %v2170, 7
        %v2172 = vsub.s32 %v2169, %v2171
        %v2173 = vrot.slane %v2159, %v2172
        %v2174 = vcombine.low %v1227, %v1235
        %v2175 = vcombine.high %v1227, %v1235
        %v2177 = vunpack.c.l.s4 1983009808
        %v2178 = vunpack.c.0.s8 %v2177
        %v2179 = vlaneseq
        %v2180 = vshrl.u32 %v2179, 7
        %v2181 = vsub.s32 %v2178, %v2180
        %v2182 = vrot.slane %v2174, %v2181
        %v2184 = vunpack.c.l.s4 1983009808
        %v2185 = vunpack.c.0.s8 %v2184
        %v2186 = vlaneseq
        %v2187 = vshrl.u32 %v2186, 7
        %v2188 = vsub.s32 %v2185, %v2187
        %v2189 = vrot.slane %v2175, %v2188
        %v2190 = vcombine.low %v2134, %v2150
        %v2191 = vcombine.high %v2134, %v2150
        %v2193 = vunpack.c.l.s4 1934713408
        %v2194 = vunpack.c.0.s8 %v2193
        %v2195 = vlaneseq
        %v2196 = vshrl.u32 %v2195, 7
        %v2197 = vsub.s32 %v2194, %v2196
        %v2198 = vrot.slane %v2190, %v2197
        %v2200 = vunpack.c.l.s4 1934713408
        %v2201 = vunpack.c.0.s8 %v2200
        %v2202 = vlaneseq
        %v2203 = vshrl.u32 %v2202, 7
        %v2204 = vsub.s32 %v2201, %v2203
        %v2205 = vrot.slane %v2191, %v2204
        %v2206 = vcombine.low %v2141, %v2157
        %v2207 = vcombine.high %v2141, %v2157
        %v2209 = vunpack.c.l.s4 1934713408
        %v2210 = vunpack.c.0.s8 %v2209
        %v2211 = vlaneseq
        %v2212 = vshrl.u32 %v2211, 7
        %v2213 = vsub.s32 %v2210, %v2212
        %v2214 = vrot.slane %v2206, %v2213
        %v2216 = vunpack.c.l.s4 1934713408
        %v2217 = vunpack.c.0.s8 %v2216
        %v2218 = vlaneseq
        %v2219 = vshrl.u32 %v2218, 7
        %v2220 = vsub.s32 %v2217, %v2219
        %v2221 = vrot.slane %v2207, %v2220
        %v2222 = vcombine.low %v2166, %v2182
        %v2223 = vcombine.high %v2166, %v2182
        %v2225 = vunpack.c.l.s4 1934713408
        %v2226 = vunpack.c.0.s8 %v2225
        %v2227 = vlaneseq
        %v2228 = vshrl.u32 %v2227, 7
        %v2229 = vsub.s32 %v2226, %v2228
        %v2230 = vrot.slane %v2222, %v2229
        %v2232 = vunpack.c.l.s4 1934713408
        %v2233 = vunpack.c.0.s8 %v2232
        %v2234 = vlaneseq
        %v2235 = vshrl.u32 %v2234, 7
        %v2236 = vsub.s32 %v2233, %v2235
        %v2237 = vrot.slane %v2223, %v2236
        %v2238 = vcombine.low %v2173, %v2189
        %v2239 = vcombine.high %v2173, %v2189
        %v2241 = vunpack.c.l.s4 1934713408
        %v2242 = vunpack.c.0.s8 %v2241
        %v2243 = vlaneseq
        %v2244 = vshrl.u32 %v2243, 7
        %v2245 = vsub.s32 %v2242, %v2244
        %v2246 = vrot.slane %v2238, %v2245
        %v2248 = vunpack.c.l.s4 1934713408
        %v2249 = vunpack.c.0.s8 %v2248
        %v2250 = vlaneseq
        %v2251 = vshrl.u32 %v2250, 7
        %v2252 = vsub.s32 %v2249, %v2251
        %v2253 = vrot.slane %v2239, %v2252
        %v2254 = vcombine.low %v2198, %v2230
        %v2255 = vcombine.high %v2198, %v2230
        %v2256 = vcombine.low %v2205, %v2237
        %v2257 = vcombine.high %v2205, %v2237
        %v2258 = vcombine.low %v2214, %v2246
        %v2259 = vcombine.high %v2214, %v2246
        %v2260 = vcombine.low %v2221, %v2253
        %v2261 = vcombine.high %v2221, %v2253
        %v2262 = vcombine.low %v1079, %v1087
        %v2263 = vcombine.high %v1079, %v1087
        %v2265 = vunpack.c.l.s4 1983009808
        %v2266 = vunpack.c.0.s8 %v2265
        %v2267 = vlaneseq
        %v2268 = vshrl.u32 %v2267, 7
        %v2269 = vsub.s32 %v2266, %v2268
        %v2270 = vrot.slane %v2262, %v2269
        %v2272 = vunpack.c.l.s4 1983009808
        %v2273 = vunpack.c.0.s8 %v2272
        %v2274 = vlaneseq
        %v2275 = vshrl.u32 %v2274, 7
        %v2276 = vsub.s32 %v2273, %v2275
        %v2277 = vrot.slane %v2263, %v2276
        %v2278 = vcombine.low %v1083, %v1091
        %v2279 = vcombine.high %v1083, %v1091
        %v2281 = vunpack.c.l.s4 1983009808
        %v2282 = vunpack.c.0.s8 %v2281
        %v2283 = vlaneseq
        %v2284 = vshrl.u32 %v2283, 7
        %v2285 = vsub.s32 %v2282, %v2284
        %v2286 = vrot.slane %v2278, %v2285
        %v2288 = vunpack.c.l.s4 1983009808
        %v2289 = vunpack.c.0.s8 %v2288
        %v2290 = vlaneseq
        %v2291 = vshrl.u32 %v2290, 7
        %v2292 = vsub.s32 %v2289, %v2291
        %v2293 = vrot.slane %v2279, %v2292
        %v2294 = vcombine.low %v1095, %v1103
        %v2295 = vcombine.high %v1095, %v1103
        %v2297 = vunpack.c.l.s4 1983009808
        %v2298 = vunpack.c.0.s8 %v2297
        %v2299 = vlaneseq
        %v2300 = vshrl.u32 %v2299, 7
        %v2301 = vsub.s32 %v2298, %v2300
        %v2302 = vrot.slane %v2294, %v2301
        %v2304 = vunpack.c.l.s4 1983009808
        %v2305 = vunpack.c.0.s8 %v2304
        %v2306 = vlaneseq
        %v2307 = vshrl.u32 %v2306, 7
        %v2308 = vsub.s32 %v2305, %v2307
        %v2309 = vrot.slane %v2295, %v2308
        %v2310 = vcombine.low %v1099, %v1107
        %v2311 = vcombine.high %v1099, %v1107
        %v2313 = vunpack.c.l.s4 1983009808
        %v2314 = vunpack.c.0.s8 %v2313
        %v2315 = vlaneseq
        %v2316 = vshrl.u32 %v2315, 7
        %v2317 = vsub.s32 %v2314, %v2316
        %v2318 = vrot.slane %v2310, %v2317
        %v2320 = vunpack.c.l.s4 1983009808
        %v2321 = vunpack.c.0.s8 %v2320
        %v2322 = vlaneseq
        %v2323 = vshrl.u32 %v2322, 7
        %v2324 = vsub.s32 %v2321, %v2323
        %v2325 = vrot.slane %v2311, %v2324
        %v2326 = vcombine.low %v2270, %v2286
        %v2327 = vcombine.high %v2270, %v2286
        %v2329 = vunpack.c.l.s4 1934713408
        %v2330 = vunpack.c.0.s8 %v2329
        %v2331 = vlaneseq
        %v2332 = vshrl.u32 %v2331, 7
        %v2333 = vsub.s32 %v2330, %v2332
        %v2334 = vrot.slane %v2326, %v2333
        %v2336 = vunpack.c.l.s4 1934713408
        %v2337 = vunpack.c.0.s8 %v2336
        %v2338 = vlaneseq
        %v2339 = vshrl.u32 %v2338, 7
        %v2340 = vsub.s32 %v2337, %v2339
        %v2341 = vrot.slane %v2327, %v2340
        %v2342 = vcombine.low %v2277, %v2293
        %v2343 = vcombine.high %v2277, %v2293
        %v2345 = vunpack.c.l.s4 1934713408
        %v2346 = vunpack.c.0.s8 %v2345
        %v2347 = vlaneseq
        %v2348 = vshrl.u32 %v2347, 7
        %v2349 = vsub.s32 %v2346, %v2348
        %v2350 = vrot.slane %v2342, %v2349
        %v2352 = vunpack.c.l.s4 1934713408
        %v2353 = vunpack.c.0.s8 %v2352
        %v2354 = vlaneseq
        %v2355 = vshrl.u32 %v2354, 7
        %v2356 = vsub.s32 %v2353, %v2355
        %v2357 = vrot.slane %v2343, %v2356
        %v2358 = vcombine.low %v2302, %v2318
        %v2359 = vcombine.high %v2302, %v2318
        %v2361 = vunpack.c.l.s4 1934713408
        %v2362 = vunpack.c.0.s8 %v2361
        %v2363 = vlaneseq
        %v2364 = vshrl.u32 %v2363, 7
        %v2365 = vsub.s32 %v2362, %v2364
        %v2366 = vrot.slane %v2358, %v2365
        %v2368 = vunpack.c.l.s4 1934713408
        %v2369 = vunpack.c.0.s8 %v2368
        %v2370 = vlaneseq
        %v2371 = vshrl.u32 %v2370, 7
        %v2372 = vsub.s32 %v2369, %v2371
        %v2373 = vrot.slane %v2359, %v2372
        %v2374 = vcombine.low %v2309, %v2325
        %v2375 = vcombine.high %v2309, %v2325
        %v2377 = vunpack.c.l.s4 1934713408
        %v2378 = vunpack.c.0.s8 %v2377
        %v2379 = vlaneseq
        %v2380 = vshrl.u32 %v2379, 7
        %v2381 = vsub.s32 %v2378, %v2380
        %v2382 = vrot.slane %v2374, %v2381
        %v2384 = vunpack.c.l.s4 1934713408
        %v2385 = vunpack.c.0.s8 %v2384
        %v2386 = vlaneseq
        %v2387 = vshrl.u32 %v2386, 7
        %v2388 = vsub.s32 %v2385, %v2387
        %v2389 = vrot.slane %v2375, %v2388
        %v2390 = vcombine.low %v2334, %v2366
        %v2391 = vcombine.high %v2334, %v2366
        %v2392 = vcombine.low %v2341, %v2373
        %v2393 = vcombine.high %v2341, %v2373
        %v2394 = vcombine.low %v2350, %v2382
        %v2395 = vcombine.high %v2350, %v2382
        %v2396 = vcombine.low %v2357, %v2389
        %v2397 = vcombine.high %v2357, %v2389
        %v2398 = vcombine.low %v1239, %v1247
        %v2399 = vcombine.high %v1239, %v1247
        %v2401 = vunpack.c.l.s4 1983009808
        %v2402 = vunpack.c.0.s8 %v2401
        %v2403 = vlaneseq
        %v2404 = vshrl.u32 %v2403, 7
        %v2405 = vsub.s32 %v2402, %v2404
        %v2406 = vrot.slane %v2398, %v2405
        %v2408 = vunpack.c.l.s4 1983009808
        %v2409 = vunpack.c.0.s8 %v2408
        %v2410 = vlaneseq
        %v2411 = vshrl.u32 %v2410, 7
        %v2412 = vsub.s32 %v2409, %v2411
        %v2413 = vrot.slane %v2399, %v2412
        %v2414 = vcombine.low %v1243, %v1251
        %v2415 = vcombine.high %v1243, %v1251
        %v2417 = vunpack.c.l.s4 1983009808
        %v2418 = vunpack.c.0.s8 %v2417
        %v2419 = vlaneseq
        %v2420 = vshrl.u32 %v2419, 7
        %v2421 = vsub.s32 %v2418, %v2420
        %v2422 = vrot.slane %v2414, %v2421
        %v2424 = vunpack.c.l.s4 1983009808
        %v2425 = vunpack.c.0.s8 %v2424
        %v2426 = vlaneseq
        %v2427 = vshrl.u32 %v2426, 7
        %v2428 = vsub.s32 %v2425, %v2427
        %v2429 = vrot.slane %v2415, %v2428
        %v2430 = vcombine.low %v1255, %v1263
        %v2431 = vcombine.high %v1255, %v1263
        %v2433 = vunpack.c.l.s4 1983009808
        %v2434 = vunpack.c.0.s8 %v2433
        %v2435 = vlaneseq
        %v2436 = vshrl.u32 %v2435, 7
        %v2437 = vsub.s32 %v2434, %v2436
        %v2438 = vrot.slane %v2430, %v2437
        %v2440 = vunpack.c.l.s4 1983009808
        %v2441 = vunpack.c.0.s8 %v2440
        %v2442 = vlaneseq
        %v2443 = vshrl.u32 %v2442, 7
        %v2444 = vsub.s32 %v2441, %v2443
        %v2445 = vrot.slane %v2431, %v2444
        %v2446 = vcombine.low %v1259, %v1267
        %v2447 = vcombine.high %v1259, %v1267
        %v2449 = vunpack.c.l.s4 1983009808
        %v2450 = vunpack.c.0.s8 %v2449
        %v2451 = vlaneseq
        %v2452 = vshrl.u32 %v2451, 7
        %v2453 = vsub.s32 %v2450, %v2452
        %v2454 = vrot.slane %v2446, %v2453
        %v2456 = vunpack.c.l.s4 1983009808
        %v2457 = vunpack.c.0.s8 %v2456
        %v2458 = vlaneseq
        %v2459 = vshrl.u32 %v2458, 7
        %v2460 = vsub.s32 %v2457, %v2459
        %v2461 = vrot.slane %v2447, %v2460
        %v2462 = vcombine.low %v2406, %v2422
        %v2463 = vcombine.high %v2406, %v2422
        %v2465 = vunpack.c.l.s4 1934713408
        %v2466 = vunpack.c.0.s8 %v2465
        %v2467 = vlaneseq
        %v2468 = vshrl.u32 %v2467, 7
        %v2469 = vsub.s32 %v2466, %v2468
        %v2470 = vrot.slane %v2462, %v2469
        %v2472 = vunpack.c.l.s4 1934713408
        %v2473 = vunpack.c.0.s8 %v2472
        %v2474 = vlaneseq
        %v2475 = vshrl.u32 %v2474, 7
        %v2476 = vsub.s32 %v2473, %v2475
        %v2477 = vrot.slane %v2463, %v2476
        %v2478 = vcombine.low %v2413, %v2429
        %v2479 = vcombine.high %v2413, %v2429
        %v2481 = vunpack.c.l.s4 1934713408
        %v2482 = vunpack.c.0.s8 %v2481
        %v2483 = vlaneseq
        %v2484 = vshrl.u32 %v2483, 7
        %v2485 = vsub.s32 %v2482, %v2484
        %v2486 = vrot.slane %v2478, %v2485
        %v2488 = vunpack.c.l.s4 1934713408
        %v2489 = vunpack.c.0.s8 %v2488
        %v2490 = vlaneseq
        %v2491 = vshrl.u32 %v2490, 7
        %v2492 = vsub.s32 %v2489, %v2491
        %v2493 = vrot.slane %v2479, %v2492
        %v2494 = vcombine.low %v2438, %v2454
        %v2495 = vcombine.high %v2438, %v2454
        %v2497 = vunpack.c.l.s4 1934713408
        %v2498 = vunpack.c.0.s8 %v2497
        %v2499 = vlaneseq
        %v2500 = vshrl.u32 %v2499, 7
        %v2501 = vsub.s32 %v2498, %v2500
        %v2502 = vrot.slane %v2494, %v2501
        %v2504 = vunpack.c.l.s4 1934713408
        %v2505 = vunpack.c.0.s8 %v2504
        %v2506 = vlaneseq
        %v2507 = vshrl.u32 %v2506, 7
        %v2508 = vsub.s32 %v2505, %v2507
        %v2509 = vrot.slane %v2495, %v2508
        %v2510 = vcombine.low %v2445, %v2461
        %v2511 = vcombine.high %v2445, %v2461
        %v2513 = vunpack.c.l.s4 1934713408
        %v2514 = vunpack.c.0.s8 %v2513
        %v2515 = vlaneseq
        %v2516 = vshrl.u32 %v2515, 7
        %v2517 = vsub.s32 %v2514, %v2516
        %v2518 = vrot.slane %v2510, %v2517
        %v2520 = vunpack.c.l.s4 1934713408
        %v2521 = vunpack.c.0.s8 %v2520
        %v2522 = vlaneseq
        %v2523 = vshrl.u32 %v2522, 7
        %v2524 = vsub.s32 %v2521, %v2523
        %v2525 = vrot.slane %v2511, %v2524
        %v2526 = vcombine.low %v2470, %v2502
        %v2527 = vcombine.high %v2470, %v2502
        %v2528 = vcombine.low %v2477, %v2509
        %v2529 = vcombine.high %v2477, %v2509
        %v2530 = vcombine.low %v2486, %v2518
        %v2531 = vcombine.high %v2486, %v2518
        %v2532 = vcombine.low %v2493, %v2525
        %v2533 = vcombine.high %v2493, %v2525
        %v2534 = vcombine.low %v1271, %v1279
        %v2535 = vcombine.high %v1271, %v1279
        %v2537 = vunpack.c.l.s4 1983009808
        %v2538 = vunpack.c.0.s8 %v2537
        %v2539 = vlaneseq
        %v2540 = vshrl.u32 %v2539, 7
        %v2541 = vsub.s32 %v2538, %v2540
        %v2542 = vrot.slane %v2534, %v2541
        %v2544 = vunpack.c.l.s4 1983009808
        %v2545 = vunpack.c.0.s8 %v2544
        %v2546 = vlaneseq
        %v2547 = vshrl.u32 %v2546, 7
        %v2548 = vsub.s32 %v2545, %v2547
        %v2549 = vrot.slane %v2535, %v2548
        %v2550 = vcombine.low %v1275, %v1283
        %v2551 = vcombine.high %v1275, %v1283
        %v2553 = vunpack.c.l.s4 1983009808
        %v2554 = vunpack.c.0.s8 %v2553
        %v2555 = vlaneseq
        %v2556 = vshrl.u32 %v2555, 7
        %v2557 = vsub.s32 %v2554, %v2556
        %v2558 = vrot.slane %v2550, %v2557
        %v2560 = vunpack.c.l.s4 1983009808
        %v2561 = vunpack.c.0.s8 %v2560
        %v2562 = vlaneseq
        %v2563 = vshrl.u32 %v2562, 7
        %v2564 = vsub.s32 %v2561, %v2563
        %v2565 = vrot.slane %v2551, %v2564
        %v2566 = vcombine.low %v1287, %v1295
        %v2567 = vcombine.high %v1287, %v1295
        %v2569 = vunpack.c.l.s4 1983009808
        %v2570 = vunpack.c.0.s8 %v2569
        %v2571 = vlaneseq
        %v2572 = vshrl.u32 %v2571, 7
        %v2573 = vsub.s32 %v2570, %v2572
        %v2574 = vrot.slane %v2566, %v2573
        %v2576 = vunpack.c.l.s4 1983009808
        %v2577 = vunpack.c.0.s8 %v2576
        %v2578 = vlaneseq
        %v2579 = vshrl.u32 %v2578, 7
        %v2580 = vsub.s32 %v2577, %v2579
        %v2581 = vrot.slane %v2567, %v2580
        %v2582 = vcombine.low %v1291, %v1299
        %v2583 = vcombine.high %v1291, %v1299
        %v2585 = vunpack.c.l.s4 1983009808
        %v2586 = vunpack.c.0.s8 %v2585
        %v2587 = vlaneseq
        %v2588 = vshrl.u32 %v2587, 7
        %v2589 = vsub.s32 %v2586, %v2588
        %v2590 = vrot.slane %v2582, %v2589
        %v2592 = vunpack.c.l.s4 1983009808
        %v2593 = vunpack.c.0.s8 %v2592
        %v2594 = vlaneseq
        %v2595 = vshrl.u32 %v2594, 7
        %v2596 = vsub.s32 %v2593, %v2595
        %v2597 = vrot.slane %v2583, %v2596
        %v2598 = vcombine.low %v2542, %v2558
        %v2599 = vcombine.high %v2542, %v2558
        %v2601 = vunpack.c.l.s4 1934713408
        %v2602 = vunpack.c.0.s8 %v2601
        %v2603 = vlaneseq
        %v2604 = vshrl.u32 %v2603, 7
        %v2605 = vsub.s32 %v2602, %v2604
        %v2606 = vrot.slane %v2598, %v2605
        %v2608 = vunpack.c.l.s4 1934713408
        %v2609 = vunpack.c.0.s8 %v2608
        %v2610 = vlaneseq
        %v2611 = vshrl.u32 %v2610, 7
        %v2612 = vsub.s32 %v2609, %v2611
        %v2613 = vrot.slane %v2599, %v2612
        %v2614 = vcombine.low %v2549, %v2565
        %v2615 = vcombine.high %v2549, %v2565
        %v2617 = vunpack.c.l.s4 1934713408
        %v2618 = vunpack.c.0.s8 %v2617
        %v2619 = vlaneseq
        %v2620 = vshrl.u32 %v2619, 7
        %v2621 = vsub.s32 %v2618, %v2620
        %v2622 = vrot.slane %v2614, %v2621
        %v2624 = vunpack.c.l.s4 1934713408
        %v2625 = vunpack.c.0.s8 %v2624
        %v2626 = vlaneseq
        %v2627 = vshrl.u32 %v2626, 7
        %v2628 = vsub.s32 %v2625, %v2627
        %v2629 = vrot.slane %v2615, %v2628
        %v2630 = vcombine.low %v2574, %v2590
        %v2631 = vcombine.high %v2574, %v2590
        %v2633 = vunpack.c.l.s4 1934713408
        %v2634 = vunpack.c.0.s8 %v2633
        %v2635 = vlaneseq
        %v2636 = vshrl.u32 %v2635, 7
        %v2637 = vsub.s32 %v2634, %v2636
        %v2638 = vrot.slane %v2630, %v2637
        %v2640 = vunpack.c.l.s4 1934713408
        %v2641 = vunpack.c.0.s8 %v2640
        %v2642 = vlaneseq
        %v2643 = vshrl.u32 %v2642, 7
        %v2644 = vsub.s32 %v2641, %v2643
        %v2645 = vrot.slane %v2631, %v2644
        %v2646 = vcombine.low %v2581, %v2597
        %v2647 = vcombine.high %v2581, %v2597
        %v2649 = vunpack.c.l.s4 1934713408
        %v2650 = vunpack.c.0.s8 %v2649
        %v2651 = vlaneseq
        %v2652 = vshrl.u32 %v2651, 7
        %v2653 = vsub.s32 %v2650, %v2652
        %v2654 = vrot.slane %v2646, %v2653
        %v2656 = vunpack.c.l.s4 1934713408
        %v2657 = vunpack.c.0.s8 %v2656
        %v2658 = vlaneseq
        %v2659 = vshrl.u32 %v2658, 7
        %v2660 = vsub.s32 %v2657, %v2659
        %v2661 = vrot.slane %v2647, %v2660
        %v2662 = vcombine.low %v2606, %v2638
        %v2663 = vcombine.high %v2606, %v2638
        %v2664 = vcombine.low %v2613, %v2645
        %v2665 = vcombine.high %v2613, %v2645
        %v2666 = vcombine.low %v2622, %v2654
        %v2667 = vcombine.high %v2622, %v2654
        %v2668 = vcombine.low %v2629, %v2661
        %v2669 = vcombine.high %v2629, %v2661
        %v2670 = vcombine.low %v921, %v929
        %v2671 = vcombine.high %v921, %v929
        %v2673 = vunpack.c.l.s4 1983009808
        %v2674 = vunpack.c.0.s8 %v2673
        %v2675 = vlaneseq
        %v2676 = vshrl.u32 %v2675, 7
        %v2677 = vsub.s32 %v2674, %v2676
        %v2678 = vrot.slane %v2670, %v2677
        %v2680 = vunpack.c.l.s4 1983009808
        %v2681 = vunpack.c.0.s8 %v2680
        %v2682 = vlaneseq
        %v2683 = vshrl.u32 %v2682, 7
        %v2684 = vsub.s32 %v2681, %v2683
        %v2685 = vrot.slane %v2671, %v2684
        %v2686 = vcombine.low %v925, %v933
        %v2687 = vcombine.high %v925, %v933
        %v2689 = vunpack.c.l.s4 1983009808
        %v2690 = vunpack.c.0.s8 %v2689
        %v2691 = vlaneseq
        %v2692 = vshrl.u32 %v2691, 7
        %v2693 = vsub.s32 %v2690, %v2692
        %v2694 = vrot.slane %v2686, %v2693
        %v2696 = vunpack.c.l.s4 1983009808
        %v2697 = vunpack.c.0.s8 %v2696
        %v2698 = vlaneseq
        %v2699 = vshrl.u32 %v2698, 7
        %v2700 = vsub.s32 %v2697, %v2699
        %v2701 = vrot.slane %v2687, %v2700
        %v2702 = vcombine.low %v937, %v945
        %v2703 = vcombine.high %v937, %v945
        %v2705 = vunpack.c.l.s4 1983009808
        %v2706 = vunpack.c.0.s8 %v2705
        %v2707 = vlaneseq
        %v2708 = vshrl.u32 %v2707, 7
        %v2709 = vsub.s32 %v2706, %v2708
        %v2710 = vrot.slane %v2702, %v2709
        %v2712 = vunpack.c.l.s4 1983009808
        %v2713 = vunpack.c.0.s8 %v2712
        %v2714 = vlaneseq
        %v2715 = vshrl.u32 %v2714, 7
        %v2716 = vsub.s32 %v2713, %v2715
        %v2717 = vrot.slane %v2703, %v2716
        %v2718 = vcombine.low %v941, %v949
        %v2719 = vcombine.high %v941, %v949
        %v2721 = vunpack.c.l.s4 1983009808
        %v2722 = vunpack.c.0.s8 %v2721
        %v2723 = vlaneseq
        %v2724 = vshrl.u32 %v2723, 7
        %v2725 = vsub.s32 %v2722, %v2724
        %v2726 = vrot.slane %v2718, %v2725
        %v2728 = vunpack.c.l.s4 1983009808
        %v2729 = vunpack.c.0.s8 %v2728
        %v2730 = vlaneseq
        %v2731 = vshrl.u32 %v2730, 7
        %v2732 = vsub.s32 %v2729, %v2731
        %v2733 = vrot.slane %v2719, %v2732
        %v2734 = vcombine.low %v2678, %v2694
        %v2735 = vcombine.high %v2678, %v2694
        %v2737 = vunpack.c.l.s4 1934713408
        %v2738 = vunpack.c.0.s8 %v2737
        %v2739 = vlaneseq
        %v2740 = vshrl.u32 %v2739, 7
        %v2741 = vsub.s32 %v2738, %v2740
        %v2742 = vrot.slane %v2734, %v2741
        %v2744 = vunpack.c.l.s4 1934713408
        %v2745 = vunpack.c.0.s8 %v2744
        %v2746 = vlaneseq
        %v2747 = vshrl.u32 %v2746, 7
        %v2748 = vsub.s32 %v2745, %v2747
        %v2749 = vrot.slane %v2735, %v2748
        %v2750 = vcombine.low %v2685, %v2701
        %v2751 = vcombine.high %v2685, %v2701
        %v2753 = vunpack.c.l.s4 1934713408
        %v2754 = vunpack.c.0.s8 %v2753
        %v2755 = vlaneseq
        %v2756 = vshrl.u32 %v2755, 7
        %v2757 = vsub.s32 %v2754, %v2756
        %v2758 = vrot.slane %v2750, %v2757
        %v2760 = vunpack.c.l.s4 1934713408
        %v2761 = vunpack.c.0.s8 %v2760
        %v2762 = vlaneseq
        %v2763 = vshrl.u32 %v2762, 7
        %v2764 = vsub.s32 %v2761, %v2763
        %v2765 = vrot.slane %v2751, %v2764
        %v2766 = vcombine.low %v2710, %v2726
        %v2767 = vcombine.high %v2710, %v2726
        %v2769 = vunpack.c.l.s4 1934713408
        %v2770 = vunpack.c.0.s8 %v2769
        %v2771 = vlaneseq
        %v2772 = vshrl.u32 %v2771, 7
        %v2773 = vsub.s32 %v2770, %v2772
        %v2774 = vrot.slane %v2766, %v2773
        %v2776 = vunpack.c.l.s4 1934713408
        %v2777 = vunpack.c.0.s8 %v2776
        %v2778 = vlaneseq
        %v2779 = vshrl.u32 %v2778, 7
        %v2780 = vsub.s32 %v2777, %v2779
        %v2781 = vrot.slane %v2767, %v2780
        %v2782 = vcombine.low %v2717, %v2733
        %v2783 = vcombine.high %v2717, %v2733
        %v2785 = vunpack.c.l.s4 1934713408
        %v2786 = vunpack.c.0.s8 %v2785
        %v2787 = vlaneseq
        %v2788 = vshrl.u32 %v2787, 7
        %v2789 = vsub.s32 %v2786, %v2788
        %v2790 = vrot.slane %v2782, %v2789
        %v2792 = vunpack.c.l.s4 1934713408
        %v2793 = vunpack.c.0.s8 %v2792
        %v2794 = vlaneseq
        %v2795 = vshrl.u32 %v2794, 7
        %v2796 = vsub.s32 %v2793, %v2795
        %v2797 = vrot.slane %v2783, %v2796
        %v2798 = vcombine.low %v2742, %v2774
        %v2799 = vcombine.high %v2742, %v2774
        %v2800 = vcombine.low %v2749, %v2781
        %v2801 = vcombine.high %v2749, %v2781
        %v2802 = vcombine.low %v2758, %v2790
        %v2803 = vcombine.high %v2758, %v2790
        %v2804 = vcombine.low %v2765, %v2797
        %v2805 = vcombine.high %v2765, %v2797
        %v2806 = vcombine.low %v1113, %v1121
        %v2807 = vcombine.high %v1113, %v1121
        %v2809 = vunpack.c.l.s4 1983009808
        %v2810 = vunpack.c.0.s8 %v2809
        %v2811 = vlaneseq
        %v2812 = vshrl.u32 %v2811, 7
        %v2813 = vsub.s32 %v2810, %v2812
        %v2814 = vrot.slane %v2806, %v2813
        %v2816 = vunpack.c.l.s4 1983009808
        %v2817 = vunpack.c.0.s8 %v2816
        %v2818 = vlaneseq
        %v2819 = vshrl.u32 %v2818, 7
        %v2820 = vsub.s32 %v2817, %v2819
        %v2821 = vrot.slane %v2807, %v2820
        %v2822 = vcombine.low %v1117, %v1125
        %v2823 = vcombine.high %v1117, %v1125
        %v2825 = vunpack.c.l.s4 1983009808
        %v2826 = vunpack.c.0.s8 %v2825
        %v2827 = vlaneseq
        %v2828 = vshrl.u32 %v2827, 7
        %v2829 = vsub.s32 %v2826, %v2828
        %v2830 = vrot.slane %v2822, %v2829
        %v2832 = vunpack.c.l.s4 1983009808
        %v2833 = vunpack.c.0.s8 %v2832
        %v2834 = vlaneseq
        %v2835 = vshrl.u32 %v2834, 7
        %v2836 = vsub.s32 %v2833, %v2835
        %v2837 = vrot.slane %v2823, %v2836
        %v2838 = vcombine.low %v1129, %v1137
        %v2839 = vcombine.high %v1129, %v1137
        %v2841 = vunpack.c.l.s4 1983009808
        %v2842 = vunpack.c.0.s8 %v2841
        %v2843 = vlaneseq
        %v2844 = vshrl.u32 %v2843, 7
        %v2845 = vsub.s32 %v2842, %v2844
        %v2846 = vrot.slane %v2838, %v2845
        %v2848 = vunpack.c.l.s4 1983009808
        %v2849 = vunpack.c.0.s8 %v2848
        %v2850 = vlaneseq
        %v2851 = vshrl.u32 %v2850, 7
        %v2852 = vsub.s32 %v2849, %v2851
        %v2853 = vrot.slane %v2839, %v2852
        %v2854 = vcombine.low %v1133, %v1141
        %v2855 = vcombine.high %v1133, %v1141
        %v2857 = vunpack.c.l.s4 1983009808
        %v2858 = vunpack.c.0.s8 %v2857
        %v2859 = vlaneseq
        %v2860 = vshrl.u32 %v2859, 7
        %v2861 = vsub.s32 %v2858, %v2860
        %v2862 = vrot.slane %v2854, %v2861
        %v2864 = vunpack.c.l.s4 1983009808
        %v2865 = vunpack.c.0.s8 %v2864
        %v2866 = vlaneseq
        %v2867 = vshrl.u32 %v2866, 7
        %v2868 = vsub.s32 %v2865, %v2867
        %v2869 = vrot.slane %v2855, %v2868
        %v2870 = vcombine.low %v2814, %v2830
        %v2871 = vcombine.high %v2814, %v2830
        %v2873 = vunpack.c.l.s4 1934713408
        %v2874 = vunpack.c.0.s8 %v2873
        %v2875 = vlaneseq
        %v2876 = vshrl.u32 %v2875, 7
        %v2877 = vsub.s32 %v2874, %v2876
        %v2878 = vrot.slane %v2870, %v2877
        %v2880 = vunpack.c.l.s4 1934713408
        %v2881 = vunpack.c.0.s8 %v2880
        %v2882 = vlaneseq
        %v2883 = vshrl.u32 %v2882, 7
        %v2884 = vsub.s32 %v2881, %v2883
        %v2885 = vrot.slane %v2871, %v2884
        %v2886 = vcombine.low %v2821, %v2837
        %v2887 = vcombine.high %v2821, %v2837
        %v2889 = vunpack.c.l.s4 1934713408
        %v2890 = vunpack.c.0.s8 %v2889
        %v2891 = vlaneseq
        %v2892 = vshrl.u32 %v2891, 7
        %v2893 = vsub.s32 %v2890, %v2892
        %v2894 = vrot.slane %v2886, %v2893
        %v2896 = vunpack.c.l.s4 1934713408
        %v2897 = vunpack.c.0.s8 %v2896
        %v2898 = vlaneseq
        %v2899 = vshrl.u32 %v2898, 7
        %v2900 = vsub.s32 %v2897, %v2899
        %v2901 = vrot.slane %v2887, %v2900
        %v2902 = vcombine.low %v2846, %v2862
        %v2903 = vcombine.high %v2846, %v2862
        %v2905 = vunpack.c.l.s4 1934713408
        %v2906 = vunpack.c.0.s8 %v2905
        %v2907 = vlaneseq
        %v2908 = vshrl.u32 %v2907, 7
        %v2909 = vsub.s32 %v2906, %v2908
        %v2910 = vrot.slane %v2902, %v2909
        %v2912 = vunpack.c.l.s4 1934713408
        %v2913 = vunpack.c.0.s8 %v2912
        %v2914 = vlaneseq
        %v2915 = vshrl.u32 %v2914, 7
        %v2916 = vsub.s32 %v2913, %v2915
        %v2917 = vrot.slane %v2903, %v2916
        %v2918 = vcombine.low %v2853, %v2869
        %v2919 = vcombine.high %v2853, %v2869
        %v2921 = vunpack.c.l.s4 1934713408
        %v2922 = vunpack.c.0.s8 %v2921
        %v2923 = vlaneseq
        %v2924 = vshrl.u32 %v2923, 7
        %v2925 = vsub.s32 %v2922, %v2924
        %v2926 = vrot.slane %v2918, %v2925
        %v2928 = vunpack.c.l.s4 1934713408
        %v2929 = vunpack.c.0.s8 %v2928
        %v2930 = vlaneseq
        %v2931 = vshrl.u32 %v2930, 7
        %v2932 = vsub.s32 %v2929, %v2931
        %v2933 = vrot.slane %v2919, %v2932
        %v2934 = vcombine.low %v2878, %v2910
        %v2935 = vcombine.high %v2878, %v2910
        %v2936 = vcombine.low %v2885, %v2917
        %v2937 = vcombine.high %v2885, %v2917
        %v2938 = vcombine.low %v2894, %v2926
        %v2939 = vcombine.high %v2894, %v2926
        %v2940 = vcombine.low %v2901, %v2933
        %v2941 = vcombine.high %v2901, %v2933
        %v2942 = vcombine.low %v1145, %v1153
        %v2943 = vcombine.high %v1145, %v1153
        %v2945 = vunpack.c.l.s4 1983009808
        %v2946 = vunpack.c.0.s8 %v2945
        %v2947 = vlaneseq
        %v2948 = vshrl.u32 %v2947, 7
        %v2949 = vsub.s32 %v2946, %v2948
        %v2950 = vrot.slane %v2942, %v2949
        %v2952 = vunpack.c.l.s4 1983009808
        %v2953 = vunpack.c.0.s8 %v2952
        %v2954 = vlaneseq
        %v2955 = vshrl.u32 %v2954, 7
        %v2956 = vsub.s32 %v2953, %v2955
        %v2957 = vrot.slane %v2943, %v2956
        %v2958 = vcombine.low %v1149, %v1157
        %v2959 = vcombine.high %v1149, %v1157
        %v2961 = vunpack.c.l.s4 1983009808
        %v2962 = vunpack.c.0.s8 %v2961
        %v2963 = vlaneseq
        %v2964 = vshrl.u32 %v2963, 7
        %v2965 = vsub.s32 %v2962, %v2964
        %v2966 = vrot.slane %v2958, %v2965
        %v2968 = vunpack.c.l.s4 1983009808
        %v2969 = vunpack.c.0.s8 %v2968
        %v2970 = vlaneseq
        %v2971 = vshrl.u32 %v2970, 7
        %v2972 = vsub.s32 %v2969, %v2971
        %v2973 = vrot.slane %v2959, %v2972
        %v2974 = vcombine.low %v1161, %v1169
        %v2975 = vcombine.high %v1161, %v1169
        %v2977 = vunpack.c.l.s4 1983009808
        %v2978 = vunpack.c.0.s8 %v2977
        %v2979 = vlaneseq
        %v2980 = vshrl.u32 %v2979, 7
        %v2981 = vsub.s32 %v2978, %v2980
        %v2982 = vrot.slane %v2974, %v2981
        %v2984 = vunpack.c.l.s4 1983009808
        %v2985 = vunpack.c.0.s8 %v2984
        %v2986 = vlaneseq
        %v2987 = vshrl.u32 %v2986, 7
        %v2988 = vsub.s32 %v2985, %v2987
        %v2989 = vrot.slane %v2975, %v2988
        %v2990 = vcombine.low %v1165, %v1173
        %v2991 = vcombine.high %v1165, %v1173
        %v2993 = vunpack.c.l.s4 1983009808
        %v2994 = vunpack.c.0.s8 %v2993
        %v2995 = vlaneseq
        %v2996 = vshrl.u32 %v2995, 7
        %v2997 = vsub.s32 %v2994, %v2996
        %v2998 = vrot.slane %v2990, %v2997
        %v3000 = vunpack.c.l.s4 1983009808
        %v3001 = vunpack.c.0.s8 %v3000
        %v3002 = vlaneseq
        %v3003 = vshrl.u32 %v3002, 7
        %v3004 = vsub.s32 %v3001, %v3003
        %v3005 = vrot.slane %v2991, %v3004
        %v3006 = vcombine.low %v2950, %v2966
        %v3007 = vcombine.high %v2950, %v2966
        %v3009 = vunpack.c.l.s4 1934713408
        %v3010 = vunpack.c.0.s8 %v3009
        %v3011 = vlaneseq
        %v3012 = vshrl.u32 %v3011, 7
        %v3013 = vsub.s32 %v3010, %v3012
        %v3014 = vrot.slane %v3006, %v3013
        %v3016 = vunpack.c.l.s4 1934713408
        %v3017 = vunpack.c.0.s8 %v3016
        %v3018 = vlaneseq
        %v3019 = vshrl.u32 %v3018, 7
        %v3020 = vsub.s32 %v3017, %v3019
        %v3021 = vrot.slane %v3007, %v3020
        %v3022 = vcombine.low %v2957, %v2973
        %v3023 = vcombine.high %v2957, %v2973
        %v3025 = vunpack.c.l.s4 1934713408
        %v3026 = vunpack.c.0.s8 %v3025
        %v3027 = vlaneseq
        %v3028 = vshrl.u32 %v3027, 7
        %v3029 = vsub.s32 %v3026, %v3028
        %v3030 = vrot.slane %v3022, %v3029
        %v3032 = vunpack.c.l.s4 1934713408
        %v3033 = vunpack.c.0.s8 %v3032
        %v3034 = vlaneseq
        %v3035 = vshrl.u32 %v3034, 7
        %v3036 = vsub.s32 %v3033, %v3035
        %v3037 = vrot.slane %v3023, %v3036
        %v3038 = vcombine.low %v2982, %v2998
        %v3039 = vcombine.high %v2982, %v2998
        %v3041 = vunpack.c.l.s4 1934713408
        %v3042 = vunpack.c.0.s8 %v3041
        %v3043 = vlaneseq
        %v3044 = vshrl.u32 %v3043, 7
        %v3045 = vsub.s32 %v3042, %v3044
        %v3046 = vrot.slane %v3038, %v3045
        %v3048 = vunpack.c.l.s4 1934713408
        %v3049 = vunpack.c.0.s8 %v3048
        %v3050 = vlaneseq
        %v3051 = vshrl.u32 %v3050, 7
        %v3052 = vsub.s32 %v3049, %v3051
        %v3053 = vrot.slane %v3039, %v3052
        %v3054 = vcombine.low %v2989, %v3005
        %v3055 = vcombine.high %v2989, %v3005
        %v3057 = vunpack.c.l.s4 1934713408
        %v3058 = vunpack.c.0.s8 %v3057
        %v3059 = vlaneseq
        %v3060 = vshrl.u32 %v3059, 7
        %v3061 = vsub.s32 %v3058, %v3060
        %v3062 = vrot.slane %v3054, %v3061
        %v3064 = vunpack.c.l.s4 1934713408
        %v3065 = vunpack.c.0.s8 %v3064
        %v3066 = vlaneseq
        %v3067 = vshrl.u32 %v3066, 7
        %v3068 = vsub.s32 %v3065, %v3067
        %v3069 = vrot.slane %v3055, %v3068
        %v3070 = vcombine.low %v3014, %v3046
        %v3071 = vcombine.high %v3014, %v3046
        %v3072 = vcombine.low %v3021, %v3053
        %v3073 = vcombine.high %v3021, %v3053
        %v3074 = vcombine.low %v3030, %v3062
        %v3075 = vcombine.high %v3030, %v3062
        %v3076 = vcombine.low %v3037, %v3069
        %v3077 = vcombine.high %v3037, %v3069
        %v3078 = vcombine.low %v1001, %v1009
        %v3079 = vcombine.high %v1001, %v1009
        %v3081 = vunpack.c.l.s4 1983009808
        %v3082 = vunpack.c.0.s8 %v3081
        %v3083 = vlaneseq
        %v3084 = vshrl.u32 %v3083, 7
        %v3085 = vsub.s32 %v3082, %v3084
        %v3086 = vrot.slane %v3078, %v3085
        %v3088 = vunpack.c.l.s4 1983009808
        %v3089 = vunpack.c.0.s8 %v3088
        %v3090 = vlaneseq
        %v3091 = vshrl.u32 %v3090, 7
        %v3092 = vsub.s32 %v3089, %v3091
        %v3093 = vrot.slane %v3079, %v3092
        %v3094 = vcombine.low %v1005, %v1013
        %v3095 = vcombine.high %v1005, %v1013
        %v3097 = vunpack.c.l.s4 1983009808
        %v3098 = vunpack.c.0.s8 %v3097
        %v3099 = vlaneseq
        %v3100 = vshrl.u32 %v3099, 7
        %v3101 = vsub.s32 %v3098, %v3100
        %v3102 = vrot.slane %v3094, %v3101
        %v3104 = vunpack.c.l.s4 1983009808
        %v3105 = vunpack.c.0.s8 %v3104
        %v3106 = vlaneseq
        %v3107 = vshrl.u32 %v3106, 7
        %v3108 = vsub.s32 %v3105, %v3107
        %v3109 = vrot.slane %v3095, %v3108
        %v3110 = vcombine.low %v1017, %v1025
        %v3111 = vcombine.high %v1017, %v1025
        %v3113 = vunpack.c.l.s4 1983009808
        %v3114 = vunpack.c.0.s8 %v3113
        %v3115 = vlaneseq
        %v3116 = vshrl.u32 %v3115, 7
        %v3117 = vsub.s32 %v3114, %v3116
        %v3118 = vrot.slane %v3110, %v3117
        %v3120 = vunpack.c.l.s4 1983009808
        %v3121 = vunpack.c.0.s8 %v3120
        %v3122 = vlaneseq
        %v3123 = vshrl.u32 %v3122, 7
        %v3124 = vsub.s32 %v3121, %v3123
        %v3125 = vrot.slane %v3111, %v3124
        %v3126 = vcombine.low %v1021, %v1029
        %v3127 = vcombine.high %v1021, %v1029
        %v3129 = vunpack.c.l.s4 1983009808
        %v3130 = vunpack.c.0.s8 %v3129
        %v3131 = vlaneseq
        %v3132 = vshrl.u32 %v3131, 7
        %v3133 = vsub.s32 %v3130, %v3132
        %v3134 = vrot.slane %v3126, %v3133
        %v3136 = vunpack.c.l.s4 1983009808
        %v3137 = vunpack.c.0.s8 %v3136
        %v3138 = vlaneseq
        %v3139 = vshrl.u32 %v3138, 7
        %v3140 = vsub.s32 %v3137, %v3139
        %v3141 = vrot.slane %v3127, %v3140
        %v3142 = vcombine.low %v3086, %v3102
        %v3143 = vcombine.high %v3086, %v3102
        %v3145 = vunpack.c.l.s4 1934713408
        %v3146 = vunpack.c.0.s8 %v3145
        %v3147 = vlaneseq
        %v3148 = vshrl.u32 %v3147, 7
        %v3149 = vsub.s32 %v3146, %v3148
        %v3150 = vrot.slane %v3142, %v3149
        %v3152 = vunpack.c.l.s4 1934713408
        %v3153 = vunpack.c.0.s8 %v3152
        %v3154 = vlaneseq
        %v3155 = vshrl.u32 %v3154, 7
        %v3156 = vsub.s32 %v3153, %v3155
        %v3157 = vrot.slane %v3143, %v3156
        %v3158 = vcombine.low %v3093, %v3109
        %v3159 = vcombine.high %v3093, %v3109
        %v3161 = vunpack.c.l.s4 1934713408
        %v3162 = vunpack.c.0.s8 %v3161
        %v3163 = vlaneseq
        %v3164 = vshrl.u32 %v3163, 7
        %v3165 = vsub.s32 %v3162, %v3164
        %v3166 = vrot.slane %v3158, %v3165
        %v3168 = vunpack.c.l.s4 1934713408
        %v3169 = vunpack.c.0.s8 %v3168
        %v3170 = vlaneseq
        %v3171 = vshrl.u32 %v3170, 7
        %v3172 = vsub.s32 %v3169, %v3171
        %v3173 = vrot.slane %v3159, %v3172
        %v3174 = vcombine.low %v3118, %v3134
        %v3175 = vcombine.high %v3118, %v3134
        %v3177 = vunpack.c.l.s4 1934713408
        %v3178 = vunpack.c.0.s8 %v3177
        %v3179 = vlaneseq
        %v3180 = vshrl.u32 %v3179, 7
        %v3181 = vsub.s32 %v3178, %v3180
        %v3182 = vrot.slane %v3174, %v3181
        %v3184 = vunpack.c.l.s4 1934713408
        %v3185 = vunpack.c.0.s8 %v3184
        %v3186 = vlaneseq
        %v3187 = vshrl.u32 %v3186, 7
        %v3188 = vsub.s32 %v3185, %v3187
        %v3189 = vrot.slane %v3175, %v3188
        %v3190 = vcombine.low %v3125, %v3141
        %v3191 = vcombine.high %v3125, %v3141
        %v3193 = vunpack.c.l.s4 1934713408
        %v3194 = vunpack.c.0.s8 %v3193
        %v3195 = vlaneseq
        %v3196 = vshrl.u32 %v3195, 7
        %v3197 = vsub.s32 %v3194, %v3196
        %v3198 = vrot.slane %v3190, %v3197
        %v3200 = vunpack.c.l.s4 1934713408
        %v3201 = vunpack.c.0.s8 %v3200
        %v3202 = vlaneseq
        %v3203 = vshrl.u32 %v3202, 7
        %v3204 = vsub.s32 %v3201, %v3203
        %v3205 = vrot.slane %v3191, %v3204
        %v3206 = vcombine.low %v3150, %v3182
        %v3207 = vcombine.high %v3150, %v3182
        %v3208 = vcombine.low %v3157, %v3189
        %v3209 = vcombine.high %v3157, %v3189
        %v3210 = vcombine.low %v3166, %v3198
        %v3211 = vcombine.high %v3166, %v3198
        %v3212 = vcombine.low %v3173, %v3205
        %v3213 = vcombine.high %v3173, %v3205
        %v3214 = vcombine.low %v1177, %v1185
        %v3215 = vcombine.high %v1177, %v1185
        %v3217 = vunpack.c.l.s4 1983009808
        %v3218 = vunpack.c.0.s8 %v3217
        %v3219 = vlaneseq
        %v3220 = vshrl.u32 %v3219, 7
        %v3221 = vsub.s32 %v3218, %v3220
        %v3222 = vrot.slane %v3214, %v3221
        %v3224 = vunpack.c.l.s4 1983009808
        %v3225 = vunpack.c.0.s8 %v3224
        %v3226 = vlaneseq
        %v3227 = vshrl.u32 %v3226, 7
        %v3228 = vsub.s32 %v3225, %v3227
        %v3229 = vrot.slane %v3215, %v3228
        %v3230 = vcombine.low %v1181, %v1189
        %v3231 = vcombine.high %v1181, %v1189
        %v3233 = vunpack.c.l.s4 1983009808
        %v3234 = vunpack.c.0.s8 %v3233
        %v3235 = vlaneseq
        %v3236 = vshrl.u32 %v3235, 7
        %v3237 = vsub.s32 %v3234, %v3236
        %v3238 = vrot.slane %v3230, %v3237
        %v3240 = vunpack.c.l.s4 1983009808
        %v3241 = vunpack.c.0.s8 %v3240
        %v3242 = vlaneseq
        %v3243 = vshrl.u32 %v3242, 7
        %v3244 = vsub.s32 %v3241, %v3243
        %v3245 = vrot.slane %v3231, %v3244
        %v3246 = vcombine.low %v1193, %v1201
        %v3247 = vcombine.high %v1193, %v1201
        %v3249 = vunpack.c.l.s4 1983009808
        %v3250 = vunpack.c.0.s8 %v3249
        %v3251 = vlaneseq
        %v3252 = vshrl.u32 %v3251, 7
        %v3253 = vsub.s32 %v3250, %v3252
        %v3254 = vrot.slane %v3246, %v3253
        %v3256 = vunpack.c.l.s4 1983009808
        %v3257 = vunpack.c.0.s8 %v3256
        %v3258 = vlaneseq
        %v3259 = vshrl.u32 %v3258, 7
        %v3260 = vsub.s32 %v3257, %v3259
        %v3261 = vrot.slane %v3247, %v3260
        %v3262 = vcombine.low %v1197, %v1205
        %v3263 = vcombine.high %v1197, %v1205
        %v3265 = vunpack.c.l.s4 1983009808
        %v3266 = vunpack.c.0.s8 %v3265
        %v3267 = vlaneseq
        %v3268 = vshrl.u32 %v3267, 7
        %v3269 = vsub.s32 %v3266, %v3268
        %v3270 = vrot.slane %v3262, %v3269
        %v3272 = vunpack.c.l.s4 1983009808
        %v3273 = vunpack.c.0.s8 %v3272
        %v3274 = vlaneseq
        %v3275 = vshrl.u32 %v3274, 7
        %v3276 = vsub.s32 %v3273, %v3275
        %v3277 = vrot.slane %v3263, %v3276
        %v3278 = vcombine.low %v3222, %v3238
        %v3279 = vcombine.high %v3222, %v3238
        %v3281 = vunpack.c.l.s4 1934713408
        %v3282 = vunpack.c.0.s8 %v3281
        %v3283 = vlaneseq
        %v3284 = vshrl.u32 %v3283, 7
        %v3285 = vsub.s32 %v3282, %v3284
        %v3286 = vrot.slane %v3278, %v3285
        %v3288 = vunpack.c.l.s4 1934713408
        %v3289 = vunpack.c.0.s8 %v3288
        %v3290 = vlaneseq
        %v3291 = vshrl.u32 %v3290, 7
        %v3292 = vsub.s32 %v3289, %v3291
        %v3293 = vrot.slane %v3279, %v3292
        %v3294 = vcombine.low %v3229, %v3245
        %v3295 = vcombine.high %v3229, %v3245
        %v3297 = vunpack.c.l.s4 1934713408
        %v3298 = vunpack.c.0.s8 %v3297
        %v3299 = vlaneseq
        %v3300 = vshrl.u32 %v3299, 7
        %v3301 = vsub.s32 %v3298, %v3300
        %v3302 = vrot.slane %v3294, %v3301
        %v3304 = vunpack.c.l.s4 1934713408
        %v3305 = vunpack.c.0.s8 %v3304
        %v3306 = vlaneseq
        %v3307 = vshrl.u32 %v3306, 7
        %v3308 = vsub.s32 %v3305, %v3307
        %v3309 = vrot.slane %v3295, %v3308
        %v3310 = vcombine.low %v3254, %v3270
        %v3311 = vcombine.high %v3254, %v3270
        %v3313 = vunpack.c.l.s4 1934713408
        %v3314 = vunpack.c.0.s8 %v3313
        %v3315 = vlaneseq
        %v3316 = vshrl.u32 %v3315, 7
        %v3317 = vsub.s32 %v3314, %v3316
        %v3318 = vrot.slane %v3310, %v3317
        %v3320 = vunpack.c.l.s4 1934713408
        %v3321 = vunpack.c.0.s8 %v3320
        %v3322 = vlaneseq
        %v3323 = vshrl.u32 %v3322, 7
        %v3324 = vsub.s32 %v3321, %v3323
        %v3325 = vrot.slane %v3311, %v3324
        %v3326 = vcombine.low %v3261, %v3277
        %v3327 = vcombine.high %v3261, %v3277
        %v3329 = vunpack.c.l.s4 1934713408
        %v3330 = vunpack.c.0.s8 %v3329
        %v3331 = vlaneseq
        %v3332 = vshrl.u32 %v3331, 7
        %v3333 = vsub.s32 %v3330, %v3332
        %v3334 = vrot.slane %v3326, %v3333
        %v3336 = vunpack.c.l.s4 1934713408
        %v3337 = vunpack.c.0.s8 %v3336
        %v3338 = vlaneseq
        %v3339 = vshrl.u32 %v3338, 7
        %v3340 = vsub.s32 %v3337, %v3339
        %v3341 = vrot.slane %v3327, %v3340
        %v3342 = vcombine.low %v3286, %v3318
        %v3343 = vcombine.high %v3286, %v3318
        %v3344 = vcombine.low %v3293, %v3325
        %v3345 = vcombine.high %v3293, %v3325
        %v3346 = vcombine.low %v3302, %v3334
        %v3347 = vcombine.high %v3302, %v3334
        %v3348 = vcombine.low %v3309, %v3341
        %v3349 = vcombine.high %v3309, %v3341
        %v3350 = vcombine.low %v1209, %v1217
        %v3351 = vcombine.high %v1209, %v1217
        %v3353 = vunpack.c.l.s4 1983009808
        %v3354 = vunpack.c.0.s8 %v3353
        %v3355 = vlaneseq
        %v3356 = vshrl.u32 %v3355, 7
        %v3357 = vsub.s32 %v3354, %v3356
        %v3358 = vrot.slane %v3350, %v3357
        %v3360 = vunpack.c.l.s4 1983009808
        %v3361 = vunpack.c.0.s8 %v3360
        %v3362 = vlaneseq
        %v3363 = vshrl.u32 %v3362, 7
        %v3364 = vsub.s32 %v3361, %v3363
        %v3365 = vrot.slane %v3351, %v3364
        %v3366 = vcombine.low %v1213, %v1221
        %v3367 = vcombine.high %v1213, %v1221
        %v3369 = vunpack.c.l.s4 1983009808
        %v3370 = vunpack.c.0.s8 %v3369
        %v3371 = vlaneseq
        %v3372 = vshrl.u32 %v3371, 7
        %v3373 = vsub.s32 %v3370, %v3372
        %v3374 = vrot.slane %v3366, %v3373
        %v3376 = vunpack.c.l.s4 1983009808
        %v3377 = vunpack.c.0.s8 %v3376
        %v3378 = vlaneseq
        %v3379 = vshrl.u32 %v3378, 7
        %v3380 = vsub.s32 %v3377, %v3379
        %v3381 = vrot.slane %v3367, %v3380
        %v3382 = vcombine.low %v1225, %v1233
        %v3383 = vcombine.high %v1225, %v1233
        %v3385 = vunpack.c.l.s4 1983009808
        %v3386 = vunpack.c.0.s8 %v3385
        %v3387 = vlaneseq
        %v3388 = vshrl.u32 %v3387, 7
        %v3389 = vsub.s32 %v3386, %v3388
        %v3390 = vrot.slane %v3382, %v3389
        %v3392 = vunpack.c.l.s4 1983009808
        %v3393 = vunpack.c.0.s8 %v3392
        %v3394 = vlaneseq
        %v3395 = vshrl.u32 %v3394, 7
        %v3396 = vsub.s32 %v3393, %v3395
        %v3397 = vrot.slane %v3383, %v3396
        %v3398 = vcombine.low %v1229, %v1237
        %v3399 = vcombine.high %v1229, %v1237
        %v3401 = vunpack.c.l.s4 1983009808
        %v3402 = vunpack.c.0.s8 %v3401
        %v3403 = vlaneseq
        %v3404 = vshrl.u32 %v3403, 7
        %v3405 = vsub.s32 %v3402, %v3404
        %v3406 = vrot.slane %v3398, %v3405
        %v3408 = vunpack.c.l.s4 1983009808
        %v3409 = vunpack.c.0.s8 %v3408
        %v3410 = vlaneseq
        %v3411 = vshrl.u32 %v3410, 7
        %v3412 = vsub.s32 %v3409, %v3411
        %v3413 = vrot.slane %v3399, %v3412
        %v3414 = vcombine.low %v3358, %v3374
        %v3415 = vcombine.high %v3358, %v3374
        %v3417 = vunpack.c.l.s4 1934713408
        %v3418 = vunpack.c.0.s8 %v3417
        %v3419 = vlaneseq
        %v3420 = vshrl.u32 %v3419, 7
        %v3421 = vsub.s32 %v3418, %v3420
        %v3422 = vrot.slane %v3414, %v3421
        %v3424 = vunpack.c.l.s4 1934713408
        %v3425 = vunpack.c.0.s8 %v3424
        %v3426 = vlaneseq
        %v3427 = vshrl.u32 %v3426, 7
        %v3428 = vsub.s32 %v3425, %v3427
        %v3429 = vrot.slane %v3415, %v3428
        %v3430 = vcombine.low %v3365, %v3381
        %v3431 = vcombine.high %v3365, %v3381
        %v3433 = vunpack.c.l.s4 1934713408
        %v3434 = vunpack.c.0.s8 %v3433
        %v3435 = vlaneseq
        %v3436 = vshrl.u32 %v3435, 7
        %v3437 = vsub.s32 %v3434, %v3436
        %v3438 = vrot.slane %v3430, %v3437
        %v3440 = vunpack.c.l.s4 1934713408
        %v3441 = vunpack.c.0.s8 %v3440
        %v3442 = vlaneseq
        %v3443 = vshrl.u32 %v3442, 7
        %v3444 = vsub.s32 %v3441, %v3443
        %v3445 = vrot.slane %v3431, %v3444
        %v3446 = vcombine.low %v3390, %v3406
        %v3447 = vcombine.high %v3390, %v3406
        %v3449 = vunpack.c.l.s4 1934713408
        %v3450 = vunpack.c.0.s8 %v3449
        %v3451 = vlaneseq
        %v3452 = vshrl.u32 %v3451, 7
        %v3453 = vsub.s32 %v3450, %v3452
        %v3454 = vrot.slane %v3446, %v3453
        %v3456 = vunpack.c.l.s4 1934713408
        %v3457 = vunpack.c.0.s8 %v3456
        %v3458 = vlaneseq
        %v3459 = vshrl.u32 %v3458, 7
        %v3460 = vsub.s32 %v3457, %v3459
        %v3461 = vrot.slane %v3447, %v3460
        %v3462 = vcombine.low %v3397, %v3413
        %v3463 = vcombine.high %v3397, %v3413
        %v3465 = vunpack.c.l.s4 1934713408
        %v3466 = vunpack.c.0.s8 %v3465
        %v3467 = vlaneseq
        %v3468 = vshrl.u32 %v3467, 7
        %v3469 = vsub.s32 %v3466, %v3468
        %v3470 = vrot.slane %v3462, %v3469
        %v3472 = vunpack.c.l.s4 1934713408
        %v3473 = vunpack.c.0.s8 %v3472
        %v3474 = vlaneseq
        %v3475 = vshrl.u32 %v3474, 7
        %v3476 = vsub.s32 %v3473, %v3475
        %v3477 = vrot.slane %v3463, %v3476
        %v3478 = vcombine.low %v3422, %v3454
        %v3479 = vcombine.high %v3422, %v3454
        %v3480 = vcombine.low %v3429, %v3461
        %v3481 = vcombine.high %v3429, %v3461
        %v3482 = vcombine.low %v3438, %v3470
        %v3483 = vcombine.high %v3438, %v3470
        %v3484 = vcombine.low %v3445, %v3477
        %v3485 = vcombine.high %v3445, %v3477
        %v3486 = vcombine.low %v1081, %v1089
        %v3487 = vcombine.high %v1081, %v1089
        %v3489 = vunpack.c.l.s4 1983009808
        %v3490 = vunpack.c.0.s8 %v3489
        %v3491 = vlaneseq
        %v3492 = vshrl.u32 %v3491, 7
        %v3493 = vsub.s32 %v3490, %v3492
        %v3494 = vrot.slane %v3486, %v3493
        %v3496 = vunpack.c.l.s4 1983009808
        %v3497 = vunpack.c.0.s8 %v3496
        %v3498 = vlaneseq
        %v3499 = vshrl.u32 %v3498, 7
        %v3500 = vsub.s32 %v3497, %v3499
        %v3501 = vrot.slane %v3487, %v3500
        %v3502 = vcombine.low %v1085, %v1093
        %v3503 = vcombine.high %v1085, %v1093
        %v3505 = vunpack.c.l.s4 1983009808
        %v3506 = vunpack.c.0.s8 %v3505
        %v3507 = vlaneseq
        %v3508 = vshrl.u32 %v3507, 7
        %v3509 = vsub.s32 %v3506, %v3508
        %v3510 = vrot.slane %v3502, %v3509
        %v3512 = vunpack.c.l.s4 1983009808
        %v3513 = vunpack.c.0.s8 %v3512
        %v3514 = vlaneseq
        %v3515 = vshrl.u32 %v3514, 7
        %v3516 = vsub.s32 %v3513, %v3515
        %v3517 = vrot.slane %v3503, %v3516
        %v3518 = vcombine.low %v1097, %v1105
        %v3519 = vcombine.high %v1097, %v1105
        %v3521 = vunpack.c.l.s4 1983009808
        %v3522 = vunpack.c.0.s8 %v3521
        %v3523 = vlaneseq
        %v3524 = vshrl.u32 %v3523, 7
        %v3525 = vsub.s32 %v3522, %v3524
        %v3526 = vrot.slane %v3518, %v3525
        %v3528 = vunpack.c.l.s4 1983009808
        %v3529 = vunpack.c.0.s8 %v3528
        %v3530 = vlaneseq
        %v3531 = vshrl.u32 %v3530, 7
        %v3532 = vsub.s32 %v3529, %v3531
        %v3533 = vrot.slane %v3519, %v3532
        %v3534 = vcombine.low %v1101, %v1109
        %v3535 = vcombine.high %v1101, %v1109
        %v3537 = vunpack.c.l.s4 1983009808
        %v3538 = vunpack.c.0.s8 %v3537
        %v3539 = vlaneseq
        %v3540 = vshrl.u32 %v3539, 7
        %v3541 = vsub.s32 %v3538, %v3540
        %v3542 = vrot.slane %v3534, %v3541
        %v3544 = vunpack.c.l.s4 1983009808
        %v3545 = vunpack.c.0.s8 %v3544
        %v3546 = vlaneseq
        %v3547 = vshrl.u32 %v3546, 7
        %v3548 = vsub.s32 %v3545, %v3547
        %v3549 = vrot.slane %v3535, %v3548
        %v3550 = vcombine.low %v3494, %v3510
        %v3551 = vcombine.high %v3494, %v3510
        %v3553 = vunpack.c.l.s4 1934713408
        %v3554 = vunpack.c.0.s8 %v3553
        %v3555 = vlaneseq
        %v3556 = vshrl.u32 %v3555, 7
        %v3557 = vsub.s32 %v3554, %v3556
        %v3558 = vrot.slane %v3550, %v3557
        %v3560 = vunpack.c.l.s4 1934713408
        %v3561 = vunpack.c.0.s8 %v3560
        %v3562 = vlaneseq
        %v3563 = vshrl.u32 %v3562, 7
        %v3564 = vsub.s32 %v3561, %v3563
        %v3565 = vrot.slane %v3551, %v3564
        %v3566 = vcombine.low %v3501, %v3517
        %v3567 = vcombine.high %v3501, %v3517
        %v3569 = vunpack.c.l.s4 1934713408
        %v3570 = vunpack.c.0.s8 %v3569
        %v3571 = vlaneseq
        %v3572 = vshrl.u32 %v3571, 7
        %v3573 = vsub.s32 %v3570, %v3572
        %v3574 = vrot.slane %v3566, %v3573
        %v3576 = vunpack.c.l.s4 1934713408
        %v3577 = vunpack.c.0.s8 %v3576
        %v3578 = vlaneseq
        %v3579 = vshrl.u32 %v3578, 7
        %v3580 = vsub.s32 %v3577, %v3579
        %v3581 = vrot.slane %v3567, %v3580
        %v3582 = vcombine.low %v3526, %v3542
        %v3583 = vcombine.high %v3526, %v3542
        %v3585 = vunpack.c.l.s4 1934713408
        %v3586 = vunpack.c.0.s8 %v3585
        %v3587 = vlaneseq
        %v3588 = vshrl.u32 %v3587, 7
        %v3589 = vsub.s32 %v3586, %v3588
        %v3590 = vrot.slane %v3582, %v3589
        %v3592 = vunpack.c.l.s4 1934713408
        %v3593 = vunpack.c.0.s8 %v3592
        %v3594 = vlaneseq
        %v3595 = vshrl.u32 %v3594, 7
        %v3596 = vsub.s32 %v3593, %v3595
        %v3597 = vrot.slane %v3583, %v3596
        %v3598 = vcombine.low %v3533, %v3549
        %v3599 = vcombine.high %v3533, %v3549
        %v3601 = vunpack.c.l.s4 1934713408
        %v3602 = vunpack.c.0.s8 %v3601
        %v3603 = vlaneseq
        %v3604 = vshrl.u32 %v3603, 7
        %v3605 = vsub.s32 %v3602, %v3604
        %v3606 = vrot.slane %v3598, %v3605
        %v3608 = vunpack.c.l.s4 1934713408
        %v3609 = vunpack.c.0.s8 %v3608
        %v3610 = vlaneseq
        %v3611 = vshrl.u32 %v3610, 7
        %v3612 = vsub.s32 %v3609, %v3611
        %v3613 = vrot.slane %v3599, %v3612
        %v3614 = vcombine.low %v3558, %v3590
        %v3615 = vcombine.high %v3558, %v3590
        %v3616 = vcombine.low %v3565, %v3597
        %v3617 = vcombine.high %v3565, %v3597
        %v3618 = vcombine.low %v3574, %v3606
        %v3619 = vcombine.high %v3574, %v3606
        %v3620 = vcombine.low %v3581, %v3613
        %v3621 = vcombine.high %v3581, %v3613
        %v3622 = vcombine.low %v1241, %v1249
        %v3623 = vcombine.high %v1241, %v1249
        %v3625 = vunpack.c.l.s4 1983009808
        %v3626 = vunpack.c.0.s8 %v3625
        %v3627 = vlaneseq
        %v3628 = vshrl.u32 %v3627, 7
        %v3629 = vsub.s32 %v3626, %v3628
        %v3630 = vrot.slane %v3622, %v3629
        %v3632 = vunpack.c.l.s4 1983009808
        %v3633 = vunpack.c.0.s8 %v3632
        %v3634 = vlaneseq
        %v3635 = vshrl.u32 %v3634, 7
        %v3636 = vsub.s32 %v3633, %v3635
        %v3637 = vrot.slane %v3623, %v3636
        %v3638 = vcombine.low %v1245, %v1253
        %v3639 = vcombine.high %v1245, %v1253
        %v3641 = vunpack.c.l.s4 1983009808
        %v3642 = vunpack.c.0.s8 %v3641
        %v3643 = vlaneseq
        %v3644 = vshrl.u32 %v3643, 7
        %v3645 = vsub.s32 %v3642, %v3644
        %v3646 = vrot.slane %v3638, %v3645
        %v3648 = vunpack.c.l.s4 1983009808
        %v3649 = vunpack.c.0.s8 %v3648
        %v3650 = vlaneseq
        %v3651 = vshrl.u32 %v3650, 7
        %v3652 = vsub.s32 %v3649, %v3651
        %v3653 = vrot.slane %v3639, %v3652
        %v3654 = vcombine.low %v1257, %v1265
        %v3655 = vcombine.high %v1257, %v1265
        %v3657 = vunpack.c.l.s4 1983009808
        %v3658 = vunpack.c.0.s8 %v3657
        %v3659 = vlaneseq
        %v3660 = vshrl.u32 %v3659, 7
        %v3661 = vsub.s32 %v3658, %v3660
        %v3662 = vrot.slane %v3654, %v3661
        %v3664 = vunpack.c.l.s4 1983009808
        %v3665 = vunpack.c.0.s8 %v3664
        %v3666 = vlaneseq
        %v3667 = vshrl.u32 %v3666, 7
        %v3668 = vsub.s32 %v3665, %v3667
        %v3669 = vrot.slane %v3655, %v3668
        %v3670 = vcombine.low %v1261, %v1269
        %v3671 = vcombine.high %v1261, %v1269
        %v3673 = vunpack.c.l.s4 1983009808
        %v3674 = vunpack.c.0.s8 %v3673
        %v3675 = vlaneseq
        %v3676 = vshrl.u32 %v3675, 7
        %v3677 = vsub.s32 %v3674, %v3676
        %v3678 = vrot.slane %v3670, %v3677
        %v3680 = vunpack.c.l.s4 1983009808
        %v3681 = vunpack.c.0.s8 %v3680
        %v3682 = vlaneseq
        %v3683 = vshrl.u32 %v3682, 7
        %v3684 = vsub.s32 %v3681, %v3683
        %v3685 = vrot.slane %v3671, %v3684
        %v3686 = vcombine.low %v3630, %v3646
        %v3687 = vcombine.high %v3630, %v3646
        %v3689 = vunpack.c.l.s4 1934713408
        %v3690 = vunpack.c.0.s8 %v3689
        %v3691 = vlaneseq
        %v3692 = vshrl.u32 %v3691, 7
        %v3693 = vsub.s32 %v3690, %v3692
        %v3694 = vrot.slane %v3686, %v3693
        %v3696 = vunpack.c.l.s4 1934713408
        %v3697 = vunpack.c.0.s8 %v3696
        %v3698 = vlaneseq
        %v3699 = vshrl.u32 %v3698, 7
        %v3700 = vsub.s32 %v3697, %v3699
        %v3701 = vrot.slane %v3687, %v3700
        %v3702 = vcombine.low %v3637, %v3653
        %v3703 = vcombine.high %v3637, %v3653
        %v3705 = vunpack.c.l.s4 1934713408
        %v3706 = vunpack.c.0.s8 %v3705
        %v3707 = vlaneseq
        %v3708 = vshrl.u32 %v3707, 7
        %v3709 = vsub.s32 %v3706, %v3708
        %v3710 = vrot.slane %v3702, %v3709
        %v3712 = vunpack.c.l.s4 1934713408
        %v3713 = vunpack.c.0.s8 %v3712
        %v3714 = vlaneseq
        %v3715 = vshrl.u32 %v3714, 7
        %v3716 = vsub.s32 %v3713, %v3715
        %v3717 = vrot.slane %v3703, %v3716
        %v3718 = vcombine.low %v3662, %v3678
        %v3719 = vcombine.high %v3662, %v3678
        %v3721 = vunpack.c.l.s4 1934713408
        %v3722 = vunpack.c.0.s8 %v3721
        %v3723 = vlaneseq
        %v3724 = vshrl.u32 %v3723, 7
        %v3725 = vsub.s32 %v3722, %v3724
        %v3726 = vrot.slane %v3718, %v3725
        %v3728 = vunpack.c.l.s4 1934713408
        %v3729 = vunpack.c.0.s8 %v3728
        %v3730 = vlaneseq
        %v3731 = vshrl.u32 %v3730, 7
        %v3732 = vsub.s32 %v3729, %v3731
        %v3733 = vrot.slane %v3719, %v3732
        %v3734 = vcombine.low %v3669, %v3685
        %v3735 = vcombine.high %v3669, %v3685
        %v3737 = vunpack.c.l.s4 1934713408
        %v3738 = vunpack.c.0.s8 %v3737
        %v3739 = vlaneseq
        %v3740 = vshrl.u32 %v3739, 7
        %v3741 = vsub.s32 %v3738, %v3740
        %v3742 = vrot.slane %v3734, %v3741
        %v3744 = vunpack.c.l.s4 1934713408
        %v3745 = vunpack.c.0.s8 %v3744
        %v3746 = vlaneseq
        %v3747 = vshrl.u32 %v3746, 7
        %v3748 = vsub.s32 %v3745, %v3747
        %v3749 = vrot.slane %v3735, %v3748
        %v3750 = vcombine.low %v3694, %v3726
        %v3751 = vcombine.high %v3694, %v3726
        %v3752 = vcombine.low %v3701, %v3733
        %v3753 = vcombine.high %v3701, %v3733
        %v3754 = vcombine.low %v3710, %v3742
        %v3755 = vcombine.high %v3710, %v3742
        %v3756 = vcombine.low %v3717, %v3749
        %v3757 = vcombine.high %v3717, %v3749
        %v3758 = vcombine.low %v1273, %v1281
        %v3759 = vcombine.high %v1273, %v1281
        %v3761 = vunpack.c.l.s4 1983009808
        %v3762 = vunpack.c.0.s8 %v3761
        %v3763 = vlaneseq
        %v3764 = vshrl.u32 %v3763, 7
        %v3765 = vsub.s32 %v3762, %v3764
        %v3766 = vrot.slane %v3758, %v3765
        %v3768 = vunpack.c.l.s4 1983009808
        %v3769 = vunpack.c.0.s8 %v3768
        %v3770 = vlaneseq
        %v3771 = vshrl.u32 %v3770, 7
        %v3772 = vsub.s32 %v3769, %v3771
        %v3773 = vrot.slane %v3759, %v3772
        %v3774 = vcombine.low %v1277, %v1285
        %v3775 = vcombine.high %v1277, %v1285
        %v3777 = vunpack.c.l.s4 1983009808
        %v3778 = vunpack.c.0.s8 %v3777
        %v3779 = vlaneseq
        %v3780 = vshrl.u32 %v3779, 7
        %v3781 = vsub.s32 %v3778, %v3780
        %v3782 = vrot.slane %v3774, %v3781
        %v3784 = vunpack.c.l.s4 1983009808
        %v3785 = vunpack.c.0.s8 %v3784
        %v3786 = vlaneseq
        %v3787 = vshrl.u32 %v3786, 7
        %v3788 = vsub.s32 %v3785, %v3787
        %v3789 = vrot.slane %v3775, %v3788
        %v3790 = vcombine.low %v1289, %v1297
        %v3791 = vcombine.high %v1289, %v1297
        %v3793 = vunpack.c.l.s4 1983009808
        %v3794 = vunpack.c.0.s8 %v3793
        %v3795 = vlaneseq
        %v3796 = vshrl.u32 %v3795, 7
        %v3797 = vsub.s32 %v3794, %v3796
        %v3798 = vrot.slane %v3790, %v3797
        %v3800 = vunpack.c.l.s4 1983009808
        %v3801 = vunpack.c.0.s8 %v3800
        %v3802 = vlaneseq
        %v3803 = vshrl.u32 %v3802, 7
        %v3804 = vsub.s32 %v3801, %v3803
        %v3805 = vrot.slane %v3791, %v3804
        %v3806 = vcombine.low %v1293, %v1301
        %v3807 = vcombine.high %v1293, %v1301
        %v3809 = vunpack.c.l.s4 1983009808
        %v3810 = vunpack.c.0.s8 %v3809
        %v3811 = vlaneseq
        %v3812 = vshrl.u32 %v3811, 7
        %v3813 = vsub.s32 %v3810, %v3812
        %v3814 = vrot.slane %v3806, %v3813
        %v3816 = vunpack.c.l.s4 1983009808
        %v3817 = vunpack.c.0.s8 %v3816
        %v3818 = vlaneseq
        %v3819 = vshrl.u32 %v3818, 7
        %v3820 = vsub.s32 %v3817, %v3819
        %v3821 = vrot.slane %v3807, %v3820
        %v3822 = vcombine.low %v3766, %v3782
        %v3823 = vcombine.high %v3766, %v3782
        %v3825 = vunpack.c.l.s4 1934713408
        %v3826 = vunpack.c.0.s8 %v3825
        %v3827 = vlaneseq
        %v3828 = vshrl.u32 %v3827, 7
        %v3829 = vsub.s32 %v3826, %v3828
        %v3830 = vrot.slane %v3822, %v3829
        %v3832 = vunpack.c.l.s4 1934713408
        %v3833 = vunpack.c.0.s8 %v3832
        %v3834 = vlaneseq
        %v3835 = vshrl.u32 %v3834, 7
        %v3836 = vsub.s32 %v3833, %v3835
        %v3837 = vrot.slane %v3823, %v3836
        %v3838 = vcombine.low %v3773, %v3789
        %v3839 = vcombine.high %v3773, %v3789
        %v3841 = vunpack.c.l.s4 1934713408
        %v3842 = vunpack.c.0.s8 %v3841
        %v3843 = vlaneseq
        %v3844 = vshrl.u32 %v3843, 7
        %v3845 = vsub.s32 %v3842, %v3844
        %v3846 = vrot.slane %v3838, %v3845
        %v3848 = vunpack.c.l.s4 1934713408
        %v3849 = vunpack.c.0.s8 %v3848
        %v3850 = vlaneseq
        %v3851 = vshrl.u32 %v3850, 7
        %v3852 = vsub.s32 %v3849, %v3851
        %v3853 = vrot.slane %v3839, %v3852
        %v3854 = vcombine.low %v3798, %v3814
        %v3855 = vcombine.high %v3798, %v3814
        %v3857 = vunpack.c.l.s4 1934713408
        %v3858 = vunpack.c.0.s8 %v3857
        %v3859 = vlaneseq
        %v3860 = vshrl.u32 %v3859, 7
        %v3861 = vsub.s32 %v3858, %v3860
        %v3862 = vrot.slane %v3854, %v3861
        %v3864 = vunpack.c.l.s4 1934713408
        %v3865 = vunpack.c.0.s8 %v3864
        %v3866 = vlaneseq
        %v3867 = vshrl.u32 %v3866, 7
        %v3868 = vsub.s32 %v3865, %v3867
        %v3869 = vrot.slane %v3855, %v3868
        %v3870 = vcombine.low %v3805, %v3821
        %v3871 = vcombine.high %v3805, %v3821
        %v3873 = vunpack.c.l.s4 1934713408
        %v3874 = vunpack.c.0.s8 %v3873
        %v3875 = vlaneseq
        %v3876 = vshrl.u32 %v3875, 7
        %v3877 = vsub.s32 %v3874, %v3876
        %v3878 = vrot.slane %v3870, %v3877
        %v3880 = vunpack.c.l.s4 1934713408
        %v3881 = vunpack.c.0.s8 %v3880
        %v3882 = vlaneseq
        %v3883 = vshrl.u32 %v3882, 7
        %v3884 = vsub.s32 %v3881, %v3883
        %v3885 = vrot.slane %v3871, %v3884
        %v3886 = vcombine.low %v3830, %v3862
        %v3887 = vcombine.high %v3830, %v3862
        %v3888 = vcombine.low %v3837, %v3869
        %v3889 = vcombine.high %v3837, %v3869
        %v3890 = vcombine.low %v3846, %v3878
        %v3891 = vcombine.high %v3846, %v3878
        %v3892 = vcombine.low %v3853, %v3885
        %v3893 = vcombine.high %v3853, %v3885
        %3903 = vrot.lane.b32.xlu0 %v1575, 16
        %v3904 = vpop.permute.xlu0 %3903
        %3905 = vrot.lane.b32.xlu0 %v1711, 16
        %v3906 = vpop.permute.xlu0 %3905
        %3907 = vrot.lane.b32.xlu0 %v1847, 16
        %v3908 = vpop.permute.xlu0 %3907
        %3909 = vrot.lane.b32.xlu0 %v1983, 16
        %v3910 = vpop.permute.xlu0 %3909
        %3911 = vrot.lane.b32.xlu0 %v2119, 16
        %v3912 = vpop.permute.xlu0 %3911
        %3913 = vrot.lane.b32.xlu0 %v2255, 16
        %v3914 = vpop.permute.xlu0 %3913
        %3915 = vrot.lane.b32.xlu0 %v2391, 16
        %v3916 = vpop.permute.xlu0 %3915
        %3917 = vrot.lane.b32.xlu0 %v2527, 16
        %v3918 = vpop.permute.xlu0 %3917
        %3919 = vrot.lane.b32.xlu0 %v2663, 16
        %v3920 = vpop.permute.xlu0 %3919
        %3939 = vrot.lane.b32.xlu0 %v1576, 32
        %v3940 = vpop.permute.xlu0 %3939
        %3941 = vrot.lane.b32.xlu0 %v1712, 32
        %v3942 = vpop.permute.xlu0 %3941
        %3943 = vrot.lane.b32.xlu0 %v1848, 32
        %v3944 = vpop.permute.xlu0 %3943
        %3945 = vrot.lane.b32.xlu0 %v1984, 32
        %v3946 = vpop.permute.xlu0 %3945
        %3947 = vrot.lane.b32.xlu0 %v2120, 32
        %v3948 = vpop.permute.xlu0 %3947
        %3949 = vrot.lane.b32.xlu0 %v2256, 32
        %v3950 = vpop.permute.xlu0 %3949
        %3951 = vrot.lane.b32.xlu0 %v2392, 32
        %v3952 = vpop.permute.xlu0 %3951
        %3953 = vrot.lane.b32.xlu0 %v2528, 32
        %v3954 = vpop.permute.xlu0 %3953
        %3955 = vrot.lane.b32.xlu0 %v2664, 32
        %v3956 = vpop.permute.xlu0 %3955
        %3975 = vrot.lane.b32.xlu0 %v1577, 48
        %v3976 = vpop.permute.xlu0 %3975
        %3977 = vrot.lane.b32.xlu0 %v1713, 48
        %v3978 = vpop.permute.xlu0 %3977
        %3979 = vrot.lane.b32.xlu0 %v1849, 48
        %v3980 = vpop.permute.xlu0 %3979
        %3981 = vrot.lane.b32.xlu0 %v1985, 48
        %v3982 = vpop.permute.xlu0 %3981
        %3983 = vrot.lane.b32.xlu0 %v2121, 48
        %v3984 = vpop.permute.xlu0 %3983
        %3985 = vrot.lane.b32.xlu0 %v2257, 48
        %v3986 = vpop.permute.xlu0 %3985
        %3987 = vrot.lane.b32.xlu0 %v2393, 48
        %v3988 = vpop.permute.xlu0 %3987
        %3989 = vrot.lane.b32.xlu0 %v2529, 48
        %v3990 = vpop.permute.xlu0 %3989
        %3991 = vrot.lane.b32.xlu0 %v2665, 48
        %v3992 = vpop.permute.xlu0 %3991
        %4011 = vrot.lane.b32.xlu0 %v1578, 64
        %v4012 = vpop.permute.xlu0 %4011
        %4013 = vrot.lane.b32.xlu0 %v1714, 64
        %v4014 = vpop.permute.xlu0 %4013
        %4015 = vrot.lane.b32.xlu0 %v1850, 64
        %v4016 = vpop.permute.xlu0 %4015
        %4017 = vrot.lane.b32.xlu0 %v1986, 64
        %v4018 = vpop.permute.xlu0 %4017
        %4019 = vrot.lane.b32.xlu0 %v2122, 64
        %v4020 = vpop.permute.xlu0 %4019
        %4021 = vrot.lane.b32.xlu0 %v2258, 64
        %v4022 = vpop.permute.xlu0 %4021
        %4023 = vrot.lane.b32.xlu0 %v2394, 64
        %v4024 = vpop.permute.xlu0 %4023
        %4025 = vrot.lane.b32.xlu0 %v2530, 64
        %v4026 = vpop.permute.xlu0 %4025
        %4027 = vrot.lane.b32.xlu0 %v2666, 64
        %v4028 = vpop.permute.xlu0 %4027
        %4047 = vrot.lane.b32.xlu0 %v1579, 80
        %v4048 = vpop.permute.xlu0 %4047
        %4049 = vrot.lane.b32.xlu0 %v1715, 80
        %v4050 = vpop.permute.xlu0 %4049
        %4051 = vrot.lane.b32.xlu0 %v1851, 80
        %v4052 = vpop.permute.xlu0 %4051
        %4053 = vrot.lane.b32.xlu0 %v1987, 80
        %v4054 = vpop.permute.xlu0 %4053
        %4055 = vrot.lane.b32.xlu0 %v2123, 80
        %v4056 = vpop.permute.xlu0 %4055
        %4057 = vrot.lane.b32.xlu0 %v2259, 80
        %v4058 = vpop.permute.xlu0 %4057
        %4059 = vrot.lane.b32.xlu0 %v2395, 80
        %v4060 = vpop.permute.xlu0 %4059
        %4061 = vrot.lane.b32.xlu0 %v2531, 80
        %v4062 = vpop.permute.xlu0 %4061
        %4063 = vrot.lane.b32.xlu0 %v2667, 80
        %v4064 = vpop.permute.xlu0 %4063
        %4083 = vrot.lane.b32.xlu0 %v1580, 96
        %v4084 = vpop.permute.xlu0 %4083
        %4085 = vrot.lane.b32.xlu0 %v1716, 96
        %v4086 = vpop.permute.xlu0 %4085
        %4087 = vrot.lane.b32.xlu0 %v1852, 96
        %v4088 = vpop.permute.xlu0 %4087
        %4089 = vrot.lane.b32.xlu0 %v1988, 96
        %v4090 = vpop.permute.xlu0 %4089
        %4091 = vrot.lane.b32.xlu0 %v2124, 96
        %v4092 = vpop.permute.xlu0 %4091
        %4093 = vrot.lane.b32.xlu0 %v2260, 96
        %v4094 = vpop.permute.xlu0 %4093
        %4095 = vrot.lane.b32.xlu0 %v2396, 96
        %v4096 = vpop.permute.xlu0 %4095
        %4097 = vrot.lane.b32.xlu0 %v2532, 96
        %v4098 = vpop.permute.xlu0 %4097
        %4099 = vrot.lane.b32.xlu0 %v2668, 96
        %v4100 = vpop.permute.xlu0 %4099
        %4119 = vrot.lane.b32.xlu0 %v1581, 112
        %v4120 = vpop.permute.xlu0 %4119
        %4121 = vrot.lane.b32.xlu0 %v1717, 112
        %v4122 = vpop.permute.xlu0 %4121
        %4123 = vrot.lane.b32.xlu0 %v1853, 112
        %v4124 = vpop.permute.xlu0 %4123
        %4125 = vrot.lane.b32.xlu0 %v1989, 112
        %v4126 = vpop.permute.xlu0 %4125
        %4127 = vrot.lane.b32.xlu0 %v2125, 112
        %v4128 = vpop.permute.xlu0 %4127
        %4129 = vrot.lane.b32.xlu0 %v2261, 112
        %v4130 = vpop.permute.xlu0 %4129
        %4131 = vrot.lane.b32.xlu0 %v2397, 112
        %v4132 = vpop.permute.xlu0 %4131
        %4133 = vrot.lane.b32.xlu0 %v2533, 112
        %v4134 = vpop.permute.xlu0 %4133
        %4135 = vrot.lane.b32.xlu0 %v2669, 112
        %v4136 = vpop.permute.xlu0 %4135
        %4155 = vrot.lane.b32.xlu0 %v2799, 16
        %v4156 = vpop.permute.xlu0 %4155
        %4157 = vrot.lane.b32.xlu0 %v2935, 16
        %v4158 = vpop.permute.xlu0 %4157
        %4159 = vrot.lane.b32.xlu0 %v3071, 16
        %v4160 = vpop.permute.xlu0 %4159
        %4161 = vrot.lane.b32.xlu0 %v3207, 16
        %v4162 = vpop.permute.xlu0 %4161
        %4163 = vrot.lane.b32.xlu0 %v3343, 16
        %v4164 = vpop.permute.xlu0 %4163
        %4165 = vrot.lane.b32.xlu0 %v3479, 16
        %v4166 = vpop.permute.xlu0 %4165
        %4167 = vrot.lane.b32.xlu0 %v3615, 16
        %v4168 = vpop.permute.xlu0 %4167
        %4169 = vrot.lane.b32.xlu0 %v3751, 16
        %v4170 = vpop.permute.xlu0 %4169
        %4171 = vrot.lane.b32.xlu0 %v3887, 16
        %v4172 = vpop.permute.xlu0 %4171
        %4191 = vrot.lane.b32.xlu0 %v2800, 32
        %v4192 = vpop.permute.xlu0 %4191
        %4193 = vrot.lane.b32.xlu0 %v2936, 32
        %v4194 = vpop.permute.xlu0 %4193
        %4195 = vrot.lane.b32.xlu0 %v3072, 32
        %v4196 = vpop.permute.xlu0 %4195
        %4197 = vrot.lane.b32.xlu0 %v3208, 32
        %v4198 = vpop.permute.xlu0 %4197
        %4199 = vrot.lane.b32.xlu0 %v3344, 32
        %v4200 = vpop.permute.xlu0 %4199
        %4201 = vrot.lane.b32.xlu0 %v3480, 32
        %v4202 = vpop.permute.xlu0 %4201
        %4203 = vrot.lane.b32.xlu0 %v3616, 32
        %v4204 = vpop.permute.xlu0 %4203
        %4205 = vrot.lane.b32.xlu0 %v3752, 32
        %v4206 = vpop.permute.xlu0 %4205
        %4207 = vrot.lane.b32.xlu0 %v3888, 32
        %v4208 = vpop.permute.xlu0 %4207
        %4227 = vrot.lane.b32.xlu0 %v2801, 48
        %v4228 = vpop.permute.xlu0 %4227
        %4229 = vrot.lane.b32.xlu0 %v2937, 48
        %v4230 = vpop.permute.xlu0 %4229
        %4231 = vrot.lane.b32.xlu0 %v3073, 48
        %v4232 = vpop.permute.xlu0 %4231
        %4233 = vrot.lane.b32.xlu0 %v3209, 48
        %v4234 = vpop.permute.xlu0 %4233
        %4235 = vrot.lane.b32.xlu0 %v3345, 48
        %v4236 = vpop.permute.xlu0 %4235
        %4237 = vrot.lane.b32.xlu0 %v3481, 48
        %v4238 = vpop.permute.xlu0 %4237
        %4239 = vrot.lane.b32.xlu0 %v3617, 48
        %v4240 = vpop.permute.xlu0 %4239
        %4241 = vrot.lane.b32.xlu0 %v3753, 48
        %v4242 = vpop.permute.xlu0 %4241
        %4243 = vrot.lane.b32.xlu0 %v3889, 48
        %v4244 = vpop.permute.xlu0 %4243
        %4263 = vrot.lane.b32.xlu0 %v2802, 64
        %v4264 = vpop.permute.xlu0 %4263
        %4265 = vrot.lane.b32.xlu0 %v2938, 64
        %v4266 = vpop.permute.xlu0 %4265
        %4267 = vrot.lane.b32.xlu0 %v3074, 64
        %v4268 = vpop.permute.xlu0 %4267
        %4269 = vrot.lane.b32.xlu0 %v3210, 64
        %v4270 = vpop.permute.xlu0 %4269
        %4271 = vrot.lane.b32.xlu0 %v3346, 64
        %v4272 = vpop.permute.xlu0 %4271
        %4273 = vrot.lane.b32.xlu0 %v3482, 64
        %v4274 = vpop.permute.xlu0 %4273
        %4275 = vrot.lane.b32.xlu0 %v3618, 64
        %v4276 = vpop.permute.xlu0 %4275
        %4277 = vrot.lane.b32.xlu0 %v3754, 64
        %v4278 = vpop.permute.xlu0 %4277
        %4279 = vrot.lane.b32.xlu0 %v3890, 64
        %v4280 = vpop.permute.xlu0 %4279
        %4299 = vrot.lane.b32.xlu0 %v2803, 80
        %v4300 = vpop.permute.xlu0 %4299
        %4301 = vrot.lane.b32.xlu0 %v2939, 80
        %v4302 = vpop.permute.xlu0 %4301
        %4303 = vrot.lane.b32.xlu0 %v3075, 80
        %v4304 = vpop.permute.xlu0 %4303
        %4305 = vrot.lane.b32.xlu0 %v3211, 80
        %v4306 = vpop.permute.xlu0 %4305
        %4307 = vrot.lane.b32.xlu0 %v3347, 80
        %v4308 = vpop.permute.xlu0 %4307
        %4309 = vrot.lane.b32.xlu0 %v3483, 80
        %v4310 = vpop.permute.xlu0 %4309
        %4311 = vrot.lane.b32.xlu0 %v3619, 80
        %v4312 = vpop.permute.xlu0 %4311
        %4313 = vrot.lane.b32.xlu0 %v3755, 80
        %v4314 = vpop.permute.xlu0 %4313
        %4315 = vrot.lane.b32.xlu0 %v3891, 80
        %v4316 = vpop.permute.xlu0 %4315
        %4335 = vrot.lane.b32.xlu0 %v2804, 96
        %v4336 = vpop.permute.xlu0 %4335
        %4337 = vrot.lane.b32.xlu0 %v2940, 96
        %v4338 = vpop.permute.xlu0 %4337
        %4339 = vrot.lane.b32.xlu0 %v3076, 96
        %v4340 = vpop.permute.xlu0 %4339
        %4341 = vrot.lane.b32.xlu0 %v3212, 96
        %v4342 = vpop.permute.xlu0 %4341
        %4343 = vrot.lane.b32.xlu0 %v3348, 96
        %v4344 = vpop.permute.xlu0 %4343
        %4345 = vrot.lane.b32.xlu0 %v3484, 96
        %v4346 = vpop.permute.xlu0 %4345
        %4347 = vrot.lane.b32.xlu0 %v3620, 96
        %v4348 = vpop.permute.xlu0 %4347
        %4349 = vrot.lane.b32.xlu0 %v3756, 96
        %v4350 = vpop.permute.xlu0 %4349
        %4351 = vrot.lane.b32.xlu0 %v3892, 96
        %v4352 = vpop.permute.xlu0 %4351
        %4371 = vrot.lane.b32.xlu0 %v2805, 112
        %v4372 = vpop.permute.xlu0 %4371
        %4373 = vrot.lane.b32.xlu0 %v2941, 112
        %v4374 = vpop.permute.xlu0 %4373
        %4375 = vrot.lane.b32.xlu0 %v3077, 112
        %v4376 = vpop.permute.xlu0 %4375
        %4377 = vrot.lane.b32.xlu0 %v3213, 112
        %v4378 = vpop.permute.xlu0 %4377
        %4379 = vrot.lane.b32.xlu0 %v3349, 112
        %v4380 = vpop.permute.xlu0 %4379
        %4381 = vrot.lane.b32.xlu0 %v3485, 112
        %v4382 = vpop.permute.xlu0 %4381
        %4383 = vrot.lane.b32.xlu0 %v3621, 112
        %v4384 = vpop.permute.xlu0 %4383
        %4385 = vrot.lane.b32.xlu0 %v3757, 112
        %v4386 = vpop.permute.xlu0 %4385
        %4387 = vrot.lane.b32.xlu0 %v3893, 112
        %v4388 = vpop.permute.xlu0 %4387
        %vm4398 = vcmask 130048
        %v4399 = vsel %vm4398, %v1574, %v3904
        %v4400 = vsel %vm4398, %v1710, %v3906
        %v4401 = vsel %vm4398, %v1846, %v3908
        %v4402 = vsel %vm4398, %v1982, %v3910
        %v4403 = vsel %vm4398, %v2118, %v3912
        %v4404 = vsel %vm4398, %v2254, %v3914
        %v4405 = vsel %vm4398, %v2390, %v3916
        %v4406 = vsel %vm4398, %v2526, %v3918
        %v4407 = vsel %vm4398, %v2662, %v3920
        %v4408 = vsel %vm319, %v4399, %v3940
        %v4409 = vsel %vm319, %v4400, %v3942
        %v4410 = vsel %vm319, %v4401, %v3944
        %v4411 = vsel %vm319, %v4402, %v3946
        %v4412 = vsel %vm319, %v4403, %v3948
        %v4413 = vsel %vm319, %v4404, %v3950
        %v4414 = vsel %vm319, %v4405, %v3952
        %v4415 = vsel %vm319, %v4406, %v3954
        %v4416 = vsel %vm319, %v4407, %v3956
        %vm4417 = vcmask 392192
        %v4418 = vsel %vm4417, %v4408, %v3976
        %v4419 = vsel %vm4417, %v4409, %v3978
        %v4420 = vsel %vm4417, %v4410, %v3980
        %v4421 = vsel %vm4417, %v4411, %v3982
        %v4422 = vsel %vm4417, %v4412, %v3984
        %v4423 = vsel %vm4417, %v4413, %v3986
        %v4424 = vsel %vm4417, %v4414, %v3988
        %v4425 = vsel %vm4417, %v4415, %v3990
        %v4426 = vsel %vm4417, %v4416, %v3992
        %vm4427 = vcmask 523264
        %v4428 = vsel %vm4427, %v4418, %v4012
        %v4429 = vsel %vm4427, %v4419, %v4014
        %v4430 = vsel %vm4427, %v4420, %v4016
        %v4431 = vsel %vm4427, %v4421, %v4018
        %v4432 = vsel %vm4427, %v4422, %v4020
        %v4433 = vsel %vm4427, %v4423, %v4022
        %v4434 = vsel %vm4427, %v4424, %v4024
        %v4435 = vsel %vm4427, %v4425, %v4026
        %v4436 = vsel %vm4427, %v4426, %v4028
        %vm4437 = vcmask 654336
        %v4438 = vsel %vm4437, %v4428, %v4048
        %v4439 = vsel %vm4437, %v4429, %v4050
        %v4440 = vsel %vm4437, %v4430, %v4052
        %v4441 = vsel %vm4437, %v4431, %v4054
        %v4442 = vsel %vm4437, %v4432, %v4056
        %v4443 = vsel %vm4437, %v4433, %v4058
        %v4444 = vsel %vm4437, %v4434, %v4060
        %v4445 = vsel %vm4437, %v4435, %v4062
        %v4446 = vsel %vm4437, %v4436, %v4064
        %vm4447 = vcmask 785408
        %v4448 = vsel %vm4447, %v4438, %v4084
        %v4449 = vsel %vm4447, %v4439, %v4086
        %v4450 = vsel %vm4447, %v4440, %v4088
        %v4451 = vsel %vm4447, %v4441, %v4090
        %v4452 = vsel %vm4447, %v4442, %v4092
        %v4453 = vsel %vm4447, %v4443, %v4094
        %v4454 = vsel %vm4447, %v4444, %v4096
        %v4455 = vsel %vm4447, %v4445, %v4098
        %v4456 = vsel %vm4447, %v4446, %v4100
        %vm4457 = vcmask 916480
        %v4458 = vsel %vm4457, %v4448, %v4120
        %v4459 = vsel %vm4457, %v4449, %v4122
        %v4460 = vsel %vm4457, %v4450, %v4124
        %v4461 = vsel %vm4457, %v4451, %v4126
        %v4462 = vsel %vm4457, %v4452, %v4128
        %v4463 = vsel %vm4457, %v4453, %v4130
        %v4464 = vsel %vm4457, %v4454, %v4132
        %v4465 = vsel %vm4457, %v4455, %v4134
        %v4466 = vsel %vm4457, %v4456, %v4136
        %v4467 = vsel %vm4398, %v2798, %v4156
        %v4468 = vsel %vm4398, %v2934, %v4158
        %v4469 = vsel %vm4398, %v3070, %v4160
        %v4470 = vsel %vm4398, %v3206, %v4162
        %v4471 = vsel %vm4398, %v3342, %v4164
        %v4472 = vsel %vm4398, %v3478, %v4166
        %v4473 = vsel %vm4398, %v3614, %v4168
        %v4474 = vsel %vm4398, %v3750, %v4170
        %v4475 = vsel %vm4398, %v3886, %v4172
        %v4476 = vsel %vm319, %v4467, %v4192
        %v4477 = vsel %vm319, %v4468, %v4194
        %v4478 = vsel %vm319, %v4469, %v4196
        %v4479 = vsel %vm319, %v4470, %v4198
        %v4480 = vsel %vm319, %v4471, %v4200
        %v4481 = vsel %vm319, %v4472, %v4202
        %v4482 = vsel %vm319, %v4473, %v4204
        %v4483 = vsel %vm319, %v4474, %v4206
        %v4484 = vsel %vm319, %v4475, %v4208
        %v4485 = vsel %vm4417, %v4476, %v4228
        %v4486 = vsel %vm4417, %v4477, %v4230
        %v4487 = vsel %vm4417, %v4478, %v4232
        %v4488 = vsel %vm4417, %v4479, %v4234
        %v4489 = vsel %vm4417, %v4480, %v4236
        %v4490 = vsel %vm4417, %v4481, %v4238
        %v4491 = vsel %vm4417, %v4482, %v4240
        %v4492 = vsel %vm4417, %v4483, %v4242
        %v4493 = vsel %vm4417, %v4484, %v4244
        %v4494 = vsel %vm4427, %v4485, %v4264
        %v4495 = vsel %vm4427, %v4486, %v4266
        %v4496 = vsel %vm4427, %v4487, %v4268
        %v4497 = vsel %vm4427, %v4488, %v4270
        %v4498 = vsel %vm4427, %v4489, %v4272
        %v4499 = vsel %vm4427, %v4490, %v4274
        %v4500 = vsel %vm4427, %v4491, %v4276
        %v4501 = vsel %vm4427, %v4492, %v4278
        %v4502 = vsel %vm4427, %v4493, %v4280
        %v4503 = vsel %vm4437, %v4494, %v4300
        %v4504 = vsel %vm4437, %v4495, %v4302
        %v4505 = vsel %vm4437, %v4496, %v4304
        %v4506 = vsel %vm4437, %v4497, %v4306
        %v4507 = vsel %vm4437, %v4498, %v4308
        %v4508 = vsel %vm4437, %v4499, %v4310
        %v4509 = vsel %vm4437, %v4500, %v4312
        %v4510 = vsel %vm4437, %v4501, %v4314
        %v4511 = vsel %vm4437, %v4502, %v4316
        %v4512 = vsel %vm4447, %v4503, %v4336
        %v4513 = vsel %vm4447, %v4504, %v4338
        %v4514 = vsel %vm4447, %v4505, %v4340
        %v4515 = vsel %vm4447, %v4506, %v4342
        %v4516 = vsel %vm4447, %v4507, %v4344
        %v4517 = vsel %vm4447, %v4508, %v4346
        %v4518 = vsel %vm4447, %v4509, %v4348
        %v4519 = vsel %vm4447, %v4510, %v4350
        %v4520 = vsel %vm4447, %v4511, %v4352
        %v4521 = vsel %vm4457, %v4512, %v4372
        %v4522 = vsel %vm4457, %v4513, %v4374
        %v4523 = vsel %vm4457, %v4514, %v4376
        %v4524 = vsel %vm4457, %v4515, %v4378
        %v4525 = vsel %vm4457, %v4516, %v4380
        %v4526 = vsel %vm4457, %v4517, %v4382
        %v4527 = vsel %vm4457, %v4518, %v4384
        %v4528 = vsel %vm4457, %v4519, %v4386
        %v4529 = vsel %vm4457, %v4520, %v4388
        %v4530 = vpack.c.bf16 %v4459, %v4458
        %v4531 = vpack.c.bf16 %v4522, %v4521
        %v4532 = vpack.c.bf16 %v4461, %v4460
        %v4533 = vpack.c.bf16 %v4524, %v4523
        %v4534 = vpack.c.bf16 %v4463, %v4462
        %v4535 = vpack.c.bf16 %v4526, %v4525
        %v4536 = vpack.c.bf16 %v4465, %v4464
        %v4537 = vpack.c.bf16 %v4528, %v4527
        %v4538 = vpack.c.bf16 %v4466, %v4466
        %v4539 = vpack.c.bf16 %v4529, %v4529
        %v4540 = vld [vmem:[%s3] sm:$0xf]
        %v4541 = vld [vmem:[%s4] sm:$0xff]
        %4543 = vset.pattern.permute.xlu0 0
        %4544 = vperm.xlu0 %4543, %v4541
        %v4545 = vpop.permute.xlu0 %4544
        %vm4547 = vcmask 588800
        %v4549 = vsel %vm4547, %v4540, 0
        %vm4551 = vcmask 1043456
        %v4553 = vsel %vm4551, %v4538, 0
        %v4556 = vsel %vm4551, %v4539, 0
        %4558 = vmatprep.subr.bf16.mxu0 %v4531
        %4559 = vmatpush1.bf16.msra.mxu0 %v4530
        %4560 = vmatprep.subr.bf16.mxu0 %v4533
        %4561 = vmatpush1.bf16.msra.mxu0 %v4532
        %4562 = vmatprep.subr.bf16.mxu0 %v4535
        %4563 = vmatpush1.bf16.msra.mxu0 %v4534
        %4564 = vmatprep.subr.bf16.mxu0 %v4537
        %4565 = vmatpush1.bf16.msra.mxu0 %v4536
        %4566 = vmatprep.subr.bf16.mxu0 %v4556
        %4567 = vmatpush1.bf16.msra.mxu0 %v4553
        %4568 = vmatprep.subr.bf16.mxu0 0
        %4569 = vmatpush1.bf16.msra.mxu0 0
        %4570 = vmatprep.subr.bf16.mxu0 0
        %4571 = vmatpush1.bf16.msra.mxu0 0
        %4572 = vmatprep.subr.bf16.mxu0 0
        %4573 = vmatpush1.bf16.msra.mxu0 0
        %4574 = vmatprep.subr.bf16.mxu0 0
        %4575 = vmatpush1.bf16.msra.mxu0 0
        %4576 = vmatprep.subr.bf16.mxu0 0
        %4577 = vmatpush1.bf16.msra.mxu0 0
        %4578 = vmatprep.subr.bf16.mxu0 0
        %4579 = vmatpush1.bf16.msra.mxu0 0
        %4580 = vmatprep.subr.bf16.mxu0 0
        %4581 = vmatpush1.bf16.msra.mxu0 0
        %4582 = vmatprep.subr.bf16.mxu0 0
        %4583 = vmatpush1.bf16.msra.mxu0 0
        %4584 = vmatprep.subr.bf16.mxu0 0
        %4585 = vmatpush1.bf16.msra.mxu0 0
        %4586 = vmatprep.subr.bf16.mxu0 0
        %4587 = vmatpush1.bf16.msra.mxu0 0
        %4588 = vmatprep.subr.bf16.mxu0 0
        %4589 = vmatpush1.bf16.msra.mxu0 0
        %4590 = vmatprep.mubr.bf16.mxu0 0
        %4591 = vmatmul.mubr.bf16.gmra.mrb[0].mxu0 %v4549
        %v4592 = vpop.f32.mrb[0].mxu0
        %v4593 = vadd.f32 %v4545, %v4592
        %v4594 = vpop.f32.mrb[0].mxu0
        %v4595 = vadd.f32 %v4545, %v4594
        %v4596 = vpop.f32.mrb[0].mxu0
        %v4597 = vpop.f32.mrb[0].mxu0
        %4598 = vdwg.mxu0
        %v4599 = vmax.f32 %v4593, 0.0
        %v4600 = vmax.f32 %v4595, 0.0
        %s4601 = scalar_lea.vmem %s5, 8
        %v4602 = vld [vmem:[%s4601] sm:$0xff]
        %4604 = vset.pattern.permute.xlu0 0
        %4605 = vperm.xlu0 %4604, %v4602
        %v4606 = vpop.permute.xlu0 %4605
        %v4608 = vmul.f32 %v4599, %v4606
        %v4609 = vmul.f32 %v4600, %v4606
        %v4610 = vadd.f32 %v372, %v4608
        %v4611 = vadd.f32 %v373, %v4609
        %v4612 = vld [vmem:[#allocation2 + $0x1] sm:$0xff]
        %v4613 = vld [vmem:[#allocation2 + $0x9] sm:$0xff]
        %v4614 = vld [vmem:[#allocation2 + $0x19] sm:$0xff]
        %v4615 = vld [vmem:[#allocation2 + $0x21] sm:$0xff]
        %v4616 = vld [vmem:[#allocation2 + $0x31] sm:$0xff]
        %v4617 = vld [vmem:[#allocation2 + $0x39] sm:$0xff]
        %v4618 = vld [vmem:[#allocation2 + $0x49] sm:$0xff]
        %v4619 = vld [vmem:[#allocation2 + $0x51] sm:$0xff]
        %v4620 = vld [vmem:[#allocation2 + $0x61] sm:$0xff]
        %v4621 = vld [vmem:[#allocation2 + $0x69] sm:$0xff]
        %v4622 = vld [vmem:[#allocation2 + $0x79] sm:$0xff]
        %v4623 = vld [vmem:[#allocation2 + $0x81] sm:$0xff]
        %v4624 = vld [vmem:[#allocation2 + $0x91] sm:$0xff]
        %v4625 = vld [vmem:[#allocation2 + $0x99] sm:$0xff]
        %v4626 = vld [vmem:[#allocation2 + $0xa9] sm:$0xff]
        %v4627 = vld [vmem:[#allocation2 + $0xb1] sm:$0xff]
        %v4628 = vld [vmem:[#allocation2 + $0x3] sm:$0xff]
        %v4629 = vld [vmem:[#allocation2 + $0xb] sm:$0xff]
        %v4630 = vld [vmem:[#allocation2 + $0x1b] sm:$0xff]
        %v4631 = vld [vmem:[#allocation2 + $0x23] sm:$0xff]
        %v4632 = vld [vmem:[#allocation2 + $0x33] sm:$0xff]
        %v4633 = vld [vmem:[#allocation2 + $0x3b] sm:$0xff]
        %v4634 = vld [vmem:[#allocation2 + $0x4b] sm:$0xff]
        %v4635 = vld [vmem:[#allocation2 + $0x53] sm:$0xff]
        %v4636 = vld [vmem:[#allocation2 + $0x63] sm:$0xff]
        %v4637 = vld [vmem:[#allocation2 + $0x6b] sm:$0xff]
        %v4638 = vld [vmem:[#allocation2 + $0x7b] sm:$0xff]
        %v4639 = vld [vmem:[#allocation2 + $0x83] sm:$0xff]
        %v4640 = vld [vmem:[#allocation2 + $0x93] sm:$0xff]
        %v4641 = vld [vmem:[#allocation2 + $0x9b] sm:$0xff]
        %v4642 = vld [vmem:[#allocation2 + $0xab] sm:$0xff]
        %v4643 = vld [vmem:[#allocation2 + $0xb3] sm:$0xff]
        %v4644 = vld [vmem:[#allocation2 + $0x5] sm:$0xff]
        %v4645 = vld [vmem:[#allocation2 + $0xd] sm:$0xff]
        %v4646 = vld [vmem:[#allocation2 + $0x1d] sm:$0xff]
        %v4647 = vld [vmem:[#allocation2 + $0x25] sm:$0xff]
        %v4648 = vld [vmem:[#allocation2 + $0x35] sm:$0xff]
        %v4649 = vld [vmem:[#allocation2 + $0x3d] sm:$0xff]
        %v4650 = vld [vmem:[#allocation2 + $0x4d] sm:$0xff]
        %v4651 = vld [vmem:[#allocation2 + $0x55] sm:$0xff]
        %v4652 = vld [vmem:[#allocation2 + $0x65] sm:$0xff]
        %v4653 = vld [vmem:[#allocation2 + $0x6d] sm:$0xff]
        %v4654 = vld [vmem:[#allocation2 + $0x7d] sm:$0xff]
        %v4655 = vld [vmem:[#allocation2 + $0x85] sm:$0xff]
        %v4656 = vld [vmem:[#allocation2 + $0x95] sm:$0xff]
        %v4657 = vld [vmem:[#allocation2 + $0x9d] sm:$0xff]
        %v4658 = vld [vmem:[#allocation2 + $0xad] sm:$0xff]
        %v4659 = vld [vmem:[#allocation2 + $0xb5] sm:$0xff]
        %4676 = vrot.lane.b32.xlu0 %v4612, 126
        %v4677 = vpop.permute.xlu0 %4676
        %4678 = vrot.lane.b32.xlu0 %v4613, 126
        %v4679 = vpop.permute.xlu0 %4678
        %4680 = vrot.lane.b32.xlu0 %v4614, 126
        %v4681 = vpop.permute.xlu0 %4680
        %4682 = vrot.lane.b32.xlu0 %v4615, 126
        %v4683 = vpop.permute.xlu0 %4682
        %4684 = vrot.lane.b32.xlu0 %v4616, 126
        %v4685 = vpop.permute.xlu0 %4684
        %4686 = vrot.lane.b32.xlu0 %v4617, 126
        %v4687 = vpop.permute.xlu0 %4686
        %4688 = vrot.lane.b32.xlu0 %v4618, 126
        %v4689 = vpop.permute.xlu0 %4688
        %4690 = vrot.lane.b32.xlu0 %v4619, 126
        %v4691 = vpop.permute.xlu0 %4690
        %4692 = vrot.lane.b32.xlu0 %v4620, 126
        %v4693 = vpop.permute.xlu0 %4692
        %4694 = vrot.lane.b32.xlu0 %v4621, 126
        %v4695 = vpop.permute.xlu0 %4694
        %4696 = vrot.lane.b32.xlu0 %v4622, 126
        %v4697 = vpop.permute.xlu0 %4696
        %4698 = vrot.lane.b32.xlu0 %v4623, 126
        %v4699 = vpop.permute.xlu0 %4698
        %4700 = vrot.lane.b32.xlu0 %v4624, 126
        %v4701 = vpop.permute.xlu0 %4700
        %4702 = vrot.lane.b32.xlu0 %v4625, 126
        %v4703 = vpop.permute.xlu0 %4702
        %4704 = vrot.lane.b32.xlu0 %v4626, 126
        %v4705 = vpop.permute.xlu0 %4704
        %4706 = vrot.lane.b32.xlu0 %v4627, 126
        %v4707 = vpop.permute.xlu0 %4706
        %4708 = vrot.lane.b32.xlu0 %v4612, 124
        %v4709 = vpop.permute.xlu0 %4708
        %4710 = vrot.lane.b32.xlu0 %v4613, 124
        %v4711 = vpop.permute.xlu0 %4710
        %4712 = vrot.lane.b32.xlu0 %v4614, 124
        %v4713 = vpop.permute.xlu0 %4712
        %4714 = vrot.lane.b32.xlu0 %v4615, 124
        %v4715 = vpop.permute.xlu0 %4714
        %4716 = vrot.lane.b32.xlu0 %v4616, 124
        %v4717 = vpop.permute.xlu0 %4716
        %4718 = vrot.lane.b32.xlu0 %v4617, 124
        %v4719 = vpop.permute.xlu0 %4718
        %4720 = vrot.lane.b32.xlu0 %v4618, 124
        %v4721 = vpop.permute.xlu0 %4720
        %4722 = vrot.lane.b32.xlu0 %v4619, 124
        %v4723 = vpop.permute.xlu0 %4722
        %4724 = vrot.lane.b32.xlu0 %v4620, 124
        %v4725 = vpop.permute.xlu0 %4724
        %4726 = vrot.lane.b32.xlu0 %v4621, 124
        %v4727 = vpop.permute.xlu0 %4726
        %4728 = vrot.lane.b32.xlu0 %v4622, 124
        %v4729 = vpop.permute.xlu0 %4728
        %4730 = vrot.lane.b32.xlu0 %v4623, 124
        %v4731 = vpop.permute.xlu0 %4730
        %4732 = vrot.lane.b32.xlu0 %v4624, 124
        %v4733 = vpop.permute.xlu0 %4732
        %4734 = vrot.lane.b32.xlu0 %v4625, 124
        %v4735 = vpop.permute.xlu0 %4734
        %4736 = vrot.lane.b32.xlu0 %v4626, 124
        %v4737 = vpop.permute.xlu0 %4736
        %4738 = vrot.lane.b32.xlu0 %v4627, 124
        %v4739 = vpop.permute.xlu0 %4738
        %4756 = vrot.lane.b32.xlu0 %v4628, 124
        %v4757 = vpop.permute.xlu0 %4756
        %4758 = vrot.lane.b32.xlu0 %v4629, 124
        %v4759 = vpop.permute.xlu0 %4758
        %4760 = vrot.lane.b32.xlu0 %v4630, 124
        %v4761 = vpop.permute.xlu0 %4760
        %4762 = vrot.lane.b32.xlu0 %v4631, 124
        %v4763 = vpop.permute.xlu0 %4762
        %4764 = vrot.lane.b32.xlu0 %v4632, 124
        %v4765 = vpop.permute.xlu0 %4764
        %4766 = vrot.lane.b32.xlu0 %v4633, 124
        %v4767 = vpop.permute.xlu0 %4766
        %4768 = vrot.lane.b32.xlu0 %v4634, 124
        %v4769 = vpop.permute.xlu0 %4768
        %4770 = vrot.lane.b32.xlu0 %v4635, 124
        %v4771 = vpop.permute.xlu0 %4770
        %4772 = vrot.lane.b32.xlu0 %v4636, 124
        %v4773 = vpop.permute.xlu0 %4772
        %4774 = vrot.lane.b32.xlu0 %v4637, 124
        %v4775 = vpop.permute.xlu0 %4774
        %4776 = vrot.lane.b32.xlu0 %v4638, 124
        %v4777 = vpop.permute.xlu0 %4776
        %4778 = vrot.lane.b32.xlu0 %v4639, 124
        %v4779 = vpop.permute.xlu0 %4778
        %4780 = vrot.lane.b32.xlu0 %v4640, 124
        %v4781 = vpop.permute.xlu0 %4780
        %4782 = vrot.lane.b32.xlu0 %v4641, 124
        %v4783 = vpop.permute.xlu0 %4782
        %4784 = vrot.lane.b32.xlu0 %v4642, 124
        %v4785 = vpop.permute.xlu0 %4784
        %4786 = vrot.lane.b32.xlu0 %v4643, 124
        %v4787 = vpop.permute.xlu0 %4786
        %4804 = vrot.lane.b32.xlu0 %v4644, 126
        %v4805 = vpop.permute.xlu0 %4804
        %4806 = vrot.lane.b32.xlu0 %v4645, 126
        %v4807 = vpop.permute.xlu0 %4806
        %4808 = vrot.lane.b32.xlu0 %v4646, 126
        %v4809 = vpop.permute.xlu0 %4808
        %4810 = vrot.lane.b32.xlu0 %v4647, 126
        %v4811 = vpop.permute.xlu0 %4810
        %4812 = vrot.lane.b32.xlu0 %v4648, 126
        %v4813 = vpop.permute.xlu0 %4812
        %4814 = vrot.lane.b32.xlu0 %v4649, 126
        %v4815 = vpop.permute.xlu0 %4814
        %4816 = vrot.lane.b32.xlu0 %v4650, 126
        %v4817 = vpop.permute.xlu0 %4816
        %4818 = vrot.lane.b32.xlu0 %v4651, 126
        %v4819 = vpop.permute.xlu0 %4818
        %4820 = vrot.lane.b32.xlu0 %v4652, 126
        %v4821 = vpop.permute.xlu0 %4820
        %4822 = vrot.lane.b32.xlu0 %v4653, 126
        %v4823 = vpop.permute.xlu0 %4822
        %4824 = vrot.lane.b32.xlu0 %v4654, 126
        %v4825 = vpop.permute.xlu0 %4824
        %4826 = vrot.lane.b32.xlu0 %v4655, 126
        %v4827 = vpop.permute.xlu0 %4826
        %4828 = vrot.lane.b32.xlu0 %v4656, 126
        %v4829 = vpop.permute.xlu0 %4828
        %4830 = vrot.lane.b32.xlu0 %v4657, 126
        %v4831 = vpop.permute.xlu0 %4830
        %4832 = vrot.lane.b32.xlu0 %v4658, 126
        %v4833 = vpop.permute.xlu0 %4832
        %4834 = vrot.lane.b32.xlu0 %v4659, 126
        %v4835 = vpop.permute.xlu0 %4834
        %4836 = vrot.lane.b32.xlu0 %v4644, 124
        %v4837 = vpop.permute.xlu0 %4836
        %4838 = vrot.lane.b32.xlu0 %v4645, 124
        %v4839 = vpop.permute.xlu0 %4838
        %4840 = vrot.lane.b32.xlu0 %v4646, 124
        %v4841 = vpop.permute.xlu0 %4840
        %4842 = vrot.lane.b32.xlu0 %v4647, 124
        %v4843 = vpop.permute.xlu0 %4842
        %4844 = vrot.lane.b32.xlu0 %v4648, 124
        %v4845 = vpop.permute.xlu0 %4844
        %4846 = vrot.lane.b32.xlu0 %v4649, 124
        %v4847 = vpop.permute.xlu0 %4846
        %4848 = vrot.lane.b32.xlu0 %v4650, 124
        %v4849 = vpop.permute.xlu0 %4848
        %4850 = vrot.lane.b32.xlu0 %v4651, 124
        %v4851 = vpop.permute.xlu0 %4850
        %4852 = vrot.lane.b32.xlu0 %v4652, 124
        %v4853 = vpop.permute.xlu0 %4852
        %4854 = vrot.lane.b32.xlu0 %v4653, 124
        %v4855 = vpop.permute.xlu0 %4854
        %4856 = vrot.lane.b32.xlu0 %v4654, 124
        %v4857 = vpop.permute.xlu0 %4856
        %4858 = vrot.lane.b32.xlu0 %v4655, 124
        %v4859 = vpop.permute.xlu0 %4858
        %4860 = vrot.lane.b32.xlu0 %v4656, 124
        %v4861 = vpop.permute.xlu0 %4860
        %4862 = vrot.lane.b32.xlu0 %v4657, 124
        %v4863 = vpop.permute.xlu0 %4862
        %4864 = vrot.lane.b32.xlu0 %v4658, 124
        %v4865 = vpop.permute.xlu0 %4864
        %4866 = vrot.lane.b32.xlu0 %v4659, 124
        %v4867 = vpop.permute.xlu0 %4866
        %4868 = vrot.lane.b32.xlu0 %v4612, 127
        %v4869 = vpop.permute.xlu0 %4868
        %4870 = vrot.lane.b32.xlu0 %v4613, 127
        %v4871 = vpop.permute.xlu0 %4870
        %4872 = vrot.lane.b32.xlu0 %v4614, 127
        %v4873 = vpop.permute.xlu0 %4872
        %4874 = vrot.lane.b32.xlu0 %v4615, 127
        %v4875 = vpop.permute.xlu0 %4874
        %4876 = vrot.lane.b32.xlu0 %v4616, 127
        %v4877 = vpop.permute.xlu0 %4876
        %4878 = vrot.lane.b32.xlu0 %v4617, 127
        %v4879 = vpop.permute.xlu0 %4878
        %4880 = vrot.lane.b32.xlu0 %v4618, 127
        %v4881 = vpop.permute.xlu0 %4880
        %4882 = vrot.lane.b32.xlu0 %v4619, 127
        %v4883 = vpop.permute.xlu0 %4882
        %4884 = vrot.lane.b32.xlu0 %v4620, 127
        %v4885 = vpop.permute.xlu0 %4884
        %4886 = vrot.lane.b32.xlu0 %v4621, 127
        %v4887 = vpop.permute.xlu0 %4886
        %4888 = vrot.lane.b32.xlu0 %v4622, 127
        %v4889 = vpop.permute.xlu0 %4888
        %4890 = vrot.lane.b32.xlu0 %v4623, 127
        %v4891 = vpop.permute.xlu0 %4890
        %4892 = vrot.lane.b32.xlu0 %v4624, 127
        %v4893 = vpop.permute.xlu0 %4892
        %4894 = vrot.lane.b32.xlu0 %v4625, 127
        %v4895 = vpop.permute.xlu0 %4894
        %4896 = vrot.lane.b32.xlu0 %v4626, 127
        %v4897 = vpop.permute.xlu0 %4896
        %4898 = vrot.lane.b32.xlu0 %v4627, 127
        %v4899 = vpop.permute.xlu0 %4898
        %4900 = vrot.lane.b32.xlu0 %v4677, 127
        %v4901 = vpop.permute.xlu0 %4900
        %4902 = vrot.lane.b32.xlu0 %v4679, 127
        %v4903 = vpop.permute.xlu0 %4902
        %4904 = vrot.lane.b32.xlu0 %v4681, 127
        %v4905 = vpop.permute.xlu0 %4904
        %4906 = vrot.lane.b32.xlu0 %v4683, 127
        %v4907 = vpop.permute.xlu0 %4906
        %4908 = vrot.lane.b32.xlu0 %v4685, 127
        %v4909 = vpop.permute.xlu0 %4908
        %4910 = vrot.lane.b32.xlu0 %v4687, 127
        %v4911 = vpop.permute.xlu0 %4910
        %4912 = vrot.lane.b32.xlu0 %v4689, 127
        %v4913 = vpop.permute.xlu0 %4912
        %4914 = vrot.lane.b32.xlu0 %v4691, 127
        %v4915 = vpop.permute.xlu0 %4914
        %4916 = vrot.lane.b32.xlu0 %v4693, 127
        %v4917 = vpop.permute.xlu0 %4916
        %4918 = vrot.lane.b32.xlu0 %v4695, 127
        %v4919 = vpop.permute.xlu0 %4918
        %4920 = vrot.lane.b32.xlu0 %v4697, 127
        %v4921 = vpop.permute.xlu0 %4920
        %4922 = vrot.lane.b32.xlu0 %v4699, 127
        %v4923 = vpop.permute.xlu0 %4922
        %4924 = vrot.lane.b32.xlu0 %v4701, 127
        %v4925 = vpop.permute.xlu0 %4924
        %4926 = vrot.lane.b32.xlu0 %v4703, 127
        %v4927 = vpop.permute.xlu0 %4926
        %4928 = vrot.lane.b32.xlu0 %v4705, 127
        %v4929 = vpop.permute.xlu0 %4928
        %4930 = vrot.lane.b32.xlu0 %v4707, 127
        %v4931 = vpop.permute.xlu0 %4930
        %4932 = vrot.lane.b32.xlu0 %v4709, 127
        %v4933 = vpop.permute.xlu0 %4932
        %4934 = vrot.lane.b32.xlu0 %v4711, 127
        %v4935 = vpop.permute.xlu0 %4934
        %4936 = vrot.lane.b32.xlu0 %v4713, 127
        %v4937 = vpop.permute.xlu0 %4936
        %4938 = vrot.lane.b32.xlu0 %v4715, 127
        %v4939 = vpop.permute.xlu0 %4938
        %4940 = vrot.lane.b32.xlu0 %v4717, 127
        %v4941 = vpop.permute.xlu0 %4940
        %4942 = vrot.lane.b32.xlu0 %v4719, 127
        %v4943 = vpop.permute.xlu0 %4942
        %4944 = vrot.lane.b32.xlu0 %v4721, 127
        %v4945 = vpop.permute.xlu0 %4944
        %4946 = vrot.lane.b32.xlu0 %v4723, 127
        %v4947 = vpop.permute.xlu0 %4946
        %4948 = vrot.lane.b32.xlu0 %v4725, 127
        %v4949 = vpop.permute.xlu0 %4948
        %4950 = vrot.lane.b32.xlu0 %v4727, 127
        %v4951 = vpop.permute.xlu0 %4950
        %4952 = vrot.lane.b32.xlu0 %v4729, 127
        %v4953 = vpop.permute.xlu0 %4952
        %4954 = vrot.lane.b32.xlu0 %v4731, 127
        %v4955 = vpop.permute.xlu0 %4954
        %4956 = vrot.lane.b32.xlu0 %v4733, 127
        %v4957 = vpop.permute.xlu0 %4956
        %4958 = vrot.lane.b32.xlu0 %v4735, 127
        %v4959 = vpop.permute.xlu0 %4958
        %4960 = vrot.lane.b32.xlu0 %v4737, 127
        %v4961 = vpop.permute.xlu0 %4960
        %4962 = vrot.lane.b32.xlu0 %v4739, 127
        %v4963 = vpop.permute.xlu0 %4962
        %4964 = vrot.lane.b32.xlu0 %v4628, 127
        %v4965 = vpop.permute.xlu0 %4964
        %4966 = vrot.lane.b32.xlu0 %v4629, 127
        %v4967 = vpop.permute.xlu0 %4966
        %4968 = vrot.lane.b32.xlu0 %v4630, 127
        %v4969 = vpop.permute.xlu0 %4968
        %4970 = vrot.lane.b32.xlu0 %v4631, 127
        %v4971 = vpop.permute.xlu0 %4970
        %4972 = vrot.lane.b32.xlu0 %v4632, 127
        %v4973 = vpop.permute.xlu0 %4972
        %4974 = vrot.lane.b32.xlu0 %v4633, 127
        %v4975 = vpop.permute.xlu0 %4974
        %4976 = vrot.lane.b32.xlu0 %v4634, 127
        %v4977 = vpop.permute.xlu0 %4976
        %4978 = vrot.lane.b32.xlu0 %v4635, 127
        %v4979 = vpop.permute.xlu0 %4978
        %4980 = vrot.lane.b32.xlu0 %v4636, 127
        %v4981 = vpop.permute.xlu0 %4980
        %4982 = vrot.lane.b32.xlu0 %v4637, 127
        %v4983 = vpop.permute.xlu0 %4982
        %4984 = vrot.lane.b32.xlu0 %v4638, 127
        %v4985 = vpop.permute.xlu0 %4984
        %4986 = vrot.lane.b32.xlu0 %v4639, 127
        %v4987 = vpop.permute.xlu0 %4986
        %4988 = vrot.lane.b32.xlu0 %v4640, 127
        %v4989 = vpop.permute.xlu0 %4988
        %4990 = vrot.lane.b32.xlu0 %v4641, 127
        %v4991 = vpop.permute.xlu0 %4990
        %4992 = vrot.lane.b32.xlu0 %v4642, 127
        %v4993 = vpop.permute.xlu0 %4992
        %4994 = vrot.lane.b32.xlu0 %v4643, 127
        %v4995 = vpop.permute.xlu0 %4994
        %4996 = vrot.lane.b32.xlu0 %v999, 127
        %v4997 = vpop.permute.xlu0 %4996
        %4998 = vrot.lane.b32.xlu0 %v1001, 127
        %v4999 = vpop.permute.xlu0 %4998
        %5000 = vrot.lane.b32.xlu0 %v1003, 127
        %v5001 = vpop.permute.xlu0 %5000
        %5002 = vrot.lane.b32.xlu0 %v1005, 127
        %v5003 = vpop.permute.xlu0 %5002
        %5004 = vrot.lane.b32.xlu0 %v1007, 127
        %v5005 = vpop.permute.xlu0 %5004
        %5006 = vrot.lane.b32.xlu0 %v1009, 127
        %v5007 = vpop.permute.xlu0 %5006
        %5008 = vrot.lane.b32.xlu0 %v1011, 127
        %v5009 = vpop.permute.xlu0 %5008
        %5010 = vrot.lane.b32.xlu0 %v1013, 127
        %v5011 = vpop.permute.xlu0 %5010
        %5012 = vrot.lane.b32.xlu0 %v1015, 127
        %v5013 = vpop.permute.xlu0 %5012
        %5014 = vrot.lane.b32.xlu0 %v1017, 127
        %v5015 = vpop.permute.xlu0 %5014
        %5016 = vrot.lane.b32.xlu0 %v1019, 127
        %v5017 = vpop.permute.xlu0 %5016
        %5018 = vrot.lane.b32.xlu0 %v1021, 127
        %v5019 = vpop.permute.xlu0 %5018
        %5020 = vrot.lane.b32.xlu0 %v1023, 127
        %v5021 = vpop.permute.xlu0 %5020
        %5022 = vrot.lane.b32.xlu0 %v1025, 127
        %v5023 = vpop.permute.xlu0 %5022
        %5024 = vrot.lane.b32.xlu0 %v1027, 127
        %v5025 = vpop.permute.xlu0 %5024
        %5026 = vrot.lane.b32.xlu0 %v1029, 127
        %v5027 = vpop.permute.xlu0 %5026
        %5028 = vrot.lane.b32.xlu0 %v4757, 127
        %v5029 = vpop.permute.xlu0 %5028
        %5030 = vrot.lane.b32.xlu0 %v4759, 127
        %v5031 = vpop.permute.xlu0 %5030
        %5032 = vrot.lane.b32.xlu0 %v4761, 127
        %v5033 = vpop.permute.xlu0 %5032
        %5034 = vrot.lane.b32.xlu0 %v4763, 127
        %v5035 = vpop.permute.xlu0 %5034
        %5036 = vrot.lane.b32.xlu0 %v4765, 127
        %v5037 = vpop.permute.xlu0 %5036
        %5038 = vrot.lane.b32.xlu0 %v4767, 127
        %v5039 = vpop.permute.xlu0 %5038
        %5040 = vrot.lane.b32.xlu0 %v4769, 127
        %v5041 = vpop.permute.xlu0 %5040
        %5042 = vrot.lane.b32.xlu0 %v4771, 127
        %v5043 = vpop.permute.xlu0 %5042
        %5044 = vrot.lane.b32.xlu0 %v4773, 127
        %v5045 = vpop.permute.xlu0 %5044
        %5046 = vrot.lane.b32.xlu0 %v4775, 127
        %v5047 = vpop.permute.xlu0 %5046
        %5048 = vrot.lane.b32.xlu0 %v4777, 127
        %v5049 = vpop.permute.xlu0 %5048
        %5050 = vrot.lane.b32.xlu0 %v4779, 127
        %v5051 = vpop.permute.xlu0 %5050
        %5052 = vrot.lane.b32.xlu0 %v4781, 127
        %v5053 = vpop.permute.xlu0 %5052
        %5054 = vrot.lane.b32.xlu0 %v4783, 127
        %v5055 = vpop.permute.xlu0 %5054
        %5056 = vrot.lane.b32.xlu0 %v4785, 127
        %v5057 = vpop.permute.xlu0 %5056
        %5058 = vrot.lane.b32.xlu0 %v4787, 127
        %v5059 = vpop.permute.xlu0 %5058
        %5060 = vrot.lane.b32.xlu0 %v4644, 127
        %v5061 = vpop.permute.xlu0 %5060
        %5062 = vrot.lane.b32.xlu0 %v4645, 127
        %v5063 = vpop.permute.xlu0 %5062
        %5064 = vrot.lane.b32.xlu0 %v4646, 127
        %v5065 = vpop.permute.xlu0 %5064
        %5066 = vrot.lane.b32.xlu0 %v4647, 127
        %v5067 = vpop.permute.xlu0 %5066
        %5068 = vrot.lane.b32.xlu0 %v4648, 127
        %v5069 = vpop.permute.xlu0 %5068
        %5070 = vrot.lane.b32.xlu0 %v4649, 127
        %v5071 = vpop.permute.xlu0 %5070
        %5072 = vrot.lane.b32.xlu0 %v4650, 127
        %v5073 = vpop.permute.xlu0 %5072
        %5074 = vrot.lane.b32.xlu0 %v4651, 127
        %v5075 = vpop.permute.xlu0 %5074
        %5076 = vrot.lane.b32.xlu0 %v4652, 127
        %v5077 = vpop.permute.xlu0 %5076
        %5078 = vrot.lane.b32.xlu0 %v4653, 127
        %v5079 = vpop.permute.xlu0 %5078
        %5080 = vrot.lane.b32.xlu0 %v4654, 127
        %v5081 = vpop.permute.xlu0 %5080
        %5082 = vrot.lane.b32.xlu0 %v4655, 127
        %v5083 = vpop.permute.xlu0 %5082
        %5084 = vrot.lane.b32.xlu0 %v4656, 127
        %v5085 = vpop.permute.xlu0 %5084
        %5086 = vrot.lane.b32.xlu0 %v4657, 127
        %v5087 = vpop.permute.xlu0 %5086
        %5088 = vrot.lane.b32.xlu0 %v4658, 127
        %v5089 = vpop.permute.xlu0 %5088
        %5090 = vrot.lane.b32.xlu0 %v4659, 127
        %v5091 = vpop.permute.xlu0 %5090
        %5092 = vrot.lane.b32.xlu0 %v4805, 127
        %v5093 = vpop.permute.xlu0 %5092
        %5094 = vrot.lane.b32.xlu0 %v4807, 127
        %v5095 = vpop.permute.xlu0 %5094
        %5096 = vrot.lane.b32.xlu0 %v4809, 127
        %v5097 = vpop.permute.xlu0 %5096
        %5098 = vrot.lane.b32.xlu0 %v4811, 127
        %v5099 = vpop.permute.xlu0 %5098
        %5100 = vrot.lane.b32.xlu0 %v4813, 127
        %v5101 = vpop.permute.xlu0 %5100
        %5102 = vrot.lane.b32.xlu0 %v4815, 127
        %v5103 = vpop.permute.xlu0 %5102
        %5104 = vrot.lane.b32.xlu0 %v4817, 127
        %v5105 = vpop.permute.xlu0 %5104
        %5106 = vrot.lane.b32.xlu0 %v4819, 127
        %v5107 = vpop.permute.xlu0 %5106
        %5108 = vrot.lane.b32.xlu0 %v4821, 127
        %v5109 = vpop.permute.xlu0 %5108
        %5110 = vrot.lane.b32.xlu0 %v4823, 127
        %v5111 = vpop.permute.xlu0 %5110
        %5112 = vrot.lane.b32.xlu0 %v4825, 127
        %v5113 = vpop.permute.xlu0 %5112
        %5114 = vrot.lane.b32.xlu0 %v4827, 127
        %v5115 = vpop.permute.xlu0 %5114
        %5116 = vrot.lane.b32.xlu0 %v4829, 127
        %v5117 = vpop.permute.xlu0 %5116
        %5118 = vrot.lane.b32.xlu0 %v4831, 127
        %v5119 = vpop.permute.xlu0 %5118
        %5120 = vrot.lane.b32.xlu0 %v4833, 127
        %v5121 = vpop.permute.xlu0 %5120
        %5122 = vrot.lane.b32.xlu0 %v4835, 127
        %v5123 = vpop.permute.xlu0 %5122
        %5124 = vrot.lane.b32.xlu0 %v4837, 127
        %v5125 = vpop.permute.xlu0 %5124
        %5126 = vrot.lane.b32.xlu0 %v4839, 127
        %v5127 = vpop.permute.xlu0 %5126
        %5128 = vrot.lane.b32.xlu0 %v4841, 127
        %v5129 = vpop.permute.xlu0 %5128
        %5130 = vrot.lane.b32.xlu0 %v4843, 127
        %v5131 = vpop.permute.xlu0 %5130
        %5132 = vrot.lane.b32.xlu0 %v4845, 127
        %v5133 = vpop.permute.xlu0 %5132
        %5134 = vrot.lane.b32.xlu0 %v4847, 127
        %v5135 = vpop.permute.xlu0 %5134
        %5136 = vrot.lane.b32.xlu0 %v4849, 127
        %v5137 = vpop.permute.xlu0 %5136
        %5138 = vrot.lane.b32.xlu0 %v4851, 127
        %v5139 = vpop.permute.xlu0 %5138
        %5140 = vrot.lane.b32.xlu0 %v4853, 127
        %v5141 = vpop.permute.xlu0 %5140
        %5142 = vrot.lane.b32.xlu0 %v4855, 127
        %v5143 = vpop.permute.xlu0 %5142
        %5144 = vrot.lane.b32.xlu0 %v4857, 127
        %v5145 = vpop.permute.xlu0 %5144
        %5146 = vrot.lane.b32.xlu0 %v4859, 127
        %v5147 = vpop.permute.xlu0 %5146
        %5148 = vrot.lane.b32.xlu0 %v4861, 127
        %v5149 = vpop.permute.xlu0 %5148
        %5150 = vrot.lane.b32.xlu0 %v4863, 127
        %v5151 = vpop.permute.xlu0 %5150
        %5152 = vrot.lane.b32.xlu0 %v4865, 127
        %v5153 = vpop.permute.xlu0 %5152
        %5154 = vrot.lane.b32.xlu0 %v4867, 127
        %v5155 = vpop.permute.xlu0 %5154
        %v5300 = vcombine.low %v4869, %v4877
        %v5301 = vcombine.high %v4869, %v4877
        %v5303 = vunpack.c.l.s4 1983009808
        %v5304 = vunpack.c.0.s8 %v5303
        %v5305 = vlaneseq
        %v5306 = vshrl.u32 %v5305, 7
        %v5307 = vsub.s32 %v5304, %v5306
        %v5308 = vrot.slane %v5300, %v5307
        %v5310 = vunpack.c.l.s4 1983009808
        %v5311 = vunpack.c.0.s8 %v5310
        %v5312 = vlaneseq
        %v5313 = vshrl.u32 %v5312, 7
        %v5314 = vsub.s32 %v5311, %v5313
        %v5315 = vrot.slane %v5301, %v5314
        %v5316 = vcombine.low %v4873, %v4881
        %v5317 = vcombine.high %v4873, %v4881
        %v5319 = vunpack.c.l.s4 1983009808
        %v5320 = vunpack.c.0.s8 %v5319
        %v5321 = vlaneseq
        %v5322 = vshrl.u32 %v5321, 7
        %v5323 = vsub.s32 %v5320, %v5322
        %v5324 = vrot.slane %v5316, %v5323
        %v5326 = vunpack.c.l.s4 1983009808
        %v5327 = vunpack.c.0.s8 %v5326
        %v5328 = vlaneseq
        %v5329 = vshrl.u32 %v5328, 7
        %v5330 = vsub.s32 %v5327, %v5329
        %v5331 = vrot.slane %v5317, %v5330
        %v5332 = vcombine.low %v4885, %v4893
        %v5333 = vcombine.high %v4885, %v4893
        %v5335 = vunpack.c.l.s4 1983009808
        %v5336 = vunpack.c.0.s8 %v5335
        %v5337 = vlaneseq
        %v5338 = vshrl.u32 %v5337, 7
        %v5339 = vsub.s32 %v5336, %v5338
        %v5340 = vrot.slane %v5332, %v5339
        %v5342 = vunpack.c.l.s4 1983009808
        %v5343 = vunpack.c.0.s8 %v5342
        %v5344 = vlaneseq
        %v5345 = vshrl.u32 %v5344, 7
        %v5346 = vsub.s32 %v5343, %v5345
        %v5347 = vrot.slane %v5333, %v5346
        %v5348 = vcombine.low %v4889, %v4897
        %v5349 = vcombine.high %v4889, %v4897
        %v5351 = vunpack.c.l.s4 1983009808
        %v5352 = vunpack.c.0.s8 %v5351
        %v5353 = vlaneseq
        %v5354 = vshrl.u32 %v5353, 7
        %v5355 = vsub.s32 %v5352, %v5354
        %v5356 = vrot.slane %v5348, %v5355
        %v5358 = vunpack.c.l.s4 1983009808
        %v5359 = vunpack.c.0.s8 %v5358
        %v5360 = vlaneseq
        %v5361 = vshrl.u32 %v5360, 7
        %v5362 = vsub.s32 %v5359, %v5361
        %v5363 = vrot.slane %v5349, %v5362
        %v5364 = vcombine.low %v5308, %v5324
        %v5365 = vcombine.high %v5308, %v5324
        %v5367 = vunpack.c.l.s4 1934713408
        %v5368 = vunpack.c.0.s8 %v5367
        %v5369 = vlaneseq
        %v5370 = vshrl.u32 %v5369, 7
        %v5371 = vsub.s32 %v5368, %v5370
        %v5372 = vrot.slane %v5364, %v5371
        %v5374 = vunpack.c.l.s4 1934713408
        %v5375 = vunpack.c.0.s8 %v5374
        %v5376 = vlaneseq
        %v5377 = vshrl.u32 %v5376, 7
        %v5378 = vsub.s32 %v5375, %v5377
        %v5379 = vrot.slane %v5365, %v5378
        %v5380 = vcombine.low %v5315, %v5331
        %v5381 = vcombine.high %v5315, %v5331
        %v5383 = vunpack.c.l.s4 1934713408
        %v5384 = vunpack.c.0.s8 %v5383
        %v5385 = vlaneseq
        %v5386 = vshrl.u32 %v5385, 7
        %v5387 = vsub.s32 %v5384, %v5386
        %v5388 = vrot.slane %v5380, %v5387
        %v5390 = vunpack.c.l.s4 1934713408
        %v5391 = vunpack.c.0.s8 %v5390
        %v5392 = vlaneseq
        %v5393 = vshrl.u32 %v5392, 7
        %v5394 = vsub.s32 %v5391, %v5393
        %v5395 = vrot.slane %v5381, %v5394
        %v5396 = vcombine.low %v5340, %v5356
        %v5397 = vcombine.high %v5340, %v5356
        %v5399 = vunpack.c.l.s4 1934713408
        %v5400 = vunpack.c.0.s8 %v5399
        %v5401 = vlaneseq
        %v5402 = vshrl.u32 %v5401, 7
        %v5403 = vsub.s32 %v5400, %v5402
        %v5404 = vrot.slane %v5396, %v5403
        %v5406 = vunpack.c.l.s4 1934713408
        %v5407 = vunpack.c.0.s8 %v5406
        %v5408 = vlaneseq
        %v5409 = vshrl.u32 %v5408, 7
        %v5410 = vsub.s32 %v5407, %v5409
        %v5411 = vrot.slane %v5397, %v5410
        %v5412 = vcombine.low %v5347, %v5363
        %v5413 = vcombine.high %v5347, %v5363
        %v5415 = vunpack.c.l.s4 1934713408
        %v5416 = vunpack.c.0.s8 %v5415
        %v5417 = vlaneseq
        %v5418 = vshrl.u32 %v5417, 7
        %v5419 = vsub.s32 %v5416, %v5418
        %v5420 = vrot.slane %v5412, %v5419
        %v5422 = vunpack.c.l.s4 1934713408
        %v5423 = vunpack.c.0.s8 %v5422
        %v5424 = vlaneseq
        %v5425 = vshrl.u32 %v5424, 7
        %v5426 = vsub.s32 %v5423, %v5425
        %v5427 = vrot.slane %v5413, %v5426
        %v5428 = vcombine.low %v5372, %v5404
        %v5429 = vcombine.high %v5372, %v5404
        %v5430 = vcombine.low %v5379, %v5411
        %v5431 = vcombine.high %v5379, %v5411
        %v5432 = vcombine.low %v5388, %v5420
        %v5433 = vcombine.high %v5388, %v5420
        %v5434 = vcombine.low %v5395, %v5427
        %v5435 = vcombine.high %v5395, %v5427
        %v5436 = vcombine.low %v4901, %v4909
        %v5437 = vcombine.high %v4901, %v4909
        %v5439 = vunpack.c.l.s4 1983009808
        %v5440 = vunpack.c.0.s8 %v5439
        %v5441 = vlaneseq
        %v5442 = vshrl.u32 %v5441, 7
        %v5443 = vsub.s32 %v5440, %v5442
        %v5444 = vrot.slane %v5436, %v5443
        %v5446 = vunpack.c.l.s4 1983009808
        %v5447 = vunpack.c.0.s8 %v5446
        %v5448 = vlaneseq
        %v5449 = vshrl.u32 %v5448, 7
        %v5450 = vsub.s32 %v5447, %v5449
        %v5451 = vrot.slane %v5437, %v5450
        %v5452 = vcombine.low %v4905, %v4913
        %v5453 = vcombine.high %v4905, %v4913
        %v5455 = vunpack.c.l.s4 1983009808
        %v5456 = vunpack.c.0.s8 %v5455
        %v5457 = vlaneseq
        %v5458 = vshrl.u32 %v5457, 7
        %v5459 = vsub.s32 %v5456, %v5458
        %v5460 = vrot.slane %v5452, %v5459
        %v5462 = vunpack.c.l.s4 1983009808
        %v5463 = vunpack.c.0.s8 %v5462
        %v5464 = vlaneseq
        %v5465 = vshrl.u32 %v5464, 7
        %v5466 = vsub.s32 %v5463, %v5465
        %v5467 = vrot.slane %v5453, %v5466
        %v5468 = vcombine.low %v4917, %v4925
        %v5469 = vcombine.high %v4917, %v4925
        %v5471 = vunpack.c.l.s4 1983009808
        %v5472 = vunpack.c.0.s8 %v5471
        %v5473 = vlaneseq
        %v5474 = vshrl.u32 %v5473, 7
        %v5475 = vsub.s32 %v5472, %v5474
        %v5476 = vrot.slane %v5468, %v5475
        %v5478 = vunpack.c.l.s4 1983009808
        %v5479 = vunpack.c.0.s8 %v5478
        %v5480 = vlaneseq
        %v5481 = vshrl.u32 %v5480, 7
        %v5482 = vsub.s32 %v5479, %v5481
        %v5483 = vrot.slane %v5469, %v5482
        %v5484 = vcombine.low %v4921, %v4929
        %v5485 = vcombine.high %v4921, %v4929
        %v5487 = vunpack.c.l.s4 1983009808
        %v5488 = vunpack.c.0.s8 %v5487
        %v5489 = vlaneseq
        %v5490 = vshrl.u32 %v5489, 7
        %v5491 = vsub.s32 %v5488, %v5490
        %v5492 = vrot.slane %v5484, %v5491
        %v5494 = vunpack.c.l.s4 1983009808
        %v5495 = vunpack.c.0.s8 %v5494
        %v5496 = vlaneseq
        %v5497 = vshrl.u32 %v5496, 7
        %v5498 = vsub.s32 %v5495, %v5497
        %v5499 = vrot.slane %v5485, %v5498
        %v5500 = vcombine.low %v5444, %v5460
        %v5501 = vcombine.high %v5444, %v5460
        %v5503 = vunpack.c.l.s4 1934713408
        %v5504 = vunpack.c.0.s8 %v5503
        %v5505 = vlaneseq
        %v5506 = vshrl.u32 %v5505, 7
        %v5507 = vsub.s32 %v5504, %v5506
        %v5508 = vrot.slane %v5500, %v5507
        %v5510 = vunpack.c.l.s4 1934713408
        %v5511 = vunpack.c.0.s8 %v5510
        %v5512 = vlaneseq
        %v5513 = vshrl.u32 %v5512, 7
        %v5514 = vsub.s32 %v5511, %v5513
        %v5515 = vrot.slane %v5501, %v5514
        %v5516 = vcombine.low %v5451, %v5467
        %v5517 = vcombine.high %v5451, %v5467
        %v5519 = vunpack.c.l.s4 1934713408
        %v5520 = vunpack.c.0.s8 %v5519
        %v5521 = vlaneseq
        %v5522 = vshrl.u32 %v5521, 7
        %v5523 = vsub.s32 %v5520, %v5522
        %v5524 = vrot.slane %v5516, %v5523
        %v5526 = vunpack.c.l.s4 1934713408
        %v5527 = vunpack.c.0.s8 %v5526
        %v5528 = vlaneseq
        %v5529 = vshrl.u32 %v5528, 7
        %v5530 = vsub.s32 %v5527, %v5529
        %v5531 = vrot.slane %v5517, %v5530
        %v5532 = vcombine.low %v5476, %v5492
        %v5533 = vcombine.high %v5476, %v5492
        %v5535 = vunpack.c.l.s4 1934713408
        %v5536 = vunpack.c.0.s8 %v5535
        %v5537 = vlaneseq
        %v5538 = vshrl.u32 %v5537, 7
        %v5539 = vsub.s32 %v5536, %v5538
        %v5540 = vrot.slane %v5532, %v5539
        %v5542 = vunpack.c.l.s4 1934713408
        %v5543 = vunpack.c.0.s8 %v5542
        %v5544 = vlaneseq
        %v5545 = vshrl.u32 %v5544, 7
        %v5546 = vsub.s32 %v5543, %v5545
        %v5547 = vrot.slane %v5533, %v5546
        %v5548 = vcombine.low %v5483, %v5499
        %v5549 = vcombine.high %v5483, %v5499
        %v5551 = vunpack.c.l.s4 1934713408
        %v5552 = vunpack.c.0.s8 %v5551
        %v5553 = vlaneseq
        %v5554 = vshrl.u32 %v5553, 7
        %v5555 = vsub.s32 %v5552, %v5554
        %v5556 = vrot.slane %v5548, %v5555
        %v5558 = vunpack.c.l.s4 1934713408
        %v5559 = vunpack.c.0.s8 %v5558
        %v5560 = vlaneseq
        %v5561 = vshrl.u32 %v5560, 7
        %v5562 = vsub.s32 %v5559, %v5561
        %v5563 = vrot.slane %v5549, %v5562
        %v5564 = vcombine.low %v5508, %v5540
        %v5565 = vcombine.high %v5508, %v5540
        %v5566 = vcombine.low %v5515, %v5547
        %v5567 = vcombine.high %v5515, %v5547
        %v5568 = vcombine.low %v5524, %v5556
        %v5569 = vcombine.high %v5524, %v5556
        %v5570 = vcombine.low %v5531, %v5563
        %v5571 = vcombine.high %v5531, %v5563
        %v5572 = vcombine.low %v4933, %v4941
        %v5573 = vcombine.high %v4933, %v4941
        %v5575 = vunpack.c.l.s4 1983009808
        %v5576 = vunpack.c.0.s8 %v5575
        %v5577 = vlaneseq
        %v5578 = vshrl.u32 %v5577, 7
        %v5579 = vsub.s32 %v5576, %v5578
        %v5580 = vrot.slane %v5572, %v5579
        %v5582 = vunpack.c.l.s4 1983009808
        %v5583 = vunpack.c.0.s8 %v5582
        %v5584 = vlaneseq
        %v5585 = vshrl.u32 %v5584, 7
        %v5586 = vsub.s32 %v5583, %v5585
        %v5587 = vrot.slane %v5573, %v5586
        %v5588 = vcombine.low %v4937, %v4945
        %v5589 = vcombine.high %v4937, %v4945
        %v5591 = vunpack.c.l.s4 1983009808
        %v5592 = vunpack.c.0.s8 %v5591
        %v5593 = vlaneseq
        %v5594 = vshrl.u32 %v5593, 7
        %v5595 = vsub.s32 %v5592, %v5594
        %v5596 = vrot.slane %v5588, %v5595
        %v5598 = vunpack.c.l.s4 1983009808
        %v5599 = vunpack.c.0.s8 %v5598
        %v5600 = vlaneseq
        %v5601 = vshrl.u32 %v5600, 7
        %v5602 = vsub.s32 %v5599, %v5601
        %v5603 = vrot.slane %v5589, %v5602
        %v5604 = vcombine.low %v4949, %v4957
        %v5605 = vcombine.high %v4949, %v4957
        %v5607 = vunpack.c.l.s4 1983009808
        %v5608 = vunpack.c.0.s8 %v5607
        %v5609 = vlaneseq
        %v5610 = vshrl.u32 %v5609, 7
        %v5611 = vsub.s32 %v5608, %v5610
        %v5612 = vrot.slane %v5604, %v5611
        %v5614 = vunpack.c.l.s4 1983009808
        %v5615 = vunpack.c.0.s8 %v5614
        %v5616 = vlaneseq
        %v5617 = vshrl.u32 %v5616, 7
        %v5618 = vsub.s32 %v5615, %v5617
        %v5619 = vrot.slane %v5605, %v5618
        %v5620 = vcombine.low %v4953, %v4961
        %v5621 = vcombine.high %v4953, %v4961
        %v5623 = vunpack.c.l.s4 1983009808
        %v5624 = vunpack.c.0.s8 %v5623
        %v5625 = vlaneseq
        %v5626 = vshrl.u32 %v5625, 7
        %v5627 = vsub.s32 %v5624, %v5626
        %v5628 = vrot.slane %v5620, %v5627
        %v5630 = vunpack.c.l.s4 1983009808
        %v5631 = vunpack.c.0.s8 %v5630
        %v5632 = vlaneseq
        %v5633 = vshrl.u32 %v5632, 7
        %v5634 = vsub.s32 %v5631, %v5633
        %v5635 = vrot.slane %v5621, %v5634
        %v5636 = vcombine.low %v5580, %v5596
        %v5637 = vcombine.high %v5580, %v5596
        %v5639 = vunpack.c.l.s4 1934713408
        %v5640 = vunpack.c.0.s8 %v5639
        %v5641 = vlaneseq
        %v5642 = vshrl.u32 %v5641, 7
        %v5643 = vsub.s32 %v5640, %v5642
        %v5644 = vrot.slane %v5636, %v5643
        %v5646 = vunpack.c.l.s4 1934713408
        %v5647 = vunpack.c.0.s8 %v5646
        %v5648 = vlaneseq
        %v5649 = vshrl.u32 %v5648, 7
        %v5650 = vsub.s32 %v5647, %v5649
        %v5651 = vrot.slane %v5637, %v5650
        %v5652 = vcombine.low %v5587, %v5603
        %v5653 = vcombine.high %v5587, %v5603
        %v5655 = vunpack.c.l.s4 1934713408
        %v5656 = vunpack.c.0.s8 %v5655
        %v5657 = vlaneseq
        %v5658 = vshrl.u32 %v5657, 7
        %v5659 = vsub.s32 %v5656, %v5658
        %v5660 = vrot.slane %v5652, %v5659
        %v5662 = vunpack.c.l.s4 1934713408
        %v5663 = vunpack.c.0.s8 %v5662
        %v5664 = vlaneseq
        %v5665 = vshrl.u32 %v5664, 7
        %v5666 = vsub.s32 %v5663, %v5665
        %v5667 = vrot.slane %v5653, %v5666
        %v5668 = vcombine.low %v5612, %v5628
        %v5669 = vcombine.high %v5612, %v5628
        %v5671 = vunpack.c.l.s4 1934713408
        %v5672 = vunpack.c.0.s8 %v5671
        %v5673 = vlaneseq
        %v5674 = vshrl.u32 %v5673, 7
        %v5675 = vsub.s32 %v5672, %v5674
        %v5676 = vrot.slane %v5668, %v5675
        %v5678 = vunpack.c.l.s4 1934713408
        %v5679 = vunpack.c.0.s8 %v5678
        %v5680 = vlaneseq
        %v5681 = vshrl.u32 %v5680, 7
        %v5682 = vsub.s32 %v5679, %v5681
        %v5683 = vrot.slane %v5669, %v5682
        %v5684 = vcombine.low %v5619, %v5635
        %v5685 = vcombine.high %v5619, %v5635
        %v5687 = vunpack.c.l.s4 1934713408
        %v5688 = vunpack.c.0.s8 %v5687
        %v5689 = vlaneseq
        %v5690 = vshrl.u32 %v5689, 7
        %v5691 = vsub.s32 %v5688, %v5690
        %v5692 = vrot.slane %v5684, %v5691
        %v5694 = vunpack.c.l.s4 1934713408
        %v5695 = vunpack.c.0.s8 %v5694
        %v5696 = vlaneseq
        %v5697 = vshrl.u32 %v5696, 7
        %v5698 = vsub.s32 %v5695, %v5697
        %v5699 = vrot.slane %v5685, %v5698
        %v5700 = vcombine.low %v5644, %v5676
        %v5701 = vcombine.high %v5644, %v5676
        %v5702 = vcombine.low %v5651, %v5683
        %v5703 = vcombine.high %v5651, %v5683
        %v5704 = vcombine.low %v5660, %v5692
        %v5705 = vcombine.high %v5660, %v5692
        %v5706 = vcombine.low %v5667, %v5699
        %v5707 = vcombine.high %v5667, %v5699
        %v5708 = vcombine.low %v4965, %v4973
        %v5709 = vcombine.high %v4965, %v4973
        %v5711 = vunpack.c.l.s4 1983009808
        %v5712 = vunpack.c.0.s8 %v5711
        %v5713 = vlaneseq
        %v5714 = vshrl.u32 %v5713, 7
        %v5715 = vsub.s32 %v5712, %v5714
        %v5716 = vrot.slane %v5708, %v5715
        %v5718 = vunpack.c.l.s4 1983009808
        %v5719 = vunpack.c.0.s8 %v5718
        %v5720 = vlaneseq
        %v5721 = vshrl.u32 %v5720, 7
        %v5722 = vsub.s32 %v5719, %v5721
        %v5723 = vrot.slane %v5709, %v5722
        %v5724 = vcombine.low %v4969, %v4977
        %v5725 = vcombine.high %v4969, %v4977
        %v5727 = vunpack.c.l.s4 1983009808
        %v5728 = vunpack.c.0.s8 %v5727
        %v5729 = vlaneseq
        %v5730 = vshrl.u32 %v5729, 7
        %v5731 = vsub.s32 %v5728, %v5730
        %v5732 = vrot.slane %v5724, %v5731
        %v5734 = vunpack.c.l.s4 1983009808
        %v5735 = vunpack.c.0.s8 %v5734
        %v5736 = vlaneseq
        %v5737 = vshrl.u32 %v5736, 7
        %v5738 = vsub.s32 %v5735, %v5737
        %v5739 = vrot.slane %v5725, %v5738
        %v5740 = vcombine.low %v4981, %v4989
        %v5741 = vcombine.high %v4981, %v4989
        %v5743 = vunpack.c.l.s4 1983009808
        %v5744 = vunpack.c.0.s8 %v5743
        %v5745 = vlaneseq
        %v5746 = vshrl.u32 %v5745, 7
        %v5747 = vsub.s32 %v5744, %v5746
        %v5748 = vrot.slane %v5740, %v5747
        %v5750 = vunpack.c.l.s4 1983009808
        %v5751 = vunpack.c.0.s8 %v5750
        %v5752 = vlaneseq
        %v5753 = vshrl.u32 %v5752, 7
        %v5754 = vsub.s32 %v5751, %v5753
        %v5755 = vrot.slane %v5741, %v5754
        %v5756 = vcombine.low %v4985, %v4993
        %v5757 = vcombine.high %v4985, %v4993
        %v5759 = vunpack.c.l.s4 1983009808
        %v5760 = vunpack.c.0.s8 %v5759
        %v5761 = vlaneseq
        %v5762 = vshrl.u32 %v5761, 7
        %v5763 = vsub.s32 %v5760, %v5762
        %v5764 = vrot.slane %v5756, %v5763
        %v5766 = vunpack.c.l.s4 1983009808
        %v5767 = vunpack.c.0.s8 %v5766
        %v5768 = vlaneseq
        %v5769 = vshrl.u32 %v5768, 7
        %v5770 = vsub.s32 %v5767, %v5769
        %v5771 = vrot.slane %v5757, %v5770
        %v5772 = vcombine.low %v5716, %v5732
        %v5773 = vcombine.high %v5716, %v5732
        %v5775 = vunpack.c.l.s4 1934713408
        %v5776 = vunpack.c.0.s8 %v5775
        %v5777 = vlaneseq
        %v5778 = vshrl.u32 %v5777, 7
        %v5779 = vsub.s32 %v5776, %v5778
        %v5780 = vrot.slane %v5772, %v5779
        %v5782 = vunpack.c.l.s4 1934713408
        %v5783 = vunpack.c.0.s8 %v5782
        %v5784 = vlaneseq
        %v5785 = vshrl.u32 %v5784, 7
        %v5786 = vsub.s32 %v5783, %v5785
        %v5787 = vrot.slane %v5773, %v5786
        %v5788 = vcombine.low %v5723, %v5739
        %v5789 = vcombine.high %v5723, %v5739
        %v5791 = vunpack.c.l.s4 1934713408
        %v5792 = vunpack.c.0.s8 %v5791
        %v5793 = vlaneseq
        %v5794 = vshrl.u32 %v5793, 7
        %v5795 = vsub.s32 %v5792, %v5794
        %v5796 = vrot.slane %v5788, %v5795
        %v5798 = vunpack.c.l.s4 1934713408
        %v5799 = vunpack.c.0.s8 %v5798
        %v5800 = vlaneseq
        %v5801 = vshrl.u32 %v5800, 7
        %v5802 = vsub.s32 %v5799, %v5801
        %v5803 = vrot.slane %v5789, %v5802
        %v5804 = vcombine.low %v5748, %v5764
        %v5805 = vcombine.high %v5748, %v5764
        %v5807 = vunpack.c.l.s4 1934713408
        %v5808 = vunpack.c.0.s8 %v5807
        %v5809 = vlaneseq
        %v5810 = vshrl.u32 %v5809, 7
        %v5811 = vsub.s32 %v5808, %v5810
        %v5812 = vrot.slane %v5804, %v5811
        %v5814 = vunpack.c.l.s4 1934713408
        %v5815 = vunpack.c.0.s8 %v5814
        %v5816 = vlaneseq
        %v5817 = vshrl.u32 %v5816, 7
        %v5818 = vsub.s32 %v5815, %v5817
        %v5819 = vrot.slane %v5805, %v5818
        %v5820 = vcombine.low %v5755, %v5771
        %v5821 = vcombine.high %v5755, %v5771
        %v5823 = vunpack.c.l.s4 1934713408
        %v5824 = vunpack.c.0.s8 %v5823
        %v5825 = vlaneseq
        %v5826 = vshrl.u32 %v5825, 7
        %v5827 = vsub.s32 %v5824, %v5826
        %v5828 = vrot.slane %v5820, %v5827
        %v5830 = vunpack.c.l.s4 1934713408
        %v5831 = vunpack.c.0.s8 %v5830
        %v5832 = vlaneseq
        %v5833 = vshrl.u32 %v5832, 7
        %v5834 = vsub.s32 %v5831, %v5833
        %v5835 = vrot.slane %v5821, %v5834
        %v5836 = vcombine.low %v5780, %v5812
        %v5837 = vcombine.high %v5780, %v5812
        %v5838 = vcombine.low %v5787, %v5819
        %v5839 = vcombine.high %v5787, %v5819
        %v5840 = vcombine.low %v5796, %v5828
        %v5841 = vcombine.high %v5796, %v5828
        %v5842 = vcombine.low %v5803, %v5835
        %v5843 = vcombine.high %v5803, %v5835
        %v5844 = vcombine.low %v4997, %v5005
        %v5845 = vcombine.high %v4997, %v5005
        %v5847 = vunpack.c.l.s4 1983009808
        %v5848 = vunpack.c.0.s8 %v5847
        %v5849 = vlaneseq
        %v5850 = vshrl.u32 %v5849, 7
        %v5851 = vsub.s32 %v5848, %v5850
        %v5852 = vrot.slane %v5844, %v5851
        %v5854 = vunpack.c.l.s4 1983009808
        %v5855 = vunpack.c.0.s8 %v5854
        %v5856 = vlaneseq
        %v5857 = vshrl.u32 %v5856, 7
        %v5858 = vsub.s32 %v5855, %v5857
        %v5859 = vrot.slane %v5845, %v5858
        %v5860 = vcombine.low %v5001, %v5009
        %v5861 = vcombine.high %v5001, %v5009
        %v5863 = vunpack.c.l.s4 1983009808
        %v5864 = vunpack.c.0.s8 %v5863
        %v5865 = vlaneseq
        %v5866 = vshrl.u32 %v5865, 7
        %v5867 = vsub.s32 %v5864, %v5866
        %v5868 = vrot.slane %v5860, %v5867
        %v5870 = vunpack.c.l.s4 1983009808
        %v5871 = vunpack.c.0.s8 %v5870
        %v5872 = vlaneseq
        %v5873 = vshrl.u32 %v5872, 7
        %v5874 = vsub.s32 %v5871, %v5873
        %v5875 = vrot.slane %v5861, %v5874
        %v5876 = vcombine.low %v5013, %v5021
        %v5877 = vcombine.high %v5013, %v5021
        %v5879 = vunpack.c.l.s4 1983009808
        %v5880 = vunpack.c.0.s8 %v5879
        %v5881 = vlaneseq
        %v5882 = vshrl.u32 %v5881, 7
        %v5883 = vsub.s32 %v5880, %v5882
        %v5884 = vrot.slane %v5876, %v5883
        %v5886 = vunpack.c.l.s4 1983009808
        %v5887 = vunpack.c.0.s8 %v5886
        %v5888 = vlaneseq
        %v5889 = vshrl.u32 %v5888, 7
        %v5890 = vsub.s32 %v5887, %v5889
        %v5891 = vrot.slane %v5877, %v5890
        %v5892 = vcombine.low %v5017, %v5025
        %v5893 = vcombine.high %v5017, %v5025
        %v5895 = vunpack.c.l.s4 1983009808
        %v5896 = vunpack.c.0.s8 %v5895
        %v5897 = vlaneseq
        %v5898 = vshrl.u32 %v5897, 7
        %v5899 = vsub.s32 %v5896, %v5898
        %v5900 = vrot.slane %v5892, %v5899
        %v5902 = vunpack.c.l.s4 1983009808
        %v5903 = vunpack.c.0.s8 %v5902
        %v5904 = vlaneseq
        %v5905 = vshrl.u32 %v5904, 7
        %v5906 = vsub.s32 %v5903, %v5905
        %v5907 = vrot.slane %v5893, %v5906
        %v5908 = vcombine.low %v5852, %v5868
        %v5909 = vcombine.high %v5852, %v5868
        %v5911 = vunpack.c.l.s4 1934713408
        %v5912 = vunpack.c.0.s8 %v5911
        %v5913 = vlaneseq
        %v5914 = vshrl.u32 %v5913, 7
        %v5915 = vsub.s32 %v5912, %v5914
        %v5916 = vrot.slane %v5908, %v5915
        %v5918 = vunpack.c.l.s4 1934713408
        %v5919 = vunpack.c.0.s8 %v5918
        %v5920 = vlaneseq
        %v5921 = vshrl.u32 %v5920, 7
        %v5922 = vsub.s32 %v5919, %v5921
        %v5923 = vrot.slane %v5909, %v5922
        %v5924 = vcombine.low %v5859, %v5875
        %v5925 = vcombine.high %v5859, %v5875
        %v5927 = vunpack.c.l.s4 1934713408
        %v5928 = vunpack.c.0.s8 %v5927
        %v5929 = vlaneseq
        %v5930 = vshrl.u32 %v5929, 7
        %v5931 = vsub.s32 %v5928, %v5930
        %v5932 = vrot.slane %v5924, %v5931
        %v5934 = vunpack.c.l.s4 1934713408
        %v5935 = vunpack.c.0.s8 %v5934
        %v5936 = vlaneseq
        %v5937 = vshrl.u32 %v5936, 7
        %v5938 = vsub.s32 %v5935, %v5937
        %v5939 = vrot.slane %v5925, %v5938
        %v5940 = vcombine.low %v5884, %v5900
        %v5941 = vcombine.high %v5884, %v5900
        %v5943 = vunpack.c.l.s4 1934713408
        %v5944 = vunpack.c.0.s8 %v5943
        %v5945 = vlaneseq
        %v5946 = vshrl.u32 %v5945, 7
        %v5947 = vsub.s32 %v5944, %v5946
        %v5948 = vrot.slane %v5940, %v5947
        %v5950 = vunpack.c.l.s4 1934713408
        %v5951 = vunpack.c.0.s8 %v5950
        %v5952 = vlaneseq
        %v5953 = vshrl.u32 %v5952, 7
        %v5954 = vsub.s32 %v5951, %v5953
        %v5955 = vrot.slane %v5941, %v5954
        %v5956 = vcombine.low %v5891, %v5907
        %v5957 = vcombine.high %v5891, %v5907
        %v5959 = vunpack.c.l.s4 1934713408
        %v5960 = vunpack.c.0.s8 %v5959
        %v5961 = vlaneseq
        %v5962 = vshrl.u32 %v5961, 7
        %v5963 = vsub.s32 %v5960, %v5962
        %v5964 = vrot.slane %v5956, %v5963
        %v5966 = vunpack.c.l.s4 1934713408
        %v5967 = vunpack.c.0.s8 %v5966
        %v5968 = vlaneseq
        %v5969 = vshrl.u32 %v5968, 7
        %v5970 = vsub.s32 %v5967, %v5969
        %v5971 = vrot.slane %v5957, %v5970
        %v5972 = vcombine.low %v5916, %v5948
        %v5973 = vcombine.high %v5916, %v5948
        %v5974 = vcombine.low %v5923, %v5955
        %v5975 = vcombine.high %v5923, %v5955
        %v5976 = vcombine.low %v5932, %v5964
        %v5977 = vcombine.high %v5932, %v5964
        %v5978 = vcombine.low %v5939, %v5971
        %v5979 = vcombine.high %v5939, %v5971
        %v5980 = vcombine.low %v5029, %v5037
        %v5981 = vcombine.high %v5029, %v5037
        %v5983 = vunpack.c.l.s4 1983009808
        %v5984 = vunpack.c.0.s8 %v5983
        %v5985 = vlaneseq
        %v5986 = vshrl.u32 %v5985, 7
        %v5987 = vsub.s32 %v5984, %v5986
        %v5988 = vrot.slane %v5980, %v5987
        %v5990 = vunpack.c.l.s4 1983009808
        %v5991 = vunpack.c.0.s8 %v5990
        %v5992 = vlaneseq
        %v5993 = vshrl.u32 %v5992, 7
        %v5994 = vsub.s32 %v5991, %v5993
        %v5995 = vrot.slane %v5981, %v5994
        %v5996 = vcombine.low %v5033, %v5041
        %v5997 = vcombine.high %v5033, %v5041
        %v5999 = vunpack.c.l.s4 1983009808
        %v6000 = vunpack.c.0.s8 %v5999
        %v6001 = vlaneseq
        %v6002 = vshrl.u32 %v6001, 7
        %v6003 = vsub.s32 %v6000, %v6002
        %v6004 = vrot.slane %v5996, %v6003
        %v6006 = vunpack.c.l.s4 1983009808
        %v6007 = vunpack.c.0.s8 %v6006
        %v6008 = vlaneseq
        %v6009 = vshrl.u32 %v6008, 7
        %v6010 = vsub.s32 %v6007, %v6009
        %v6011 = vrot.slane %v5997, %v6010
        %v6012 = vcombine.low %v5045, %v5053
        %v6013 = vcombine.high %v5045, %v5053
        %v6015 = vunpack.c.l.s4 1983009808
        %v6016 = vunpack.c.0.s8 %v6015
        %v6017 = vlaneseq
        %v6018 = vshrl.u32 %v6017, 7
        %v6019 = vsub.s32 %v6016, %v6018
        %v6020 = vrot.slane %v6012, %v6019
        %v6022 = vunpack.c.l.s4 1983009808
        %v6023 = vunpack.c.0.s8 %v6022
        %v6024 = vlaneseq
        %v6025 = vshrl.u32 %v6024, 7
        %v6026 = vsub.s32 %v6023, %v6025
        %v6027 = vrot.slane %v6013, %v6026
        %v6028 = vcombine.low %v5049, %v5057
        %v6029 = vcombine.high %v5049, %v5057
        %v6031 = vunpack.c.l.s4 1983009808
        %v6032 = vunpack.c.0.s8 %v6031
        %v6033 = vlaneseq
        %v6034 = vshrl.u32 %v6033, 7
        %v6035 = vsub.s32 %v6032, %v6034
        %v6036 = vrot.slane %v6028, %v6035
        %v6038 = vunpack.c.l.s4 1983009808
        %v6039 = vunpack.c.0.s8 %v6038
        %v6040 = vlaneseq
        %v6041 = vshrl.u32 %v6040, 7
        %v6042 = vsub.s32 %v6039, %v6041
        %v6043 = vrot.slane %v6029, %v6042
        %v6044 = vcombine.low %v5988, %v6004
        %v6045 = vcombine.high %v5988, %v6004
        %v6047 = vunpack.c.l.s4 1934713408
        %v6048 = vunpack.c.0.s8 %v6047
        %v6049 = vlaneseq
        %v6050 = vshrl.u32 %v6049, 7
        %v6051 = vsub.s32 %v6048, %v6050
        %v6052 = vrot.slane %v6044, %v6051
        %v6054 = vunpack.c.l.s4 1934713408
        %v6055 = vunpack.c.0.s8 %v6054
        %v6056 = vlaneseq
        %v6057 = vshrl.u32 %v6056, 7
        %v6058 = vsub.s32 %v6055, %v6057
        %v6059 = vrot.slane %v6045, %v6058
        %v6060 = vcombine.low %v5995, %v6011
        %v6061 = vcombine.high %v5995, %v6011
        %v6063 = vunpack.c.l.s4 1934713408
        %v6064 = vunpack.c.0.s8 %v6063
        %v6065 = vlaneseq
        %v6066 = vshrl.u32 %v6065, 7
        %v6067 = vsub.s32 %v6064, %v6066
        %v6068 = vrot.slane %v6060, %v6067
        %v6070 = vunpack.c.l.s4 1934713408
        %v6071 = vunpack.c.0.s8 %v6070
        %v6072 = vlaneseq
        %v6073 = vshrl.u32 %v6072, 7
        %v6074 = vsub.s32 %v6071, %v6073
        %v6075 = vrot.slane %v6061, %v6074
        %v6076 = vcombine.low %v6020, %v6036
        %v6077 = vcombine.high %v6020, %v6036
        %v6079 = vunpack.c.l.s4 1934713408
        %v6080 = vunpack.c.0.s8 %v6079
        %v6081 = vlaneseq
        %v6082 = vshrl.u32 %v6081, 7
        %v6083 = vsub.s32 %v6080, %v6082
        %v6084 = vrot.slane %v6076, %v6083
        %v6086 = vunpack.c.l.s4 1934713408
        %v6087 = vunpack.c.0.s8 %v6086
        %v6088 = vlaneseq
        %v6089 = vshrl.u32 %v6088, 7
        %v6090 = vsub.s32 %v6087, %v6089
        %v6091 = vrot.slane %v6077, %v6090
        %v6092 = vcombine.low %v6027, %v6043
        %v6093 = vcombine.high %v6027, %v6043
        %v6095 = vunpack.c.l.s4 1934713408
        %v6096 = vunpack.c.0.s8 %v6095
        %v6097 = vlaneseq
        %v6098 = vshrl.u32 %v6097, 7
        %v6099 = vsub.s32 %v6096, %v6098
        %v6100 = vrot.slane %v6092, %v6099
        %v6102 = vunpack.c.l.s4 1934713408
        %v6103 = vunpack.c.0.s8 %v6102
        %v6104 = vlaneseq
        %v6105 = vshrl.u32 %v6104, 7
        %v6106 = vsub.s32 %v6103, %v6105
        %v6107 = vrot.slane %v6093, %v6106
        %v6108 = vcombine.low %v6052, %v6084
        %v6109 = vcombine.high %v6052, %v6084
        %v6110 = vcombine.low %v6059, %v6091
        %v6111 = vcombine.high %v6059, %v6091
        %v6112 = vcombine.low %v6068, %v6100
        %v6113 = vcombine.high %v6068, %v6100
        %v6114 = vcombine.low %v6075, %v6107
        %v6115 = vcombine.high %v6075, %v6107
        %v6116 = vcombine.low %v5061, %v5069
        %v6117 = vcombine.high %v5061, %v5069
        %v6119 = vunpack.c.l.s4 1983009808
        %v6120 = vunpack.c.0.s8 %v6119
        %v6121 = vlaneseq
        %v6122 = vshrl.u32 %v6121, 7
        %v6123 = vsub.s32 %v6120, %v6122
        %v6124 = vrot.slane %v6116, %v6123
        %v6126 = vunpack.c.l.s4 1983009808
        %v6127 = vunpack.c.0.s8 %v6126
        %v6128 = vlaneseq
        %v6129 = vshrl.u32 %v6128, 7
        %v6130 = vsub.s32 %v6127, %v6129
        %v6131 = vrot.slane %v6117, %v6130
        %v6132 = vcombine.low %v5065, %v5073
        %v6133 = vcombine.high %v5065, %v5073
        %v6135 = vunpack.c.l.s4 1983009808
        %v6136 = vunpack.c.0.s8 %v6135
        %v6137 = vlaneseq
        %v6138 = vshrl.u32 %v6137, 7
        %v6139 = vsub.s32 %v6136, %v6138
        %v6140 = vrot.slane %v6132, %v6139
        %v6142 = vunpack.c.l.s4 1983009808
        %v6143 = vunpack.c.0.s8 %v6142
        %v6144 = vlaneseq
        %v6145 = vshrl.u32 %v6144, 7
        %v6146 = vsub.s32 %v6143, %v6145
        %v6147 = vrot.slane %v6133, %v6146
        %v6148 = vcombine.low %v5077, %v5085
        %v6149 = vcombine.high %v5077, %v5085
        %v6151 = vunpack.c.l.s4 1983009808
        %v6152 = vunpack.c.0.s8 %v6151
        %v6153 = vlaneseq
        %v6154 = vshrl.u32 %v6153, 7
        %v6155 = vsub.s32 %v6152, %v6154
        %v6156 = vrot.slane %v6148, %v6155
        %v6158 = vunpack.c.l.s4 1983009808
        %v6159 = vunpack.c.0.s8 %v6158
        %v6160 = vlaneseq
        %v6161 = vshrl.u32 %v6160, 7
        %v6162 = vsub.s32 %v6159, %v6161
        %v6163 = vrot.slane %v6149, %v6162
        %v6164 = vcombine.low %v5081, %v5089
        %v6165 = vcombine.high %v5081, %v5089
        %v6167 = vunpack.c.l.s4 1983009808
        %v6168 = vunpack.c.0.s8 %v6167
        %v6169 = vlaneseq
        %v6170 = vshrl.u32 %v6169, 7
        %v6171 = vsub.s32 %v6168, %v6170
        %v6172 = vrot.slane %v6164, %v6171
        %v6174 = vunpack.c.l.s4 1983009808
        %v6175 = vunpack.c.0.s8 %v6174
        %v6176 = vlaneseq
        %v6177 = vshrl.u32 %v6176, 7
        %v6178 = vsub.s32 %v6175, %v6177
        %v6179 = vrot.slane %v6165, %v6178
        %v6180 = vcombine.low %v6124, %v6140
        %v6181 = vcombine.high %v6124, %v6140
        %v6183 = vunpack.c.l.s4 1934713408
        %v6184 = vunpack.c.0.s8 %v6183
        %v6185 = vlaneseq
        %v6186 = vshrl.u32 %v6185, 7
        %v6187 = vsub.s32 %v6184, %v6186
        %v6188 = vrot.slane %v6180, %v6187
        %v6190 = vunpack.c.l.s4 1934713408
        %v6191 = vunpack.c.0.s8 %v6190
        %v6192 = vlaneseq
        %v6193 = vshrl.u32 %v6192, 7
        %v6194 = vsub.s32 %v6191, %v6193
        %v6195 = vrot.slane %v6181, %v6194
        %v6196 = vcombine.low %v6131, %v6147
        %v6197 = vcombine.high %v6131, %v6147
        %v6199 = vunpack.c.l.s4 1934713408
        %v6200 = vunpack.c.0.s8 %v6199
        %v6201 = vlaneseq
        %v6202 = vshrl.u32 %v6201, 7
        %v6203 = vsub.s32 %v6200, %v6202
        %v6204 = vrot.slane %v6196, %v6203
        %v6206 = vunpack.c.l.s4 1934713408
        %v6207 = vunpack.c.0.s8 %v6206
        %v6208 = vlaneseq
        %v6209 = vshrl.u32 %v6208, 7
        %v6210 = vsub.s32 %v6207, %v6209
        %v6211 = vrot.slane %v6197, %v6210
        %v6212 = vcombine.low %v6156, %v6172
        %v6213 = vcombine.high %v6156, %v6172
        %v6215 = vunpack.c.l.s4 1934713408
        %v6216 = vunpack.c.0.s8 %v6215
        %v6217 = vlaneseq
        %v6218 = vshrl.u32 %v6217, 7
        %v6219 = vsub.s32 %v6216, %v6218
        %v6220 = vrot.slane %v6212, %v6219
        %v6222 = vunpack.c.l.s4 1934713408
        %v6223 = vunpack.c.0.s8 %v6222
        %v6224 = vlaneseq
        %v6225 = vshrl.u32 %v6224, 7
        %v6226 = vsub.s32 %v6223, %v6225
        %v6227 = vrot.slane %v6213, %v6226
        %v6228 = vcombine.low %v6163, %v6179
        %v6229 = vcombine.high %v6163, %v6179
        %v6231 = vunpack.c.l.s4 1934713408
        %v6232 = vunpack.c.0.s8 %v6231
        %v6233 = vlaneseq
        %v6234 = vshrl.u32 %v6233, 7
        %v6235 = vsub.s32 %v6232, %v6234
        %v6236 = vrot.slane %v6228, %v6235
        %v6238 = vunpack.c.l.s4 1934713408
        %v6239 = vunpack.c.0.s8 %v6238
        %v6240 = vlaneseq
        %v6241 = vshrl.u32 %v6240, 7
        %v6242 = vsub.s32 %v6239, %v6241
        %v6243 = vrot.slane %v6229, %v6242
        %v6244 = vcombine.low %v6188, %v6220
        %v6245 = vcombine.high %v6188, %v6220
        %v6246 = vcombine.low %v6195, %v6227
        %v6247 = vcombine.high %v6195, %v6227
        %v6248 = vcombine.low %v6204, %v6236
        %v6249 = vcombine.high %v6204, %v6236
        %v6250 = vcombine.low %v6211, %v6243
        %v6251 = vcombine.high %v6211, %v6243
        %v6252 = vcombine.low %v5093, %v5101
        %v6253 = vcombine.high %v5093, %v5101
        %v6255 = vunpack.c.l.s4 1983009808
        %v6256 = vunpack.c.0.s8 %v6255
        %v6257 = vlaneseq
        %v6258 = vshrl.u32 %v6257, 7
        %v6259 = vsub.s32 %v6256, %v6258
        %v6260 = vrot.slane %v6252, %v6259
        %v6262 = vunpack.c.l.s4 1983009808
        %v6263 = vunpack.c.0.s8 %v6262
        %v6264 = vlaneseq
        %v6265 = vshrl.u32 %v6264, 7
        %v6266 = vsub.s32 %v6263, %v6265
        %v6267 = vrot.slane %v6253, %v6266
        %v6268 = vcombine.low %v5097, %v5105
        %v6269 = vcombine.high %v5097, %v5105
        %v6271 = vunpack.c.l.s4 1983009808
        %v6272 = vunpack.c.0.s8 %v6271
        %v6273 = vlaneseq
        %v6274 = vshrl.u32 %v6273, 7
        %v6275 = vsub.s32 %v6272, %v6274
        %v6276 = vrot.slane %v6268, %v6275
        %v6278 = vunpack.c.l.s4 1983009808
        %v6279 = vunpack.c.0.s8 %v6278
        %v6280 = vlaneseq
        %v6281 = vshrl.u32 %v6280, 7
        %v6282 = vsub.s32 %v6279, %v6281
        %v6283 = vrot.slane %v6269, %v6282
        %v6284 = vcombine.low %v5109, %v5117
        %v6285 = vcombine.high %v5109, %v5117
        %v6287 = vunpack.c.l.s4 1983009808
        %v6288 = vunpack.c.0.s8 %v6287
        %v6289 = vlaneseq
        %v6290 = vshrl.u32 %v6289, 7
        %v6291 = vsub.s32 %v6288, %v6290
        %v6292 = vrot.slane %v6284, %v6291
        %v6294 = vunpack.c.l.s4 1983009808
        %v6295 = vunpack.c.0.s8 %v6294
        %v6296 = vlaneseq
        %v6297 = vshrl.u32 %v6296, 7
        %v6298 = vsub.s32 %v6295, %v6297
        %v6299 = vrot.slane %v6285, %v6298
        %v6300 = vcombine.low %v5113, %v5121
        %v6301 = vcombine.high %v5113, %v5121
        %v6303 = vunpack.c.l.s4 1983009808
        %v6304 = vunpack.c.0.s8 %v6303
        %v6305 = vlaneseq
        %v6306 = vshrl.u32 %v6305, 7
        %v6307 = vsub.s32 %v6304, %v6306
        %v6308 = vrot.slane %v6300, %v6307
        %v6310 = vunpack.c.l.s4 1983009808
        %v6311 = vunpack.c.0.s8 %v6310
        %v6312 = vlaneseq
        %v6313 = vshrl.u32 %v6312, 7
        %v6314 = vsub.s32 %v6311, %v6313
        %v6315 = vrot.slane %v6301, %v6314
        %v6316 = vcombine.low %v6260, %v6276
        %v6317 = vcombine.high %v6260, %v6276
        %v6319 = vunpack.c.l.s4 1934713408
        %v6320 = vunpack.c.0.s8 %v6319
        %v6321 = vlaneseq
        %v6322 = vshrl.u32 %v6321, 7
        %v6323 = vsub.s32 %v6320, %v6322
        %v6324 = vrot.slane %v6316, %v6323
        %v6326 = vunpack.c.l.s4 1934713408
        %v6327 = vunpack.c.0.s8 %v6326
        %v6328 = vlaneseq
        %v6329 = vshrl.u32 %v6328, 7
        %v6330 = vsub.s32 %v6327, %v6329
        %v6331 = vrot.slane %v6317, %v6330
        %v6332 = vcombine.low %v6267, %v6283
        %v6333 = vcombine.high %v6267, %v6283
        %v6335 = vunpack.c.l.s4 1934713408
        %v6336 = vunpack.c.0.s8 %v6335
        %v6337 = vlaneseq
        %v6338 = vshrl.u32 %v6337, 7
        %v6339 = vsub.s32 %v6336, %v6338
        %v6340 = vrot.slane %v6332, %v6339
        %v6342 = vunpack.c.l.s4 1934713408
        %v6343 = vunpack.c.0.s8 %v6342
        %v6344 = vlaneseq
        %v6345 = vshrl.u32 %v6344, 7
        %v6346 = vsub.s32 %v6343, %v6345
        %v6347 = vrot.slane %v6333, %v6346
        %v6348 = vcombine.low %v6292, %v6308
        %v6349 = vcombine.high %v6292, %v6308
        %v6351 = vunpack.c.l.s4 1934713408
        %v6352 = vunpack.c.0.s8 %v6351
        %v6353 = vlaneseq
        %v6354 = vshrl.u32 %v6353, 7
        %v6355 = vsub.s32 %v6352, %v6354
        %v6356 = vrot.slane %v6348, %v6355
        %v6358 = vunpack.c.l.s4 1934713408
        %v6359 = vunpack.c.0.s8 %v6358
        %v6360 = vlaneseq
        %v6361 = vshrl.u32 %v6360, 7
        %v6362 = vsub.s32 %v6359, %v6361
        %v6363 = vrot.slane %v6349, %v6362
        %v6364 = vcombine.low %v6299, %v6315
        %v6365 = vcombine.high %v6299, %v6315
        %v6367 = vunpack.c.l.s4 1934713408
        %v6368 = vunpack.c.0.s8 %v6367
        %v6369 = vlaneseq
        %v6370 = vshrl.u32 %v6369, 7
        %v6371 = vsub.s32 %v6368, %v6370
        %v6372 = vrot.slane %v6364, %v6371
        %v6374 = vunpack.c.l.s4 1934713408
        %v6375 = vunpack.c.0.s8 %v6374
        %v6376 = vlaneseq
        %v6377 = vshrl.u32 %v6376, 7
        %v6378 = vsub.s32 %v6375, %v6377
        %v6379 = vrot.slane %v6365, %v6378
        %v6380 = vcombine.low %v6324, %v6356
        %v6381 = vcombine.high %v6324, %v6356
        %v6382 = vcombine.low %v6331, %v6363
        %v6383 = vcombine.high %v6331, %v6363
        %v6384 = vcombine.low %v6340, %v6372
        %v6385 = vcombine.high %v6340, %v6372
        %v6386 = vcombine.low %v6347, %v6379
        %v6387 = vcombine.high %v6347, %v6379
        %v6388 = vcombine.low %v5125, %v5133
        %v6389 = vcombine.high %v5125, %v5133
        %v6391 = vunpack.c.l.s4 1983009808
        %v6392 = vunpack.c.0.s8 %v6391
        %v6393 = vlaneseq
        %v6394 = vshrl.u32 %v6393, 7
        %v6395 = vsub.s32 %v6392, %v6394
        %v6396 = vrot.slane %v6388, %v6395
        %v6398 = vunpack.c.l.s4 1983009808
        %v6399 = vunpack.c.0.s8 %v6398
        %v6400 = vlaneseq
        %v6401 = vshrl.u32 %v6400, 7
        %v6402 = vsub.s32 %v6399, %v6401
        %v6403 = vrot.slane %v6389, %v6402
        %v6404 = vcombine.low %v5129, %v5137
        %v6405 = vcombine.high %v5129, %v5137
        %v6407 = vunpack.c.l.s4 1983009808
        %v6408 = vunpack.c.0.s8 %v6407
        %v6409 = vlaneseq
        %v6410 = vshrl.u32 %v6409, 7
        %v6411 = vsub.s32 %v6408, %v6410
        %v6412 = vrot.slane %v6404, %v6411
        %v6414 = vunpack.c.l.s4 1983009808
        %v6415 = vunpack.c.0.s8 %v6414
        %v6416 = vlaneseq
        %v6417 = vshrl.u32 %v6416, 7
        %v6418 = vsub.s32 %v6415, %v6417
        %v6419 = vrot.slane %v6405, %v6418
        %v6420 = vcombine.low %v5141, %v5149
        %v6421 = vcombine.high %v5141, %v5149
        %v6423 = vunpack.c.l.s4 1983009808
        %v6424 = vunpack.c.0.s8 %v6423
        %v6425 = vlaneseq
        %v6426 = vshrl.u32 %v6425, 7
        %v6427 = vsub.s32 %v6424, %v6426
        %v6428 = vrot.slane %v6420, %v6427
        %v6430 = vunpack.c.l.s4 1983009808
        %v6431 = vunpack.c.0.s8 %v6430
        %v6432 = vlaneseq
        %v6433 = vshrl.u32 %v6432, 7
        %v6434 = vsub.s32 %v6431, %v6433
        %v6435 = vrot.slane %v6421, %v6434
        %v6436 = vcombine.low %v5145, %v5153
        %v6437 = vcombine.high %v5145, %v5153
        %v6439 = vunpack.c.l.s4 1983009808
        %v6440 = vunpack.c.0.s8 %v6439
        %v6441 = vlaneseq
        %v6442 = vshrl.u32 %v6441, 7
        %v6443 = vsub.s32 %v6440, %v6442
        %v6444 = vrot.slane %v6436, %v6443
        %v6446 = vunpack.c.l.s4 1983009808
        %v6447 = vunpack.c.0.s8 %v6446
        %v6448 = vlaneseq
        %v6449 = vshrl.u32 %v6448, 7
        %v6450 = vsub.s32 %v6447, %v6449
        %v6451 = vrot.slane %v6437, %v6450
        %v6452 = vcombine.low %v6396, %v6412
        %v6453 = vcombine.high %v6396, %v6412
        %v6455 = vunpack.c.l.s4 1934713408
        %v6456 = vunpack.c.0.s8 %v6455
        %v6457 = vlaneseq
        %v6458 = vshrl.u32 %v6457, 7
        %v6459 = vsub.s32 %v6456, %v6458
        %v6460 = vrot.slane %v6452, %v6459
        %v6462 = vunpack.c.l.s4 1934713408
        %v6463 = vunpack.c.0.s8 %v6462
        %v6464 = vlaneseq
        %v6465 = vshrl.u32 %v6464, 7
        %v6466 = vsub.s32 %v6463, %v6465
        %v6467 = vrot.slane %v6453, %v6466
        %v6468 = vcombine.low %v6403, %v6419
        %v6469 = vcombine.high %v6403, %v6419
        %v6471 = vunpack.c.l.s4 1934713408
        %v6472 = vunpack.c.0.s8 %v6471
        %v6473 = vlaneseq
        %v6474 = vshrl.u32 %v6473, 7
        %v6475 = vsub.s32 %v6472, %v6474
        %v6476 = vrot.slane %v6468, %v6475
        %v6478 = vunpack.c.l.s4 1934713408
        %v6479 = vunpack.c.0.s8 %v6478
        %v6480 = vlaneseq
        %v6481 = vshrl.u32 %v6480, 7
        %v6482 = vsub.s32 %v6479, %v6481
        %v6483 = vrot.slane %v6469, %v6482
        %v6484 = vcombine.low %v6428, %v6444
        %v6485 = vcombine.high %v6428, %v6444
        %v6487 = vunpack.c.l.s4 1934713408
        %v6488 = vunpack.c.0.s8 %v6487
        %v6489 = vlaneseq
        %v6490 = vshrl.u32 %v6489, 7
        %v6491 = vsub.s32 %v6488, %v6490
        %v6492 = vrot.slane %v6484, %v6491
        %v6494 = vunpack.c.l.s4 1934713408
        %v6495 = vunpack.c.0.s8 %v6494
        %v6496 = vlaneseq
        %v6497 = vshrl.u32 %v6496, 7
        %v6498 = vsub.s32 %v6495, %v6497
        %v6499 = vrot.slane %v6485, %v6498
        %v6500 = vcombine.low %v6435, %v6451
        %v6501 = vcombine.high %v6435, %v6451
        %v6503 = vunpack.c.l.s4 1934713408
        %v6504 = vunpack.c.0.s8 %v6503
        %v6505 = vlaneseq
        %v6506 = vshrl.u32 %v6505, 7
        %v6507 = vsub.s32 %v6504, %v6506
        %v6508 = vrot.slane %v6500, %v6507
        %v6510 = vunpack.c.l.s4 1934713408
        %v6511 = vunpack.c.0.s8 %v6510
        %v6512 = vlaneseq
        %v6513 = vshrl.u32 %v6512, 7
        %v6514 = vsub.s32 %v6511, %v6513
        %v6515 = vrot.slane %v6501, %v6514
        %v6516 = vcombine.low %v6460, %v6492
        %v6517 = vcombine.high %v6460, %v6492
        %v6518 = vcombine.low %v6467, %v6499
        %v6519 = vcombine.high %v6467, %v6499
        %v6520 = vcombine.low %v6476, %v6508
        %v6521 = vcombine.high %v6476, %v6508
        %v6522 = vcombine.low %v6483, %v6515
        %v6523 = vcombine.high %v6483, %v6515
        %v6524 = vcombine.low %v4871, %v4879
        %v6525 = vcombine.high %v4871, %v4879
        %v6527 = vunpack.c.l.s4 1983009808
        %v6528 = vunpack.c.0.s8 %v6527
        %v6529 = vlaneseq
        %v6530 = vshrl.u32 %v6529, 7
        %v6531 = vsub.s32 %v6528, %v6530
        %v6532 = vrot.slane %v6524, %v6531
        %v6534 = vunpack.c.l.s4 1983009808
        %v6535 = vunpack.c.0.s8 %v6534
        %v6536 = vlaneseq
        %v6537 = vshrl.u32 %v6536, 7
        %v6538 = vsub.s32 %v6535, %v6537
        %v6539 = vrot.slane %v6525, %v6538
        %v6540 = vcombine.low %v4875, %v4883
        %v6541 = vcombine.high %v4875, %v4883
        %v6543 = vunpack.c.l.s4 1983009808
        %v6544 = vunpack.c.0.s8 %v6543
        %v6545 = vlaneseq
        %v6546 = vshrl.u32 %v6545, 7
        %v6547 = vsub.s32 %v6544, %v6546
        %v6548 = vrot.slane %v6540, %v6547
        %v6550 = vunpack.c.l.s4 1983009808
        %v6551 = vunpack.c.0.s8 %v6550
        %v6552 = vlaneseq
        %v6553 = vshrl.u32 %v6552, 7
        %v6554 = vsub.s32 %v6551, %v6553
        %v6555 = vrot.slane %v6541, %v6554
        %v6556 = vcombine.low %v4887, %v4895
        %v6557 = vcombine.high %v4887, %v4895
        %v6559 = vunpack.c.l.s4 1983009808
        %v6560 = vunpack.c.0.s8 %v6559
        %v6561 = vlaneseq
        %v6562 = vshrl.u32 %v6561, 7
        %v6563 = vsub.s32 %v6560, %v6562
        %v6564 = vrot.slane %v6556, %v6563
        %v6566 = vunpack.c.l.s4 1983009808
        %v6567 = vunpack.c.0.s8 %v6566
        %v6568 = vlaneseq
        %v6569 = vshrl.u32 %v6568, 7
        %v6570 = vsub.s32 %v6567, %v6569
        %v6571 = vrot.slane %v6557, %v6570
        %v6572 = vcombine.low %v4891, %v4899
        %v6573 = vcombine.high %v4891, %v4899
        %v6575 = vunpack.c.l.s4 1983009808
        %v6576 = vunpack.c.0.s8 %v6575
        %v6577 = vlaneseq
        %v6578 = vshrl.u32 %v6577, 7
        %v6579 = vsub.s32 %v6576, %v6578
        %v6580 = vrot.slane %v6572, %v6579
        %v6582 = vunpack.c.l.s4 1983009808
        %v6583 = vunpack.c.0.s8 %v6582
        %v6584 = vlaneseq
        %v6585 = vshrl.u32 %v6584, 7
        %v6586 = vsub.s32 %v6583, %v6585
        %v6587 = vrot.slane %v6573, %v6586
        %v6588 = vcombine.low %v6532, %v6548
        %v6589 = vcombine.high %v6532, %v6548
        %v6591 = vunpack.c.l.s4 1934713408
        %v6592 = vunpack.c.0.s8 %v6591
        %v6593 = vlaneseq
        %v6594 = vshrl.u32 %v6593, 7
        %v6595 = vsub.s32 %v6592, %v6594
        %v6596 = vrot.slane %v6588, %v6595
        %v6598 = vunpack.c.l.s4 1934713408
        %v6599 = vunpack.c.0.s8 %v6598
        %v6600 = vlaneseq
        %v6601 = vshrl.u32 %v6600, 7
        %v6602 = vsub.s32 %v6599, %v6601
        %v6603 = vrot.slane %v6589, %v6602
        %v6604 = vcombine.low %v6539, %v6555
        %v6605 = vcombine.high %v6539, %v6555
        %v6607 = vunpack.c.l.s4 1934713408
        %v6608 = vunpack.c.0.s8 %v6607
        %v6609 = vlaneseq
        %v6610 = vshrl.u32 %v6609, 7
        %v6611 = vsub.s32 %v6608, %v6610
        %v6612 = vrot.slane %v6604, %v6611
        %v6614 = vunpack.c.l.s4 1934713408
        %v6615 = vunpack.c.0.s8 %v6614
        %v6616 = vlaneseq
        %v6617 = vshrl.u32 %v6616, 7
        %v6618 = vsub.s32 %v6615, %v6617
        %v6619 = vrot.slane %v6605, %v6618
        %v6620 = vcombine.low %v6564, %v6580
        %v6621 = vcombine.high %v6564, %v6580
        %v6623 = vunpack.c.l.s4 1934713408
        %v6624 = vunpack.c.0.s8 %v6623
        %v6625 = vlaneseq
        %v6626 = vshrl.u32 %v6625, 7
        %v6627 = vsub.s32 %v6624, %v6626
        %v6628 = vrot.slane %v6620, %v6627
        %v6630 = vunpack.c.l.s4 1934713408
        %v6631 = vunpack.c.0.s8 %v6630
        %v6632 = vlaneseq
        %v6633 = vshrl.u32 %v6632, 7
        %v6634 = vsub.s32 %v6631, %v6633
        %v6635 = vrot.slane %v6621, %v6634
        %v6636 = vcombine.low %v6571, %v6587
        %v6637 = vcombine.high %v6571, %v6587
        %v6639 = vunpack.c.l.s4 1934713408
        %v6640 = vunpack.c.0.s8 %v6639
        %v6641 = vlaneseq
        %v6642 = vshrl.u32 %v6641, 7
        %v6643 = vsub.s32 %v6640, %v6642
        %v6644 = vrot.slane %v6636, %v6643
        %v6646 = vunpack.c.l.s4 1934713408
        %v6647 = vunpack.c.0.s8 %v6646
        %v6648 = vlaneseq
        %v6649 = vshrl.u32 %v6648, 7
        %v6650 = vsub.s32 %v6647, %v6649
        %v6651 = vrot.slane %v6637, %v6650
        %v6652 = vcombine.low %v6596, %v6628
        %v6653 = vcombine.high %v6596, %v6628
        %v6654 = vcombine.low %v6603, %v6635
        %v6655 = vcombine.high %v6603, %v6635
        %v6656 = vcombine.low %v6612, %v6644
        %v6657 = vcombine.high %v6612, %v6644
        %v6658 = vcombine.low %v6619, %v6651
        %v6659 = vcombine.high %v6619, %v6651
        %v6660 = vcombine.low %v4903, %v4911
        %v6661 = vcombine.high %v4903, %v4911
        %v6663 = vunpack.c.l.s4 1983009808
        %v6664 = vunpack.c.0.s8 %v6663
        %v6665 = vlaneseq
        %v6666 = vshrl.u32 %v6665, 7
        %v6667 = vsub.s32 %v6664, %v6666
        %v6668 = vrot.slane %v6660, %v6667
        %v6670 = vunpack.c.l.s4 1983009808
        %v6671 = vunpack.c.0.s8 %v6670
        %v6672 = vlaneseq
        %v6673 = vshrl.u32 %v6672, 7
        %v6674 = vsub.s32 %v6671, %v6673
        %v6675 = vrot.slane %v6661, %v6674
        %v6676 = vcombine.low %v4907, %v4915
        %v6677 = vcombine.high %v4907, %v4915
        %v6679 = vunpack.c.l.s4 1983009808
        %v6680 = vunpack.c.0.s8 %v6679
        %v6681 = vlaneseq
        %v6682 = vshrl.u32 %v6681, 7
        %v6683 = vsub.s32 %v6680, %v6682
        %v6684 = vrot.slane %v6676, %v6683
        %v6686 = vunpack.c.l.s4 1983009808
        %v6687 = vunpack.c.0.s8 %v6686
        %v6688 = vlaneseq
        %v6689 = vshrl.u32 %v6688, 7
        %v6690 = vsub.s32 %v6687, %v6689
        %v6691 = vrot.slane %v6677, %v6690
        %v6692 = vcombine.low %v4919, %v4927
        %v6693 = vcombine.high %v4919, %v4927
        %v6695 = vunpack.c.l.s4 1983009808
        %v6696 = vunpack.c.0.s8 %v6695
        %v6697 = vlaneseq
        %v6698 = vshrl.u32 %v6697, 7
        %v6699 = vsub.s32 %v6696, %v6698
        %v6700 = vrot.slane %v6692, %v6699
        %v6702 = vunpack.c.l.s4 1983009808
        %v6703 = vunpack.c.0.s8 %v6702
        %v6704 = vlaneseq
        %v6705 = vshrl.u32 %v6704, 7
        %v6706 = vsub.s32 %v6703, %v6705
        %v6707 = vrot.slane %v6693, %v6706
        %v6708 = vcombine.low %v4923, %v4931
        %v6709 = vcombine.high %v4923, %v4931
        %v6711 = vunpack.c.l.s4 1983009808
        %v6712 = vunpack.c.0.s8 %v6711
        %v6713 = vlaneseq
        %v6714 = vshrl.u32 %v6713, 7
        %v6715 = vsub.s32 %v6712, %v6714
        %v6716 = vrot.slane %v6708, %v6715
        %v6718 = vunpack.c.l.s4 1983009808
        %v6719 = vunpack.c.0.s8 %v6718
        %v6720 = vlaneseq
        %v6721 = vshrl.u32 %v6720, 7
        %v6722 = vsub.s32 %v6719, %v6721
        %v6723 = vrot.slane %v6709, %v6722
        %v6724 = vcombine.low %v6668, %v6684
        %v6725 = vcombine.high %v6668, %v6684
        %v6727 = vunpack.c.l.s4 1934713408
        %v6728 = vunpack.c.0.s8 %v6727
        %v6729 = vlaneseq
        %v6730 = vshrl.u32 %v6729, 7
        %v6731 = vsub.s32 %v6728, %v6730
        %v6732 = vrot.slane %v6724, %v6731
        %v6734 = vunpack.c.l.s4 1934713408
        %v6735 = vunpack.c.0.s8 %v6734
        %v6736 = vlaneseq
        %v6737 = vshrl.u32 %v6736, 7
        %v6738 = vsub.s32 %v6735, %v6737
        %v6739 = vrot.slane %v6725, %v6738
        %v6740 = vcombine.low %v6675, %v6691
        %v6741 = vcombine.high %v6675, %v6691
        %v6743 = vunpack.c.l.s4 1934713408
        %v6744 = vunpack.c.0.s8 %v6743
        %v6745 = vlaneseq
        %v6746 = vshrl.u32 %v6745, 7
        %v6747 = vsub.s32 %v6744, %v6746
        %v6748 = vrot.slane %v6740, %v6747
        %v6750 = vunpack.c.l.s4 1934713408
        %v6751 = vunpack.c.0.s8 %v6750
        %v6752 = vlaneseq
        %v6753 = vshrl.u32 %v6752, 7
        %v6754 = vsub.s32 %v6751, %v6753
        %v6755 = vrot.slane %v6741, %v6754
        %v6756 = vcombine.low %v6700, %v6716
        %v6757 = vcombine.high %v6700, %v6716
        %v6759 = vunpack.c.l.s4 1934713408
        %v6760 = vunpack.c.0.s8 %v6759
        %v6761 = vlaneseq
        %v6762 = vshrl.u32 %v6761, 7
        %v6763 = vsub.s32 %v6760, %v6762
        %v6764 = vrot.slane %v6756, %v6763
        %v6766 = vunpack.c.l.s4 1934713408
        %v6767 = vunpack.c.0.s8 %v6766
        %v6768 = vlaneseq
        %v6769 = vshrl.u32 %v6768, 7
        %v6770 = vsub.s32 %v6767, %v6769
        %v6771 = vrot.slane %v6757, %v6770
        %v6772 = vcombine.low %v6707, %v6723
        %v6773 = vcombine.high %v6707, %v6723
        %v6775 = vunpack.c.l.s4 1934713408
        %v6776 = vunpack.c.0.s8 %v6775
        %v6777 = vlaneseq
        %v6778 = vshrl.u32 %v6777, 7
        %v6779 = vsub.s32 %v6776, %v6778
        %v6780 = vrot.slane %v6772, %v6779
        %v6782 = vunpack.c.l.s4 1934713408
        %v6783 = vunpack.c.0.s8 %v6782
        %v6784 = vlaneseq
        %v6785 = vshrl.u32 %v6784, 7
        %v6786 = vsub.s32 %v6783, %v6785
        %v6787 = vrot.slane %v6773, %v6786
        %v6788 = vcombine.low %v6732, %v6764
        %v6789 = vcombine.high %v6732, %v6764
        %v6790 = vcombine.low %v6739, %v6771
        %v6791 = vcombine.high %v6739, %v6771
        %v6792 = vcombine.low %v6748, %v6780
        %v6793 = vcombine.high %v6748, %v6780
        %v6794 = vcombine.low %v6755, %v6787
        %v6795 = vcombine.high %v6755, %v6787
        %v6796 = vcombine.low %v4935, %v4943
        %v6797 = vcombine.high %v4935, %v4943
        %v6799 = vunpack.c.l.s4 1983009808
        %v6800 = vunpack.c.0.s8 %v6799
        %v6801 = vlaneseq
        %v6802 = vshrl.u32 %v6801, 7
        %v6803 = vsub.s32 %v6800, %v6802
        %v6804 = vrot.slane %v6796, %v6803
        %v6806 = vunpack.c.l.s4 1983009808
        %v6807 = vunpack.c.0.s8 %v6806
        %v6808 = vlaneseq
        %v6809 = vshrl.u32 %v6808, 7
        %v6810 = vsub.s32 %v6807, %v6809
        %v6811 = vrot.slane %v6797, %v6810
        %v6812 = vcombine.low %v4939, %v4947
        %v6813 = vcombine.high %v4939, %v4947
        %v6815 = vunpack.c.l.s4 1983009808
        %v6816 = vunpack.c.0.s8 %v6815
        %v6817 = vlaneseq
        %v6818 = vshrl.u32 %v6817, 7
        %v6819 = vsub.s32 %v6816, %v6818
        %v6820 = vrot.slane %v6812, %v6819
        %v6822 = vunpack.c.l.s4 1983009808
        %v6823 = vunpack.c.0.s8 %v6822
        %v6824 = vlaneseq
        %v6825 = vshrl.u32 %v6824, 7
        %v6826 = vsub.s32 %v6823, %v6825
        %v6827 = vrot.slane %v6813, %v6826
        %v6828 = vcombine.low %v4951, %v4959
        %v6829 = vcombine.high %v4951, %v4959
        %v6831 = vunpack.c.l.s4 1983009808
        %v6832 = vunpack.c.0.s8 %v6831
        %v6833 = vlaneseq
        %v6834 = vshrl.u32 %v6833, 7
        %v6835 = vsub.s32 %v6832, %v6834
        %v6836 = vrot.slane %v6828, %v6835
        %v6838 = vunpack.c.l.s4 1983009808
        %v6839 = vunpack.c.0.s8 %v6838
        %v6840 = vlaneseq
        %v6841 = vshrl.u32 %v6840, 7
        %v6842 = vsub.s32 %v6839, %v6841
        %v6843 = vrot.slane %v6829, %v6842
        %v6844 = vcombine.low %v4955, %v4963
        %v6845 = vcombine.high %v4955, %v4963
        %v6847 = vunpack.c.l.s4 1983009808
        %v6848 = vunpack.c.0.s8 %v6847
        %v6849 = vlaneseq
        %v6850 = vshrl.u32 %v6849, 7
        %v6851 = vsub.s32 %v6848, %v6850
        %v6852 = vrot.slane %v6844, %v6851
        %v6854 = vunpack.c.l.s4 1983009808
        %v6855 = vunpack.c.0.s8 %v6854
        %v6856 = vlaneseq
        %v6857 = vshrl.u32 %v6856, 7
        %v6858 = vsub.s32 %v6855, %v6857
        %v6859 = vrot.slane %v6845, %v6858
        %v6860 = vcombine.low %v6804, %v6820
        %v6861 = vcombine.high %v6804, %v6820
        %v6863 = vunpack.c.l.s4 1934713408
        %v6864 = vunpack.c.0.s8 %v6863
        %v6865 = vlaneseq
        %v6866 = vshrl.u32 %v6865, 7
        %v6867 = vsub.s32 %v6864, %v6866
        %v6868 = vrot.slane %v6860, %v6867
        %v6870 = vunpack.c.l.s4 1934713408
        %v6871 = vunpack.c.0.s8 %v6870
        %v6872 = vlaneseq
        %v6873 = vshrl.u32 %v6872, 7
        %v6874 = vsub.s32 %v6871, %v6873
        %v6875 = vrot.slane %v6861, %v6874
        %v6876 = vcombine.low %v6811, %v6827
        %v6877 = vcombine.high %v6811, %v6827
        %v6879 = vunpack.c.l.s4 1934713408
        %v6880 = vunpack.c.0.s8 %v6879
        %v6881 = vlaneseq
        %v6882 = vshrl.u32 %v6881, 7
        %v6883 = vsub.s32 %v6880, %v6882
        %v6884 = vrot.slane %v6876, %v6883
        %v6886 = vunpack.c.l.s4 1934713408
        %v6887 = vunpack.c.0.s8 %v6886
        %v6888 = vlaneseq
        %v6889 = vshrl.u32 %v6888, 7
        %v6890 = vsub.s32 %v6887, %v6889
        %v6891 = vrot.slane %v6877, %v6890
        %v6892 = vcombine.low %v6836, %v6852
        %v6893 = vcombine.high %v6836, %v6852
        %v6895 = vunpack.c.l.s4 1934713408
        %v6896 = vunpack.c.0.s8 %v6895
        %v6897 = vlaneseq
        %v6898 = vshrl.u32 %v6897, 7
        %v6899 = vsub.s32 %v6896, %v6898
        %v6900 = vrot.slane %v6892, %v6899
        %v6902 = vunpack.c.l.s4 1934713408
        %v6903 = vunpack.c.0.s8 %v6902
        %v6904 = vlaneseq
        %v6905 = vshrl.u32 %v6904, 7
        %v6906 = vsub.s32 %v6903, %v6905
        %v6907 = vrot.slane %v6893, %v6906
        %v6908 = vcombine.low %v6843, %v6859
        %v6909 = vcombine.high %v6843, %v6859
        %v6911 = vunpack.c.l.s4 1934713408
        %v6912 = vunpack.c.0.s8 %v6911
        %v6913 = vlaneseq
        %v6914 = vshrl.u32 %v6913, 7
        %v6915 = vsub.s32 %v6912, %v6914
        %v6916 = vrot.slane %v6908, %v6915
        %v6918 = vunpack.c.l.s4 1934713408
        %v6919 = vunpack.c.0.s8 %v6918
        %v6920 = vlaneseq
        %v6921 = vshrl.u32 %v6920, 7
        %v6922 = vsub.s32 %v6919, %v6921
        %v6923 = vrot.slane %v6909, %v6922
        %v6924 = vcombine.low %v6868, %v6900
        %v6925 = vcombine.high %v6868, %v6900
        %v6926 = vcombine.low %v6875, %v6907
        %v6927 = vcombine.high %v6875, %v6907
        %v6928 = vcombine.low %v6884, %v6916
        %v6929 = vcombine.high %v6884, %v6916
        %v6930 = vcombine.low %v6891, %v6923
        %v6931 = vcombine.high %v6891, %v6923
        %v6932 = vcombine.low %v4967, %v4975
        %v6933 = vcombine.high %v4967, %v4975
        %v6935 = vunpack.c.l.s4 1983009808
        %v6936 = vunpack.c.0.s8 %v6935
        %v6937 = vlaneseq
        %v6938 = vshrl.u32 %v6937, 7
        %v6939 = vsub.s32 %v6936, %v6938
        %v6940 = vrot.slane %v6932, %v6939
        %v6942 = vunpack.c.l.s4 1983009808
        %v6943 = vunpack.c.0.s8 %v6942
        %v6944 = vlaneseq
        %v6945 = vshrl.u32 %v6944, 7
        %v6946 = vsub.s32 %v6943, %v6945
        %v6947 = vrot.slane %v6933, %v6946
        %v6948 = vcombine.low %v4971, %v4979
        %v6949 = vcombine.high %v4971, %v4979
        %v6951 = vunpack.c.l.s4 1983009808
        %v6952 = vunpack.c.0.s8 %v6951
        %v6953 = vlaneseq
        %v6954 = vshrl.u32 %v6953, 7
        %v6955 = vsub.s32 %v6952, %v6954
        %v6956 = vrot.slane %v6948, %v6955
        %v6958 = vunpack.c.l.s4 1983009808
        %v6959 = vunpack.c.0.s8 %v6958
        %v6960 = vlaneseq
        %v6961 = vshrl.u32 %v6960, 7
        %v6962 = vsub.s32 %v6959, %v6961
        %v6963 = vrot.slane %v6949, %v6962
        %v6964 = vcombine.low %v4983, %v4991
        %v6965 = vcombine.high %v4983, %v4991
        %v6967 = vunpack.c.l.s4 1983009808
        %v6968 = vunpack.c.0.s8 %v6967
        %v6969 = vlaneseq
        %v6970 = vshrl.u32 %v6969, 7
        %v6971 = vsub.s32 %v6968, %v6970
        %v6972 = vrot.slane %v6964, %v6971
        %v6974 = vunpack.c.l.s4 1983009808
        %v6975 = vunpack.c.0.s8 %v6974
        %v6976 = vlaneseq
        %v6977 = vshrl.u32 %v6976, 7
        %v6978 = vsub.s32 %v6975, %v6977
        %v6979 = vrot.slane %v6965, %v6978
        %v6980 = vcombine.low %v4987, %v4995
        %v6981 = vcombine.high %v4987, %v4995
        %v6983 = vunpack.c.l.s4 1983009808
        %v6984 = vunpack.c.0.s8 %v6983
        %v6985 = vlaneseq
        %v6986 = vshrl.u32 %v6985, 7
        %v6987 = vsub.s32 %v6984, %v6986
        %v6988 = vrot.slane %v6980, %v6987
        %v6990 = vunpack.c.l.s4 1983009808
        %v6991 = vunpack.c.0.s8 %v6990
        %v6992 = vlaneseq
        %v6993 = vshrl.u32 %v6992, 7
        %v6994 = vsub.s32 %v6991, %v6993
        %v6995 = vrot.slane %v6981, %v6994
        %v6996 = vcombine.low %v6940, %v6956
        %v6997 = vcombine.high %v6940, %v6956
        %v6999 = vunpack.c.l.s4 1934713408
        %v7000 = vunpack.c.0.s8 %v6999
        %v7001 = vlaneseq
        %v7002 = vshrl.u32 %v7001, 7
        %v7003 = vsub.s32 %v7000, %v7002
        %v7004 = vrot.slane %v6996, %v7003
        %v7006 = vunpack.c.l.s4 1934713408
        %v7007 = vunpack.c.0.s8 %v7006
        %v7008 = vlaneseq
        %v7009 = vshrl.u32 %v7008, 7
        %v7010 = vsub.s32 %v7007, %v7009
        %v7011 = vrot.slane %v6997, %v7010
        %v7012 = vcombine.low %v6947, %v6963
        %v7013 = vcombine.high %v6947, %v6963
        %v7015 = vunpack.c.l.s4 1934713408
        %v7016 = vunpack.c.0.s8 %v7015
        %v7017 = vlaneseq
        %v7018 = vshrl.u32 %v7017, 7
        %v7019 = vsub.s32 %v7016, %v7018
        %v7020 = vrot.slane %v7012, %v7019
        %v7022 = vunpack.c.l.s4 1934713408
        %v7023 = vunpack.c.0.s8 %v7022
        %v7024 = vlaneseq
        %v7025 = vshrl.u32 %v7024, 7
        %v7026 = vsub.s32 %v7023, %v7025
        %v7027 = vrot.slane %v7013, %v7026
        %v7028 = vcombine.low %v6972, %v6988
        %v7029 = vcombine.high %v6972, %v6988
        %v7031 = vunpack.c.l.s4 1934713408
        %v7032 = vunpack.c.0.s8 %v7031
        %v7033 = vlaneseq
        %v7034 = vshrl.u32 %v7033, 7
        %v7035 = vsub.s32 %v7032, %v7034
        %v7036 = vrot.slane %v7028, %v7035
        %v7038 = vunpack.c.l.s4 1934713408
        %v7039 = vunpack.c.0.s8 %v7038
        %v7040 = vlaneseq
        %v7041 = vshrl.u32 %v7040, 7
        %v7042 = vsub.s32 %v7039, %v7041
        %v7043 = vrot.slane %v7029, %v7042
        %v7044 = vcombine.low %v6979, %v6995
        %v7045 = vcombine.high %v6979, %v6995
        %v7047 = vunpack.c.l.s4 1934713408
        %v7048 = vunpack.c.0.s8 %v7047
        %v7049 = vlaneseq
        %v7050 = vshrl.u32 %v7049, 7
        %v7051 = vsub.s32 %v7048, %v7050
        %v7052 = vrot.slane %v7044, %v7051
        %v7054 = vunpack.c.l.s4 1934713408
        %v7055 = vunpack.c.0.s8 %v7054
        %v7056 = vlaneseq
        %v7057 = vshrl.u32 %v7056, 7
        %v7058 = vsub.s32 %v7055, %v7057
        %v7059 = vrot.slane %v7045, %v7058
        %v7060 = vcombine.low %v7004, %v7036
        %v7061 = vcombine.high %v7004, %v7036
        %v7062 = vcombine.low %v7011, %v7043
        %v7063 = vcombine.high %v7011, %v7043
        %v7064 = vcombine.low %v7020, %v7052
        %v7065 = vcombine.high %v7020, %v7052
        %v7066 = vcombine.low %v7027, %v7059
        %v7067 = vcombine.high %v7027, %v7059
        %v7068 = vcombine.low %v4999, %v5007
        %v7069 = vcombine.high %v4999, %v5007
        %v7071 = vunpack.c.l.s4 1983009808
        %v7072 = vunpack.c.0.s8 %v7071
        %v7073 = vlaneseq
        %v7074 = vshrl.u32 %v7073, 7
        %v7075 = vsub.s32 %v7072, %v7074
        %v7076 = vrot.slane %v7068, %v7075
        %v7078 = vunpack.c.l.s4 1983009808
        %v7079 = vunpack.c.0.s8 %v7078
        %v7080 = vlaneseq
        %v7081 = vshrl.u32 %v7080, 7
        %v7082 = vsub.s32 %v7079, %v7081
        %v7083 = vrot.slane %v7069, %v7082
        %v7084 = vcombine.low %v5003, %v5011
        %v7085 = vcombine.high %v5003, %v5011
        %v7087 = vunpack.c.l.s4 1983009808
        %v7088 = vunpack.c.0.s8 %v7087
        %v7089 = vlaneseq
        %v7090 = vshrl.u32 %v7089, 7
        %v7091 = vsub.s32 %v7088, %v7090
        %v7092 = vrot.slane %v7084, %v7091
        %v7094 = vunpack.c.l.s4 1983009808
        %v7095 = vunpack.c.0.s8 %v7094
        %v7096 = vlaneseq
        %v7097 = vshrl.u32 %v7096, 7
        %v7098 = vsub.s32 %v7095, %v7097
        %v7099 = vrot.slane %v7085, %v7098
        %v7100 = vcombine.low %v5015, %v5023
        %v7101 = vcombine.high %v5015, %v5023
        %v7103 = vunpack.c.l.s4 1983009808
        %v7104 = vunpack.c.0.s8 %v7103
        %v7105 = vlaneseq
        %v7106 = vshrl.u32 %v7105, 7
        %v7107 = vsub.s32 %v7104, %v7106
        %v7108 = vrot.slane %v7100, %v7107
        %v7110 = vunpack.c.l.s4 1983009808
        %v7111 = vunpack.c.0.s8 %v7110
        %v7112 = vlaneseq
        %v7113 = vshrl.u32 %v7112, 7
        %v7114 = vsub.s32 %v7111, %v7113
        %v7115 = vrot.slane %v7101, %v7114
        %v7116 = vcombine.low %v5019, %v5027
        %v7117 = vcombine.high %v5019, %v5027
        %v7119 = vunpack.c.l.s4 1983009808
        %v7120 = vunpack.c.0.s8 %v7119
        %v7121 = vlaneseq
        %v7122 = vshrl.u32 %v7121, 7
        %v7123 = vsub.s32 %v7120, %v7122
        %v7124 = vrot.slane %v7116, %v7123
        %v7126 = vunpack.c.l.s4 1983009808
        %v7127 = vunpack.c.0.s8 %v7126
        %v7128 = vlaneseq
        %v7129 = vshrl.u32 %v7128, 7
        %v7130 = vsub.s32 %v7127, %v7129
        %v7131 = vrot.slane %v7117, %v7130
        %v7132 = vcombine.low %v7076, %v7092
        %v7133 = vcombine.high %v7076, %v7092
        %v7135 = vunpack.c.l.s4 1934713408
        %v7136 = vunpack.c.0.s8 %v7135
        %v7137 = vlaneseq
        %v7138 = vshrl.u32 %v7137, 7
        %v7139 = vsub.s32 %v7136, %v7138
        %v7140 = vrot.slane %v7132, %v7139
        %v7142 = vunpack.c.l.s4 1934713408
        %v7143 = vunpack.c.0.s8 %v7142
        %v7144 = vlaneseq
        %v7145 = vshrl.u32 %v7144, 7
        %v7146 = vsub.s32 %v7143, %v7145
        %v7147 = vrot.slane %v7133, %v7146
        %v7148 = vcombine.low %v7083, %v7099
        %v7149 = vcombine.high %v7083, %v7099
        %v7151 = vunpack.c.l.s4 1934713408
        %v7152 = vunpack.c.0.s8 %v7151
        %v7153 = vlaneseq
        %v7154 = vshrl.u32 %v7153, 7
        %v7155 = vsub.s32 %v7152, %v7154
        %v7156 = vrot.slane %v7148, %v7155
        %v7158 = vunpack.c.l.s4 1934713408
        %v7159 = vunpack.c.0.s8 %v7158
        %v7160 = vlaneseq
        %v7161 = vshrl.u32 %v7160, 7
        %v7162 = vsub.s32 %v7159, %v7161
        %v7163 = vrot.slane %v7149, %v7162
        %v7164 = vcombine.low %v7108, %v7124
        %v7165 = vcombine.high %v7108, %v7124
        %v7167 = vunpack.c.l.s4 1934713408
        %v7168 = vunpack.c.0.s8 %v7167
        %v7169 = vlaneseq
        %v7170 = vshrl.u32 %v7169, 7
        %v7171 = vsub.s32 %v7168, %v7170
        %v7172 = vrot.slane %v7164, %v7171
        %v7174 = vunpack.c.l.s4 1934713408
        %v7175 = vunpack.c.0.s8 %v7174
        %v7176 = vlaneseq
        %v7177 = vshrl.u32 %v7176, 7
        %v7178 = vsub.s32 %v7175, %v7177
        %v7179 = vrot.slane %v7165, %v7178
        %v7180 = vcombine.low %v7115, %v7131
        %v7181 = vcombine.high %v7115, %v7131
        %v7183 = vunpack.c.l.s4 1934713408
        %v7184 = vunpack.c.0.s8 %v7183
        %v7185 = vlaneseq
        %v7186 = vshrl.u32 %v7185, 7
        %v7187 = vsub.s32 %v7184, %v7186
        %v7188 = vrot.slane %v7180, %v7187
        %v7190 = vunpack.c.l.s4 1934713408
        %v7191 = vunpack.c.0.s8 %v7190
        %v7192 = vlaneseq
        %v7193 = vshrl.u32 %v7192, 7
        %v7194 = vsub.s32 %v7191, %v7193
        %v7195 = vrot.slane %v7181, %v7194
        %v7196 = vcombine.low %v7140, %v7172
        %v7197 = vcombine.high %v7140, %v7172
        %v7198 = vcombine.low %v7147, %v7179
        %v7199 = vcombine.high %v7147, %v7179
        %v7200 = vcombine.low %v7156, %v7188
        %v7201 = vcombine.high %v7156, %v7188
        %v7202 = vcombine.low %v7163, %v7195
        %v7203 = vcombine.high %v7163, %v7195
        %v7204 = vcombine.low %v5031, %v5039
        %v7205 = vcombine.high %v5031, %v5039
        %v7207 = vunpack.c.l.s4 1983009808
        %v7208 = vunpack.c.0.s8 %v7207
        %v7209 = vlaneseq
        %v7210 = vshrl.u32 %v7209, 7
        %v7211 = vsub.s32 %v7208, %v7210
        %v7212 = vrot.slane %v7204, %v7211
        %v7214 = vunpack.c.l.s4 1983009808
        %v7215 = vunpack.c.0.s8 %v7214
        %v7216 = vlaneseq
        %v7217 = vshrl.u32 %v7216, 7
        %v7218 = vsub.s32 %v7215, %v7217
        %v7219 = vrot.slane %v7205, %v7218
        %v7220 = vcombine.low %v5035, %v5043
        %v7221 = vcombine.high %v5035, %v5043
        %v7223 = vunpack.c.l.s4 1983009808
        %v7224 = vunpack.c.0.s8 %v7223
        %v7225 = vlaneseq
        %v7226 = vshrl.u32 %v7225, 7
        %v7227 = vsub.s32 %v7224, %v7226
        %v7228 = vrot.slane %v7220, %v7227
        %v7230 = vunpack.c.l.s4 1983009808
        %v7231 = vunpack.c.0.s8 %v7230
        %v7232 = vlaneseq
        %v7233 = vshrl.u32 %v7232, 7
        %v7234 = vsub.s32 %v7231, %v7233
        %v7235 = vrot.slane %v7221, %v7234
        %v7236 = vcombine.low %v5047, %v5055
        %v7237 = vcombine.high %v5047, %v5055
        %v7239 = vunpack.c.l.s4 1983009808
        %v7240 = vunpack.c.0.s8 %v7239
        %v7241 = vlaneseq
        %v7242 = vshrl.u32 %v7241, 7
        %v7243 = vsub.s32 %v7240, %v7242
        %v7244 = vrot.slane %v7236, %v7243
        %v7246 = vunpack.c.l.s4 1983009808
        %v7247 = vunpack.c.0.s8 %v7246
        %v7248 = vlaneseq
        %v7249 = vshrl.u32 %v7248, 7
        %v7250 = vsub.s32 %v7247, %v7249
        %v7251 = vrot.slane %v7237, %v7250
        %v7252 = vcombine.low %v5051, %v5059
        %v7253 = vcombine.high %v5051, %v5059
        %v7255 = vunpack.c.l.s4 1983009808
        %v7256 = vunpack.c.0.s8 %v7255
        %v7257 = vlaneseq
        %v7258 = vshrl.u32 %v7257, 7
        %v7259 = vsub.s32 %v7256, %v7258
        %v7260 = vrot.slane %v7252, %v7259
        %v7262 = vunpack.c.l.s4 1983009808
        %v7263 = vunpack.c.0.s8 %v7262
        %v7264 = vlaneseq
        %v7265 = vshrl.u32 %v7264, 7
        %v7266 = vsub.s32 %v7263, %v7265
        %v7267 = vrot.slane %v7253, %v7266
        %v7268 = vcombine.low %v7212, %v7228
        %v7269 = vcombine.high %v7212, %v7228
        %v7271 = vunpack.c.l.s4 1934713408
        %v7272 = vunpack.c.0.s8 %v7271
        %v7273 = vlaneseq
        %v7274 = vshrl.u32 %v7273, 7
        %v7275 = vsub.s32 %v7272, %v7274
        %v7276 = vrot.slane %v7268, %v7275
        %v7278 = vunpack.c.l.s4 1934713408
        %v7279 = vunpack.c.0.s8 %v7278
        %v7280 = vlaneseq
        %v7281 = vshrl.u32 %v7280, 7
        %v7282 = vsub.s32 %v7279, %v7281
        %v7283 = vrot.slane %v7269, %v7282
        %v7284 = vcombine.low %v7219, %v7235
        %v7285 = vcombine.high %v7219, %v7235
        %v7287 = vunpack.c.l.s4 1934713408
        %v7288 = vunpack.c.0.s8 %v7287
        %v7289 = vlaneseq
        %v7290 = vshrl.u32 %v7289, 7
        %v7291 = vsub.s32 %v7288, %v7290
        %v7292 = vrot.slane %v7284, %v7291
        %v7294 = vunpack.c.l.s4 1934713408
        %v7295 = vunpack.c.0.s8 %v7294
        %v7296 = vlaneseq
        %v7297 = vshrl.u32 %v7296, 7
        %v7298 = vsub.s32 %v7295, %v7297
        %v7299 = vrot.slane %v7285, %v7298
        %v7300 = vcombine.low %v7244, %v7260
        %v7301 = vcombine.high %v7244, %v7260
        %v7303 = vunpack.c.l.s4 1934713408
        %v7304 = vunpack.c.0.s8 %v7303
        %v7305 = vlaneseq
        %v7306 = vshrl.u32 %v7305, 7
        %v7307 = vsub.s32 %v7304, %v7306
        %v7308 = vrot.slane %v7300, %v7307
        %v7310 = vunpack.c.l.s4 1934713408
        %v7311 = vunpack.c.0.s8 %v7310
        %v7312 = vlaneseq
        %v7313 = vshrl.u32 %v7312, 7
        %v7314 = vsub.s32 %v7311, %v7313
        %v7315 = vrot.slane %v7301, %v7314
        %v7316 = vcombine.low %v7251, %v7267
        %v7317 = vcombine.high %v7251, %v7267
        %v7319 = vunpack.c.l.s4 1934713408
        %v7320 = vunpack.c.0.s8 %v7319
        %v7321 = vlaneseq
        %v7322 = vshrl.u32 %v7321, 7
        %v7323 = vsub.s32 %v7320, %v7322
        %v7324 = vrot.slane %v7316, %v7323
        %v7326 = vunpack.c.l.s4 1934713408
        %v7327 = vunpack.c.0.s8 %v7326
        %v7328 = vlaneseq
        %v7329 = vshrl.u32 %v7328, 7
        %v7330 = vsub.s32 %v7327, %v7329
        %v7331 = vrot.slane %v7317, %v7330
        %v7332 = vcombine.low %v7276, %v7308
        %v7333 = vcombine.high %v7276, %v7308
        %v7334 = vcombine.low %v7283, %v7315
        %v7335 = vcombine.high %v7283, %v7315
        %v7336 = vcombine.low %v7292, %v7324
        %v7337 = vcombine.high %v7292, %v7324
        %v7338 = vcombine.low %v7299, %v7331
        %v7339 = vcombine.high %v7299, %v7331
        %v7340 = vcombine.low %v5063, %v5071
        %v7341 = vcombine.high %v5063, %v5071
        %v7343 = vunpack.c.l.s4 1983009808
        %v7344 = vunpack.c.0.s8 %v7343
        %v7345 = vlaneseq
        %v7346 = vshrl.u32 %v7345, 7
        %v7347 = vsub.s32 %v7344, %v7346
        %v7348 = vrot.slane %v7340, %v7347
        %v7350 = vunpack.c.l.s4 1983009808
        %v7351 = vunpack.c.0.s8 %v7350
        %v7352 = vlaneseq
        %v7353 = vshrl.u32 %v7352, 7
        %v7354 = vsub.s32 %v7351, %v7353
        %v7355 = vrot.slane %v7341, %v7354
        %v7356 = vcombine.low %v5067, %v5075
        %v7357 = vcombine.high %v5067, %v5075
        %v7359 = vunpack.c.l.s4 1983009808
        %v7360 = vunpack.c.0.s8 %v7359
        %v7361 = vlaneseq
        %v7362 = vshrl.u32 %v7361, 7
        %v7363 = vsub.s32 %v7360, %v7362
        %v7364 = vrot.slane %v7356, %v7363
        %v7366 = vunpack.c.l.s4 1983009808
        %v7367 = vunpack.c.0.s8 %v7366
        %v7368 = vlaneseq
        %v7369 = vshrl.u32 %v7368, 7
        %v7370 = vsub.s32 %v7367, %v7369
        %v7371 = vrot.slane %v7357, %v7370
        %v7372 = vcombine.low %v5079, %v5087
        %v7373 = vcombine.high %v5079, %v5087
        %v7375 = vunpack.c.l.s4 1983009808
        %v7376 = vunpack.c.0.s8 %v7375
        %v7377 = vlaneseq
        %v7378 = vshrl.u32 %v7377, 7
        %v7379 = vsub.s32 %v7376, %v7378
        %v7380 = vrot.slane %v7372, %v7379
        %v7382 = vunpack.c.l.s4 1983009808
        %v7383 = vunpack.c.0.s8 %v7382
        %v7384 = vlaneseq
        %v7385 = vshrl.u32 %v7384, 7
        %v7386 = vsub.s32 %v7383, %v7385
        %v7387 = vrot.slane %v7373, %v7386
        %v7388 = vcombine.low %v5083, %v5091
        %v7389 = vcombine.high %v5083, %v5091
        %v7391 = vunpack.c.l.s4 1983009808
        %v7392 = vunpack.c.0.s8 %v7391
        %v7393 = vlaneseq
        %v7394 = vshrl.u32 %v7393, 7
        %v7395 = vsub.s32 %v7392, %v7394
        %v7396 = vrot.slane %v7388, %v7395
        %v7398 = vunpack.c.l.s4 1983009808
        %v7399 = vunpack.c.0.s8 %v7398
        %v7400 = vlaneseq
        %v7401 = vshrl.u32 %v7400, 7
        %v7402 = vsub.s32 %v7399, %v7401
        %v7403 = vrot.slane %v7389, %v7402
        %v7404 = vcombine.low %v7348, %v7364
        %v7405 = vcombine.high %v7348, %v7364
        %v7407 = vunpack.c.l.s4 1934713408
        %v7408 = vunpack.c.0.s8 %v7407
        %v7409 = vlaneseq
        %v7410 = vshrl.u32 %v7409, 7
        %v7411 = vsub.s32 %v7408, %v7410
        %v7412 = vrot.slane %v7404, %v7411
        %v7414 = vunpack.c.l.s4 1934713408
        %v7415 = vunpack.c.0.s8 %v7414
        %v7416 = vlaneseq
        %v7417 = vshrl.u32 %v7416, 7
        %v7418 = vsub.s32 %v7415, %v7417
        %v7419 = vrot.slane %v7405, %v7418
        %v7420 = vcombine.low %v7355, %v7371
        %v7421 = vcombine.high %v7355, %v7371
        %v7423 = vunpack.c.l.s4 1934713408
        %v7424 = vunpack.c.0.s8 %v7423
        %v7425 = vlaneseq
        %v7426 = vshrl.u32 %v7425, 7
        %v7427 = vsub.s32 %v7424, %v7426
        %v7428 = vrot.slane %v7420, %v7427
        %v7430 = vunpack.c.l.s4 1934713408
        %v7431 = vunpack.c.0.s8 %v7430
        %v7432 = vlaneseq
        %v7433 = vshrl.u32 %v7432, 7
        %v7434 = vsub.s32 %v7431, %v7433
        %v7435 = vrot.slane %v7421, %v7434
        %v7436 = vcombine.low %v7380, %v7396
        %v7437 = vcombine.high %v7380, %v7396
        %v7439 = vunpack.c.l.s4 1934713408
        %v7440 = vunpack.c.0.s8 %v7439
        %v7441 = vlaneseq
        %v7442 = vshrl.u32 %v7441, 7
        %v7443 = vsub.s32 %v7440, %v7442
        %v7444 = vrot.slane %v7436, %v7443
        %v7446 = vunpack.c.l.s4 1934713408
        %v7447 = vunpack.c.0.s8 %v7446
        %v7448 = vlaneseq
        %v7449 = vshrl.u32 %v7448, 7
        %v7450 = vsub.s32 %v7447, %v7449
        %v7451 = vrot.slane %v7437, %v7450
        %v7452 = vcombine.low %v7387, %v7403
        %v7453 = vcombine.high %v7387, %v7403
        %v7455 = vunpack.c.l.s4 1934713408
        %v7456 = vunpack.c.0.s8 %v7455
        %v7457 = vlaneseq
        %v7458 = vshrl.u32 %v7457, 7
        %v7459 = vsub.s32 %v7456, %v7458
        %v7460 = vrot.slane %v7452, %v7459
        %v7462 = vunpack.c.l.s4 1934713408
        %v7463 = vunpack.c.0.s8 %v7462
        %v7464 = vlaneseq
        %v7465 = vshrl.u32 %v7464, 7
        %v7466 = vsub.s32 %v7463, %v7465
        %v7467 = vrot.slane %v7453, %v7466
        %v7468 = vcombine.low %v7412, %v7444
        %v7469 = vcombine.high %v7412, %v7444
        %v7470 = vcombine.low %v7419, %v7451
        %v7471 = vcombine.high %v7419, %v7451
        %v7472 = vcombine.low %v7428, %v7460
        %v7473 = vcombine.high %v7428, %v7460
        %v7474 = vcombine.low %v7435, %v7467
        %v7475 = vcombine.high %v7435, %v7467
        %v7476 = vcombine.low %v5095, %v5103
        %v7477 = vcombine.high %v5095, %v5103
        %v7479 = vunpack.c.l.s4 1983009808
        %v7480 = vunpack.c.0.s8 %v7479
        %v7481 = vlaneseq
        %v7482 = vshrl.u32 %v7481, 7
        %v7483 = vsub.s32 %v7480, %v7482
        %v7484 = vrot.slane %v7476, %v7483
        %v7486 = vunpack.c.l.s4 1983009808
        %v7487 = vunpack.c.0.s8 %v7486
        %v7488 = vlaneseq
        %v7489 = vshrl.u32 %v7488, 7
        %v7490 = vsub.s32 %v7487, %v7489
        %v7491 = vrot.slane %v7477, %v7490
        %v7492 = vcombine.low %v5099, %v5107
        %v7493 = vcombine.high %v5099, %v5107
        %v7495 = vunpack.c.l.s4 1983009808
        %v7496 = vunpack.c.0.s8 %v7495
        %v7497 = vlaneseq
        %v7498 = vshrl.u32 %v7497, 7
        %v7499 = vsub.s32 %v7496, %v7498
        %v7500 = vrot.slane %v7492, %v7499
        %v7502 = vunpack.c.l.s4 1983009808
        %v7503 = vunpack.c.0.s8 %v7502
        %v7504 = vlaneseq
        %v7505 = vshrl.u32 %v7504, 7
        %v7506 = vsub.s32 %v7503, %v7505
        %v7507 = vrot.slane %v7493, %v7506
        %v7508 = vcombine.low %v5111, %v5119
        %v7509 = vcombine.high %v5111, %v5119
        %v7511 = vunpack.c.l.s4 1983009808
        %v7512 = vunpack.c.0.s8 %v7511
        %v7513 = vlaneseq
        %v7514 = vshrl.u32 %v7513, 7
        %v7515 = vsub.s32 %v7512, %v7514
        %v7516 = vrot.slane %v7508, %v7515
        %v7518 = vunpack.c.l.s4 1983009808
        %v7519 = vunpack.c.0.s8 %v7518
        %v7520 = vlaneseq
        %v7521 = vshrl.u32 %v7520, 7
        %v7522 = vsub.s32 %v7519, %v7521
        %v7523 = vrot.slane %v7509, %v7522
        %v7524 = vcombine.low %v5115, %v5123
        %v7525 = vcombine.high %v5115, %v5123
        %v7527 = vunpack.c.l.s4 1983009808
        %v7528 = vunpack.c.0.s8 %v7527
        %v7529 = vlaneseq
        %v7530 = vshrl.u32 %v7529, 7
        %v7531 = vsub.s32 %v7528, %v7530
        %v7532 = vrot.slane %v7524, %v7531
        %v7534 = vunpack.c.l.s4 1983009808
        %v7535 = vunpack.c.0.s8 %v7534
        %v7536 = vlaneseq
        %v7537 = vshrl.u32 %v7536, 7
        %v7538 = vsub.s32 %v7535, %v7537
        %v7539 = vrot.slane %v7525, %v7538
        %v7540 = vcombine.low %v7484, %v7500
        %v7541 = vcombine.high %v7484, %v7500
        %v7543 = vunpack.c.l.s4 1934713408
        %v7544 = vunpack.c.0.s8 %v7543
        %v7545 = vlaneseq
        %v7546 = vshrl.u32 %v7545, 7
        %v7547 = vsub.s32 %v7544, %v7546
        %v7548 = vrot.slane %v7540, %v7547
        %v7550 = vunpack.c.l.s4 1934713408
        %v7551 = vunpack.c.0.s8 %v7550
        %v7552 = vlaneseq
        %v7553 = vshrl.u32 %v7552, 7
        %v7554 = vsub.s32 %v7551, %v7553
        %v7555 = vrot.slane %v7541, %v7554
        %v7556 = vcombine.low %v7491, %v7507
        %v7557 = vcombine.high %v7491, %v7507
        %v7559 = vunpack.c.l.s4 1934713408
        %v7560 = vunpack.c.0.s8 %v7559
        %v7561 = vlaneseq
        %v7562 = vshrl.u32 %v7561, 7
        %v7563 = vsub.s32 %v7560, %v7562
        %v7564 = vrot.slane %v7556, %v7563
        %v7566 = vunpack.c.l.s4 1934713408
        %v7567 = vunpack.c.0.s8 %v7566
        %v7568 = vlaneseq
        %v7569 = vshrl.u32 %v7568, 7
        %v7570 = vsub.s32 %v7567, %v7569
        %v7571 = vrot.slane %v7557, %v7570
        %v7572 = vcombine.low %v7516, %v7532
        %v7573 = vcombine.high %v7516, %v7532
        %v7575 = vunpack.c.l.s4 1934713408
        %v7576 = vunpack.c.0.s8 %v7575
        %v7577 = vlaneseq
        %v7578 = vshrl.u32 %v7577, 7
        %v7579 = vsub.s32 %v7576, %v7578
        %v7580 = vrot.slane %v7572, %v7579
        %v7582 = vunpack.c.l.s4 1934713408
        %v7583 = vunpack.c.0.s8 %v7582
        %v7584 = vlaneseq
        %v7585 = vshrl.u32 %v7584, 7
        %v7586 = vsub.s32 %v7583, %v7585
        %v7587 = vrot.slane %v7573, %v7586
        %v7588 = vcombine.low %v7523, %v7539
        %v7589 = vcombine.high %v7523, %v7539
        %v7591 = vunpack.c.l.s4 1934713408
        %v7592 = vunpack.c.0.s8 %v7591
        %v7593 = vlaneseq
        %v7594 = vshrl.u32 %v7593, 7
        %v7595 = vsub.s32 %v7592, %v7594
        %v7596 = vrot.slane %v7588, %v7595
        %v7598 = vunpack.c.l.s4 1934713408
        %v7599 = vunpack.c.0.s8 %v7598
        %v7600 = vlaneseq
        %v7601 = vshrl.u32 %v7600, 7
        %v7602 = vsub.s32 %v7599, %v7601
        %v7603 = vrot.slane %v7589, %v7602
        %v7604 = vcombine.low %v7548, %v7580
        %v7605 = vcombine.high %v7548, %v7580
        %v7606 = vcombine.low %v7555, %v7587
        %v7607 = vcombine.high %v7555, %v7587
        %v7608 = vcombine.low %v7564, %v7596
        %v7609 = vcombine.high %v7564, %v7596
        %v7610 = vcombine.low %v7571, %v7603
        %v7611 = vcombine.high %v7571, %v7603
        %v7612 = vcombine.low %v5127, %v5135
        %v7613 = vcombine.high %v5127, %v5135
        %v7615 = vunpack.c.l.s4 1983009808
        %v7616 = vunpack.c.0.s8 %v7615
        %v7617 = vlaneseq
        %v7618 = vshrl.u32 %v7617, 7
        %v7619 = vsub.s32 %v7616, %v7618
        %v7620 = vrot.slane %v7612, %v7619
        %v7622 = vunpack.c.l.s4 1983009808
        %v7623 = vunpack.c.0.s8 %v7622
        %v7624 = vlaneseq
        %v7625 = vshrl.u32 %v7624, 7
        %v7626 = vsub.s32 %v7623, %v7625
        %v7627 = vrot.slane %v7613, %v7626
        %v7628 = vcombine.low %v5131, %v5139
        %v7629 = vcombine.high %v5131, %v5139
        %v7631 = vunpack.c.l.s4 1983009808
        %v7632 = vunpack.c.0.s8 %v7631
        %v7633 = vlaneseq
        %v7634 = vshrl.u32 %v7633, 7
        %v7635 = vsub.s32 %v7632, %v7634
        %v7636 = vrot.slane %v7628, %v7635
        %v7638 = vunpack.c.l.s4 1983009808
        %v7639 = vunpack.c.0.s8 %v7638
        %v7640 = vlaneseq
        %v7641 = vshrl.u32 %v7640, 7
        %v7642 = vsub.s32 %v7639, %v7641
        %v7643 = vrot.slane %v7629, %v7642
        %v7644 = vcombine.low %v5143, %v5151
        %v7645 = vcombine.high %v5143, %v5151
        %v7647 = vunpack.c.l.s4 1983009808
        %v7648 = vunpack.c.0.s8 %v7647
        %v7649 = vlaneseq
        %v7650 = vshrl.u32 %v7649, 7
        %v7651 = vsub.s32 %v7648, %v7650
        %v7652 = vrot.slane %v7644, %v7651
        %v7654 = vunpack.c.l.s4 1983009808
        %v7655 = vunpack.c.0.s8 %v7654
        %v7656 = vlaneseq
        %v7657 = vshrl.u32 %v7656, 7
        %v7658 = vsub.s32 %v7655, %v7657
        %v7659 = vrot.slane %v7645, %v7658
        %v7660 = vcombine.low %v5147, %v5155
        %v7661 = vcombine.high %v5147, %v5155
        %v7663 = vunpack.c.l.s4 1983009808
        %v7664 = vunpack.c.0.s8 %v7663
        %v7665 = vlaneseq
        %v7666 = vshrl.u32 %v7665, 7
        %v7667 = vsub.s32 %v7664, %v7666
        %v7668 = vrot.slane %v7660, %v7667
        %v7670 = vunpack.c.l.s4 1983009808
        %v7671 = vunpack.c.0.s8 %v7670
        %v7672 = vlaneseq
        %v7673 = vshrl.u32 %v7672, 7
        %v7674 = vsub.s32 %v7671, %v7673
        %v7675 = vrot.slane %v7661, %v7674
        %v7676 = vcombine.low %v7620, %v7636
        %v7677 = vcombine.high %v7620, %v7636
        %v7679 = vunpack.c.l.s4 1934713408
        %v7680 = vunpack.c.0.s8 %v7679
        %v7681 = vlaneseq
        %v7682 = vshrl.u32 %v7681, 7
        %v7683 = vsub.s32 %v7680, %v7682
        %v7684 = vrot.slane %v7676, %v7683
        %v7686 = vunpack.c.l.s4 1934713408
        %v7687 = vunpack.c.0.s8 %v7686
        %v7688 = vlaneseq
        %v7689 = vshrl.u32 %v7688, 7
        %v7690 = vsub.s32 %v7687, %v7689
        %v7691 = vrot.slane %v7677, %v7690
        %v7692 = vcombine.low %v7627, %v7643
        %v7693 = vcombine.high %v7627, %v7643
        %v7695 = vunpack.c.l.s4 1934713408
        %v7696 = vunpack.c.0.s8 %v7695
        %v7697 = vlaneseq
        %v7698 = vshrl.u32 %v7697, 7
        %v7699 = vsub.s32 %v7696, %v7698
        %v7700 = vrot.slane %v7692, %v7699
        %v7702 = vunpack.c.l.s4 1934713408
        %v7703 = vunpack.c.0.s8 %v7702
        %v7704 = vlaneseq
        %v7705 = vshrl.u32 %v7704, 7
        %v7706 = vsub.s32 %v7703, %v7705
        %v7707 = vrot.slane %v7693, %v7706
        %v7708 = vcombine.low %v7652, %v7668
        %v7709 = vcombine.high %v7652, %v7668
        %v7711 = vunpack.c.l.s4 1934713408
        %v7712 = vunpack.c.0.s8 %v7711
        %v7713 = vlaneseq
        %v7714 = vshrl.u32 %v7713, 7
        %v7715 = vsub.s32 %v7712, %v7714
        %v7716 = vrot.slane %v7708, %v7715
        %v7718 = vunpack.c.l.s4 1934713408
        %v7719 = vunpack.c.0.s8 %v7718
        %v7720 = vlaneseq
        %v7721 = vshrl.u32 %v7720, 7
        %v7722 = vsub.s32 %v7719, %v7721
        %v7723 = vrot.slane %v7709, %v7722
        %v7724 = vcombine.low %v7659, %v7675
        %v7725 = vcombine.high %v7659, %v7675
        %v7727 = vunpack.c.l.s4 1934713408
        %v7728 = vunpack.c.0.s8 %v7727
        %v7729 = vlaneseq
        %v7730 = vshrl.u32 %v7729, 7
        %v7731 = vsub.s32 %v7728, %v7730
        %v7732 = vrot.slane %v7724, %v7731
        %v7734 = vunpack.c.l.s4 1934713408
        %v7735 = vunpack.c.0.s8 %v7734
        %v7736 = vlaneseq
        %v7737 = vshrl.u32 %v7736, 7
        %v7738 = vsub.s32 %v7735, %v7737
        %v7739 = vrot.slane %v7725, %v7738
        %v7740 = vcombine.low %v7684, %v7716
        %v7741 = vcombine.high %v7684, %v7716
        %v7742 = vcombine.low %v7691, %v7723
        %v7743 = vcombine.high %v7691, %v7723
        %v7744 = vcombine.low %v7700, %v7732
        %v7745 = vcombine.high %v7700, %v7732
        %v7746 = vcombine.low %v7707, %v7739
        %v7747 = vcombine.high %v7707, %v7739
        %7757 = vrot.lane.b32.xlu0 %v5429, 16
        %v7758 = vpop.permute.xlu0 %7757
        %7759 = vrot.lane.b32.xlu0 %v5565, 16
        %v7760 = vpop.permute.xlu0 %7759
        %7761 = vrot.lane.b32.xlu0 %v5701, 16
        %v7762 = vpop.permute.xlu0 %7761
        %7763 = vrot.lane.b32.xlu0 %v5837, 16
        %v7764 = vpop.permute.xlu0 %7763
        %7765 = vrot.lane.b32.xlu0 %v5973, 16
        %v7766 = vpop.permute.xlu0 %7765
        %7767 = vrot.lane.b32.xlu0 %v6109, 16
        %v7768 = vpop.permute.xlu0 %7767
        %7769 = vrot.lane.b32.xlu0 %v6245, 16
        %v7770 = vpop.permute.xlu0 %7769
        %7771 = vrot.lane.b32.xlu0 %v6381, 16
        %v7772 = vpop.permute.xlu0 %7771
        %7773 = vrot.lane.b32.xlu0 %v6517, 16
        %v7774 = vpop.permute.xlu0 %7773
        %7793 = vrot.lane.b32.xlu0 %v5430, 32
        %v7794 = vpop.permute.xlu0 %7793
        %7795 = vrot.lane.b32.xlu0 %v5566, 32
        %v7796 = vpop.permute.xlu0 %7795
        %7797 = vrot.lane.b32.xlu0 %v5702, 32
        %v7798 = vpop.permute.xlu0 %7797
        %7799 = vrot.lane.b32.xlu0 %v5838, 32
        %v7800 = vpop.permute.xlu0 %7799
        %7801 = vrot.lane.b32.xlu0 %v5974, 32
        %v7802 = vpop.permute.xlu0 %7801
        %7803 = vrot.lane.b32.xlu0 %v6110, 32
        %v7804 = vpop.permute.xlu0 %7803
        %7805 = vrot.lane.b32.xlu0 %v6246, 32
        %v7806 = vpop.permute.xlu0 %7805
        %7807 = vrot.lane.b32.xlu0 %v6382, 32
        %v7808 = vpop.permute.xlu0 %7807
        %7809 = vrot.lane.b32.xlu0 %v6518, 32
        %v7810 = vpop.permute.xlu0 %7809
        %7829 = vrot.lane.b32.xlu0 %v5431, 48
        %v7830 = vpop.permute.xlu0 %7829
        %7831 = vrot.lane.b32.xlu0 %v5567, 48
        %v7832 = vpop.permute.xlu0 %7831
        %7833 = vrot.lane.b32.xlu0 %v5703, 48
        %v7834 = vpop.permute.xlu0 %7833
        %7835 = vrot.lane.b32.xlu0 %v5839, 48
        %v7836 = vpop.permute.xlu0 %7835
        %7837 = vrot.lane.b32.xlu0 %v5975, 48
        %v7838 = vpop.permute.xlu0 %7837
        %7839 = vrot.lane.b32.xlu0 %v6111, 48
        %v7840 = vpop.permute.xlu0 %7839
        %7841 = vrot.lane.b32.xlu0 %v6247, 48
        %v7842 = vpop.permute.xlu0 %7841
        %7843 = vrot.lane.b32.xlu0 %v6383, 48
        %v7844 = vpop.permute.xlu0 %7843
        %7845 = vrot.lane.b32.xlu0 %v6519, 48
        %v7846 = vpop.permute.xlu0 %7845
        %7865 = vrot.lane.b32.xlu0 %v5432, 64
        %v7866 = vpop.permute.xlu0 %7865
        %7867 = vrot.lane.b32.xlu0 %v5568, 64
        %v7868 = vpop.permute.xlu0 %7867
        %7869 = vrot.lane.b32.xlu0 %v5704, 64
        %v7870 = vpop.permute.xlu0 %7869
        %7871 = vrot.lane.b32.xlu0 %v5840, 64
        %v7872 = vpop.permute.xlu0 %7871
        %7873 = vrot.lane.b32.xlu0 %v5976, 64
        %v7874 = vpop.permute.xlu0 %7873
        %7875 = vrot.lane.b32.xlu0 %v6112, 64
        %v7876 = vpop.permute.xlu0 %7875
        %7877 = vrot.lane.b32.xlu0 %v6248, 64
        %v7878 = vpop.permute.xlu0 %7877
        %7879 = vrot.lane.b32.xlu0 %v6384, 64
        %v7880 = vpop.permute.xlu0 %7879
        %7881 = vrot.lane.b32.xlu0 %v6520, 64
        %v7882 = vpop.permute.xlu0 %7881
        %7901 = vrot.lane.b32.xlu0 %v5433, 80
        %v7902 = vpop.permute.xlu0 %7901
        %7903 = vrot.lane.b32.xlu0 %v5569, 80
        %v7904 = vpop.permute.xlu0 %7903
        %7905 = vrot.lane.b32.xlu0 %v5705, 80
        %v7906 = vpop.permute.xlu0 %7905
        %7907 = vrot.lane.b32.xlu0 %v5841, 80
        %v7908 = vpop.permute.xlu0 %7907
        %7909 = vrot.lane.b32.xlu0 %v5977, 80
        %v7910 = vpop.permute.xlu0 %7909
        %7911 = vrot.lane.b32.xlu0 %v6113, 80
        %v7912 = vpop.permute.xlu0 %7911
        %7913 = vrot.lane.b32.xlu0 %v6249, 80
        %v7914 = vpop.permute.xlu0 %7913
        %7915 = vrot.lane.b32.xlu0 %v6385, 80
        %v7916 = vpop.permute.xlu0 %7915
        %7917 = vrot.lane.b32.xlu0 %v6521, 80
        %v7918 = vpop.permute.xlu0 %7917
        %7937 = vrot.lane.b32.xlu0 %v5434, 96
        %v7938 = vpop.permute.xlu0 %7937
        %7939 = vrot.lane.b32.xlu0 %v5570, 96
        %v7940 = vpop.permute.xlu0 %7939
        %7941 = vrot.lane.b32.xlu0 %v5706, 96
        %v7942 = vpop.permute.xlu0 %7941
        %7943 = vrot.lane.b32.xlu0 %v5842, 96
        %v7944 = vpop.permute.xlu0 %7943
        %7945 = vrot.lane.b32.xlu0 %v5978, 96
        %v7946 = vpop.permute.xlu0 %7945
        %7947 = vrot.lane.b32.xlu0 %v6114, 96
        %v7948 = vpop.permute.xlu0 %7947
        %7949 = vrot.lane.b32.xlu0 %v6250, 96
        %v7950 = vpop.permute.xlu0 %7949
        %7951 = vrot.lane.b32.xlu0 %v6386, 96
        %v7952 = vpop.permute.xlu0 %7951
        %7953 = vrot.lane.b32.xlu0 %v6522, 96
        %v7954 = vpop.permute.xlu0 %7953
        %7973 = vrot.lane.b32.xlu0 %v5435, 112
        %v7974 = vpop.permute.xlu0 %7973
        %7975 = vrot.lane.b32.xlu0 %v5571, 112
        %v7976 = vpop.permute.xlu0 %7975
        %7977 = vrot.lane.b32.xlu0 %v5707, 112
        %v7978 = vpop.permute.xlu0 %7977
        %7979 = vrot.lane.b32.xlu0 %v5843, 112
        %v7980 = vpop.permute.xlu0 %7979
        %7981 = vrot.lane.b32.xlu0 %v5979, 112
        %v7982 = vpop.permute.xlu0 %7981
        %7983 = vrot.lane.b32.xlu0 %v6115, 112
        %v7984 = vpop.permute.xlu0 %7983
        %7985 = vrot.lane.b32.xlu0 %v6251, 112
        %v7986 = vpop.permute.xlu0 %7985
        %7987 = vrot.lane.b32.xlu0 %v6387, 112
        %v7988 = vpop.permute.xlu0 %7987
        %7989 = vrot.lane.b32.xlu0 %v6523, 112
        %v7990 = vpop.permute.xlu0 %7989
        %8009 = vrot.lane.b32.xlu0 %v6653, 16
        %v8010 = vpop.permute.xlu0 %8009
        %8011 = vrot.lane.b32.xlu0 %v6789, 16
        %v8012 = vpop.permute.xlu0 %8011
        %8013 = vrot.lane.b32.xlu0 %v6925, 16
        %v8014 = vpop.permute.xlu0 %8013
        %8015 = vrot.lane.b32.xlu0 %v7061, 16
        %v8016 = vpop.permute.xlu0 %8015
        %8017 = vrot.lane.b32.xlu0 %v7197, 16
        %v8018 = vpop.permute.xlu0 %8017
        %8019 = vrot.lane.b32.xlu0 %v7333, 16
        %v8020 = vpop.permute.xlu0 %8019
        %8021 = vrot.lane.b32.xlu0 %v7469, 16
        %v8022 = vpop.permute.xlu0 %8021
        %8023 = vrot.lane.b32.xlu0 %v7605, 16
        %v8024 = vpop.permute.xlu0 %8023
        %8025 = vrot.lane.b32.xlu0 %v7741, 16
        %v8026 = vpop.permute.xlu0 %8025
        %8045 = vrot.lane.b32.xlu0 %v6654, 32
        %v8046 = vpop.permute.xlu0 %8045
        %8047 = vrot.lane.b32.xlu0 %v6790, 32
        %v8048 = vpop.permute.xlu0 %8047
        %8049 = vrot.lane.b32.xlu0 %v6926, 32
        %v8050 = vpop.permute.xlu0 %8049
        %8051 = vrot.lane.b32.xlu0 %v7062, 32
        %v8052 = vpop.permute.xlu0 %8051
        %8053 = vrot.lane.b32.xlu0 %v7198, 32
        %v8054 = vpop.permute.xlu0 %8053
        %8055 = vrot.lane.b32.xlu0 %v7334, 32
        %v8056 = vpop.permute.xlu0 %8055
        %8057 = vrot.lane.b32.xlu0 %v7470, 32
        %v8058 = vpop.permute.xlu0 %8057
        %8059 = vrot.lane.b32.xlu0 %v7606, 32
        %v8060 = vpop.permute.xlu0 %8059
        %8061 = vrot.lane.b32.xlu0 %v7742, 32
        %v8062 = vpop.permute.xlu0 %8061
        %8081 = vrot.lane.b32.xlu0 %v6655, 48
        %v8082 = vpop.permute.xlu0 %8081
        %8083 = vrot.lane.b32.xlu0 %v6791, 48
        %v8084 = vpop.permute.xlu0 %8083
        %8085 = vrot.lane.b32.xlu0 %v6927, 48
        %v8086 = vpop.permute.xlu0 %8085
        %8087 = vrot.lane.b32.xlu0 %v7063, 48
        %v8088 = vpop.permute.xlu0 %8087
        %8089 = vrot.lane.b32.xlu0 %v7199, 48
        %v8090 = vpop.permute.xlu0 %8089
        %8091 = vrot.lane.b32.xlu0 %v7335, 48
        %v8092 = vpop.permute.xlu0 %8091
        %8093 = vrot.lane.b32.xlu0 %v7471, 48
        %v8094 = vpop.permute.xlu0 %8093
        %8095 = vrot.lane.b32.xlu0 %v7607, 48
        %v8096 = vpop.permute.xlu0 %8095
        %8097 = vrot.lane.b32.xlu0 %v7743, 48
        %v8098 = vpop.permute.xlu0 %8097
        %8117 = vrot.lane.b32.xlu0 %v6656, 64
        %v8118 = vpop.permute.xlu0 %8117
        %8119 = vrot.lane.b32.xlu0 %v6792, 64
        %v8120 = vpop.permute.xlu0 %8119
        %8121 = vrot.lane.b32.xlu0 %v6928, 64
        %v8122 = vpop.permute.xlu0 %8121
        %8123 = vrot.lane.b32.xlu0 %v7064, 64
        %v8124 = vpop.permute.xlu0 %8123
        %8125 = vrot.lane.b32.xlu0 %v7200, 64
        %v8126 = vpop.permute.xlu0 %8125
        %8127 = vrot.lane.b32.xlu0 %v7336, 64
        %v8128 = vpop.permute.xlu0 %8127
        %8129 = vrot.lane.b32.xlu0 %v7472, 64
        %v8130 = vpop.permute.xlu0 %8129
        %8131 = vrot.lane.b32.xlu0 %v7608, 64
        %v8132 = vpop.permute.xlu0 %8131
        %8133 = vrot.lane.b32.xlu0 %v7744, 64
        %v8134 = vpop.permute.xlu0 %8133
        %8153 = vrot.lane.b32.xlu0 %v6657, 80
        %v8154 = vpop.permute.xlu0 %8153
        %8155 = vrot.lane.b32.xlu0 %v6793, 80
        %v8156 = vpop.permute.xlu0 %8155
        %8157 = vrot.lane.b32.xlu0 %v6929, 80
        %v8158 = vpop.permute.xlu0 %8157
        %8159 = vrot.lane.b32.xlu0 %v7065, 80
        %v8160 = vpop.permute.xlu0 %8159
        %8161 = vrot.lane.b32.xlu0 %v7201, 80
        %v8162 = vpop.permute.xlu0 %8161
        %8163 = vrot.lane.b32.xlu0 %v7337, 80
        %v8164 = vpop.permute.xlu0 %8163
        %8165 = vrot.lane.b32.xlu0 %v7473, 80
        %v8166 = vpop.permute.xlu0 %8165
        %8167 = vrot.lane.b32.xlu0 %v7609, 80
        %v8168 = vpop.permute.xlu0 %8167
        %8169 = vrot.lane.b32.xlu0 %v7745, 80
        %v8170 = vpop.permute.xlu0 %8169
        %8189 = vrot.lane.b32.xlu0 %v6658, 96
        %v8190 = vpop.permute.xlu0 %8189
        %8191 = vrot.lane.b32.xlu0 %v6794, 96
        %v8192 = vpop.permute.xlu0 %8191
        %8193 = vrot.lane.b32.xlu0 %v6930, 96
        %v8194 = vpop.permute.xlu0 %8193
        %8195 = vrot.lane.b32.xlu0 %v7066, 96
        %v8196 = vpop.permute.xlu0 %8195
        %8197 = vrot.lane.b32.xlu0 %v7202, 96
        %v8198 = vpop.permute.xlu0 %8197
        %8199 = vrot.lane.b32.xlu0 %v7338, 96
        %v8200 = vpop.permute.xlu0 %8199
        %8201 = vrot.lane.b32.xlu0 %v7474, 96
        %v8202 = vpop.permute.xlu0 %8201
        %8203 = vrot.lane.b32.xlu0 %v7610, 96
        %v8204 = vpop.permute.xlu0 %8203
        %8205 = vrot.lane.b32.xlu0 %v7746, 96
        %v8206 = vpop.permute.xlu0 %8205
        %8225 = vrot.lane.b32.xlu0 %v6659, 112
        %v8226 = vpop.permute.xlu0 %8225
        %8227 = vrot.lane.b32.xlu0 %v6795, 112
        %v8228 = vpop.permute.xlu0 %8227
        %8229 = vrot.lane.b32.xlu0 %v6931, 112
        %v8230 = vpop.permute.xlu0 %8229
        %8231 = vrot.lane.b32.xlu0 %v7067, 112
        %v8232 = vpop.permute.xlu0 %8231
        %8233 = vrot.lane.b32.xlu0 %v7203, 112
        %v8234 = vpop.permute.xlu0 %8233
        %8235 = vrot.lane.b32.xlu0 %v7339, 112
        %v8236 = vpop.permute.xlu0 %8235
        %8237 = vrot.lane.b32.xlu0 %v7475, 112
        %v8238 = vpop.permute.xlu0 %8237
        %8239 = vrot.lane.b32.xlu0 %v7611, 112
        %v8240 = vpop.permute.xlu0 %8239
        %8241 = vrot.lane.b32.xlu0 %v7747, 112
        %v8242 = vpop.permute.xlu0 %8241
        %v8252 = vsel %vm4398, %v5428, %v7758
        %v8253 = vsel %vm4398, %v5564, %v7760
        %v8254 = vsel %vm4398, %v5700, %v7762
        %v8255 = vsel %vm4398, %v5836, %v7764
        %v8256 = vsel %vm4398, %v5972, %v7766
        %v8257 = vsel %vm4398, %v6108, %v7768
        %v8258 = vsel %vm4398, %v6244, %v7770
        %v8259 = vsel %vm4398, %v6380, %v7772
        %v8260 = vsel %vm4398, %v6516, %v7774
        %v8261 = vsel %vm319, %v8252, %v7794
        %v8262 = vsel %vm319, %v8253, %v7796
        %v8263 = vsel %vm319, %v8254, %v7798
        %v8264 = vsel %vm319, %v8255, %v7800
        %v8265 = vsel %vm319, %v8256, %v7802
        %v8266 = vsel %vm319, %v8257, %v7804
        %v8267 = vsel %vm319, %v8258, %v7806
        %v8268 = vsel %vm319, %v8259, %v7808
        %v8269 = vsel %vm319, %v8260, %v7810
        %v8270 = vsel %vm4417, %v8261, %v7830
        %v8271 = vsel %vm4417, %v8262, %v7832
        %v8272 = vsel %vm4417, %v8263, %v7834
        %v8273 = vsel %vm4417, %v8264, %v7836
        %v8274 = vsel %vm4417, %v8265, %v7838
        %v8275 = vsel %vm4417, %v8266, %v7840
        %v8276 = vsel %vm4417, %v8267, %v7842
        %v8277 = vsel %vm4417, %v8268, %v7844
        %v8278 = vsel %vm4417, %v8269, %v7846
        %v8279 = vsel %vm4427, %v8270, %v7866
        %v8280 = vsel %vm4427, %v8271, %v7868
        %v8281 = vsel %vm4427, %v8272, %v7870
        %v8282 = vsel %vm4427, %v8273, %v7872
        %v8283 = vsel %vm4427, %v8274, %v7874
        %v8284 = vsel %vm4427, %v8275, %v7876
        %v8285 = vsel %vm4427, %v8276, %v7878
        %v8286 = vsel %vm4427, %v8277, %v7880
        %v8287 = vsel %vm4427, %v8278, %v7882
        %v8288 = vsel %vm4437, %v8279, %v7902
        %v8289 = vsel %vm4437, %v8280, %v7904
        %v8290 = vsel %vm4437, %v8281, %v7906
        %v8291 = vsel %vm4437, %v8282, %v7908
        %v8292 = vsel %vm4437, %v8283, %v7910
        %v8293 = vsel %vm4437, %v8284, %v7912
        %v8294 = vsel %vm4437, %v8285, %v7914
        %v8295 = vsel %vm4437, %v8286, %v7916
        %v8296 = vsel %vm4437, %v8287, %v7918
        %v8297 = vsel %vm4447, %v8288, %v7938
        %v8298 = vsel %vm4447, %v8289, %v7940
        %v8299 = vsel %vm4447, %v8290, %v7942
        %v8300 = vsel %vm4447, %v8291, %v7944
        %v8301 = vsel %vm4447, %v8292, %v7946
        %v8302 = vsel %vm4447, %v8293, %v7948
        %v8303 = vsel %vm4447, %v8294, %v7950
        %v8304 = vsel %vm4447, %v8295, %v7952
        %v8305 = vsel %vm4447, %v8296, %v7954
        %v8306 = vsel %vm4457, %v8297, %v7974
        %v8307 = vsel %vm4457, %v8298, %v7976
        %v8308 = vsel %vm4457, %v8299, %v7978
        %v8309 = vsel %vm4457, %v8300, %v7980
        %v8310 = vsel %vm4457, %v8301, %v7982
        %v8311 = vsel %vm4457, %v8302, %v7984
        %v8312 = vsel %vm4457, %v8303, %v7986
        %v8313 = vsel %vm4457, %v8304, %v7988
        %v8314 = vsel %vm4457, %v8305, %v7990
        %v8315 = vsel %vm4398, %v6652, %v8010
        %v8316 = vsel %vm4398, %v6788, %v8012
        %v8317 = vsel %vm4398, %v6924, %v8014
        %v8318 = vsel %vm4398, %v7060, %v8016
        %v8319 = vsel %vm4398, %v7196, %v8018
        %v8320 = vsel %vm4398, %v7332, %v8020
        %v8321 = vsel %vm4398, %v7468, %v8022
        %v8322 = vsel %vm4398, %v7604, %v8024
        %v8323 = vsel %vm4398, %v7740, %v8026
        %v8324 = vsel %vm319, %v8315, %v8046
        %v8325 = vsel %vm319, %v8316, %v8048
        %v8326 = vsel %vm319, %v8317, %v8050
        %v8327 = vsel %vm319, %v8318, %v8052
        %v8328 = vsel %vm319, %v8319, %v8054
        %v8329 = vsel %vm319, %v8320, %v8056
        %v8330 = vsel %vm319, %v8321, %v8058
        %v8331 = vsel %vm319, %v8322, %v8060
        %v8332 = vsel %vm319, %v8323, %v8062
        %v8333 = vsel %vm4417, %v8324, %v8082
        %v8334 = vsel %vm4417, %v8325, %v8084
        %v8335 = vsel %vm4417, %v8326, %v8086
        %v8336 = vsel %vm4417, %v8327, %v8088
        %v8337 = vsel %vm4417, %v8328, %v8090
        %v8338 = vsel %vm4417, %v8329, %v8092
        %v8339 = vsel %vm4417, %v8330, %v8094
        %v8340 = vsel %vm4417, %v8331, %v8096
        %v8341 = vsel %vm4417, %v8332, %v8098
        %v8342 = vsel %vm4427, %v8333, %v8118
        %v8343 = vsel %vm4427, %v8334, %v8120
        %v8344 = vsel %vm4427, %v8335, %v8122
        %v8345 = vsel %vm4427, %v8336, %v8124
        %v8346 = vsel %vm4427, %v8337, %v8126
        %v8347 = vsel %vm4427, %v8338, %v8128
        %v8348 = vsel %vm4427, %v8339, %v8130
        %v8349 = vsel %vm4427, %v8340, %v8132
        %v8350 = vsel %vm4427, %v8341, %v8134
        %v8351 = vsel %vm4437, %v8342, %v8154
        %v8352 = vsel %vm4437, %v8343, %v8156
        %v8353 = vsel %vm4437, %v8344, %v8158
        %v8354 = vsel %vm4437, %v8345, %v8160
        %v8355 = vsel %vm4437, %v8346, %v8162
        %v8356 = vsel %vm4437, %v8347, %v8164
        %v8357 = vsel %vm4437, %v8348, %v8166
        %v8358 = vsel %vm4437, %v8349, %v8168
        %v8359 = vsel %vm4437, %v8350, %v8170
        %v8360 = vsel %vm4447, %v8351, %v8190
        %v8361 = vsel %vm4447, %v8352, %v8192
        %v8362 = vsel %vm4447, %v8353, %v8194
        %v8363 = vsel %vm4447, %v8354, %v8196
        %v8364 = vsel %vm4447, %v8355, %v8198
        %v8365 = vsel %vm4447, %v8356, %v8200
        %v8366 = vsel %vm4447, %v8357, %v8202
        %v8367 = vsel %vm4447, %v8358, %v8204
        %v8368 = vsel %vm4447, %v8359, %v8206
        %v8369 = vsel %vm4457, %v8360, %v8226
        %v8370 = vsel %vm4457, %v8361, %v8228
        %v8371 = vsel %vm4457, %v8362, %v8230
        %v8372 = vsel %vm4457, %v8363, %v8232
        %v8373 = vsel %vm4457, %v8364, %v8234
        %v8374 = vsel %vm4457, %v8365, %v8236
        %v8375 = vsel %vm4457, %v8366, %v8238
        %v8376 = vsel %vm4457, %v8367, %v8240
        %v8377 = vsel %vm4457, %v8368, %v8242
        %v8378 = vpack.c.bf16 %v8307, %v8306
        %v8379 = vpack.c.bf16 %v8370, %v8369
        %v8380 = vpack.c.bf16 %v8309, %v8308
        %v8381 = vpack.c.bf16 %v8372, %v8371
        %v8382 = vpack.c.bf16 %v8311, %v8310
        %v8383 = vpack.c.bf16 %v8374, %v8373
        %v8384 = vpack.c.bf16 %v8313, %v8312
        %v8385 = vpack.c.bf16 %v8376, %v8375
        %v8386 = vpack.c.bf16 %v8314, %v8314
        %v8387 = vpack.c.bf16 %v8377, %v8377
        %s8388 = scalar_lea.vmem %s3, 4
        %v8389 = vld [vmem:[%s8388] sm:$0xf]
        %s8390 = scalar_lea.vmem %s4, 8
        %v8391 = vld [vmem:[%s8390] sm:$0xff]
        %8393 = vset.pattern.permute.xlu0 0
        %8394 = vperm.xlu0 %8393, %v8391
        %v8395 = vpop.permute.xlu0 %8394
        %v8398 = vsel %vm4547, %v8389, 0
        %v8401 = vsel %vm4551, %v8386, 0
        %v8404 = vsel %vm4551, %v8387, 0
        %8406 = vmatprep.subr.bf16.mxu0 %v8379
        %8407 = vmatpush1.bf16.msra.mxu0 %v8378
        %8408 = vmatprep.subr.bf16.mxu0 %v8381
        %8409 = vmatpush1.bf16.msra.mxu0 %v8380
        %8410 = vmatprep.subr.bf16.mxu0 %v8383
        %8411 = vmatpush1.bf16.msra.mxu0 %v8382
        %8412 = vmatprep.subr.bf16.mxu0 %v8385
        %8413 = vmatpush1.bf16.msra.mxu0 %v8384
        %8414 = vmatprep.subr.bf16.mxu0 %v8404
        %8415 = vmatpush1.bf16.msra.mxu0 %v8401
        %8416 = vmatprep.subr.bf16.mxu0 0
        %8417 = vmatpush1.bf16.msra.mxu0 0
        %8418 = vmatprep.subr.bf16.mxu0 0
        %8419 = vmatpush1.bf16.msra.mxu0 0
        %8420 = vmatprep.subr.bf16.mxu0 0
        %8421 = vmatpush1.bf16.msra.mxu0 0
        %8422 = vmatprep.subr.bf16.mxu0 0
        %8423 = vmatpush1.bf16.msra.mxu0 0
        %8424 = vmatprep.subr.bf16.mxu0 0
        %8425 = vmatpush1.bf16.msra.mxu0 0
        %8426 = vmatprep.subr.bf16.mxu0 0
        %8427 = vmatpush1.bf16.msra.mxu0 0
        %8428 = vmatprep.subr.bf16.mxu0 0
        %8429 = vmatpush1.bf16.msra.mxu0 0
        %8430 = vmatprep.subr.bf16.mxu0 0
        %8431 = vmatpush1.bf16.msra.mxu0 0
        %8432 = vmatprep.subr.bf16.mxu0 0
        %8433 = vmatpush1.bf16.msra.mxu0 0
        %8434 = vmatprep.subr.bf16.mxu0 0
        %8435 = vmatpush1.bf16.msra.mxu0 0
        %8436 = vmatprep.subr.bf16.mxu0 0
        %8437 = vmatpush1.bf16.msra.mxu0 0
        %8438 = vmatprep.mubr.bf16.mxu0 0
        %8439 = vmatmul.mubr.bf16.gmra.mrb[0].mxu0 %v8398
        %v8440 = vpop.f32.mrb[0].mxu0
        %v8441 = vadd.f32 %v8395, %v8440
        %v8442 = vpop.f32.mrb[0].mxu0
        %v8443 = vadd.f32 %v8395, %v8442
        %v8444 = vpop.f32.mrb[0].mxu0
        %v8445 = vpop.f32.mrb[0].mxu0
        %8446 = vdwg.mxu0
        %v8447 = vmax.f32 %v8441, 0.0
        %v8448 = vmax.f32 %v8443, 0.0
        %s8449 = scalar_lea.vmem %s5, 16
        %v8450 = vld [vmem:[%s8449] sm:$0xff]
        %8452 = vset.pattern.permute.xlu0 0
        %8453 = vperm.xlu0 %8452, %v8450
        %v8454 = vpop.permute.xlu0 %8453
        %v8456 = vmul.f32 %v8447, %v8454
        %v8457 = vmul.f32 %v8448, %v8454
        %v8458 = vadd.f32 %v4610, %v8456
        %v8459 = vadd.f32 %v4611, %v8457
        %v8460 = vld [vmem:[#allocation2] sm:$0xff]
        %v8461 = vld [vmem:[#allocation2 + $0x8] sm:$0xff]
        %v8462 = vld [vmem:[#allocation2 + $0x18] sm:$0xff]
        %v8463 = vld [vmem:[#allocation2 + $0x20] sm:$0xff]
        %v8464 = vld [vmem:[#allocation2 + $0x30] sm:$0xff]
        %v8465 = vld [vmem:[#allocation2 + $0x38] sm:$0xff]
        %v8466 = vld [vmem:[#allocation2 + $0x48] sm:$0xff]
        %v8467 = vld [vmem:[#allocation2 + $0x50] sm:$0xff]
        %v8468 = vld [vmem:[#allocation2 + $0x60] sm:$0xff]
        %v8469 = vld [vmem:[#allocation2 + $0x68] sm:$0xff]
        %v8470 = vld [vmem:[#allocation2 + $0x78] sm:$0xff]
        %v8471 = vld [vmem:[#allocation2 + $0x80] sm:$0xff]
        %v8472 = vld [vmem:[#allocation2 + $0x90] sm:$0xff]
        %v8473 = vld [vmem:[#allocation2 + $0x98] sm:$0xff]
        %v8474 = vld [vmem:[#allocation2 + $0xa8] sm:$0xff]
        %v8475 = vld [vmem:[#allocation2 + $0xb0] sm:$0xff]
        %v8476 = vld [vmem:[#allocation2 + $0x3] sm:$0xff]
        %v8477 = vld [vmem:[#allocation2 + $0xb] sm:$0xff]
        %v8478 = vld [vmem:[#allocation2 + $0x1b] sm:$0xff]
        %v8479 = vld [vmem:[#allocation2 + $0x23] sm:$0xff]
        %v8480 = vld [vmem:[#allocation2 + $0x33] sm:$0xff]
        %v8481 = vld [vmem:[#allocation2 + $0x3b] sm:$0xff]
        %v8482 = vld [vmem:[#allocation2 + $0x4b] sm:$0xff]
        %v8483 = vld [vmem:[#allocation2 + $0x53] sm:$0xff]
        %v8484 = vld [vmem:[#allocation2 + $0x63] sm:$0xff]
        %v8485 = vld [vmem:[#allocation2 + $0x6b] sm:$0xff]
        %v8486 = vld [vmem:[#allocation2 + $0x7b] sm:$0xff]
        %v8487 = vld [vmem:[#allocation2 + $0x83] sm:$0xff]
        %v8488 = vld [vmem:[#allocation2 + $0x93] sm:$0xff]
        %v8489 = vld [vmem:[#allocation2 + $0x9b] sm:$0xff]
        %v8490 = vld [vmem:[#allocation2 + $0xab] sm:$0xff]
        %v8491 = vld [vmem:[#allocation2 + $0xb3] sm:$0xff]
        %v8492 = vld [vmem:[#allocation2 + $0x6] sm:$0xff]
        %v8493 = vld [vmem:[#allocation2 + $0xe] sm:$0xff]
        %v8494 = vld [vmem:[#allocation2 + $0x1e] sm:$0xff]
        %v8495 = vld [vmem:[#allocation2 + $0x26] sm:$0xff]
        %v8496 = vld [vmem:[#allocation2 + $0x36] sm:$0xff]
        %v8497 = vld [vmem:[#allocation2 + $0x3e] sm:$0xff]
        %v8498 = vld [vmem:[#allocation2 + $0x4e] sm:$0xff]
        %v8499 = vld [vmem:[#allocation2 + $0x56] sm:$0xff]
        %v8500 = vld [vmem:[#allocation2 + $0x66] sm:$0xff]
        %v8501 = vld [vmem:[#allocation2 + $0x6e] sm:$0xff]
        %v8502 = vld [vmem:[#allocation2 + $0x7e] sm:$0xff]
        %v8503 = vld [vmem:[#allocation2 + $0x86] sm:$0xff]
        %v8504 = vld [vmem:[#allocation2 + $0x96] sm:$0xff]
        %v8505 = vld [vmem:[#allocation2 + $0x9e] sm:$0xff]
        %v8506 = vld [vmem:[#allocation2 + $0xae] sm:$0xff]
        %v8507 = vld [vmem:[#allocation2 + $0xb6] sm:$0xff]
        %8524 = vrot.lane.b32.xlu0 %v8460, 125
        %v8525 = vpop.permute.xlu0 %8524
        %8526 = vrot.lane.b32.xlu0 %v8461, 125
        %v8527 = vpop.permute.xlu0 %8526
        %8528 = vrot.lane.b32.xlu0 %v8462, 125
        %v8529 = vpop.permute.xlu0 %8528
        %8530 = vrot.lane.b32.xlu0 %v8463, 125
        %v8531 = vpop.permute.xlu0 %8530
        %8532 = vrot.lane.b32.xlu0 %v8464, 125
        %v8533 = vpop.permute.xlu0 %8532
        %8534 = vrot.lane.b32.xlu0 %v8465, 125
        %v8535 = vpop.permute.xlu0 %8534
        %8536 = vrot.lane.b32.xlu0 %v8466, 125
        %v8537 = vpop.permute.xlu0 %8536
        %8538 = vrot.lane.b32.xlu0 %v8467, 125
        %v8539 = vpop.permute.xlu0 %8538
        %8540 = vrot.lane.b32.xlu0 %v8468, 125
        %v8541 = vpop.permute.xlu0 %8540
        %8542 = vrot.lane.b32.xlu0 %v8469, 125
        %v8543 = vpop.permute.xlu0 %8542
        %8544 = vrot.lane.b32.xlu0 %v8470, 125
        %v8545 = vpop.permute.xlu0 %8544
        %8546 = vrot.lane.b32.xlu0 %v8471, 125
        %v8547 = vpop.permute.xlu0 %8546
        %8548 = vrot.lane.b32.xlu0 %v8472, 125
        %v8549 = vpop.permute.xlu0 %8548
        %8550 = vrot.lane.b32.xlu0 %v8473, 125
        %v8551 = vpop.permute.xlu0 %8550
        %8552 = vrot.lane.b32.xlu0 %v8474, 125
        %v8553 = vpop.permute.xlu0 %8552
        %8554 = vrot.lane.b32.xlu0 %v8475, 125
        %v8555 = vpop.permute.xlu0 %8554
        %8572 = vrot.lane.b32.xlu0 %v8460, 122
        %v8573 = vpop.permute.xlu0 %8572
        %8574 = vrot.lane.b32.xlu0 %v8461, 122
        %v8575 = vpop.permute.xlu0 %8574
        %8576 = vrot.lane.b32.xlu0 %v8462, 122
        %v8577 = vpop.permute.xlu0 %8576
        %8578 = vrot.lane.b32.xlu0 %v8463, 122
        %v8579 = vpop.permute.xlu0 %8578
        %8580 = vrot.lane.b32.xlu0 %v8464, 122
        %v8581 = vpop.permute.xlu0 %8580
        %8582 = vrot.lane.b32.xlu0 %v8465, 122
        %v8583 = vpop.permute.xlu0 %8582
        %8584 = vrot.lane.b32.xlu0 %v8466, 122
        %v8585 = vpop.permute.xlu0 %8584
        %8586 = vrot.lane.b32.xlu0 %v8467, 122
        %v8587 = vpop.permute.xlu0 %8586
        %8588 = vrot.lane.b32.xlu0 %v8468, 122
        %v8589 = vpop.permute.xlu0 %8588
        %8590 = vrot.lane.b32.xlu0 %v8469, 122
        %v8591 = vpop.permute.xlu0 %8590
        %8592 = vrot.lane.b32.xlu0 %v8470, 122
        %v8593 = vpop.permute.xlu0 %8592
        %8594 = vrot.lane.b32.xlu0 %v8471, 122
        %v8595 = vpop.permute.xlu0 %8594
        %8596 = vrot.lane.b32.xlu0 %v8472, 122
        %v8597 = vpop.permute.xlu0 %8596
        %8598 = vrot.lane.b32.xlu0 %v8473, 122
        %v8599 = vpop.permute.xlu0 %8598
        %8600 = vrot.lane.b32.xlu0 %v8474, 122
        %v8601 = vpop.permute.xlu0 %8600
        %8602 = vrot.lane.b32.xlu0 %v8475, 122
        %v8603 = vpop.permute.xlu0 %8602
        %8620 = vrot.lane.b32.xlu0 %v838, 125
        %v8621 = vpop.permute.xlu0 %8620
        %8622 = vrot.lane.b32.xlu0 %v839, 125
        %v8623 = vpop.permute.xlu0 %8622
        %8624 = vrot.lane.b32.xlu0 %v840, 125
        %v8625 = vpop.permute.xlu0 %8624
        %8626 = vrot.lane.b32.xlu0 %v841, 125
        %v8627 = vpop.permute.xlu0 %8626
        %8628 = vrot.lane.b32.xlu0 %v842, 125
        %v8629 = vpop.permute.xlu0 %8628
        %8630 = vrot.lane.b32.xlu0 %v843, 125
        %v8631 = vpop.permute.xlu0 %8630
        %8632 = vrot.lane.b32.xlu0 %v844, 125
        %v8633 = vpop.permute.xlu0 %8632
        %8634 = vrot.lane.b32.xlu0 %v845, 125
        %v8635 = vpop.permute.xlu0 %8634
        %8636 = vrot.lane.b32.xlu0 %v846, 125
        %v8637 = vpop.permute.xlu0 %8636
        %8638 = vrot.lane.b32.xlu0 %v847, 125
        %v8639 = vpop.permute.xlu0 %8638
        %8640 = vrot.lane.b32.xlu0 %v848, 125
        %v8641 = vpop.permute.xlu0 %8640
        %8642 = vrot.lane.b32.xlu0 %v849, 125
        %v8643 = vpop.permute.xlu0 %8642
        %8644 = vrot.lane.b32.xlu0 %v850, 125
        %v8645 = vpop.permute.xlu0 %8644
        %8646 = vrot.lane.b32.xlu0 %v851, 125
        %v8647 = vpop.permute.xlu0 %8646
        %8648 = vrot.lane.b32.xlu0 %v852, 125
        %v8649 = vpop.permute.xlu0 %8648
        %8650 = vrot.lane.b32.xlu0 %v853, 125
        %v8651 = vpop.permute.xlu0 %8650
        %8684 = vrot.lane.b32.xlu0 %v8476, 122
        %v8685 = vpop.permute.xlu0 %8684
        %8686 = vrot.lane.b32.xlu0 %v8477, 122
        %v8687 = vpop.permute.xlu0 %8686
        %8688 = vrot.lane.b32.xlu0 %v8478, 122
        %v8689 = vpop.permute.xlu0 %8688
        %8690 = vrot.lane.b32.xlu0 %v8479, 122
        %v8691 = vpop.permute.xlu0 %8690
        %8692 = vrot.lane.b32.xlu0 %v8480, 122
        %v8693 = vpop.permute.xlu0 %8692
        %8694 = vrot.lane.b32.xlu0 %v8481, 122
        %v8695 = vpop.permute.xlu0 %8694
        %8696 = vrot.lane.b32.xlu0 %v8482, 122
        %v8697 = vpop.permute.xlu0 %8696
        %8698 = vrot.lane.b32.xlu0 %v8483, 122
        %v8699 = vpop.permute.xlu0 %8698
        %8700 = vrot.lane.b32.xlu0 %v8484, 122
        %v8701 = vpop.permute.xlu0 %8700
        %8702 = vrot.lane.b32.xlu0 %v8485, 122
        %v8703 = vpop.permute.xlu0 %8702
        %8704 = vrot.lane.b32.xlu0 %v8486, 122
        %v8705 = vpop.permute.xlu0 %8704
        %8706 = vrot.lane.b32.xlu0 %v8487, 122
        %v8707 = vpop.permute.xlu0 %8706
        %8708 = vrot.lane.b32.xlu0 %v8488, 122
        %v8709 = vpop.permute.xlu0 %8708
        %8710 = vrot.lane.b32.xlu0 %v8489, 122
        %v8711 = vpop.permute.xlu0 %8710
        %8712 = vrot.lane.b32.xlu0 %v8490, 122
        %v8713 = vpop.permute.xlu0 %8712
        %8714 = vrot.lane.b32.xlu0 %v8491, 122
        %v8715 = vpop.permute.xlu0 %8714
        %8748 = vrot.lane.b32.xlu0 %v8492, 125
        %v8749 = vpop.permute.xlu0 %8748
        %8750 = vrot.lane.b32.xlu0 %v8493, 125
        %v8751 = vpop.permute.xlu0 %8750
        %8752 = vrot.lane.b32.xlu0 %v8494, 125
        %v8753 = vpop.permute.xlu0 %8752
        %8754 = vrot.lane.b32.xlu0 %v8495, 125
        %v8755 = vpop.permute.xlu0 %8754
        %8756 = vrot.lane.b32.xlu0 %v8496, 125
        %v8757 = vpop.permute.xlu0 %8756
        %8758 = vrot.lane.b32.xlu0 %v8497, 125
        %v8759 = vpop.permute.xlu0 %8758
        %8760 = vrot.lane.b32.xlu0 %v8498, 125
        %v8761 = vpop.permute.xlu0 %8760
        %8762 = vrot.lane.b32.xlu0 %v8499, 125
        %v8763 = vpop.permute.xlu0 %8762
        %8764 = vrot.lane.b32.xlu0 %v8500, 125
        %v8765 = vpop.permute.xlu0 %8764
        %8766 = vrot.lane.b32.xlu0 %v8501, 125
        %v8767 = vpop.permute.xlu0 %8766
        %8768 = vrot.lane.b32.xlu0 %v8502, 125
        %v8769 = vpop.permute.xlu0 %8768
        %8770 = vrot.lane.b32.xlu0 %v8503, 125
        %v8771 = vpop.permute.xlu0 %8770
        %8772 = vrot.lane.b32.xlu0 %v8504, 125
        %v8773 = vpop.permute.xlu0 %8772
        %8774 = vrot.lane.b32.xlu0 %v8505, 125
        %v8775 = vpop.permute.xlu0 %8774
        %8776 = vrot.lane.b32.xlu0 %v8506, 125
        %v8777 = vpop.permute.xlu0 %8776
        %8778 = vrot.lane.b32.xlu0 %v8507, 125
        %v8779 = vpop.permute.xlu0 %8778
        %8796 = vrot.lane.b32.xlu0 %v8492, 122
        %v8797 = vpop.permute.xlu0 %8796
        %8798 = vrot.lane.b32.xlu0 %v8493, 122
        %v8799 = vpop.permute.xlu0 %8798
        %8800 = vrot.lane.b32.xlu0 %v8494, 122
        %v8801 = vpop.permute.xlu0 %8800
        %8802 = vrot.lane.b32.xlu0 %v8495, 122
        %v8803 = vpop.permute.xlu0 %8802
        %8804 = vrot.lane.b32.xlu0 %v8496, 122
        %v8805 = vpop.permute.xlu0 %8804
        %8806 = vrot.lane.b32.xlu0 %v8497, 122
        %v8807 = vpop.permute.xlu0 %8806
        %8808 = vrot.lane.b32.xlu0 %v8498, 122
        %v8809 = vpop.permute.xlu0 %8808
        %8810 = vrot.lane.b32.xlu0 %v8499, 122
        %v8811 = vpop.permute.xlu0 %8810
        %8812 = vrot.lane.b32.xlu0 %v8500, 122
        %v8813 = vpop.permute.xlu0 %8812
        %8814 = vrot.lane.b32.xlu0 %v8501, 122
        %v8815 = vpop.permute.xlu0 %8814
        %8816 = vrot.lane.b32.xlu0 %v8502, 122
        %v8817 = vpop.permute.xlu0 %8816
        %8818 = vrot.lane.b32.xlu0 %v8503, 122
        %v8819 = vpop.permute.xlu0 %8818
        %8820 = vrot.lane.b32.xlu0 %v8504, 122
        %v8821 = vpop.permute.xlu0 %8820
        %8822 = vrot.lane.b32.xlu0 %v8505, 122
        %v8823 = vpop.permute.xlu0 %8822
        %8824 = vrot.lane.b32.xlu0 %v8506, 122
        %v8825 = vpop.permute.xlu0 %8824
        %8826 = vrot.lane.b32.xlu0 %v8507, 122
        %v8827 = vpop.permute.xlu0 %8826
        %v8844 = vcombine.low %v8460, %v8464
        %v8845 = vcombine.high %v8460, %v8464
        %v8847 = vunpack.c.l.s4 1983009808
        %v8848 = vunpack.c.0.s8 %v8847
        %v8849 = vlaneseq
        %v8850 = vshrl.u32 %v8849, 7
        %v8851 = vsub.s32 %v8848, %v8850
        %v8852 = vrot.slane %v8844, %v8851
        %v8854 = vunpack.c.l.s4 1983009808
        %v8855 = vunpack.c.0.s8 %v8854
        %v8856 = vlaneseq
        %v8857 = vshrl.u32 %v8856, 7
        %v8858 = vsub.s32 %v8855, %v8857
        %v8859 = vrot.slane %v8845, %v8858
        %v8860 = vcombine.low %v8462, %v8466
        %v8861 = vcombine.high %v8462, %v8466
        %v8863 = vunpack.c.l.s4 1983009808
        %v8864 = vunpack.c.0.s8 %v8863
        %v8865 = vlaneseq
        %v8866 = vshrl.u32 %v8865, 7
        %v8867 = vsub.s32 %v8864, %v8866
        %v8868 = vrot.slane %v8860, %v8867
        %v8870 = vunpack.c.l.s4 1983009808
        %v8871 = vunpack.c.0.s8 %v8870
        %v8872 = vlaneseq
        %v8873 = vshrl.u32 %v8872, 7
        %v8874 = vsub.s32 %v8871, %v8873
        %v8875 = vrot.slane %v8861, %v8874
        %v8876 = vcombine.low %v8468, %v8472
        %v8877 = vcombine.high %v8468, %v8472
        %v8879 = vunpack.c.l.s4 1983009808
        %v8880 = vunpack.c.0.s8 %v8879
        %v8881 = vlaneseq
        %v8882 = vshrl.u32 %v8881, 7
        %v8883 = vsub.s32 %v8880, %v8882
        %v8884 = vrot.slane %v8876, %v8883
        %v8886 = vunpack.c.l.s4 1983009808
        %v8887 = vunpack.c.0.s8 %v8886
        %v8888 = vlaneseq
        %v8889 = vshrl.u32 %v8888, 7
        %v8890 = vsub.s32 %v8887, %v8889
        %v8891 = vrot.slane %v8877, %v8890
        %v8892 = vcombine.low %v8470, %v8474
        %v8893 = vcombine.high %v8470, %v8474
        %v8895 = vunpack.c.l.s4 1983009808
        %v8896 = vunpack.c.0.s8 %v8895
        %v8897 = vlaneseq
        %v8898 = vshrl.u32 %v8897, 7
        %v8899 = vsub.s32 %v8896, %v8898
        %v8900 = vrot.slane %v8892, %v8899
        %v8902 = vunpack.c.l.s4 1983009808
        %v8903 = vunpack.c.0.s8 %v8902
        %v8904 = vlaneseq
        %v8905 = vshrl.u32 %v8904, 7
        %v8906 = vsub.s32 %v8903, %v8905
        %v8907 = vrot.slane %v8893, %v8906
        %v8908 = vcombine.low %v8852, %v8868
        %v8909 = vcombine.high %v8852, %v8868
        %v8911 = vunpack.c.l.s4 1934713408
        %v8912 = vunpack.c.0.s8 %v8911
        %v8913 = vlaneseq
        %v8914 = vshrl.u32 %v8913, 7
        %v8915 = vsub.s32 %v8912, %v8914
        %v8916 = vrot.slane %v8908, %v8915
        %v8918 = vunpack.c.l.s4 1934713408
        %v8919 = vunpack.c.0.s8 %v8918
        %v8920 = vlaneseq
        %v8921 = vshrl.u32 %v8920, 7
        %v8922 = vsub.s32 %v8919, %v8921
        %v8923 = vrot.slane %v8909, %v8922
        %v8924 = vcombine.low %v8859, %v8875
        %v8925 = vcombine.high %v8859, %v8875
        %v8927 = vunpack.c.l.s4 1934713408
        %v8928 = vunpack.c.0.s8 %v8927
        %v8929 = vlaneseq
        %v8930 = vshrl.u32 %v8929, 7
        %v8931 = vsub.s32 %v8928, %v8930
        %v8932 = vrot.slane %v8924, %v8931
        %v8934 = vunpack.c.l.s4 1934713408
        %v8935 = vunpack.c.0.s8 %v8934
        %v8936 = vlaneseq
        %v8937 = vshrl.u32 %v8936, 7
        %v8938 = vsub.s32 %v8935, %v8937
        %v8939 = vrot.slane %v8925, %v8938
        %v8940 = vcombine.low %v8884, %v8900
        %v8941 = vcombine.high %v8884, %v8900
        %v8943 = vunpack.c.l.s4 1934713408
        %v8944 = vunpack.c.0.s8 %v8943
        %v8945 = vlaneseq
        %v8946 = vshrl.u32 %v8945, 7
        %v8947 = vsub.s32 %v8944, %v8946
        %v8948 = vrot.slane %v8940, %v8947
        %v8950 = vunpack.c.l.s4 1934713408
        %v8951 = vunpack.c.0.s8 %v8950
        %v8952 = vlaneseq
        %v8953 = vshrl.u32 %v8952, 7
        %v8954 = vsub.s32 %v8951, %v8953
        %v8955 = vrot.slane %v8941, %v8954
        %v8956 = vcombine.low %v8891, %v8907
        %v8957 = vcombine.high %v8891, %v8907
        %v8959 = vunpack.c.l.s4 1934713408
        %v8960 = vunpack.c.0.s8 %v8959
        %v8961 = vlaneseq
        %v8962 = vshrl.u32 %v8961, 7
        %v8963 = vsub.s32 %v8960, %v8962
        %v8964 = vrot.slane %v8956, %v8963
        %v8966 = vunpack.c.l.s4 1934713408
        %v8967 = vunpack.c.0.s8 %v8966
        %v8968 = vlaneseq
        %v8969 = vshrl.u32 %v8968, 7
        %v8970 = vsub.s32 %v8967, %v8969
        %v8971 = vrot.slane %v8957, %v8970
        %v8972 = vcombine.low %v8916, %v8948
        %v8973 = vcombine.high %v8916, %v8948
        %v8974 = vcombine.low %v8923, %v8955
        %v8975 = vcombine.high %v8923, %v8955
        %v8976 = vcombine.low %v8932, %v8964
        %v8977 = vcombine.high %v8932, %v8964
        %v8978 = vcombine.low %v8939, %v8971
        %v8979 = vcombine.high %v8939, %v8971
        %v8980 = vcombine.low %v8525, %v8533
        %v8981 = vcombine.high %v8525, %v8533
        %v8983 = vunpack.c.l.s4 1983009808
        %v8984 = vunpack.c.0.s8 %v8983
        %v8985 = vlaneseq
        %v8986 = vshrl.u32 %v8985, 7
        %v8987 = vsub.s32 %v8984, %v8986
        %v8988 = vrot.slane %v8980, %v8987
        %v8990 = vunpack.c.l.s4 1983009808
        %v8991 = vunpack.c.0.s8 %v8990
        %v8992 = vlaneseq
        %v8993 = vshrl.u32 %v8992, 7
        %v8994 = vsub.s32 %v8991, %v8993
        %v8995 = vrot.slane %v8981, %v8994
        %v8996 = vcombine.low %v8529, %v8537
        %v8997 = vcombine.high %v8529, %v8537
        %v8999 = vunpack.c.l.s4 1983009808
        %v9000 = vunpack.c.0.s8 %v8999
        %v9001 = vlaneseq
        %v9002 = vshrl.u32 %v9001, 7
        %v9003 = vsub.s32 %v9000, %v9002
        %v9004 = vrot.slane %v8996, %v9003
        %v9006 = vunpack.c.l.s4 1983009808
        %v9007 = vunpack.c.0.s8 %v9006
        %v9008 = vlaneseq
        %v9009 = vshrl.u32 %v9008, 7
        %v9010 = vsub.s32 %v9007, %v9009
        %v9011 = vrot.slane %v8997, %v9010
        %v9012 = vcombine.low %v8541, %v8549
        %v9013 = vcombine.high %v8541, %v8549
        %v9015 = vunpack.c.l.s4 1983009808
        %v9016 = vunpack.c.0.s8 %v9015
        %v9017 = vlaneseq
        %v9018 = vshrl.u32 %v9017, 7
        %v9019 = vsub.s32 %v9016, %v9018
        %v9020 = vrot.slane %v9012, %v9019
        %v9022 = vunpack.c.l.s4 1983009808
        %v9023 = vunpack.c.0.s8 %v9022
        %v9024 = vlaneseq
        %v9025 = vshrl.u32 %v9024, 7
        %v9026 = vsub.s32 %v9023, %v9025
        %v9027 = vrot.slane %v9013, %v9026
        %v9028 = vcombine.low %v8545, %v8553
        %v9029 = vcombine.high %v8545, %v8553
        %v9031 = vunpack.c.l.s4 1983009808
        %v9032 = vunpack.c.0.s8 %v9031
        %v9033 = vlaneseq
        %v9034 = vshrl.u32 %v9033, 7
        %v9035 = vsub.s32 %v9032, %v9034
        %v9036 = vrot.slane %v9028, %v9035
        %v9038 = vunpack.c.l.s4 1983009808
        %v9039 = vunpack.c.0.s8 %v9038
        %v9040 = vlaneseq
        %v9041 = vshrl.u32 %v9040, 7
        %v9042 = vsub.s32 %v9039, %v9041
        %v9043 = vrot.slane %v9029, %v9042
        %v9044 = vcombine.low %v8988, %v9004
        %v9045 = vcombine.high %v8988, %v9004
        %v9047 = vunpack.c.l.s4 1934713408
        %v9048 = vunpack.c.0.s8 %v9047
        %v9049 = vlaneseq
        %v9050 = vshrl.u32 %v9049, 7
        %v9051 = vsub.s32 %v9048, %v9050
        %v9052 = vrot.slane %v9044, %v9051
        %v9054 = vunpack.c.l.s4 1934713408
        %v9055 = vunpack.c.0.s8 %v9054
        %v9056 = vlaneseq
        %v9057 = vshrl.u32 %v9056, 7
        %v9058 = vsub.s32 %v9055, %v9057
        %v9059 = vrot.slane %v9045, %v9058
        %v9060 = vcombine.low %v8995, %v9011
        %v9061 = vcombine.high %v8995, %v9011
        %v9063 = vunpack.c.l.s4 1934713408
        %v9064 = vunpack.c.0.s8 %v9063
        %v9065 = vlaneseq
        %v9066 = vshrl.u32 %v9065, 7
        %v9067 = vsub.s32 %v9064, %v9066
        %v9068 = vrot.slane %v9060, %v9067
        %v9070 = vunpack.c.l.s4 1934713408
        %v9071 = vunpack.c.0.s8 %v9070
        %v9072 = vlaneseq
        %v9073 = vshrl.u32 %v9072, 7
        %v9074 = vsub.s32 %v9071, %v9073
        %v9075 = vrot.slane %v9061, %v9074
        %v9076 = vcombine.low %v9020, %v9036
        %v9077 = vcombine.high %v9020, %v9036
        %v9079 = vunpack.c.l.s4 1934713408
        %v9080 = vunpack.c.0.s8 %v9079
        %v9081 = vlaneseq
        %v9082 = vshrl.u32 %v9081, 7
        %v9083 = vsub.s32 %v9080, %v9082
        %v9084 = vrot.slane %v9076, %v9083
        %v9086 = vunpack.c.l.s4 1934713408
        %v9087 = vunpack.c.0.s8 %v9086
        %v9088 = vlaneseq
        %v9089 = vshrl.u32 %v9088, 7
        %v9090 = vsub.s32 %v9087, %v9089
        %v9091 = vrot.slane %v9077, %v9090
        %v9092 = vcombine.low %v9027, %v9043
        %v9093 = vcombine.high %v9027, %v9043
        %v9095 = vunpack.c.l.s4 1934713408
        %v9096 = vunpack.c.0.s8 %v9095
        %v9097 = vlaneseq
        %v9098 = vshrl.u32 %v9097, 7
        %v9099 = vsub.s32 %v9096, %v9098
        %v9100 = vrot.slane %v9092, %v9099
        %v9102 = vunpack.c.l.s4 1934713408
        %v9103 = vunpack.c.0.s8 %v9102
        %v9104 = vlaneseq
        %v9105 = vshrl.u32 %v9104, 7
        %v9106 = vsub.s32 %v9103, %v9105
        %v9107 = vrot.slane %v9093, %v9106
        %v9108 = vcombine.low %v9052, %v9084
        %v9109 = vcombine.high %v9052, %v9084
        %v9110 = vcombine.low %v9059, %v9091
        %v9111 = vcombine.high %v9059, %v9091
        %v9112 = vcombine.low %v9068, %v9100
        %v9113 = vcombine.high %v9068, %v9100
        %v9114 = vcombine.low %v9075, %v9107
        %v9115 = vcombine.high %v9075, %v9107
        %v9116 = vcombine.low %v8573, %v8581
        %v9117 = vcombine.high %v8573, %v8581
        %v9119 = vunpack.c.l.s4 1983009808
        %v9120 = vunpack.c.0.s8 %v9119
        %v9121 = vlaneseq
        %v9122 = vshrl.u32 %v9121, 7
        %v9123 = vsub.s32 %v9120, %v9122
        %v9124 = vrot.slane %v9116, %v9123
        %v9126 = vunpack.c.l.s4 1983009808
        %v9127 = vunpack.c.0.s8 %v9126
        %v9128 = vlaneseq
        %v9129 = vshrl.u32 %v9128, 7
        %v9130 = vsub.s32 %v9127, %v9129
        %v9131 = vrot.slane %v9117, %v9130
        %v9132 = vcombine.low %v8577, %v8585
        %v9133 = vcombine.high %v8577, %v8585
        %v9135 = vunpack.c.l.s4 1983009808
        %v9136 = vunpack.c.0.s8 %v9135
        %v9137 = vlaneseq
        %v9138 = vshrl.u32 %v9137, 7
        %v9139 = vsub.s32 %v9136, %v9138
        %v9140 = vrot.slane %v9132, %v9139
        %v9142 = vunpack.c.l.s4 1983009808
        %v9143 = vunpack.c.0.s8 %v9142
        %v9144 = vlaneseq
        %v9145 = vshrl.u32 %v9144, 7
        %v9146 = vsub.s32 %v9143, %v9145
        %v9147 = vrot.slane %v9133, %v9146
        %v9148 = vcombine.low %v8589, %v8597
        %v9149 = vcombine.high %v8589, %v8597
        %v9151 = vunpack.c.l.s4 1983009808
        %v9152 = vunpack.c.0.s8 %v9151
        %v9153 = vlaneseq
        %v9154 = vshrl.u32 %v9153, 7
        %v9155 = vsub.s32 %v9152, %v9154
        %v9156 = vrot.slane %v9148, %v9155
        %v9158 = vunpack.c.l.s4 1983009808
        %v9159 = vunpack.c.0.s8 %v9158
        %v9160 = vlaneseq
        %v9161 = vshrl.u32 %v9160, 7
        %v9162 = vsub.s32 %v9159, %v9161
        %v9163 = vrot.slane %v9149, %v9162
        %v9164 = vcombine.low %v8593, %v8601
        %v9165 = vcombine.high %v8593, %v8601
        %v9167 = vunpack.c.l.s4 1983009808
        %v9168 = vunpack.c.0.s8 %v9167
        %v9169 = vlaneseq
        %v9170 = vshrl.u32 %v9169, 7
        %v9171 = vsub.s32 %v9168, %v9170
        %v9172 = vrot.slane %v9164, %v9171
        %v9174 = vunpack.c.l.s4 1983009808
        %v9175 = vunpack.c.0.s8 %v9174
        %v9176 = vlaneseq
        %v9177 = vshrl.u32 %v9176, 7
        %v9178 = vsub.s32 %v9175, %v9177
        %v9179 = vrot.slane %v9165, %v9178
        %v9180 = vcombine.low %v9124, %v9140
        %v9181 = vcombine.high %v9124, %v9140
        %v9183 = vunpack.c.l.s4 1934713408
        %v9184 = vunpack.c.0.s8 %v9183
        %v9185 = vlaneseq
        %v9186 = vshrl.u32 %v9185, 7
        %v9187 = vsub.s32 %v9184, %v9186
        %v9188 = vrot.slane %v9180, %v9187
        %v9190 = vunpack.c.l.s4 1934713408
        %v9191 = vunpack.c.0.s8 %v9190
        %v9192 = vlaneseq
        %v9193 = vshrl.u32 %v9192, 7
        %v9194 = vsub.s32 %v9191, %v9193
        %v9195 = vrot.slane %v9181, %v9194
        %v9196 = vcombine.low %v9131, %v9147
        %v9197 = vcombine.high %v9131, %v9147
        %v9199 = vunpack.c.l.s4 1934713408
        %v9200 = vunpack.c.0.s8 %v9199
        %v9201 = vlaneseq
        %v9202 = vshrl.u32 %v9201, 7
        %v9203 = vsub.s32 %v9200, %v9202
        %v9204 = vrot.slane %v9196, %v9203
        %v9206 = vunpack.c.l.s4 1934713408
        %v9207 = vunpack.c.0.s8 %v9206
        %v9208 = vlaneseq
        %v9209 = vshrl.u32 %v9208, 7
        %v9210 = vsub.s32 %v9207, %v9209
        %v9211 = vrot.slane %v9197, %v9210
        %v9212 = vcombine.low %v9156, %v9172
        %v9213 = vcombine.high %v9156, %v9172
        %v9215 = vunpack.c.l.s4 1934713408
        %v9216 = vunpack.c.0.s8 %v9215
        %v9217 = vlaneseq
        %v9218 = vshrl.u32 %v9217, 7
        %v9219 = vsub.s32 %v9216, %v9218
        %v9220 = vrot.slane %v9212, %v9219
        %v9222 = vunpack.c.l.s4 1934713408
        %v9223 = vunpack.c.0.s8 %v9222
        %v9224 = vlaneseq
        %v9225 = vshrl.u32 %v9224, 7
        %v9226 = vsub.s32 %v9223, %v9225
        %v9227 = vrot.slane %v9213, %v9226
        %v9228 = vcombine.low %v9163, %v9179
        %v9229 = vcombine.high %v9163, %v9179
        %v9231 = vunpack.c.l.s4 1934713408
        %v9232 = vunpack.c.0.s8 %v9231
        %v9233 = vlaneseq
        %v9234 = vshrl.u32 %v9233, 7
        %v9235 = vsub.s32 %v9232, %v9234
        %v9236 = vrot.slane %v9228, %v9235
        %v9238 = vunpack.c.l.s4 1934713408
        %v9239 = vunpack.c.0.s8 %v9238
        %v9240 = vlaneseq
        %v9241 = vshrl.u32 %v9240, 7
        %v9242 = vsub.s32 %v9239, %v9241
        %v9243 = vrot.slane %v9229, %v9242
        %v9244 = vcombine.low %v9188, %v9220
        %v9245 = vcombine.high %v9188, %v9220
        %v9246 = vcombine.low %v9195, %v9227
        %v9247 = vcombine.high %v9195, %v9227
        %v9248 = vcombine.low %v9204, %v9236
        %v9249 = vcombine.high %v9204, %v9236
        %v9250 = vcombine.low %v9211, %v9243
        %v9251 = vcombine.high %v9211, %v9243
        %v9252 = vcombine.low %v8476, %v8480
        %v9253 = vcombine.high %v8476, %v8480
        %v9255 = vunpack.c.l.s4 1983009808
        %v9256 = vunpack.c.0.s8 %v9255
        %v9257 = vlaneseq
        %v9258 = vshrl.u32 %v9257, 7
        %v9259 = vsub.s32 %v9256, %v9258
        %v9260 = vrot.slane %v9252, %v9259
        %v9262 = vunpack.c.l.s4 1983009808
        %v9263 = vunpack.c.0.s8 %v9262
        %v9264 = vlaneseq
        %v9265 = vshrl.u32 %v9264, 7
        %v9266 = vsub.s32 %v9263, %v9265
        %v9267 = vrot.slane %v9253, %v9266
        %v9268 = vcombine.low %v8478, %v8482
        %v9269 = vcombine.high %v8478, %v8482
        %v9271 = vunpack.c.l.s4 1983009808
        %v9272 = vunpack.c.0.s8 %v9271
        %v9273 = vlaneseq
        %v9274 = vshrl.u32 %v9273, 7
        %v9275 = vsub.s32 %v9272, %v9274
        %v9276 = vrot.slane %v9268, %v9275
        %v9278 = vunpack.c.l.s4 1983009808
        %v9279 = vunpack.c.0.s8 %v9278
        %v9280 = vlaneseq
        %v9281 = vshrl.u32 %v9280, 7
        %v9282 = vsub.s32 %v9279, %v9281
        %v9283 = vrot.slane %v9269, %v9282
        %v9284 = vcombine.low %v8484, %v8488
        %v9285 = vcombine.high %v8484, %v8488
        %v9287 = vunpack.c.l.s4 1983009808
        %v9288 = vunpack.c.0.s8 %v9287
        %v9289 = vlaneseq
        %v9290 = vshrl.u32 %v9289, 7
        %v9291 = vsub.s32 %v9288, %v9290
        %v9292 = vrot.slane %v9284, %v9291
        %v9294 = vunpack.c.l.s4 1983009808
        %v9295 = vunpack.c.0.s8 %v9294
        %v9296 = vlaneseq
        %v9297 = vshrl.u32 %v9296, 7
        %v9298 = vsub.s32 %v9295, %v9297
        %v9299 = vrot.slane %v9285, %v9298
        %v9300 = vcombine.low %v8486, %v8490
        %v9301 = vcombine.high %v8486, %v8490
        %v9303 = vunpack.c.l.s4 1983009808
        %v9304 = vunpack.c.0.s8 %v9303
        %v9305 = vlaneseq
        %v9306 = vshrl.u32 %v9305, 7
        %v9307 = vsub.s32 %v9304, %v9306
        %v9308 = vrot.slane %v9300, %v9307
        %v9310 = vunpack.c.l.s4 1983009808
        %v9311 = vunpack.c.0.s8 %v9310
        %v9312 = vlaneseq
        %v9313 = vshrl.u32 %v9312, 7
        %v9314 = vsub.s32 %v9311, %v9313
        %v9315 = vrot.slane %v9301, %v9314
        %v9316 = vcombine.low %v9260, %v9276
        %v9317 = vcombine.high %v9260, %v9276
        %v9319 = vunpack.c.l.s4 1934713408
        %v9320 = vunpack.c.0.s8 %v9319
        %v9321 = vlaneseq
        %v9322 = vshrl.u32 %v9321, 7
        %v9323 = vsub.s32 %v9320, %v9322
        %v9324 = vrot.slane %v9316, %v9323
        %v9326 = vunpack.c.l.s4 1934713408
        %v9327 = vunpack.c.0.s8 %v9326
        %v9328 = vlaneseq
        %v9329 = vshrl.u32 %v9328, 7
        %v9330 = vsub.s32 %v9327, %v9329
        %v9331 = vrot.slane %v9317, %v9330
        %v9332 = vcombine.low %v9267, %v9283
        %v9333 = vcombine.high %v9267, %v9283
        %v9335 = vunpack.c.l.s4 1934713408
        %v9336 = vunpack.c.0.s8 %v9335
        %v9337 = vlaneseq
        %v9338 = vshrl.u32 %v9337, 7
        %v9339 = vsub.s32 %v9336, %v9338
        %v9340 = vrot.slane %v9332, %v9339
        %v9342 = vunpack.c.l.s4 1934713408
        %v9343 = vunpack.c.0.s8 %v9342
        %v9344 = vlaneseq
        %v9345 = vshrl.u32 %v9344, 7
        %v9346 = vsub.s32 %v9343, %v9345
        %v9347 = vrot.slane %v9333, %v9346
        %v9348 = vcombine.low %v9292, %v9308
        %v9349 = vcombine.high %v9292, %v9308
        %v9351 = vunpack.c.l.s4 1934713408
        %v9352 = vunpack.c.0.s8 %v9351
        %v9353 = vlaneseq
        %v9354 = vshrl.u32 %v9353, 7
        %v9355 = vsub.s32 %v9352, %v9354
        %v9356 = vrot.slane %v9348, %v9355
        %v9358 = vunpack.c.l.s4 1934713408
        %v9359 = vunpack.c.0.s8 %v9358
        %v9360 = vlaneseq
        %v9361 = vshrl.u32 %v9360, 7
        %v9362 = vsub.s32 %v9359, %v9361
        %v9363 = vrot.slane %v9349, %v9362
        %v9364 = vcombine.low %v9299, %v9315
        %v9365 = vcombine.high %v9299, %v9315
        %v9367 = vunpack.c.l.s4 1934713408
        %v9368 = vunpack.c.0.s8 %v9367
        %v9369 = vlaneseq
        %v9370 = vshrl.u32 %v9369, 7
        %v9371 = vsub.s32 %v9368, %v9370
        %v9372 = vrot.slane %v9364, %v9371
        %v9374 = vunpack.c.l.s4 1934713408
        %v9375 = vunpack.c.0.s8 %v9374
        %v9376 = vlaneseq
        %v9377 = vshrl.u32 %v9376, 7
        %v9378 = vsub.s32 %v9375, %v9377
        %v9379 = vrot.slane %v9365, %v9378
        %v9380 = vcombine.low %v9324, %v9356
        %v9381 = vcombine.high %v9324, %v9356
        %v9382 = vcombine.low %v9331, %v9363
        %v9383 = vcombine.high %v9331, %v9363
        %v9384 = vcombine.low %v9340, %v9372
        %v9385 = vcombine.high %v9340, %v9372
        %v9386 = vcombine.low %v9347, %v9379
        %v9387 = vcombine.high %v9347, %v9379
        %v9388 = vcombine.low %v8621, %v8629
        %v9389 = vcombine.high %v8621, %v8629
        %v9391 = vunpack.c.l.s4 1983009808
        %v9392 = vunpack.c.0.s8 %v9391
        %v9393 = vlaneseq
        %v9394 = vshrl.u32 %v9393, 7
        %v9395 = vsub.s32 %v9392, %v9394
        %v9396 = vrot.slane %v9388, %v9395
        %v9398 = vunpack.c.l.s4 1983009808
        %v9399 = vunpack.c.0.s8 %v9398
        %v9400 = vlaneseq
        %v9401 = vshrl.u32 %v9400, 7
        %v9402 = vsub.s32 %v9399, %v9401
        %v9403 = vrot.slane %v9389, %v9402
        %v9404 = vcombine.low %v8625, %v8633
        %v9405 = vcombine.high %v8625, %v8633
        %v9407 = vunpack.c.l.s4 1983009808
        %v9408 = vunpack.c.0.s8 %v9407
        %v9409 = vlaneseq
        %v9410 = vshrl.u32 %v9409, 7
        %v9411 = vsub.s32 %v9408, %v9410
        %v9412 = vrot.slane %v9404, %v9411
        %v9414 = vunpack.c.l.s4 1983009808
        %v9415 = vunpack.c.0.s8 %v9414
        %v9416 = vlaneseq
        %v9417 = vshrl.u32 %v9416, 7
        %v9418 = vsub.s32 %v9415, %v9417
        %v9419 = vrot.slane %v9405, %v9418
        %v9420 = vcombine.low %v8637, %v8645
        %v9421 = vcombine.high %v8637, %v8645
        %v9423 = vunpack.c.l.s4 1983009808
        %v9424 = vunpack.c.0.s8 %v9423
        %v9425 = vlaneseq
        %v9426 = vshrl.u32 %v9425, 7
        %v9427 = vsub.s32 %v9424, %v9426
        %v9428 = vrot.slane %v9420, %v9427
        %v9430 = vunpack.c.l.s4 1983009808
        %v9431 = vunpack.c.0.s8 %v9430
        %v9432 = vlaneseq
        %v9433 = vshrl.u32 %v9432, 7
        %v9434 = vsub.s32 %v9431, %v9433
        %v9435 = vrot.slane %v9421, %v9434
        %v9436 = vcombine.low %v8641, %v8649
        %v9437 = vcombine.high %v8641, %v8649
        %v9439 = vunpack.c.l.s4 1983009808
        %v9440 = vunpack.c.0.s8 %v9439
        %v9441 = vlaneseq
        %v9442 = vshrl.u32 %v9441, 7
        %v9443 = vsub.s32 %v9440, %v9442
        %v9444 = vrot.slane %v9436, %v9443
        %v9446 = vunpack.c.l.s4 1983009808
        %v9447 = vunpack.c.0.s8 %v9446
        %v9448 = vlaneseq
        %v9449 = vshrl.u32 %v9448, 7
        %v9450 = vsub.s32 %v9447, %v9449
        %v9451 = vrot.slane %v9437, %v9450
        %v9452 = vcombine.low %v9396, %v9412
        %v9453 = vcombine.high %v9396, %v9412
        %v9455 = vunpack.c.l.s4 1934713408
        %v9456 = vunpack.c.0.s8 %v9455
        %v9457 = vlaneseq
        %v9458 = vshrl.u32 %v9457, 7
        %v9459 = vsub.s32 %v9456, %v9458
        %v9460 = vrot.slane %v9452, %v9459
        %v9462 = vunpack.c.l.s4 1934713408
        %v9463 = vunpack.c.0.s8 %v9462
        %v9464 = vlaneseq
        %v9465 = vshrl.u32 %v9464, 7
        %v9466 = vsub.s32 %v9463, %v9465
        %v9467 = vrot.slane %v9453, %v9466
        %v9468 = vcombine.low %v9403, %v9419
        %v9469 = vcombine.high %v9403, %v9419
        %v9471 = vunpack.c.l.s4 1934713408
        %v9472 = vunpack.c.0.s8 %v9471
        %v9473 = vlaneseq
        %v9474 = vshrl.u32 %v9473, 7
        %v9475 = vsub.s32 %v9472, %v9474
        %v9476 = vrot.slane %v9468, %v9475
        %v9478 = vunpack.c.l.s4 1934713408
        %v9479 = vunpack.c.0.s8 %v9478
        %v9480 = vlaneseq
        %v9481 = vshrl.u32 %v9480, 7
        %v9482 = vsub.s32 %v9479, %v9481
        %v9483 = vrot.slane %v9469, %v9482
        %v9484 = vcombine.low %v9428, %v9444
        %v9485 = vcombine.high %v9428, %v9444
        %v9487 = vunpack.c.l.s4 1934713408
        %v9488 = vunpack.c.0.s8 %v9487
        %v9489 = vlaneseq
        %v9490 = vshrl.u32 %v9489, 7
        %v9491 = vsub.s32 %v9488, %v9490
        %v9492 = vrot.slane %v9484, %v9491
        %v9494 = vunpack.c.l.s4 1934713408
        %v9495 = vunpack.c.0.s8 %v9494
        %v9496 = vlaneseq
        %v9497 = vshrl.u32 %v9496, 7
        %v9498 = vsub.s32 %v9495, %v9497
        %v9499 = vrot.slane %v9485, %v9498
        %v9500 = vcombine.low %v9435, %v9451
        %v9501 = vcombine.high %v9435, %v9451
        %v9503 = vunpack.c.l.s4 1934713408
        %v9504 = vunpack.c.0.s8 %v9503
        %v9505 = vlaneseq
        %v9506 = vshrl.u32 %v9505, 7
        %v9507 = vsub.s32 %v9504, %v9506
        %v9508 = vrot.slane %v9500, %v9507
        %v9510 = vunpack.c.l.s4 1934713408
        %v9511 = vunpack.c.0.s8 %v9510
        %v9512 = vlaneseq
        %v9513 = vshrl.u32 %v9512, 7
        %v9514 = vsub.s32 %v9511, %v9513
        %v9515 = vrot.slane %v9501, %v9514
        %v9516 = vcombine.low %v9460, %v9492
        %v9517 = vcombine.high %v9460, %v9492
        %v9518 = vcombine.low %v9467, %v9499
        %v9519 = vcombine.high %v9467, %v9499
        %v9520 = vcombine.low %v9476, %v9508
        %v9521 = vcombine.high %v9476, %v9508
        %v9522 = vcombine.low %v9483, %v9515
        %v9523 = vcombine.high %v9483, %v9515
        %v9524 = vcombine.low %v8685, %v8693
        %v9525 = vcombine.high %v8685, %v8693
        %v9527 = vunpack.c.l.s4 1983009808
        %v9528 = vunpack.c.0.s8 %v9527
        %v9529 = vlaneseq
        %v9530 = vshrl.u32 %v9529, 7
        %v9531 = vsub.s32 %v9528, %v9530
        %v9532 = vrot.slane %v9524, %v9531
        %v9534 = vunpack.c.l.s4 1983009808
        %v9535 = vunpack.c.0.s8 %v9534
        %v9536 = vlaneseq
        %v9537 = vshrl.u32 %v9536, 7
        %v9538 = vsub.s32 %v9535, %v9537
        %v9539 = vrot.slane %v9525, %v9538
        %v9540 = vcombine.low %v8689, %v8697
        %v9541 = vcombine.high %v8689, %v8697
        %v9543 = vunpack.c.l.s4 1983009808
        %v9544 = vunpack.c.0.s8 %v9543
        %v9545 = vlaneseq
        %v9546 = vshrl.u32 %v9545, 7
        %v9547 = vsub.s32 %v9544, %v9546
        %v9548 = vrot.slane %v9540, %v9547
        %v9550 = vunpack.c.l.s4 1983009808
        %v9551 = vunpack.c.0.s8 %v9550
        %v9552 = vlaneseq
        %v9553 = vshrl.u32 %v9552, 7
        %v9554 = vsub.s32 %v9551, %v9553
        %v9555 = vrot.slane %v9541, %v9554
        %v9556 = vcombine.low %v8701, %v8709
        %v9557 = vcombine.high %v8701, %v8709
        %v9559 = vunpack.c.l.s4 1983009808
        %v9560 = vunpack.c.0.s8 %v9559
        %v9561 = vlaneseq
        %v9562 = vshrl.u32 %v9561, 7
        %v9563 = vsub.s32 %v9560, %v9562
        %v9564 = vrot.slane %v9556, %v9563
        %v9566 = vunpack.c.l.s4 1983009808
        %v9567 = vunpack.c.0.s8 %v9566
        %v9568 = vlaneseq
        %v9569 = vshrl.u32 %v9568, 7
        %v9570 = vsub.s32 %v9567, %v9569
        %v9571 = vrot.slane %v9557, %v9570
        %v9572 = vcombine.low %v8705, %v8713
        %v9573 = vcombine.high %v8705, %v8713
        %v9575 = vunpack.c.l.s4 1983009808
        %v9576 = vunpack.c.0.s8 %v9575
        %v9577 = vlaneseq
        %v9578 = vshrl.u32 %v9577, 7
        %v9579 = vsub.s32 %v9576, %v9578
        %v9580 = vrot.slane %v9572, %v9579
        %v9582 = vunpack.c.l.s4 1983009808
        %v9583 = vunpack.c.0.s8 %v9582
        %v9584 = vlaneseq
        %v9585 = vshrl.u32 %v9584, 7
        %v9586 = vsub.s32 %v9583, %v9585
        %v9587 = vrot.slane %v9573, %v9586
        %v9588 = vcombine.low %v9532, %v9548
        %v9589 = vcombine.high %v9532, %v9548
        %v9591 = vunpack.c.l.s4 1934713408
        %v9592 = vunpack.c.0.s8 %v9591
        %v9593 = vlaneseq
        %v9594 = vshrl.u32 %v9593, 7
        %v9595 = vsub.s32 %v9592, %v9594
        %v9596 = vrot.slane %v9588, %v9595
        %v9598 = vunpack.c.l.s4 1934713408
        %v9599 = vunpack.c.0.s8 %v9598
        %v9600 = vlaneseq
        %v9601 = vshrl.u32 %v9600, 7
        %v9602 = vsub.s32 %v9599, %v9601
        %v9603 = vrot.slane %v9589, %v9602
        %v9604 = vcombine.low %v9539, %v9555
        %v9605 = vcombine.high %v9539, %v9555
        %v9607 = vunpack.c.l.s4 1934713408
        %v9608 = vunpack.c.0.s8 %v9607
        %v9609 = vlaneseq
        %v9610 = vshrl.u32 %v9609, 7
        %v9611 = vsub.s32 %v9608, %v9610
        %v9612 = vrot.slane %v9604, %v9611
        %v9614 = vunpack.c.l.s4 1934713408
        %v9615 = vunpack.c.0.s8 %v9614
        %v9616 = vlaneseq
        %v9617 = vshrl.u32 %v9616, 7
        %v9618 = vsub.s32 %v9615, %v9617
        %v9619 = vrot.slane %v9605, %v9618
        %v9620 = vcombine.low %v9564, %v9580
        %v9621 = vcombine.high %v9564, %v9580
        %v9623 = vunpack.c.l.s4 1934713408
        %v9624 = vunpack.c.0.s8 %v9623
        %v9625 = vlaneseq
        %v9626 = vshrl.u32 %v9625, 7
        %v9627 = vsub.s32 %v9624, %v9626
        %v9628 = vrot.slane %v9620, %v9627
        %v9630 = vunpack.c.l.s4 1934713408
        %v9631 = vunpack.c.0.s8 %v9630
        %v9632 = vlaneseq
        %v9633 = vshrl.u32 %v9632, 7
        %v9634 = vsub.s32 %v9631, %v9633
        %v9635 = vrot.slane %v9621, %v9634
        %v9636 = vcombine.low %v9571, %v9587
        %v9637 = vcombine.high %v9571, %v9587
        %v9639 = vunpack.c.l.s4 1934713408
        %v9640 = vunpack.c.0.s8 %v9639
        %v9641 = vlaneseq
        %v9642 = vshrl.u32 %v9641, 7
        %v9643 = vsub.s32 %v9640, %v9642
        %v9644 = vrot.slane %v9636, %v9643
        %v9646 = vunpack.c.l.s4 1934713408
        %v9647 = vunpack.c.0.s8 %v9646
        %v9648 = vlaneseq
        %v9649 = vshrl.u32 %v9648, 7
        %v9650 = vsub.s32 %v9647, %v9649
        %v9651 = vrot.slane %v9637, %v9650
        %v9652 = vcombine.low %v9596, %v9628
        %v9653 = vcombine.high %v9596, %v9628
        %v9654 = vcombine.low %v9603, %v9635
        %v9655 = vcombine.high %v9603, %v9635
        %v9656 = vcombine.low %v9612, %v9644
        %v9657 = vcombine.high %v9612, %v9644
        %v9658 = vcombine.low %v9619, %v9651
        %v9659 = vcombine.high %v9619, %v9651
        %v9660 = vcombine.low %v8492, %v8496
        %v9661 = vcombine.high %v8492, %v8496
        %v9663 = vunpack.c.l.s4 1983009808
        %v9664 = vunpack.c.0.s8 %v9663
        %v9665 = vlaneseq
        %v9666 = vshrl.u32 %v9665, 7
        %v9667 = vsub.s32 %v9664, %v9666
        %v9668 = vrot.slane %v9660, %v9667
        %v9670 = vunpack.c.l.s4 1983009808
        %v9671 = vunpack.c.0.s8 %v9670
        %v9672 = vlaneseq
        %v9673 = vshrl.u32 %v9672, 7
        %v9674 = vsub.s32 %v9671, %v9673
        %v9675 = vrot.slane %v9661, %v9674
        %v9676 = vcombine.low %v8494, %v8498
        %v9677 = vcombine.high %v8494, %v8498
        %v9679 = vunpack.c.l.s4 1983009808
        %v9680 = vunpack.c.0.s8 %v9679
        %v9681 = vlaneseq
        %v9682 = vshrl.u32 %v9681, 7
        %v9683 = vsub.s32 %v9680, %v9682
        %v9684 = vrot.slane %v9676, %v9683
        %v9686 = vunpack.c.l.s4 1983009808
        %v9687 = vunpack.c.0.s8 %v9686
        %v9688 = vlaneseq
        %v9689 = vshrl.u32 %v9688, 7
        %v9690 = vsub.s32 %v9687, %v9689
        %v9691 = vrot.slane %v9677, %v9690
        %v9692 = vcombine.low %v8500, %v8504
        %v9693 = vcombine.high %v8500, %v8504
        %v9695 = vunpack.c.l.s4 1983009808
        %v9696 = vunpack.c.0.s8 %v9695
        %v9697 = vlaneseq
        %v9698 = vshrl.u32 %v9697, 7
        %v9699 = vsub.s32 %v9696, %v9698
        %v9700 = vrot.slane %v9692, %v9699
        %v9702 = vunpack.c.l.s4 1983009808
        %v9703 = vunpack.c.0.s8 %v9702
        %v9704 = vlaneseq
        %v9705 = vshrl.u32 %v9704, 7
        %v9706 = vsub.s32 %v9703, %v9705
        %v9707 = vrot.slane %v9693, %v9706
        %v9708 = vcombine.low %v8502, %v8506
        %v9709 = vcombine.high %v8502, %v8506
        %v9711 = vunpack.c.l.s4 1983009808
        %v9712 = vunpack.c.0.s8 %v9711
        %v9713 = vlaneseq
        %v9714 = vshrl.u32 %v9713, 7
        %v9715 = vsub.s32 %v9712, %v9714
        %v9716 = vrot.slane %v9708, %v9715
        %v9718 = vunpack.c.l.s4 1983009808
        %v9719 = vunpack.c.0.s8 %v9718
        %v9720 = vlaneseq
        %v9721 = vshrl.u32 %v9720, 7
        %v9722 = vsub.s32 %v9719, %v9721
        %v9723 = vrot.slane %v9709, %v9722
        %v9724 = vcombine.low %v9668, %v9684
        %v9725 = vcombine.high %v9668, %v9684
        %v9727 = vunpack.c.l.s4 1934713408
        %v9728 = vunpack.c.0.s8 %v9727
        %v9729 = vlaneseq
        %v9730 = vshrl.u32 %v9729, 7
        %v9731 = vsub.s32 %v9728, %v9730
        %v9732 = vrot.slane %v9724, %v9731
        %v9734 = vunpack.c.l.s4 1934713408
        %v9735 = vunpack.c.0.s8 %v9734
        %v9736 = vlaneseq
        %v9737 = vshrl.u32 %v9736, 7
        %v9738 = vsub.s32 %v9735, %v9737
        %v9739 = vrot.slane %v9725, %v9738
        %v9740 = vcombine.low %v9675, %v9691
        %v9741 = vcombine.high %v9675, %v9691
        %v9743 = vunpack.c.l.s4 1934713408
        %v9744 = vunpack.c.0.s8 %v9743
        %v9745 = vlaneseq
        %v9746 = vshrl.u32 %v9745, 7
        %v9747 = vsub.s32 %v9744, %v9746
        %v9748 = vrot.slane %v9740, %v9747
        %v9750 = vunpack.c.l.s4 1934713408
        %v9751 = vunpack.c.0.s8 %v9750
        %v9752 = vlaneseq
        %v9753 = vshrl.u32 %v9752, 7
        %v9754 = vsub.s32 %v9751, %v9753
        %v9755 = vrot.slane %v9741, %v9754
        %v9756 = vcombine.low %v9700, %v9716
        %v9757 = vcombine.high %v9700, %v9716
        %v9759 = vunpack.c.l.s4 1934713408
        %v9760 = vunpack.c.0.s8 %v9759
        %v9761 = vlaneseq
        %v9762 = vshrl.u32 %v9761, 7
        %v9763 = vsub.s32 %v9760, %v9762
        %v9764 = vrot.slane %v9756, %v9763
        %v9766 = vunpack.c.l.s4 1934713408
        %v9767 = vunpack.c.0.s8 %v9766
        %v9768 = vlaneseq
        %v9769 = vshrl.u32 %v9768, 7
        %v9770 = vsub.s32 %v9767, %v9769
        %v9771 = vrot.slane %v9757, %v9770
        %v9772 = vcombine.low %v9707, %v9723
        %v9773 = vcombine.high %v9707, %v9723
        %v9775 = vunpack.c.l.s4 1934713408
        %v9776 = vunpack.c.0.s8 %v9775
        %v9777 = vlaneseq
        %v9778 = vshrl.u32 %v9777, 7
        %v9779 = vsub.s32 %v9776, %v9778
        %v9780 = vrot.slane %v9772, %v9779
        %v9782 = vunpack.c.l.s4 1934713408
        %v9783 = vunpack.c.0.s8 %v9782
        %v9784 = vlaneseq
        %v9785 = vshrl.u32 %v9784, 7
        %v9786 = vsub.s32 %v9783, %v9785
        %v9787 = vrot.slane %v9773, %v9786
        %v9788 = vcombine.low %v9732, %v9764
        %v9789 = vcombine.high %v9732, %v9764
        %v9790 = vcombine.low %v9739, %v9771
        %v9791 = vcombine.high %v9739, %v9771
        %v9792 = vcombine.low %v9748, %v9780
        %v9793 = vcombine.high %v9748, %v9780
        %v9794 = vcombine.low %v9755, %v9787
        %v9795 = vcombine.high %v9755, %v9787
        %v9796 = vcombine.low %v8749, %v8757
        %v9797 = vcombine.high %v8749, %v8757
        %v9799 = vunpack.c.l.s4 1983009808
        %v9800 = vunpack.c.0.s8 %v9799
        %v9801 = vlaneseq
        %v9802 = vshrl.u32 %v9801, 7
        %v9803 = vsub.s32 %v9800, %v9802
        %v9804 = vrot.slane %v9796, %v9803
        %v9806 = vunpack.c.l.s4 1983009808
        %v9807 = vunpack.c.0.s8 %v9806
        %v9808 = vlaneseq
        %v9809 = vshrl.u32 %v9808, 7
        %v9810 = vsub.s32 %v9807, %v9809
        %v9811 = vrot.slane %v9797, %v9810
        %v9812 = vcombine.low %v8753, %v8761
        %v9813 = vcombine.high %v8753, %v8761
        %v9815 = vunpack.c.l.s4 1983009808
        %v9816 = vunpack.c.0.s8 %v9815
        %v9817 = vlaneseq
        %v9818 = vshrl.u32 %v9817, 7
        %v9819 = vsub.s32 %v9816, %v9818
        %v9820 = vrot.slane %v9812, %v9819
        %v9822 = vunpack.c.l.s4 1983009808
        %v9823 = vunpack.c.0.s8 %v9822
        %v9824 = vlaneseq
        %v9825 = vshrl.u32 %v9824, 7
        %v9826 = vsub.s32 %v9823, %v9825
        %v9827 = vrot.slane %v9813, %v9826
        %v9828 = vcombine.low %v8765, %v8773
        %v9829 = vcombine.high %v8765, %v8773
        %v9831 = vunpack.c.l.s4 1983009808
        %v9832 = vunpack.c.0.s8 %v9831
        %v9833 = vlaneseq
        %v9834 = vshrl.u32 %v9833, 7
        %v9835 = vsub.s32 %v9832, %v9834
        %v9836 = vrot.slane %v9828, %v9835
        %v9838 = vunpack.c.l.s4 1983009808
        %v9839 = vunpack.c.0.s8 %v9838
        %v9840 = vlaneseq
        %v9841 = vshrl.u32 %v9840, 7
        %v9842 = vsub.s32 %v9839, %v9841
        %v9843 = vrot.slane %v9829, %v9842
        %v9844 = vcombine.low %v8769, %v8777
        %v9845 = vcombine.high %v8769, %v8777
        %v9847 = vunpack.c.l.s4 1983009808
        %v9848 = vunpack.c.0.s8 %v9847
        %v9849 = vlaneseq
        %v9850 = vshrl.u32 %v9849, 7
        %v9851 = vsub.s32 %v9848, %v9850
        %v9852 = vrot.slane %v9844, %v9851
        %v9854 = vunpack.c.l.s4 1983009808
        %v9855 = vunpack.c.0.s8 %v9854
        %v9856 = vlaneseq
        %v9857 = vshrl.u32 %v9856, 7
        %v9858 = vsub.s32 %v9855, %v9857
        %v9859 = vrot.slane %v9845, %v9858
        %v9860 = vcombine.low %v9804, %v9820
        %v9861 = vcombine.high %v9804, %v9820
        %v9863 = vunpack.c.l.s4 1934713408
        %v9864 = vunpack.c.0.s8 %v9863
        %v9865 = vlaneseq
        %v9866 = vshrl.u32 %v9865, 7
        %v9867 = vsub.s32 %v9864, %v9866
        %v9868 = vrot.slane %v9860, %v9867
        %v9870 = vunpack.c.l.s4 1934713408
        %v9871 = vunpack.c.0.s8 %v9870
        %v9872 = vlaneseq
        %v9873 = vshrl.u32 %v9872, 7
        %v9874 = vsub.s32 %v9871, %v9873
        %v9875 = vrot.slane %v9861, %v9874
        %v9876 = vcombine.low %v9811, %v9827
        %v9877 = vcombine.high %v9811, %v9827
        %v9879 = vunpack.c.l.s4 1934713408
        %v9880 = vunpack.c.0.s8 %v9879
        %v9881 = vlaneseq
        %v9882 = vshrl.u32 %v9881, 7
        %v9883 = vsub.s32 %v9880, %v9882
        %v9884 = vrot.slane %v9876, %v9883
        %v9886 = vunpack.c.l.s4 1934713408
        %v9887 = vunpack.c.0.s8 %v9886
        %v9888 = vlaneseq
        %v9889 = vshrl.u32 %v9888, 7
        %v9890 = vsub.s32 %v9887, %v9889
        %v9891 = vrot.slane %v9877, %v9890
        %v9892 = vcombine.low %v9836, %v9852
        %v9893 = vcombine.high %v9836, %v9852
        %v9895 = vunpack.c.l.s4 1934713408
        %v9896 = vunpack.c.0.s8 %v9895
        %v9897 = vlaneseq
        %v9898 = vshrl.u32 %v9897, 7
        %v9899 = vsub.s32 %v9896, %v9898
        %v9900 = vrot.slane %v9892, %v9899
        %v9902 = vunpack.c.l.s4 1934713408
        %v9903 = vunpack.c.0.s8 %v9902
        %v9904 = vlaneseq
        %v9905 = vshrl.u32 %v9904, 7
        %v9906 = vsub.s32 %v9903, %v9905
        %v9907 = vrot.slane %v9893, %v9906
        %v9908 = vcombine.low %v9843, %v9859
        %v9909 = vcombine.high %v9843, %v9859
        %v9911 = vunpack.c.l.s4 1934713408
        %v9912 = vunpack.c.0.s8 %v9911
        %v9913 = vlaneseq
        %v9914 = vshrl.u32 %v9913, 7
        %v9915 = vsub.s32 %v9912, %v9914
        %v9916 = vrot.slane %v9908, %v9915
        %v9918 = vunpack.c.l.s4 1934713408
        %v9919 = vunpack.c.0.s8 %v9918
        %v9920 = vlaneseq
        %v9921 = vshrl.u32 %v9920, 7
        %v9922 = vsub.s32 %v9919, %v9921
        %v9923 = vrot.slane %v9909, %v9922
        %v9924 = vcombine.low %v9868, %v9900
        %v9925 = vcombine.high %v9868, %v9900
        %v9926 = vcombine.low %v9875, %v9907
        %v9927 = vcombine.high %v9875, %v9907
        %v9928 = vcombine.low %v9884, %v9916
        %v9929 = vcombine.high %v9884, %v9916
        %v9930 = vcombine.low %v9891, %v9923
        %v9931 = vcombine.high %v9891, %v9923
        %v9932 = vcombine.low %v8797, %v8805
        %v9933 = vcombine.high %v8797, %v8805
        %v9935 = vunpack.c.l.s4 1983009808
        %v9936 = vunpack.c.0.s8 %v9935
        %v9937 = vlaneseq
        %v9938 = vshrl.u32 %v9937, 7
        %v9939 = vsub.s32 %v9936, %v9938
        %v9940 = vrot.slane %v9932, %v9939
        %v9942 = vunpack.c.l.s4 1983009808
        %v9943 = vunpack.c.0.s8 %v9942
        %v9944 = vlaneseq
        %v9945 = vshrl.u32 %v9944, 7
        %v9946 = vsub.s32 %v9943, %v9945
        %v9947 = vrot.slane %v9933, %v9946
        %v9948 = vcombine.low %v8801, %v8809
        %v9949 = vcombine.high %v8801, %v8809
        %v9951 = vunpack.c.l.s4 1983009808
        %v9952 = vunpack.c.0.s8 %v9951
        %v9953 = vlaneseq
        %v9954 = vshrl.u32 %v9953, 7
        %v9955 = vsub.s32 %v9952, %v9954
        %v9956 = vrot.slane %v9948, %v9955
        %v9958 = vunpack.c.l.s4 1983009808
        %v9959 = vunpack.c.0.s8 %v9958
        %v9960 = vlaneseq
        %v9961 = vshrl.u32 %v9960, 7
        %v9962 = vsub.s32 %v9959, %v9961
        %v9963 = vrot.slane %v9949, %v9962
        %v9964 = vcombine.low %v8813, %v8821
        %v9965 = vcombine.high %v8813, %v8821
        %v9967 = vunpack.c.l.s4 1983009808
        %v9968 = vunpack.c.0.s8 %v9967
        %v9969 = vlaneseq
        %v9970 = vshrl.u32 %v9969, 7
        %v9971 = vsub.s32 %v9968, %v9970
        %v9972 = vrot.slane %v9964, %v9971
        %v9974 = vunpack.c.l.s4 1983009808
        %v9975 = vunpack.c.0.s8 %v9974
        %v9976 = vlaneseq
        %v9977 = vshrl.u32 %v9976, 7
        %v9978 = vsub.s32 %v9975, %v9977
        %v9979 = vrot.slane %v9965, %v9978
        %v9980 = vcombine.low %v8817, %v8825
        %v9981 = vcombine.high %v8817, %v8825
        %v9983 = vunpack.c.l.s4 1983009808
        %v9984 = vunpack.c.0.s8 %v9983
        %v9985 = vlaneseq
        %v9986 = vshrl.u32 %v9985, 7
        %v9987 = vsub.s32 %v9984, %v9986
        %v9988 = vrot.slane %v9980, %v9987
        %v9990 = vunpack.c.l.s4 1983009808
        %v9991 = vunpack.c.0.s8 %v9990
        %v9992 = vlaneseq
        %v9993 = vshrl.u32 %v9992, 7
        %v9994 = vsub.s32 %v9991, %v9993
        %v9995 = vrot.slane %v9981, %v9994
        %v9996 = vcombine.low %v9940, %v9956
        %v9997 = vcombine.high %v9940, %v9956
        %v9999 = vunpack.c.l.s4 1934713408
        %v10000 = vunpack.c.0.s8 %v9999
        %v10001 = vlaneseq
        %v10002 = vshrl.u32 %v10001, 7
        %v10003 = vsub.s32 %v10000, %v10002
        %v10004 = vrot.slane %v9996, %v10003
        %v10006 = vunpack.c.l.s4 1934713408
        %v10007 = vunpack.c.0.s8 %v10006
        %v10008 = vlaneseq
        %v10009 = vshrl.u32 %v10008, 7
        %v10010 = vsub.s32 %v10007, %v10009
        %v10011 = vrot.slane %v9997, %v10010
        %v10012 = vcombine.low %v9947, %v9963
        %v10013 = vcombine.high %v9947, %v9963
        %v10015 = vunpack.c.l.s4 1934713408
        %v10016 = vunpack.c.0.s8 %v10015
        %v10017 = vlaneseq
        %v10018 = vshrl.u32 %v10017, 7
        %v10019 = vsub.s32 %v10016, %v10018
        %v10020 = vrot.slane %v10012, %v10019
        %v10022 = vunpack.c.l.s4 1934713408
        %v10023 = vunpack.c.0.s8 %v10022
        %v10024 = vlaneseq
        %v10025 = vshrl.u32 %v10024, 7
        %v10026 = vsub.s32 %v10023, %v10025
        %v10027 = vrot.slane %v10013, %v10026
        %v10028 = vcombine.low %v9972, %v9988
        %v10029 = vcombine.high %v9972, %v9988
        %v10031 = vunpack.c.l.s4 1934713408
        %v10032 = vunpack.c.0.s8 %v10031
        %v10033 = vlaneseq
        %v10034 = vshrl.u32 %v10033, 7
        %v10035 = vsub.s32 %v10032, %v10034
        %v10036 = vrot.slane %v10028, %v10035
        %v10038 = vunpack.c.l.s4 1934713408
        %v10039 = vunpack.c.0.s8 %v10038
        %v10040 = vlaneseq
        %v10041 = vshrl.u32 %v10040, 7
        %v10042 = vsub.s32 %v10039, %v10041
        %v10043 = vrot.slane %v10029, %v10042
        %v10044 = vcombine.low %v9979, %v9995
        %v10045 = vcombine.high %v9979, %v9995
        %v10047 = vunpack.c.l.s4 1934713408
        %v10048 = vunpack.c.0.s8 %v10047
        %v10049 = vlaneseq
        %v10050 = vshrl.u32 %v10049, 7
        %v10051 = vsub.s32 %v10048, %v10050
        %v10052 = vrot.slane %v10044, %v10051
        %v10054 = vunpack.c.l.s4 1934713408
        %v10055 = vunpack.c.0.s8 %v10054
        %v10056 = vlaneseq
        %v10057 = vshrl.u32 %v10056, 7
        %v10058 = vsub.s32 %v10055, %v10057
        %v10059 = vrot.slane %v10045, %v10058
        %v10060 = vcombine.low %v10004, %v10036
        %v10061 = vcombine.high %v10004, %v10036
        %v10062 = vcombine.low %v10011, %v10043
        %v10063 = vcombine.high %v10011, %v10043
        %v10064 = vcombine.low %v10020, %v10052
        %v10065 = vcombine.high %v10020, %v10052
        %v10066 = vcombine.low %v10027, %v10059
        %v10067 = vcombine.high %v10027, %v10059
        %v10068 = vcombine.low %v8461, %v8465
        %v10069 = vcombine.high %v8461, %v8465
        %v10071 = vunpack.c.l.s4 1983009808
        %v10072 = vunpack.c.0.s8 %v10071
        %v10073 = vlaneseq
        %v10074 = vshrl.u32 %v10073, 7
        %v10075 = vsub.s32 %v10072, %v10074
        %v10076 = vrot.slane %v10068, %v10075
        %v10078 = vunpack.c.l.s4 1983009808
        %v10079 = vunpack.c.0.s8 %v10078
        %v10080 = vlaneseq
        %v10081 = vshrl.u32 %v10080, 7
        %v10082 = vsub.s32 %v10079, %v10081
        %v10083 = vrot.slane %v10069, %v10082
        %v10084 = vcombine.low %v8463, %v8467
        %v10085 = vcombine.high %v8463, %v8467
        %v10087 = vunpack.c.l.s4 1983009808
        %v10088 = vunpack.c.0.s8 %v10087
        %v10089 = vlaneseq
        %v10090 = vshrl.u32 %v10089, 7
        %v10091 = vsub.s32 %v10088, %v10090
        %v10092 = vrot.slane %v10084, %v10091
        %v10094 = vunpack.c.l.s4 1983009808
        %v10095 = vunpack.c.0.s8 %v10094
        %v10096 = vlaneseq
        %v10097 = vshrl.u32 %v10096, 7
        %v10098 = vsub.s32 %v10095, %v10097
        %v10099 = vrot.slane %v10085, %v10098
        %v10100 = vcombine.low %v8469, %v8473
        %v10101 = vcombine.high %v8469, %v8473
        %v10103 = vunpack.c.l.s4 1983009808
        %v10104 = vunpack.c.0.s8 %v10103
        %v10105 = vlaneseq
        %v10106 = vshrl.u32 %v10105, 7
        %v10107 = vsub.s32 %v10104, %v10106
        %v10108 = vrot.slane %v10100, %v10107
        %v10110 = vunpack.c.l.s4 1983009808
        %v10111 = vunpack.c.0.s8 %v10110
        %v10112 = vlaneseq
        %v10113 = vshrl.u32 %v10112, 7
        %v10114 = vsub.s32 %v10111, %v10113
        %v10115 = vrot.slane %v10101, %v10114
        %v10116 = vcombine.low %v8471, %v8475
        %v10117 = vcombine.high %v8471, %v8475
        %v10119 = vunpack.c.l.s4 1983009808
        %v10120 = vunpack.c.0.s8 %v10119
        %v10121 = vlaneseq
        %v10122 = vshrl.u32 %v10121, 7
        %v10123 = vsub.s32 %v10120, %v10122
        %v10124 = vrot.slane %v10116, %v10123
        %v10126 = vunpack.c.l.s4 1983009808
        %v10127 = vunpack.c.0.s8 %v10126
        %v10128 = vlaneseq
        %v10129 = vshrl.u32 %v10128, 7
        %v10130 = vsub.s32 %v10127, %v10129
        %v10131 = vrot.slane %v10117, %v10130
        %v10132 = vcombine.low %v10076, %v10092
        %v10133 = vcombine.high %v10076, %v10092
        %v10135 = vunpack.c.l.s4 1934713408
        %v10136 = vunpack.c.0.s8 %v10135
        %v10137 = vlaneseq
        %v10138 = vshrl.u32 %v10137, 7
        %v10139 = vsub.s32 %v10136, %v10138
        %v10140 = vrot.slane %v10132, %v10139
        %v10142 = vunpack.c.l.s4 1934713408
        %v10143 = vunpack.c.0.s8 %v10142
        %v10144 = vlaneseq
        %v10145 = vshrl.u32 %v10144, 7
        %v10146 = vsub.s32 %v10143, %v10145
        %v10147 = vrot.slane %v10133, %v10146
        %v10148 = vcombine.low %v10083, %v10099
        %v10149 = vcombine.high %v10083, %v10099
        %v10151 = vunpack.c.l.s4 1934713408
        %v10152 = vunpack.c.0.s8 %v10151
        %v10153 = vlaneseq
        %v10154 = vshrl.u32 %v10153, 7
        %v10155 = vsub.s32 %v10152, %v10154
        %v10156 = vrot.slane %v10148, %v10155
        %v10158 = vunpack.c.l.s4 1934713408
        %v10159 = vunpack.c.0.s8 %v10158
        %v10160 = vlaneseq
        %v10161 = vshrl.u32 %v10160, 7
        %v10162 = vsub.s32 %v10159, %v10161
        %v10163 = vrot.slane %v10149, %v10162
        %v10164 = vcombine.low %v10108, %v10124
        %v10165 = vcombine.high %v10108, %v10124
        %v10167 = vunpack.c.l.s4 1934713408
        %v10168 = vunpack.c.0.s8 %v10167
        %v10169 = vlaneseq
        %v10170 = vshrl.u32 %v10169, 7
        %v10171 = vsub.s32 %v10168, %v10170
        %v10172 = vrot.slane %v10164, %v10171
        %v10174 = vunpack.c.l.s4 1934713408
        %v10175 = vunpack.c.0.s8 %v10174
        %v10176 = vlaneseq
        %v10177 = vshrl.u32 %v10176, 7
        %v10178 = vsub.s32 %v10175, %v10177
        %v10179 = vrot.slane %v10165, %v10178
        %v10180 = vcombine.low %v10115, %v10131
        %v10181 = vcombine.high %v10115, %v10131
        %v10183 = vunpack.c.l.s4 1934713408
        %v10184 = vunpack.c.0.s8 %v10183
        %v10185 = vlaneseq
        %v10186 = vshrl.u32 %v10185, 7
        %v10187 = vsub.s32 %v10184, %v10186
        %v10188 = vrot.slane %v10180, %v10187
        %v10190 = vunpack.c.l.s4 1934713408
        %v10191 = vunpack.c.0.s8 %v10190
        %v10192 = vlaneseq
        %v10193 = vshrl.u32 %v10192, 7
        %v10194 = vsub.s32 %v10191, %v10193
        %v10195 = vrot.slane %v10181, %v10194
        %v10196 = vcombine.low %v10140, %v10172
        %v10197 = vcombine.high %v10140, %v10172
        %v10198 = vcombine.low %v10147, %v10179
        %v10199 = vcombine.high %v10147, %v10179
        %v10200 = vcombine.low %v10156, %v10188
        %v10201 = vcombine.high %v10156, %v10188
        %v10202 = vcombine.low %v10163, %v10195
        %v10203 = vcombine.high %v10163, %v10195
        %v10204 = vcombine.low %v8527, %v8535
        %v10205 = vcombine.high %v8527, %v8535
        %v10207 = vunpack.c.l.s4 1983009808
        %v10208 = vunpack.c.0.s8 %v10207
        %v10209 = vlaneseq
        %v10210 = vshrl.u32 %v10209, 7
        %v10211 = vsub.s32 %v10208, %v10210
        %v10212 = vrot.slane %v10204, %v10211
        %v10214 = vunpack.c.l.s4 1983009808
        %v10215 = vunpack.c.0.s8 %v10214
        %v10216 = vlaneseq
        %v10217 = vshrl.u32 %v10216, 7
        %v10218 = vsub.s32 %v10215, %v10217
        %v10219 = vrot.slane %v10205, %v10218
        %v10220 = vcombine.low %v8531, %v8539
        %v10221 = vcombine.high %v8531, %v8539
        %v10223 = vunpack.c.l.s4 1983009808
        %v10224 = vunpack.c.0.s8 %v10223
        %v10225 = vlaneseq
        %v10226 = vshrl.u32 %v10225, 7
        %v10227 = vsub.s32 %v10224, %v10226
        %v10228 = vrot.slane %v10220, %v10227
        %v10230 = vunpack.c.l.s4 1983009808
        %v10231 = vunpack.c.0.s8 %v10230
        %v10232 = vlaneseq
        %v10233 = vshrl.u32 %v10232, 7
        %v10234 = vsub.s32 %v10231, %v10233
        %v10235 = vrot.slane %v10221, %v10234
        %v10236 = vcombine.low %v8543, %v8551
        %v10237 = vcombine.high %v8543, %v8551
        %v10239 = vunpack.c.l.s4 1983009808
        %v10240 = vunpack.c.0.s8 %v10239
        %v10241 = vlaneseq
        %v10242 = vshrl.u32 %v10241, 7
        %v10243 = vsub.s32 %v10240, %v10242
        %v10244 = vrot.slane %v10236, %v10243
        %v10246 = vunpack.c.l.s4 1983009808
        %v10247 = vunpack.c.0.s8 %v10246
        %v10248 = vlaneseq
        %v10249 = vshrl.u32 %v10248, 7
        %v10250 = vsub.s32 %v10247, %v10249
        %v10251 = vrot.slane %v10237, %v10250
        %v10252 = vcombine.low %v8547, %v8555
        %v10253 = vcombine.high %v8547, %v8555
        %v10255 = vunpack.c.l.s4 1983009808
        %v10256 = vunpack.c.0.s8 %v10255
        %v10257 = vlaneseq
        %v10258 = vshrl.u32 %v10257, 7
        %v10259 = vsub.s32 %v10256, %v10258
        %v10260 = vrot.slane %v10252, %v10259
        %v10262 = vunpack.c.l.s4 1983009808
        %v10263 = vunpack.c.0.s8 %v10262
        %v10264 = vlaneseq
        %v10265 = vshrl.u32 %v10264, 7
        %v10266 = vsub.s32 %v10263, %v10265
        %v10267 = vrot.slane %v10253, %v10266
        %v10268 = vcombine.low %v10212, %v10228
        %v10269 = vcombine.high %v10212, %v10228
        %v10271 = vunpack.c.l.s4 1934713408
        %v10272 = vunpack.c.0.s8 %v10271
        %v10273 = vlaneseq
        %v10274 = vshrl.u32 %v10273, 7
        %v10275 = vsub.s32 %v10272, %v10274
        %v10276 = vrot.slane %v10268, %v10275
        %v10278 = vunpack.c.l.s4 1934713408
        %v10279 = vunpack.c.0.s8 %v10278
        %v10280 = vlaneseq
        %v10281 = vshrl.u32 %v10280, 7
        %v10282 = vsub.s32 %v10279, %v10281
        %v10283 = vrot.slane %v10269, %v10282
        %v10284 = vcombine.low %v10219, %v10235
        %v10285 = vcombine.high %v10219, %v10235
        %v10287 = vunpack.c.l.s4 1934713408
        %v10288 = vunpack.c.0.s8 %v10287
        %v10289 = vlaneseq
        %v10290 = vshrl.u32 %v10289, 7
        %v10291 = vsub.s32 %v10288, %v10290
        %v10292 = vrot.slane %v10284, %v10291
        %v10294 = vunpack.c.l.s4 1934713408
        %v10295 = vunpack.c.0.s8 %v10294
        %v10296 = vlaneseq
        %v10297 = vshrl.u32 %v10296, 7
        %v10298 = vsub.s32 %v10295, %v10297
        %v10299 = vrot.slane %v10285, %v10298
        %v10300 = vcombine.low %v10244, %v10260
        %v10301 = vcombine.high %v10244, %v10260
        %v10303 = vunpack.c.l.s4 1934713408
        %v10304 = vunpack.c.0.s8 %v10303
        %v10305 = vlaneseq
        %v10306 = vshrl.u32 %v10305, 7
        %v10307 = vsub.s32 %v10304, %v10306
        %v10308 = vrot.slane %v10300, %v10307
        %v10310 = vunpack.c.l.s4 1934713408
        %v10311 = vunpack.c.0.s8 %v10310
        %v10312 = vlaneseq
        %v10313 = vshrl.u32 %v10312, 7
        %v10314 = vsub.s32 %v10311, %v10313
        %v10315 = vrot.slane %v10301, %v10314
        %v10316 = vcombine.low %v10251, %v10267
        %v10317 = vcombine.high %v10251, %v10267
        %v10319 = vunpack.c.l.s4 1934713408
        %v10320 = vunpack.c.0.s8 %v10319
        %v10321 = vlaneseq
        %v10322 = vshrl.u32 %v10321, 7
        %v10323 = vsub.s32 %v10320, %v10322
        %v10324 = vrot.slane %v10316, %v10323
        %v10326 = vunpack.c.l.s4 1934713408
        %v10327 = vunpack.c.0.s8 %v10326
        %v10328 = vlaneseq
        %v10329 = vshrl.u32 %v10328, 7
        %v10330 = vsub.s32 %v10327, %v10329
        %v10331 = vrot.slane %v10317, %v10330
        %v10332 = vcombine.low %v10276, %v10308
        %v10333 = vcombine.high %v10276, %v10308
        %v10334 = vcombine.low %v10283, %v10315
        %v10335 = vcombine.high %v10283, %v10315
        %v10336 = vcombine.low %v10292, %v10324
        %v10337 = vcombine.high %v10292, %v10324
        %v10338 = vcombine.low %v10299, %v10331
        %v10339 = vcombine.high %v10299, %v10331
        %v10340 = vcombine.low %v8575, %v8583
        %v10341 = vcombine.high %v8575, %v8583
        %v10343 = vunpack.c.l.s4 1983009808
        %v10344 = vunpack.c.0.s8 %v10343
        %v10345 = vlaneseq
        %v10346 = vshrl.u32 %v10345, 7
        %v10347 = vsub.s32 %v10344, %v10346
        %v10348 = vrot.slane %v10340, %v10347
        %v10350 = vunpack.c.l.s4 1983009808
        %v10351 = vunpack.c.0.s8 %v10350
        %v10352 = vlaneseq
        %v10353 = vshrl.u32 %v10352, 7
        %v10354 = vsub.s32 %v10351, %v10353
        %v10355 = vrot.slane %v10341, %v10354
        %v10356 = vcombine.low %v8579, %v8587
        %v10357 = vcombine.high %v8579, %v8587
        %v10359 = vunpack.c.l.s4 1983009808
        %v10360 = vunpack.c.0.s8 %v10359
        %v10361 = vlaneseq
        %v10362 = vshrl.u32 %v10361, 7
        %v10363 = vsub.s32 %v10360, %v10362
        %v10364 = vrot.slane %v10356, %v10363
        %v10366 = vunpack.c.l.s4 1983009808
        %v10367 = vunpack.c.0.s8 %v10366
        %v10368 = vlaneseq
        %v10369 = vshrl.u32 %v10368, 7
        %v10370 = vsub.s32 %v10367, %v10369
        %v10371 = vrot.slane %v10357, %v10370
        %v10372 = vcombine.low %v8591, %v8599
        %v10373 = vcombine.high %v8591, %v8599
        %v10375 = vunpack.c.l.s4 1983009808
        %v10376 = vunpack.c.0.s8 %v10375
        %v10377 = vlaneseq
        %v10378 = vshrl.u32 %v10377, 7
        %v10379 = vsub.s32 %v10376, %v10378
        %v10380 = vrot.slane %v10372, %v10379
        %v10382 = vunpack.c.l.s4 1983009808
        %v10383 = vunpack.c.0.s8 %v10382
        %v10384 = vlaneseq
        %v10385 = vshrl.u32 %v10384, 7
        %v10386 = vsub.s32 %v10383, %v10385
        %v10387 = vrot.slane %v10373, %v10386
        %v10388 = vcombine.low %v8595, %v8603
        %v10389 = vcombine.high %v8595, %v8603
        %v10391 = vunpack.c.l.s4 1983009808
        %v10392 = vunpack.c.0.s8 %v10391
        %v10393 = vlaneseq
        %v10394 = vshrl.u32 %v10393, 7
        %v10395 = vsub.s32 %v10392, %v10394
        %v10396 = vrot.slane %v10388, %v10395
        %v10398 = vunpack.c.l.s4 1983009808
        %v10399 = vunpack.c.0.s8 %v10398
        %v10400 = vlaneseq
        %v10401 = vshrl.u32 %v10400, 7
        %v10402 = vsub.s32 %v10399, %v10401
        %v10403 = vrot.slane %v10389, %v10402
        %v10404 = vcombine.low %v10348, %v10364
        %v10405 = vcombine.high %v10348, %v10364
        %v10407 = vunpack.c.l.s4 1934713408
        %v10408 = vunpack.c.0.s8 %v10407
        %v10409 = vlaneseq
        %v10410 = vshrl.u32 %v10409, 7
        %v10411 = vsub.s32 %v10408, %v10410
        %v10412 = vrot.slane %v10404, %v10411
        %v10414 = vunpack.c.l.s4 1934713408
        %v10415 = vunpack.c.0.s8 %v10414
        %v10416 = vlaneseq
        %v10417 = vshrl.u32 %v10416, 7
        %v10418 = vsub.s32 %v10415, %v10417
        %v10419 = vrot.slane %v10405, %v10418
        %v10420 = vcombine.low %v10355, %v10371
        %v10421 = vcombine.high %v10355, %v10371
        %v10423 = vunpack.c.l.s4 1934713408
        %v10424 = vunpack.c.0.s8 %v10423
        %v10425 = vlaneseq
        %v10426 = vshrl.u32 %v10425, 7
        %v10427 = vsub.s32 %v10424, %v10426
        %v10428 = vrot.slane %v10420, %v10427
        %v10430 = vunpack.c.l.s4 1934713408
        %v10431 = vunpack.c.0.s8 %v10430
        %v10432 = vlaneseq
        %v10433 = vshrl.u32 %v10432, 7
        %v10434 = vsub.s32 %v10431, %v10433
        %v10435 = vrot.slane %v10421, %v10434
        %v10436 = vcombine.low %v10380, %v10396
        %v10437 = vcombine.high %v10380, %v10396
        %v10439 = vunpack.c.l.s4 1934713408
        %v10440 = vunpack.c.0.s8 %v10439
        %v10441 = vlaneseq
        %v10442 = vshrl.u32 %v10441, 7
        %v10443 = vsub.s32 %v10440, %v10442
        %v10444 = vrot.slane %v10436, %v10443
        %v10446 = vunpack.c.l.s4 1934713408
        %v10447 = vunpack.c.0.s8 %v10446
        %v10448 = vlaneseq
        %v10449 = vshrl.u32 %v10448, 7
        %v10450 = vsub.s32 %v10447, %v10449
        %v10451 = vrot.slane %v10437, %v10450
        %v10452 = vcombine.low %v10387, %v10403
        %v10453 = vcombine.high %v10387, %v10403
        %v10455 = vunpack.c.l.s4 1934713408
        %v10456 = vunpack.c.0.s8 %v10455
        %v10457 = vlaneseq
        %v10458 = vshrl.u32 %v10457, 7
        %v10459 = vsub.s32 %v10456, %v10458
        %v10460 = vrot.slane %v10452, %v10459
        %v10462 = vunpack.c.l.s4 1934713408
        %v10463 = vunpack.c.0.s8 %v10462
        %v10464 = vlaneseq
        %v10465 = vshrl.u32 %v10464, 7
        %v10466 = vsub.s32 %v10463, %v10465
        %v10467 = vrot.slane %v10453, %v10466
        %v10468 = vcombine.low %v10412, %v10444
        %v10469 = vcombine.high %v10412, %v10444
        %v10470 = vcombine.low %v10419, %v10451
        %v10471 = vcombine.high %v10419, %v10451
        %v10472 = vcombine.low %v10428, %v10460
        %v10473 = vcombine.high %v10428, %v10460
        %v10474 = vcombine.low %v10435, %v10467
        %v10475 = vcombine.high %v10435, %v10467
        %v10476 = vcombine.low %v8477, %v8481
        %v10477 = vcombine.high %v8477, %v8481
        %v10479 = vunpack.c.l.s4 1983009808
        %v10480 = vunpack.c.0.s8 %v10479
        %v10481 = vlaneseq
        %v10482 = vshrl.u32 %v10481, 7
        %v10483 = vsub.s32 %v10480, %v10482
        %v10484 = vrot.slane %v10476, %v10483
        %v10486 = vunpack.c.l.s4 1983009808
        %v10487 = vunpack.c.0.s8 %v10486
        %v10488 = vlaneseq
        %v10489 = vshrl.u32 %v10488, 7
        %v10490 = vsub.s32 %v10487, %v10489
        %v10491 = vrot.slane %v10477, %v10490
        %v10492 = vcombine.low %v8479, %v8483
        %v10493 = vcombine.high %v8479, %v8483
        %v10495 = vunpack.c.l.s4 1983009808
        %v10496 = vunpack.c.0.s8 %v10495
        %v10497 = vlaneseq
        %v10498 = vshrl.u32 %v10497, 7
        %v10499 = vsub.s32 %v10496, %v10498
        %v10500 = vrot.slane %v10492, %v10499
        %v10502 = vunpack.c.l.s4 1983009808
        %v10503 = vunpack.c.0.s8 %v10502
        %v10504 = vlaneseq
        %v10505 = vshrl.u32 %v10504, 7
        %v10506 = vsub.s32 %v10503, %v10505
        %v10507 = vrot.slane %v10493, %v10506
        %v10508 = vcombine.low %v8485, %v8489
        %v10509 = vcombine.high %v8485, %v8489
        %v10511 = vunpack.c.l.s4 1983009808
        %v10512 = vunpack.c.0.s8 %v10511
        %v10513 = vlaneseq
        %v10514 = vshrl.u32 %v10513, 7
        %v10515 = vsub.s32 %v10512, %v10514
        %v10516 = vrot.slane %v10508, %v10515
        %v10518 = vunpack.c.l.s4 1983009808
        %v10519 = vunpack.c.0.s8 %v10518
        %v10520 = vlaneseq
        %v10521 = vshrl.u32 %v10520, 7
        %v10522 = vsub.s32 %v10519, %v10521
        %v10523 = vrot.slane %v10509, %v10522
        %v10524 = vcombine.low %v8487, %v8491
        %v10525 = vcombine.high %v8487, %v8491
        %v10527 = vunpack.c.l.s4 1983009808
        %v10528 = vunpack.c.0.s8 %v10527
        %v10529 = vlaneseq
        %v10530 = vshrl.u32 %v10529, 7
        %v10531 = vsub.s32 %v10528, %v10530
        %v10532 = vrot.slane %v10524, %v10531
        %v10534 = vunpack.c.l.s4 1983009808
        %v10535 = vunpack.c.0.s8 %v10534
        %v10536 = vlaneseq
        %v10537 = vshrl.u32 %v10536, 7
        %v10538 = vsub.s32 %v10535, %v10537
        %v10539 = vrot.slane %v10525, %v10538
        %v10540 = vcombine.low %v10484, %v10500
        %v10541 = vcombine.high %v10484, %v10500
        %v10543 = vunpack.c.l.s4 1934713408
        %v10544 = vunpack.c.0.s8 %v10543
        %v10545 = vlaneseq
        %v10546 = vshrl.u32 %v10545, 7
        %v10547 = vsub.s32 %v10544, %v10546
        %v10548 = vrot.slane %v10540, %v10547
        %v10550 = vunpack.c.l.s4 1934713408
        %v10551 = vunpack.c.0.s8 %v10550
        %v10552 = vlaneseq
        %v10553 = vshrl.u32 %v10552, 7
        %v10554 = vsub.s32 %v10551, %v10553
        %v10555 = vrot.slane %v10541, %v10554
        %v10556 = vcombine.low %v10491, %v10507
        %v10557 = vcombine.high %v10491, %v10507
        %v10559 = vunpack.c.l.s4 1934713408
        %v10560 = vunpack.c.0.s8 %v10559
        %v10561 = vlaneseq
        %v10562 = vshrl.u32 %v10561, 7
        %v10563 = vsub.s32 %v10560, %v10562
        %v10564 = vrot.slane %v10556, %v10563
        %v10566 = vunpack.c.l.s4 1934713408
        %v10567 = vunpack.c.0.s8 %v10566
        %v10568 = vlaneseq
        %v10569 = vshrl.u32 %v10568, 7
        %v10570 = vsub.s32 %v10567, %v10569
        %v10571 = vrot.slane %v10557, %v10570
        %v10572 = vcombine.low %v10516, %v10532
        %v10573 = vcombine.high %v10516, %v10532
        %v10575 = vunpack.c.l.s4 1934713408
        %v10576 = vunpack.c.0.s8 %v10575
        %v10577 = vlaneseq
        %v10578 = vshrl.u32 %v10577, 7
        %v10579 = vsub.s32 %v10576, %v10578
        %v10580 = vrot.slane %v10572, %v10579
        %v10582 = vunpack.c.l.s4 1934713408
        %v10583 = vunpack.c.0.s8 %v10582
        %v10584 = vlaneseq
        %v10585 = vshrl.u32 %v10584, 7
        %v10586 = vsub.s32 %v10583, %v10585
        %v10587 = vrot.slane %v10573, %v10586
        %v10588 = vcombine.low %v10523, %v10539
        %v10589 = vcombine.high %v10523, %v10539
        %v10591 = vunpack.c.l.s4 1934713408
        %v10592 = vunpack.c.0.s8 %v10591
        %v10593 = vlaneseq
        %v10594 = vshrl.u32 %v10593, 7
        %v10595 = vsub.s32 %v10592, %v10594
        %v10596 = vrot.slane %v10588, %v10595
        %v10598 = vunpack.c.l.s4 1934713408
        %v10599 = vunpack.c.0.s8 %v10598
        %v10600 = vlaneseq
        %v10601 = vshrl.u32 %v10600, 7
        %v10602 = vsub.s32 %v10599, %v10601
        %v10603 = vrot.slane %v10589, %v10602
        %v10604 = vcombine.low %v10548, %v10580
        %v10605 = vcombine.high %v10548, %v10580
        %v10606 = vcombine.low %v10555, %v10587
        %v10607 = vcombine.high %v10555, %v10587
        %v10608 = vcombine.low %v10564, %v10596
        %v10609 = vcombine.high %v10564, %v10596
        %v10610 = vcombine.low %v10571, %v10603
        %v10611 = vcombine.high %v10571, %v10603
        %v10612 = vcombine.low %v8623, %v8631
        %v10613 = vcombine.high %v8623, %v8631
        %v10615 = vunpack.c.l.s4 1983009808
        %v10616 = vunpack.c.0.s8 %v10615
        %v10617 = vlaneseq
        %v10618 = vshrl.u32 %v10617, 7
        %v10619 = vsub.s32 %v10616, %v10618
        %v10620 = vrot.slane %v10612, %v10619
        %v10622 = vunpack.c.l.s4 1983009808
        %v10623 = vunpack.c.0.s8 %v10622
        %v10624 = vlaneseq
        %v10625 = vshrl.u32 %v10624, 7
        %v10626 = vsub.s32 %v10623, %v10625
        %v10627 = vrot.slane %v10613, %v10626
        %v10628 = vcombine.low %v8627, %v8635
        %v10629 = vcombine.high %v8627, %v8635
        %v10631 = vunpack.c.l.s4 1983009808
        %v10632 = vunpack.c.0.s8 %v10631
        %v10633 = vlaneseq
        %v10634 = vshrl.u32 %v10633, 7
        %v10635 = vsub.s32 %v10632, %v10634
        %v10636 = vrot.slane %v10628, %v10635
        %v10638 = vunpack.c.l.s4 1983009808
        %v10639 = vunpack.c.0.s8 %v10638
        %v10640 = vlaneseq
        %v10641 = vshrl.u32 %v10640, 7
        %v10642 = vsub.s32 %v10639, %v10641
        %v10643 = vrot.slane %v10629, %v10642
        %v10644 = vcombine.low %v8639, %v8647
        %v10645 = vcombine.high %v8639, %v8647
        %v10647 = vunpack.c.l.s4 1983009808
        %v10648 = vunpack.c.0.s8 %v10647
        %v10649 = vlaneseq
        %v10650 = vshrl.u32 %v10649, 7
        %v10651 = vsub.s32 %v10648, %v10650
        %v10652 = vrot.slane %v10644, %v10651
        %v10654 = vunpack.c.l.s4 1983009808
        %v10655 = vunpack.c.0.s8 %v10654
        %v10656 = vlaneseq
        %v10657 = vshrl.u32 %v10656, 7
        %v10658 = vsub.s32 %v10655, %v10657
        %v10659 = vrot.slane %v10645, %v10658
        %v10660 = vcombine.low %v8643, %v8651
        %v10661 = vcombine.high %v8643, %v8651
        %v10663 = vunpack.c.l.s4 1983009808
        %v10664 = vunpack.c.0.s8 %v10663
        %v10665 = vlaneseq
        %v10666 = vshrl.u32 %v10665, 7
        %v10667 = vsub.s32 %v10664, %v10666
        %v10668 = vrot.slane %v10660, %v10667
        %v10670 = vunpack.c.l.s4 1983009808
        %v10671 = vunpack.c.0.s8 %v10670
        %v10672 = vlaneseq
        %v10673 = vshrl.u32 %v10672, 7
        %v10674 = vsub.s32 %v10671, %v10673
        %v10675 = vrot.slane %v10661, %v10674
        %v10676 = vcombine.low %v10620, %v10636
        %v10677 = vcombine.high %v10620, %v10636
        %v10679 = vunpack.c.l.s4 1934713408
        %v10680 = vunpack.c.0.s8 %v10679
        %v10681 = vlaneseq
        %v10682 = vshrl.u32 %v10681, 7
        %v10683 = vsub.s32 %v10680, %v10682
        %v10684 = vrot.slane %v10676, %v10683
        %v10686 = vunpack.c.l.s4 1934713408
        %v10687 = vunpack.c.0.s8 %v10686
        %v10688 = vlaneseq
        %v10689 = vshrl.u32 %v10688, 7
        %v10690 = vsub.s32 %v10687, %v10689
        %v10691 = vrot.slane %v10677, %v10690
        %v10692 = vcombine.low %v10627, %v10643
        %v10693 = vcombine.high %v10627, %v10643
        %v10695 = vunpack.c.l.s4 1934713408
        %v10696 = vunpack.c.0.s8 %v10695
        %v10697 = vlaneseq
        %v10698 = vshrl.u32 %v10697, 7
        %v10699 = vsub.s32 %v10696, %v10698
        %v10700 = vrot.slane %v10692, %v10699
        %v10702 = vunpack.c.l.s4 1934713408
        %v10703 = vunpack.c.0.s8 %v10702
        %v10704 = vlaneseq
        %v10705 = vshrl.u32 %v10704, 7
        %v10706 = vsub.s32 %v10703, %v10705
        %v10707 = vrot.slane %v10693, %v10706
        %v10708 = vcombine.low %v10652, %v10668
        %v10709 = vcombine.high %v10652, %v10668
        %v10711 = vunpack.c.l.s4 1934713408
        %v10712 = vunpack.c.0.s8 %v10711
        %v10713 = vlaneseq
        %v10714 = vshrl.u32 %v10713, 7
        %v10715 = vsub.s32 %v10712, %v10714
        %v10716 = vrot.slane %v10708, %v10715
        %v10718 = vunpack.c.l.s4 1934713408
        %v10719 = vunpack.c.0.s8 %v10718
        %v10720 = vlaneseq
        %v10721 = vshrl.u32 %v10720, 7
        %v10722 = vsub.s32 %v10719, %v10721
        %v10723 = vrot.slane %v10709, %v10722
        %v10724 = vcombine.low %v10659, %v10675
        %v10725 = vcombine.high %v10659, %v10675
        %v10727 = vunpack.c.l.s4 1934713408
        %v10728 = vunpack.c.0.s8 %v10727
        %v10729 = vlaneseq
        %v10730 = vshrl.u32 %v10729, 7
        %v10731 = vsub.s32 %v10728, %v10730
        %v10732 = vrot.slane %v10724, %v10731
        %v10734 = vunpack.c.l.s4 1934713408
        %v10735 = vunpack.c.0.s8 %v10734
        %v10736 = vlaneseq
        %v10737 = vshrl.u32 %v10736, 7
        %v10738 = vsub.s32 %v10735, %v10737
        %v10739 = vrot.slane %v10725, %v10738
        %v10740 = vcombine.low %v10684, %v10716
        %v10741 = vcombine.high %v10684, %v10716
        %v10742 = vcombine.low %v10691, %v10723
        %v10743 = vcombine.high %v10691, %v10723
        %v10744 = vcombine.low %v10700, %v10732
        %v10745 = vcombine.high %v10700, %v10732
        %v10746 = vcombine.low %v10707, %v10739
        %v10747 = vcombine.high %v10707, %v10739
        %v10748 = vcombine.low %v8687, %v8695
        %v10749 = vcombine.high %v8687, %v8695
        %v10751 = vunpack.c.l.s4 1983009808
        %v10752 = vunpack.c.0.s8 %v10751
        %v10753 = vlaneseq
        %v10754 = vshrl.u32 %v10753, 7
        %v10755 = vsub.s32 %v10752, %v10754
        %v10756 = vrot.slane %v10748, %v10755
        %v10758 = vunpack.c.l.s4 1983009808
        %v10759 = vunpack.c.0.s8 %v10758
        %v10760 = vlaneseq
        %v10761 = vshrl.u32 %v10760, 7
        %v10762 = vsub.s32 %v10759, %v10761
        %v10763 = vrot.slane %v10749, %v10762
        %v10764 = vcombine.low %v8691, %v8699
        %v10765 = vcombine.high %v8691, %v8699
        %v10767 = vunpack.c.l.s4 1983009808
        %v10768 = vunpack.c.0.s8 %v10767
        %v10769 = vlaneseq
        %v10770 = vshrl.u32 %v10769, 7
        %v10771 = vsub.s32 %v10768, %v10770
        %v10772 = vrot.slane %v10764, %v10771
        %v10774 = vunpack.c.l.s4 1983009808
        %v10775 = vunpack.c.0.s8 %v10774
        %v10776 = vlaneseq
        %v10777 = vshrl.u32 %v10776, 7
        %v10778 = vsub.s32 %v10775, %v10777
        %v10779 = vrot.slane %v10765, %v10778
        %v10780 = vcombine.low %v8703, %v8711
        %v10781 = vcombine.high %v8703, %v8711
        %v10783 = vunpack.c.l.s4 1983009808
        %v10784 = vunpack.c.0.s8 %v10783
        %v10785 = vlaneseq
        %v10786 = vshrl.u32 %v10785, 7
        %v10787 = vsub.s32 %v10784, %v10786
        %v10788 = vrot.slane %v10780, %v10787
        %v10790 = vunpack.c.l.s4 1983009808
        %v10791 = vunpack.c.0.s8 %v10790
        %v10792 = vlaneseq
        %v10793 = vshrl.u32 %v10792, 7
        %v10794 = vsub.s32 %v10791, %v10793
        %v10795 = vrot.slane %v10781, %v10794
        %v10796 = vcombine.low %v8707, %v8715
        %v10797 = vcombine.high %v8707, %v8715
        %v10799 = vunpack.c.l.s4 1983009808
        %v10800 = vunpack.c.0.s8 %v10799
        %v10801 = vlaneseq
        %v10802 = vshrl.u32 %v10801, 7
        %v10803 = vsub.s32 %v10800, %v10802
        %v10804 = vrot.slane %v10796, %v10803
        %v10806 = vunpack.c.l.s4 1983009808
        %v10807 = vunpack.c.0.s8 %v10806
        %v10808 = vlaneseq
        %v10809 = vshrl.u32 %v10808, 7
        %v10810 = vsub.s32 %v10807, %v10809
        %v10811 = vrot.slane %v10797, %v10810
        %v10812 = vcombine.low %v10756, %v10772
        %v10813 = vcombine.high %v10756, %v10772
        %v10815 = vunpack.c.l.s4 1934713408
        %v10816 = vunpack.c.0.s8 %v10815
        %v10817 = vlaneseq
        %v10818 = vshrl.u32 %v10817, 7
        %v10819 = vsub.s32 %v10816, %v10818
        %v10820 = vrot.slane %v10812, %v10819
        %v10822 = vunpack.c.l.s4 1934713408
        %v10823 = vunpack.c.0.s8 %v10822
        %v10824 = vlaneseq
        %v10825 = vshrl.u32 %v10824, 7
        %v10826 = vsub.s32 %v10823, %v10825
        %v10827 = vrot.slane %v10813, %v10826
        %v10828 = vcombine.low %v10763, %v10779
        %v10829 = vcombine.high %v10763, %v10779
        %v10831 = vunpack.c.l.s4 1934713408
        %v10832 = vunpack.c.0.s8 %v10831
        %v10833 = vlaneseq
        %v10834 = vshrl.u32 %v10833, 7
        %v10835 = vsub.s32 %v10832, %v10834
        %v10836 = vrot.slane %v10828, %v10835
        %v10838 = vunpack.c.l.s4 1934713408
        %v10839 = vunpack.c.0.s8 %v10838
        %v10840 = vlaneseq
        %v10841 = vshrl.u32 %v10840, 7
        %v10842 = vsub.s32 %v10839, %v10841
        %v10843 = vrot.slane %v10829, %v10842
        %v10844 = vcombine.low %v10788, %v10804
        %v10845 = vcombine.high %v10788, %v10804
        %v10847 = vunpack.c.l.s4 1934713408
        %v10848 = vunpack.c.0.s8 %v10847
        %v10849 = vlaneseq
        %v10850 = vshrl.u32 %v10849, 7
        %v10851 = vsub.s32 %v10848, %v10850
        %v10852 = vrot.slane %v10844, %v10851
        %v10854 = vunpack.c.l.s4 1934713408
        %v10855 = vunpack.c.0.s8 %v10854
        %v10856 = vlaneseq
        %v10857 = vshrl.u32 %v10856, 7
        %v10858 = vsub.s32 %v10855, %v10857
        %v10859 = vrot.slane %v10845, %v10858
        %v10860 = vcombine.low %v10795, %v10811
        %v10861 = vcombine.high %v10795, %v10811
        %v10863 = vunpack.c.l.s4 1934713408
        %v10864 = vunpack.c.0.s8 %v10863
        %v10865 = vlaneseq
        %v10866 = vshrl.u32 %v10865, 7
        %v10867 = vsub.s32 %v10864, %v10866
        %v10868 = vrot.slane %v10860, %v10867
        %v10870 = vunpack.c.l.s4 1934713408
        %v10871 = vunpack.c.0.s8 %v10870
        %v10872 = vlaneseq
        %v10873 = vshrl.u32 %v10872, 7
        %v10874 = vsub.s32 %v10871, %v10873
        %v10875 = vrot.slane %v10861, %v10874
        %v10876 = vcombine.low %v10820, %v10852
        %v10877 = vcombine.high %v10820, %v10852
        %v10878 = vcombine.low %v10827, %v10859
        %v10879 = vcombine.high %v10827, %v10859
        %v10880 = vcombine.low %v10836, %v10868
        %v10881 = vcombine.high %v10836, %v10868
        %v10882 = vcombine.low %v10843, %v10875
        %v10883 = vcombine.high %v10843, %v10875
        %v10884 = vcombine.low %v8493, %v8497
        %v10885 = vcombine.high %v8493, %v8497
        %v10887 = vunpack.c.l.s4 1983009808
        %v10888 = vunpack.c.0.s8 %v10887
        %v10889 = vlaneseq
        %v10890 = vshrl.u32 %v10889, 7
        %v10891 = vsub.s32 %v10888, %v10890
        %v10892 = vrot.slane %v10884, %v10891
        %v10894 = vunpack.c.l.s4 1983009808
        %v10895 = vunpack.c.0.s8 %v10894
        %v10896 = vlaneseq
        %v10897 = vshrl.u32 %v10896, 7
        %v10898 = vsub.s32 %v10895, %v10897
        %v10899 = vrot.slane %v10885, %v10898
        %v10900 = vcombine.low %v8495, %v8499
        %v10901 = vcombine.high %v8495, %v8499
        %v10903 = vunpack.c.l.s4 1983009808
        %v10904 = vunpack.c.0.s8 %v10903
        %v10905 = vlaneseq
        %v10906 = vshrl.u32 %v10905, 7
        %v10907 = vsub.s32 %v10904, %v10906
        %v10908 = vrot.slane %v10900, %v10907
        %v10910 = vunpack.c.l.s4 1983009808
        %v10911 = vunpack.c.0.s8 %v10910
        %v10912 = vlaneseq
        %v10913 = vshrl.u32 %v10912, 7
        %v10914 = vsub.s32 %v10911, %v10913
        %v10915 = vrot.slane %v10901, %v10914
        %v10916 = vcombine.low %v8501, %v8505
        %v10917 = vcombine.high %v8501, %v8505
        %v10919 = vunpack.c.l.s4 1983009808
        %v10920 = vunpack.c.0.s8 %v10919
        %v10921 = vlaneseq
        %v10922 = vshrl.u32 %v10921, 7
        %v10923 = vsub.s32 %v10920, %v10922
        %v10924 = vrot.slane %v10916, %v10923
        %v10926 = vunpack.c.l.s4 1983009808
        %v10927 = vunpack.c.0.s8 %v10926
        %v10928 = vlaneseq
        %v10929 = vshrl.u32 %v10928, 7
        %v10930 = vsub.s32 %v10927, %v10929
        %v10931 = vrot.slane %v10917, %v10930
        %v10932 = vcombine.low %v8503, %v8507
        %v10933 = vcombine.high %v8503, %v8507
        %v10935 = vunpack.c.l.s4 1983009808
        %v10936 = vunpack.c.0.s8 %v10935
        %v10937 = vlaneseq
        %v10938 = vshrl.u32 %v10937, 7
        %v10939 = vsub.s32 %v10936, %v10938
        %v10940 = vrot.slane %v10932, %v10939
        %v10942 = vunpack.c.l.s4 1983009808
        %v10943 = vunpack.c.0.s8 %v10942
        %v10944 = vlaneseq
        %v10945 = vshrl.u32 %v10944, 7
        %v10946 = vsub.s32 %v10943, %v10945
        %v10947 = vrot.slane %v10933, %v10946
        %v10948 = vcombine.low %v10892, %v10908
        %v10949 = vcombine.high %v10892, %v10908
        %v10951 = vunpack.c.l.s4 1934713408
        %v10952 = vunpack.c.0.s8 %v10951
        %v10953 = vlaneseq
        %v10954 = vshrl.u32 %v10953, 7
        %v10955 = vsub.s32 %v10952, %v10954
        %v10956 = vrot.slane %v10948, %v10955
        %v10958 = vunpack.c.l.s4 1934713408
        %v10959 = vunpack.c.0.s8 %v10958
        %v10960 = vlaneseq
        %v10961 = vshrl.u32 %v10960, 7
        %v10962 = vsub.s32 %v10959, %v10961
        %v10963 = vrot.slane %v10949, %v10962
        %v10964 = vcombine.low %v10899, %v10915
        %v10965 = vcombine.high %v10899, %v10915
        %v10967 = vunpack.c.l.s4 1934713408
        %v10968 = vunpack.c.0.s8 %v10967
        %v10969 = vlaneseq
        %v10970 = vshrl.u32 %v10969, 7
        %v10971 = vsub.s32 %v10968, %v10970
        %v10972 = vrot.slane %v10964, %v10971
        %v10974 = vunpack.c.l.s4 1934713408
        %v10975 = vunpack.c.0.s8 %v10974
        %v10976 = vlaneseq
        %v10977 = vshrl.u32 %v10976, 7
        %v10978 = vsub.s32 %v10975, %v10977
        %v10979 = vrot.slane %v10965, %v10978
        %v10980 = vcombine.low %v10924, %v10940
        %v10981 = vcombine.high %v10924, %v10940
        %v10983 = vunpack.c.l.s4 1934713408
        %v10984 = vunpack.c.0.s8 %v10983
        %v10985 = vlaneseq
        %v10986 = vshrl.u32 %v10985, 7
        %v10987 = vsub.s32 %v10984, %v10986
        %v10988 = vrot.slane %v10980, %v10987
        %v10990 = vunpack.c.l.s4 1934713408
        %v10991 = vunpack.c.0.s8 %v10990
        %v10992 = vlaneseq
        %v10993 = vshrl.u32 %v10992, 7
        %v10994 = vsub.s32 %v10991, %v10993
        %v10995 = vrot.slane %v10981, %v10994
        %v10996 = vcombine.low %v10931, %v10947
        %v10997 = vcombine.high %v10931, %v10947
        %v10999 = vunpack.c.l.s4 1934713408
        %v11000 = vunpack.c.0.s8 %v10999
        %v11001 = vlaneseq
        %v11002 = vshrl.u32 %v11001, 7
        %v11003 = vsub.s32 %v11000, %v11002
        %v11004 = vrot.slane %v10996, %v11003
        %v11006 = vunpack.c.l.s4 1934713408
        %v11007 = vunpack.c.0.s8 %v11006
        %v11008 = vlaneseq
        %v11009 = vshrl.u32 %v11008, 7
        %v11010 = vsub.s32 %v11007, %v11009
        %v11011 = vrot.slane %v10997, %v11010
        %v11012 = vcombine.low %v10956, %v10988
        %v11013 = vcombine.high %v10956, %v10988
        %v11014 = vcombine.low %v10963, %v10995
        %v11015 = vcombine.high %v10963, %v10995
        %v11016 = vcombine.low %v10972, %v11004
        %v11017 = vcombine.high %v10972, %v11004
        %v11018 = vcombine.low %v10979, %v11011
        %v11019 = vcombine.high %v10979, %v11011
        %v11020 = vcombine.low %v8751, %v8759
        %v11021 = vcombine.high %v8751, %v8759
        %v11023 = vunpack.c.l.s4 1983009808
        %v11024 = vunpack.c.0.s8 %v11023
        %v11025 = vlaneseq
        %v11026 = vshrl.u32 %v11025, 7
        %v11027 = vsub.s32 %v11024, %v11026
        %v11028 = vrot.slane %v11020, %v11027
        %v11030 = vunpack.c.l.s4 1983009808
        %v11031 = vunpack.c.0.s8 %v11030
        %v11032 = vlaneseq
        %v11033 = vshrl.u32 %v11032, 7
        %v11034 = vsub.s32 %v11031, %v11033
        %v11035 = vrot.slane %v11021, %v11034
        %v11036 = vcombine.low %v8755, %v8763
        %v11037 = vcombine.high %v8755, %v8763
        %v11039 = vunpack.c.l.s4 1983009808
        %v11040 = vunpack.c.0.s8 %v11039
        %v11041 = vlaneseq
        %v11042 = vshrl.u32 %v11041, 7
        %v11043 = vsub.s32 %v11040, %v11042
        %v11044 = vrot.slane %v11036, %v11043
        %v11046 = vunpack.c.l.s4 1983009808
        %v11047 = vunpack.c.0.s8 %v11046
        %v11048 = vlaneseq
        %v11049 = vshrl.u32 %v11048, 7
        %v11050 = vsub.s32 %v11047, %v11049
        %v11051 = vrot.slane %v11037, %v11050
        %v11052 = vcombine.low %v8767, %v8775
        %v11053 = vcombine.high %v8767, %v8775
        %v11055 = vunpack.c.l.s4 1983009808
        %v11056 = vunpack.c.0.s8 %v11055
        %v11057 = vlaneseq
        %v11058 = vshrl.u32 %v11057, 7
        %v11059 = vsub.s32 %v11056, %v11058
        %v11060 = vrot.slane %v11052, %v11059
        %v11062 = vunpack.c.l.s4 1983009808
        %v11063 = vunpack.c.0.s8 %v11062
        %v11064 = vlaneseq
        %v11065 = vshrl.u32 %v11064, 7
        %v11066 = vsub.s32 %v11063, %v11065
        %v11067 = vrot.slane %v11053, %v11066
        %v11068 = vcombine.low %v8771, %v8779
        %v11069 = vcombine.high %v8771, %v8779
        %v11071 = vunpack.c.l.s4 1983009808
        %v11072 = vunpack.c.0.s8 %v11071
        %v11073 = vlaneseq
        %v11074 = vshrl.u32 %v11073, 7
        %v11075 = vsub.s32 %v11072, %v11074
        %v11076 = vrot.slane %v11068, %v11075
        %v11078 = vunpack.c.l.s4 1983009808
        %v11079 = vunpack.c.0.s8 %v11078
        %v11080 = vlaneseq
        %v11081 = vshrl.u32 %v11080, 7
        %v11082 = vsub.s32 %v11079, %v11081
        %v11083 = vrot.slane %v11069, %v11082
        %v11084 = vcombine.low %v11028, %v11044
        %v11085 = vcombine.high %v11028, %v11044
        %v11087 = vunpack.c.l.s4 1934713408
        %v11088 = vunpack.c.0.s8 %v11087
        %v11089 = vlaneseq
        %v11090 = vshrl.u32 %v11089, 7
        %v11091 = vsub.s32 %v11088, %v11090
        %v11092 = vrot.slane %v11084, %v11091
        %v11094 = vunpack.c.l.s4 1934713408
        %v11095 = vunpack.c.0.s8 %v11094
        %v11096 = vlaneseq
        %v11097 = vshrl.u32 %v11096, 7
        %v11098 = vsub.s32 %v11095, %v11097
        %v11099 = vrot.slane %v11085, %v11098
        %v11100 = vcombine.low %v11035, %v11051
        %v11101 = vcombine.high %v11035, %v11051
        %v11103 = vunpack.c.l.s4 1934713408
        %v11104 = vunpack.c.0.s8 %v11103
        %v11105 = vlaneseq
        %v11106 = vshrl.u32 %v11105, 7
        %v11107 = vsub.s32 %v11104, %v11106
        %v11108 = vrot.slane %v11100, %v11107
        %v11110 = vunpack.c.l.s4 1934713408
        %v11111 = vunpack.c.0.s8 %v11110
        %v11112 = vlaneseq
        %v11113 = vshrl.u32 %v11112, 7
        %v11114 = vsub.s32 %v11111, %v11113
        %v11115 = vrot.slane %v11101, %v11114
        %v11116 = vcombine.low %v11060, %v11076
        %v11117 = vcombine.high %v11060, %v11076
        %v11119 = vunpack.c.l.s4 1934713408
        %v11120 = vunpack.c.0.s8 %v11119
        %v11121 = vlaneseq
        %v11122 = vshrl.u32 %v11121, 7
        %v11123 = vsub.s32 %v11120, %v11122
        %v11124 = vrot.slane %v11116, %v11123
        %v11126 = vunpack.c.l.s4 1934713408
        %v11127 = vunpack.c.0.s8 %v11126
        %v11128 = vlaneseq
        %v11129 = vshrl.u32 %v11128, 7
        %v11130 = vsub.s32 %v11127, %v11129
        %v11131 = vrot.slane %v11117, %v11130
        %v11132 = vcombine.low %v11067, %v11083
        %v11133 = vcombine.high %v11067, %v11083
        %v11135 = vunpack.c.l.s4 1934713408
        %v11136 = vunpack.c.0.s8 %v11135
        %v11137 = vlaneseq
        %v11138 = vshrl.u32 %v11137, 7
        %v11139 = vsub.s32 %v11136, %v11138
        %v11140 = vrot.slane %v11132, %v11139
        %v11142 = vunpack.c.l.s4 1934713408
        %v11143 = vunpack.c.0.s8 %v11142
        %v11144 = vlaneseq
        %v11145 = vshrl.u32 %v11144, 7
        %v11146 = vsub.s32 %v11143, %v11145
        %v11147 = vrot.slane %v11133, %v11146
        %v11148 = vcombine.low %v11092, %v11124
        %v11149 = vcombine.high %v11092, %v11124
        %v11150 = vcombine.low %v11099, %v11131
        %v11151 = vcombine.high %v11099, %v11131
        %v11152 = vcombine.low %v11108, %v11140
        %v11153 = vcombine.high %v11108, %v11140
        %v11154 = vcombine.low %v11115, %v11147
        %v11155 = vcombine.high %v11115, %v11147
        %v11156 = vcombine.low %v8799, %v8807
        %v11157 = vcombine.high %v8799, %v8807
        %v11159 = vunpack.c.l.s4 1983009808
        %v11160 = vunpack.c.0.s8 %v11159
        %v11161 = vlaneseq
        %v11162 = vshrl.u32 %v11161, 7
        %v11163 = vsub.s32 %v11160, %v11162
        %v11164 = vrot.slane %v11156, %v11163
        %v11166 = vunpack.c.l.s4 1983009808
        %v11167 = vunpack.c.0.s8 %v11166
        %v11168 = vlaneseq
        %v11169 = vshrl.u32 %v11168, 7
        %v11170 = vsub.s32 %v11167, %v11169
        %v11171 = vrot.slane %v11157, %v11170
        %v11172 = vcombine.low %v8803, %v8811
        %v11173 = vcombine.high %v8803, %v8811
        %v11175 = vunpack.c.l.s4 1983009808
        %v11176 = vunpack.c.0.s8 %v11175
        %v11177 = vlaneseq
        %v11178 = vshrl.u32 %v11177, 7
        %v11179 = vsub.s32 %v11176, %v11178
        %v11180 = vrot.slane %v11172, %v11179
        %v11182 = vunpack.c.l.s4 1983009808
        %v11183 = vunpack.c.0.s8 %v11182
        %v11184 = vlaneseq
        %v11185 = vshrl.u32 %v11184, 7
        %v11186 = vsub.s32 %v11183, %v11185
        %v11187 = vrot.slane %v11173, %v11186
        %v11188 = vcombine.low %v8815, %v8823
        %v11189 = vcombine.high %v8815, %v8823
        %v11191 = vunpack.c.l.s4 1983009808
        %v11192 = vunpack.c.0.s8 %v11191
        %v11193 = vlaneseq
        %v11194 = vshrl.u32 %v11193, 7
        %v11195 = vsub.s32 %v11192, %v11194
        %v11196 = vrot.slane %v11188, %v11195
        %v11198 = vunpack.c.l.s4 1983009808
        %v11199 = vunpack.c.0.s8 %v11198
        %v11200 = vlaneseq
        %v11201 = vshrl.u32 %v11200, 7
        %v11202 = vsub.s32 %v11199, %v11201
        %v11203 = vrot.slane %v11189, %v11202
        %v11204 = vcombine.low %v8819, %v8827
        %v11205 = vcombine.high %v8819, %v8827
        %v11207 = vunpack.c.l.s4 1983009808
        %v11208 = vunpack.c.0.s8 %v11207
        %v11209 = vlaneseq
        %v11210 = vshrl.u32 %v11209, 7
        %v11211 = vsub.s32 %v11208, %v11210
        %v11212 = vrot.slane %v11204, %v11211
        %v11214 = vunpack.c.l.s4 1983009808
        %v11215 = vunpack.c.0.s8 %v11214
        %v11216 = vlaneseq
        %v11217 = vshrl.u32 %v11216, 7
        %v11218 = vsub.s32 %v11215, %v11217
        %v11219 = vrot.slane %v11205, %v11218
        %v11220 = vcombine.low %v11164, %v11180
        %v11221 = vcombine.high %v11164, %v11180
        %v11223 = vunpack.c.l.s4 1934713408
        %v11224 = vunpack.c.0.s8 %v11223
        %v11225 = vlaneseq
        %v11226 = vshrl.u32 %v11225, 7
        %v11227 = vsub.s32 %v11224, %v11226
        %v11228 = vrot.slane %v11220, %v11227
        %v11230 = vunpack.c.l.s4 1934713408
        %v11231 = vunpack.c.0.s8 %v11230
        %v11232 = vlaneseq
        %v11233 = vshrl.u32 %v11232, 7
        %v11234 = vsub.s32 %v11231, %v11233
        %v11235 = vrot.slane %v11221, %v11234
        %v11236 = vcombine.low %v11171, %v11187
        %v11237 = vcombine.high %v11171, %v11187
        %v11239 = vunpack.c.l.s4 1934713408
        %v11240 = vunpack.c.0.s8 %v11239
        %v11241 = vlaneseq
        %v11242 = vshrl.u32 %v11241, 7
        %v11243 = vsub.s32 %v11240, %v11242
        %v11244 = vrot.slane %v11236, %v11243
        %v11246 = vunpack.c.l.s4 1934713408
        %v11247 = vunpack.c.0.s8 %v11246
        %v11248 = vlaneseq
        %v11249 = vshrl.u32 %v11248, 7
        %v11250 = vsub.s32 %v11247, %v11249
        %v11251 = vrot.slane %v11237, %v11250
        %v11252 = vcombine.low %v11196, %v11212
        %v11253 = vcombine.high %v11196, %v11212
        %v11255 = vunpack.c.l.s4 1934713408
        %v11256 = vunpack.c.0.s8 %v11255
        %v11257 = vlaneseq
        %v11258 = vshrl.u32 %v11257, 7
        %v11259 = vsub.s32 %v11256, %v11258
        %v11260 = vrot.slane %v11252, %v11259
        %v11262 = vunpack.c.l.s4 1934713408
        %v11263 = vunpack.c.0.s8 %v11262
        %v11264 = vlaneseq
        %v11265 = vshrl.u32 %v11264, 7
        %v11266 = vsub.s32 %v11263, %v11265
        %v11267 = vrot.slane %v11253, %v11266
        %v11268 = vcombine.low %v11203, %v11219
        %v11269 = vcombine.high %v11203, %v11219
        %v11271 = vunpack.c.l.s4 1934713408
        %v11272 = vunpack.c.0.s8 %v11271
        %v11273 = vlaneseq
        %v11274 = vshrl.u32 %v11273, 7
        %v11275 = vsub.s32 %v11272, %v11274
        %v11276 = vrot.slane %v11268, %v11275
        %v11278 = vunpack.c.l.s4 1934713408
        %v11279 = vunpack.c.0.s8 %v11278
        %v11280 = vlaneseq
        %v11281 = vshrl.u32 %v11280, 7
        %v11282 = vsub.s32 %v11279, %v11281
        %v11283 = vrot.slane %v11269, %v11282
        %v11284 = vcombine.low %v11228, %v11260
        %v11285 = vcombine.high %v11228, %v11260
        %v11286 = vcombine.low %v11235, %v11267
        %v11287 = vcombine.high %v11235, %v11267
        %v11288 = vcombine.low %v11244, %v11276
        %v11289 = vcombine.high %v11244, %v11276
        %v11290 = vcombine.low %v11251, %v11283
        %v11291 = vcombine.high %v11251, %v11283
        %11301 = vrot.lane.b32.xlu0 %v8973, 16
        %v11302 = vpop.permute.xlu0 %11301
        %11303 = vrot.lane.b32.xlu0 %v9109, 16
        %v11304 = vpop.permute.xlu0 %11303
        %11305 = vrot.lane.b32.xlu0 %v9245, 16
        %v11306 = vpop.permute.xlu0 %11305
        %11307 = vrot.lane.b32.xlu0 %v9381, 16
        %v11308 = vpop.permute.xlu0 %11307
        %11309 = vrot.lane.b32.xlu0 %v9517, 16
        %v11310 = vpop.permute.xlu0 %11309
        %11311 = vrot.lane.b32.xlu0 %v9653, 16
        %v11312 = vpop.permute.xlu0 %11311
        %11313 = vrot.lane.b32.xlu0 %v9789, 16
        %v11314 = vpop.permute.xlu0 %11313
        %11315 = vrot.lane.b32.xlu0 %v9925, 16
        %v11316 = vpop.permute.xlu0 %11315
        %11317 = vrot.lane.b32.xlu0 %v10061, 16
        %v11318 = vpop.permute.xlu0 %11317
        %11337 = vrot.lane.b32.xlu0 %v8974, 32
        %v11338 = vpop.permute.xlu0 %11337
        %11339 = vrot.lane.b32.xlu0 %v9110, 32
        %v11340 = vpop.permute.xlu0 %11339
        %11341 = vrot.lane.b32.xlu0 %v9246, 32
        %v11342 = vpop.permute.xlu0 %11341
        %11343 = vrot.lane.b32.xlu0 %v9382, 32
        %v11344 = vpop.permute.xlu0 %11343
        %11345 = vrot.lane.b32.xlu0 %v9518, 32
        %v11346 = vpop.permute.xlu0 %11345
        %11347 = vrot.lane.b32.xlu0 %v9654, 32
        %v11348 = vpop.permute.xlu0 %11347
        %11349 = vrot.lane.b32.xlu0 %v9790, 32
        %v11350 = vpop.permute.xlu0 %11349
        %11351 = vrot.lane.b32.xlu0 %v9926, 32
        %v11352 = vpop.permute.xlu0 %11351
        %11353 = vrot.lane.b32.xlu0 %v10062, 32
        %v11354 = vpop.permute.xlu0 %11353
        %11373 = vrot.lane.b32.xlu0 %v8975, 48
        %v11374 = vpop.permute.xlu0 %11373
        %11375 = vrot.lane.b32.xlu0 %v9111, 48
        %v11376 = vpop.permute.xlu0 %11375
        %11377 = vrot.lane.b32.xlu0 %v9247, 48
        %v11378 = vpop.permute.xlu0 %11377
        %11379 = vrot.lane.b32.xlu0 %v9383, 48
        %v11380 = vpop.permute.xlu0 %11379
        %11381 = vrot.lane.b32.xlu0 %v9519, 48
        %v11382 = vpop.permute.xlu0 %11381
        %11383 = vrot.lane.b32.xlu0 %v9655, 48
        %v11384 = vpop.permute.xlu0 %11383
        %11385 = vrot.lane.b32.xlu0 %v9791, 48
        %v11386 = vpop.permute.xlu0 %11385
        %11387 = vrot.lane.b32.xlu0 %v9927, 48
        %v11388 = vpop.permute.xlu0 %11387
        %11389 = vrot.lane.b32.xlu0 %v10063, 48
        %v11390 = vpop.permute.xlu0 %11389
        %11409 = vrot.lane.b32.xlu0 %v8976, 64
        %v11410 = vpop.permute.xlu0 %11409
        %11411 = vrot.lane.b32.xlu0 %v9112, 64
        %v11412 = vpop.permute.xlu0 %11411
        %11413 = vrot.lane.b32.xlu0 %v9248, 64
        %v11414 = vpop.permute.xlu0 %11413
        %11415 = vrot.lane.b32.xlu0 %v9384, 64
        %v11416 = vpop.permute.xlu0 %11415
        %11417 = vrot.lane.b32.xlu0 %v9520, 64
        %v11418 = vpop.permute.xlu0 %11417
        %11419 = vrot.lane.b32.xlu0 %v9656, 64
        %v11420 = vpop.permute.xlu0 %11419
        %11421 = vrot.lane.b32.xlu0 %v9792, 64
        %v11422 = vpop.permute.xlu0 %11421
        %11423 = vrot.lane.b32.xlu0 %v9928, 64
        %v11424 = vpop.permute.xlu0 %11423
        %11425 = vrot.lane.b32.xlu0 %v10064, 64
        %v11426 = vpop.permute.xlu0 %11425
        %11445 = vrot.lane.b32.xlu0 %v8977, 80
        %v11446 = vpop.permute.xlu0 %11445
        %11447 = vrot.lane.b32.xlu0 %v9113, 80
        %v11448 = vpop.permute.xlu0 %11447
        %11449 = vrot.lane.b32.xlu0 %v9249, 80
        %v11450 = vpop.permute.xlu0 %11449
        %11451 = vrot.lane.b32.xlu0 %v9385, 80
        %v11452 = vpop.permute.xlu0 %11451
        %11453 = vrot.lane.b32.xlu0 %v9521, 80
        %v11454 = vpop.permute.xlu0 %11453
        %11455 = vrot.lane.b32.xlu0 %v9657, 80
        %v11456 = vpop.permute.xlu0 %11455
        %11457 = vrot.lane.b32.xlu0 %v9793, 80
        %v11458 = vpop.permute.xlu0 %11457
        %11459 = vrot.lane.b32.xlu0 %v9929, 80
        %v11460 = vpop.permute.xlu0 %11459
        %11461 = vrot.lane.b32.xlu0 %v10065, 80
        %v11462 = vpop.permute.xlu0 %11461
        %11481 = vrot.lane.b32.xlu0 %v8978, 96
        %v11482 = vpop.permute.xlu0 %11481
        %11483 = vrot.lane.b32.xlu0 %v9114, 96
        %v11484 = vpop.permute.xlu0 %11483
        %11485 = vrot.lane.b32.xlu0 %v9250, 96
        %v11486 = vpop.permute.xlu0 %11485
        %11487 = vrot.lane.b32.xlu0 %v9386, 96
        %v11488 = vpop.permute.xlu0 %11487
        %11489 = vrot.lane.b32.xlu0 %v9522, 96
        %v11490 = vpop.permute.xlu0 %11489
        %11491 = vrot.lane.b32.xlu0 %v9658, 96
        %v11492 = vpop.permute.xlu0 %11491
        %11493 = vrot.lane.b32.xlu0 %v9794, 96
        %v11494 = vpop.permute.xlu0 %11493
        %11495 = vrot.lane.b32.xlu0 %v9930, 96
        %v11496 = vpop.permute.xlu0 %11495
        %11497 = vrot.lane.b32.xlu0 %v10066, 96
        %v11498 = vpop.permute.xlu0 %11497
        %11517 = vrot.lane.b32.xlu0 %v8979, 112
        %v11518 = vpop.permute.xlu0 %11517
        %11519 = vrot.lane.b32.xlu0 %v9115, 112
        %v11520 = vpop.permute.xlu0 %11519
        %11521 = vrot.lane.b32.xlu0 %v9251, 112
        %v11522 = vpop.permute.xlu0 %11521
        %11523 = vrot.lane.b32.xlu0 %v9387, 112
        %v11524 = vpop.permute.xlu0 %11523
        %11525 = vrot.lane.b32.xlu0 %v9523, 112
        %v11526 = vpop.permute.xlu0 %11525
        %11527 = vrot.lane.b32.xlu0 %v9659, 112
        %v11528 = vpop.permute.xlu0 %11527
        %11529 = vrot.lane.b32.xlu0 %v9795, 112
        %v11530 = vpop.permute.xlu0 %11529
        %11531 = vrot.lane.b32.xlu0 %v9931, 112
        %v11532 = vpop.permute.xlu0 %11531
        %11533 = vrot.lane.b32.xlu0 %v10067, 112
        %v11534 = vpop.permute.xlu0 %11533
        %11553 = vrot.lane.b32.xlu0 %v10197, 16
        %v11554 = vpop.permute.xlu0 %11553
        %11555 = vrot.lane.b32.xlu0 %v10333, 16
        %v11556 = vpop.permute.xlu0 %11555
        %11557 = vrot.lane.b32.xlu0 %v10469, 16
        %v11558 = vpop.permute.xlu0 %11557
        %11559 = vrot.lane.b32.xlu0 %v10605, 16
        %v11560 = vpop.permute.xlu0 %11559
        %11561 = vrot.lane.b32.xlu0 %v10741, 16
        %v11562 = vpop.permute.xlu0 %11561
        %11563 = vrot.lane.b32.xlu0 %v10877, 16
        %v11564 = vpop.permute.xlu0 %11563
        %11565 = vrot.lane.b32.xlu0 %v11013, 16
        %v11566 = vpop.permute.xlu0 %11565
        %11567 = vrot.lane.b32.xlu0 %v11149, 16
        %v11568 = vpop.permute.xlu0 %11567
        %11569 = vrot.lane.b32.xlu0 %v11285, 16
        %v11570 = vpop.permute.xlu0 %11569
        %11589 = vrot.lane.b32.xlu0 %v10198, 32
        %v11590 = vpop.permute.xlu0 %11589
        %11591 = vrot.lane.b32.xlu0 %v10334, 32
        %v11592 = vpop.permute.xlu0 %11591
        %11593 = vrot.lane.b32.xlu0 %v10470, 32
        %v11594 = vpop.permute.xlu0 %11593
        %11595 = vrot.lane.b32.xlu0 %v10606, 32
        %v11596 = vpop.permute.xlu0 %11595
        %11597 = vrot.lane.b32.xlu0 %v10742, 32
        %v11598 = vpop.permute.xlu0 %11597
        %11599 = vrot.lane.b32.xlu0 %v10878, 32
        %v11600 = vpop.permute.xlu0 %11599
        %11601 = vrot.lane.b32.xlu0 %v11014, 32
        %v11602 = vpop.permute.xlu0 %11601
        %11603 = vrot.lane.b32.xlu0 %v11150, 32
        %v11604 = vpop.permute.xlu0 %11603
        %11605 = vrot.lane.b32.xlu0 %v11286, 32
        %v11606 = vpop.permute.xlu0 %11605
        %11625 = vrot.lane.b32.xlu0 %v10199, 48
        %v11626 = vpop.permute.xlu0 %11625
        %11627 = vrot.lane.b32.xlu0 %v10335, 48
        %v11628 = vpop.permute.xlu0 %11627
        %11629 = vrot.lane.b32.xlu0 %v10471, 48
        %v11630 = vpop.permute.xlu0 %11629
        %11631 = vrot.lane.b32.xlu0 %v10607, 48
        %v11632 = vpop.permute.xlu0 %11631
        %11633 = vrot.lane.b32.xlu0 %v10743, 48
        %v11634 = vpop.permute.xlu0 %11633
        %11635 = vrot.lane.b32.xlu0 %v10879, 48
        %v11636 = vpop.permute.xlu0 %11635
        %11637 = vrot.lane.b32.xlu0 %v11015, 48
        %v11638 = vpop.permute.xlu0 %11637
        %11639 = vrot.lane.b32.xlu0 %v11151, 48
        %v11640 = vpop.permute.xlu0 %11639
        %11641 = vrot.lane.b32.xlu0 %v11287, 48
        %v11642 = vpop.permute.xlu0 %11641
        %11661 = vrot.lane.b32.xlu0 %v10200, 64
        %v11662 = vpop.permute.xlu0 %11661
        %11663 = vrot.lane.b32.xlu0 %v10336, 64
        %v11664 = vpop.permute.xlu0 %11663
        %11665 = vrot.lane.b32.xlu0 %v10472, 64
        %v11666 = vpop.permute.xlu0 %11665
        %11667 = vrot.lane.b32.xlu0 %v10608, 64
        %v11668 = vpop.permute.xlu0 %11667
        %11669 = vrot.lane.b32.xlu0 %v10744, 64
        %v11670 = vpop.permute.xlu0 %11669
        %11671 = vrot.lane.b32.xlu0 %v10880, 64
        %v11672 = vpop.permute.xlu0 %11671
        %11673 = vrot.lane.b32.xlu0 %v11016, 64
        %v11674 = vpop.permute.xlu0 %11673
        %11675 = vrot.lane.b32.xlu0 %v11152, 64
        %v11676 = vpop.permute.xlu0 %11675
        %11677 = vrot.lane.b32.xlu0 %v11288, 64
        %v11678 = vpop.permute.xlu0 %11677
        %11697 = vrot.lane.b32.xlu0 %v10201, 80
        %v11698 = vpop.permute.xlu0 %11697
        %11699 = vrot.lane.b32.xlu0 %v10337, 80
        %v11700 = vpop.permute.xlu0 %11699
        %11701 = vrot.lane.b32.xlu0 %v10473, 80
        %v11702 = vpop.permute.xlu0 %11701
        %11703 = vrot.lane.b32.xlu0 %v10609, 80
        %v11704 = vpop.permute.xlu0 %11703
        %11705 = vrot.lane.b32.xlu0 %v10745, 80
        %v11706 = vpop.permute.xlu0 %11705
        %11707 = vrot.lane.b32.xlu0 %v10881, 80
        %v11708 = vpop.permute.xlu0 %11707
        %11709 = vrot.lane.b32.xlu0 %v11017, 80
        %v11710 = vpop.permute.xlu0 %11709
        %11711 = vrot.lane.b32.xlu0 %v11153, 80
        %v11712 = vpop.permute.xlu0 %11711
        %11713 = vrot.lane.b32.xlu0 %v11289, 80
        %v11714 = vpop.permute.xlu0 %11713
        %11733 = vrot.lane.b32.xlu0 %v10202, 96
        %v11734 = vpop.permute.xlu0 %11733
        %11735 = vrot.lane.b32.xlu0 %v10338, 96
        %v11736 = vpop.permute.xlu0 %11735
        %11737 = vrot.lane.b32.xlu0 %v10474, 96
        %v11738 = vpop.permute.xlu0 %11737
        %11739 = vrot.lane.b32.xlu0 %v10610, 96
        %v11740 = vpop.permute.xlu0 %11739
        %11741 = vrot.lane.b32.xlu0 %v10746, 96
        %v11742 = vpop.permute.xlu0 %11741
        %11743 = vrot.lane.b32.xlu0 %v10882, 96
        %v11744 = vpop.permute.xlu0 %11743
        %11745 = vrot.lane.b32.xlu0 %v11018, 96
        %v11746 = vpop.permute.xlu0 %11745
        %11747 = vrot.lane.b32.xlu0 %v11154, 96
        %v11748 = vpop.permute.xlu0 %11747
        %11749 = vrot.lane.b32.xlu0 %v11290, 96
        %v11750 = vpop.permute.xlu0 %11749
        %11769 = vrot.lane.b32.xlu0 %v10203, 112
        %v11770 = vpop.permute.xlu0 %11769
        %11771 = vrot.lane.b32.xlu0 %v10339, 112
        %v11772 = vpop.permute.xlu0 %11771
        %11773 = vrot.lane.b32.xlu0 %v10475, 112
        %v11774 = vpop.permute.xlu0 %11773
        %11775 = vrot.lane.b32.xlu0 %v10611, 112
        %v11776 = vpop.permute.xlu0 %11775
        %11777 = vrot.lane.b32.xlu0 %v10747, 112
        %v11778 = vpop.permute.xlu0 %11777
        %11779 = vrot.lane.b32.xlu0 %v10883, 112
        %v11780 = vpop.permute.xlu0 %11779
        %11781 = vrot.lane.b32.xlu0 %v11019, 112
        %v11782 = vpop.permute.xlu0 %11781
        %11783 = vrot.lane.b32.xlu0 %v11155, 112
        %v11784 = vpop.permute.xlu0 %11783
        %11785 = vrot.lane.b32.xlu0 %v11291, 112
        %v11786 = vpop.permute.xlu0 %11785
        %v11796 = vsel %vm4398, %v8972, %v11302
        %v11797 = vsel %vm4398, %v9108, %v11304
        %v11798 = vsel %vm4398, %v9244, %v11306
        %v11799 = vsel %vm4398, %v9380, %v11308
        %v11800 = vsel %vm4398, %v9516, %v11310
        %v11801 = vsel %vm4398, %v9652, %v11312
        %v11802 = vsel %vm4398, %v9788, %v11314
        %v11803 = vsel %vm4398, %v9924, %v11316
        %v11804 = vsel %vm4398, %v10060, %v11318
        %v11805 = vsel %vm319, %v11796, %v11338
        %v11806 = vsel %vm319, %v11797, %v11340
        %v11807 = vsel %vm319, %v11798, %v11342
        %v11808 = vsel %vm319, %v11799, %v11344
        %v11809 = vsel %vm319, %v11800, %v11346
        %v11810 = vsel %vm319, %v11801, %v11348
        %v11811 = vsel %vm319, %v11802, %v11350
        %v11812 = vsel %vm319, %v11803, %v11352
        %v11813 = vsel %vm319, %v11804, %v11354
        %v11814 = vsel %vm4417, %v11805, %v11374
        %v11815 = vsel %vm4417, %v11806, %v11376
        %v11816 = vsel %vm4417, %v11807, %v11378
        %v11817 = vsel %vm4417, %v11808, %v11380
        %v11818 = vsel %vm4417, %v11809, %v11382
        %v11819 = vsel %vm4417, %v11810, %v11384
        %v11820 = vsel %vm4417, %v11811, %v11386
        %v11821 = vsel %vm4417, %v11812, %v11388
        %v11822 = vsel %vm4417, %v11813, %v11390
        %v11823 = vsel %vm4427, %v11814, %v11410
        %v11824 = vsel %vm4427, %v11815, %v11412
        %v11825 = vsel %vm4427, %v11816, %v11414
        %v11826 = vsel %vm4427, %v11817, %v11416
        %v11827 = vsel %vm4427, %v11818, %v11418
        %v11828 = vsel %vm4427, %v11819, %v11420
        %v11829 = vsel %vm4427, %v11820, %v11422
        %v11830 = vsel %vm4427, %v11821, %v11424
        %v11831 = vsel %vm4427, %v11822, %v11426
        %v11832 = vsel %vm4437, %v11823, %v11446
        %v11833 = vsel %vm4437, %v11824, %v11448
        %v11834 = vsel %vm4437, %v11825, %v11450
        %v11835 = vsel %vm4437, %v11826, %v11452
        %v11836 = vsel %vm4437, %v11827, %v11454
        %v11837 = vsel %vm4437, %v11828, %v11456
        %v11838 = vsel %vm4437, %v11829, %v11458
        %v11839 = vsel %vm4437, %v11830, %v11460
        %v11840 = vsel %vm4437, %v11831, %v11462
        %v11841 = vsel %vm4447, %v11832, %v11482
        %v11842 = vsel %vm4447, %v11833, %v11484
        %v11843 = vsel %vm4447, %v11834, %v11486
        %v11844 = vsel %vm4447, %v11835, %v11488
        %v11845 = vsel %vm4447, %v11836, %v11490
        %v11846 = vsel %vm4447, %v11837, %v11492
        %v11847 = vsel %vm4447, %v11838, %v11494
        %v11848 = vsel %vm4447, %v11839, %v11496
        %v11849 = vsel %vm4447, %v11840, %v11498
        %v11850 = vsel %vm4457, %v11841, %v11518
        %v11851 = vsel %vm4457, %v11842, %v11520
        %v11852 = vsel %vm4457, %v11843, %v11522
        %v11853 = vsel %vm4457, %v11844, %v11524
        %v11854 = vsel %vm4457, %v11845, %v11526
        %v11855 = vsel %vm4457, %v11846, %v11528
        %v11856 = vsel %vm4457, %v11847, %v11530
        %v11857 = vsel %vm4457, %v11848, %v11532
        %v11858 = vsel %vm4457, %v11849, %v11534
        %v11859 = vsel %vm4398, %v10196, %v11554
        %v11860 = vsel %vm4398, %v10332, %v11556
        %v11861 = vsel %vm4398, %v10468, %v11558
        %v11862 = vsel %vm4398, %v10604, %v11560
        %v11863 = vsel %vm4398, %v10740, %v11562
        %v11864 = vsel %vm4398, %v10876, %v11564
        %v11865 = vsel %vm4398, %v11012, %v11566
        %v11866 = vsel %vm4398, %v11148, %v11568
        %v11867 = vsel %vm4398, %v11284, %v11570
        %v11868 = vsel %vm319, %v11859, %v11590
        %v11869 = vsel %vm319, %v11860, %v11592
        %v11870 = vsel %vm319, %v11861, %v11594
        %v11871 = vsel %vm319, %v11862, %v11596
        %v11872 = vsel %vm319, %v11863, %v11598
        %v11873 = vsel %vm319, %v11864, %v11600
        %v11874 = vsel %vm319, %v11865, %v11602
        %v11875 = vsel %vm319, %v11866, %v11604
        %v11876 = vsel %vm319, %v11867, %v11606
        %v11877 = vsel %vm4417, %v11868, %v11626
        %v11878 = vsel %vm4417, %v11869, %v11628
        %v11879 = vsel %vm4417, %v11870, %v11630
        %v11880 = vsel %vm4417, %v11871, %v11632
        %v11881 = vsel %vm4417, %v11872, %v11634
        %v11882 = vsel %vm4417, %v11873, %v11636
        %v11883 = vsel %vm4417, %v11874, %v11638
        %v11884 = vsel %vm4417, %v11875, %v11640
        %v11885 = vsel %vm4417, %v11876, %v11642
        %v11886 = vsel %vm4427, %v11877, %v11662
        %v11887 = vsel %vm4427, %v11878, %v11664
        %v11888 = vsel %vm4427, %v11879, %v11666
        %v11889 = vsel %vm4427, %v11880, %v11668
        %v11890 = vsel %vm4427, %v11881, %v11670
        %v11891 = vsel %vm4427, %v11882, %v11672
        %v11892 = vsel %vm4427, %v11883, %v11674
        %v11893 = vsel %vm4427, %v11884, %v11676
        %v11894 = vsel %vm4427, %v11885, %v11678
        %v11895 = vsel %vm4437, %v11886, %v11698
        %v11896 = vsel %vm4437, %v11887, %v11700
        %v11897 = vsel %vm4437, %v11888, %v11702
        %v11898 = vsel %vm4437, %v11889, %v11704
        %v11899 = vsel %vm4437, %v11890, %v11706
        %v11900 = vsel %vm4437, %v11891, %v11708
        %v11901 = vsel %vm4437, %v11892, %v11710
        %v11902 = vsel %vm4437, %v11893, %v11712
        %v11903 = vsel %vm4437, %v11894, %v11714
        %v11904 = vsel %vm4447, %v11895, %v11734
        %v11905 = vsel %vm4447, %v11896, %v11736
        %v11906 = vsel %vm4447, %v11897, %v11738
        %v11907 = vsel %vm4447, %v11898, %v11740
        %v11908 = vsel %vm4447, %v11899, %v11742
        %v11909 = vsel %vm4447, %v11900, %v11744
        %v11910 = vsel %vm4447, %v11901, %v11746
        %v11911 = vsel %vm4447, %v11902, %v11748
        %v11912 = vsel %vm4447, %v11903, %v11750
        %v11913 = vsel %vm4457, %v11904, %v11770
        %v11914 = vsel %vm4457, %v11905, %v11772
        %v11915 = vsel %vm4457, %v11906, %v11774
        %v11916 = vsel %vm4457, %v11907, %v11776
        %v11917 = vsel %vm4457, %v11908, %v11778
        %v11918 = vsel %vm4457, %v11909, %v11780
        %v11919 = vsel %vm4457, %v11910, %v11782
        %v11920 = vsel %vm4457, %v11911, %v11784
        %v11921 = vsel %vm4457, %v11912, %v11786
        %v11922 = vpack.c.bf16 %v11851, %v11850
        %v11923 = vpack.c.bf16 %v11914, %v11913
        %v11924 = vpack.c.bf16 %v11853, %v11852
        %v11925 = vpack.c.bf16 %v11916, %v11915
        %v11926 = vpack.c.bf16 %v11855, %v11854
        %v11927 = vpack.c.bf16 %v11918, %v11917
        %v11928 = vpack.c.bf16 %v11857, %v11856
        %v11929 = vpack.c.bf16 %v11920, %v11919
        %v11930 = vpack.c.bf16 %v11858, %v11858
        %v11931 = vpack.c.bf16 %v11921, %v11921
        %s11932 = scalar_lea.vmem %s3, 8
        %v11933 = vld [vmem:[%s11932] sm:$0xf]
        %s11934 = scalar_lea.vmem %s4, 16
        %v11935 = vld [vmem:[%s11934] sm:$0xff]
        %11937 = vset.pattern.permute.xlu0 0
        %11938 = vperm.xlu0 %11937, %v11935
        %v11939 = vpop.permute.xlu0 %11938
        %v11942 = vsel %vm4547, %v11933, 0
        %v11945 = vsel %vm4551, %v11930, 0
        %v11948 = vsel %vm4551, %v11931, 0
        %11950 = vmatprep.subr.bf16.mxu0 %v11923
        %11951 = vmatpush1.bf16.msra.mxu0 %v11922
        %11952 = vmatprep.subr.bf16.mxu0 %v11925
        %11953 = vmatpush1.bf16.msra.mxu0 %v11924
        %11954 = vmatprep.subr.bf16.mxu0 %v11927
        %11955 = vmatpush1.bf16.msra.mxu0 %v11926
        %11956 = vmatprep.subr.bf16.mxu0 %v11929
        %11957 = vmatpush1.bf16.msra.mxu0 %v11928
        %11958 = vmatprep.subr.bf16.mxu0 %v11948
        %11959 = vmatpush1.bf16.msra.mxu0 %v11945
        %11960 = vmatprep.subr.bf16.mxu0 0
        %11961 = vmatpush1.bf16.msra.mxu0 0
        %11962 = vmatprep.subr.bf16.mxu0 0
        %11963 = vmatpush1.bf16.msra.mxu0 0
        %11964 = vmatprep.subr.bf16.mxu0 0
        %11965 = vmatpush1.bf16.msra.mxu0 0
        %11966 = vmatprep.subr.bf16.mxu0 0
        %11967 = vmatpush1.bf16.msra.mxu0 0
        %11968 = vmatprep.subr.bf16.mxu0 0
        %11969 = vmatpush1.bf16.msra.mxu0 0
        %11970 = vmatprep.subr.bf16.mxu0 0
        %11971 = vmatpush1.bf16.msra.mxu0 0
        %11972 = vmatprep.subr.bf16.mxu0 0
        %11973 = vmatpush1.bf16.msra.mxu0 0
        %11974 = vmatprep.subr.bf16.mxu0 0
        %11975 = vmatpush1.bf16.msra.mxu0 0
        %11976 = vmatprep.subr.bf16.mxu0 0
        %11977 = vmatpush1.bf16.msra.mxu0 0
        %11978 = vmatprep.subr.bf16.mxu0 0
        %11979 = vmatpush1.bf16.msra.mxu0 0
        %11980 = vmatprep.subr.bf16.mxu0 0
        %11981 = vmatpush1.bf16.msra.mxu0 0
        %11982 = vmatprep.mubr.bf16.mxu0 0
        %11983 = vmatmul.mubr.bf16.gmra.mrb[0].mxu0 %v11942
        %v11984 = vpop.f32.mrb[0].mxu0
        %v11985 = vadd.f32 %v11939, %v11984
        %v11986 = vpop.f32.mrb[0].mxu0
        %v11987 = vadd.f32 %v11939, %v11986
        %v11988 = vpop.f32.mrb[0].mxu0
        %v11989 = vpop.f32.mrb[0].mxu0
        %11990 = vdwg.mxu0
        %v11991 = vmax.f32 %v11985, 0.0
        %v11992 = vmax.f32 %v11987, 0.0
        %s11993 = scalar_lea.vmem %s5, 24
        %v11994 = vld [vmem:[%s11993] sm:$0xff]
        %11996 = vset.pattern.permute.xlu0 0
        %11997 = vperm.xlu0 %11996, %v11994
        %v11998 = vpop.permute.xlu0 %11997
        %v12000 = vmul.f32 %v11991, %v11998
        %v12001 = vmul.f32 %v11992, %v11998
        %v12002 = vadd.f32 %v8458, %v12000
        %v12003 = vadd.f32 %v8459, %v12001
        %v12004 = vrot.slane %v12002, 4
        %v12005 = vadd.f32 %v12002, %v12004
        %v12006 = vrot.slane %v12005, 2
        %v12007 = vadd.f32 %v12005, %v12006
        %v12008 = vrot.slane %v12007, 1
        %v12009 = vadd.f32 %v12007, %v12008
        %v12010 = vrot.slane %v12003, 4
        %v12011 = vadd.f32 %v12003, %v12010
        %v12012 = vrot.slane %v12011, 2
        %v12013 = vadd.f32 %v12011, %v12012
        %v12014 = vrot.slane %v12013, 1
        %v12015 = vadd.f32 %v12013, %v12014
        %v12016 = vld [vmem:[#allocation3] sm:$0x1]
        %12018 = vset.pattern.permute.xlu0 0
        %12019 = vperm.xlu0 %12018, %v12016
        %v12020 = vpop.permute.xlu0 %12019
        %v12022 = vlaneseq
        %v12023 = vshrl.u32 %v12022, 7
        %v12024 = vsub.s32 0, %v12023
        %v12025 = vrot.slane %v12020, %v12024
        %v12026 = vadd.f32 %v12009, %v12025
        %v12027 = vadd.f32 %v12015, %v12025
        %v12028 = vmax.f32 %v12026, 0.0
        %v12029 = vmax.f32 %v12027, 0.0
        %v12032 = vcombine.low %v12028, %v12029
        %v12034 = vunpack.c.l.s4 1966171168
        %v12035 = vunpack.c.0.s8 %v12034
        %v12036 = vlaneseq
        %v12037 = vshrl.u32 %v12036, 7
        %v12038 = vsub.s32 %v12035, %v12037
        %v12039 = vrot.slane %v12032, %v12038
        %v12041 = vunpack.c.l.s4 1966171168
        %v12042 = vunpack.c.0.s8 %v12041
        %v12043 = vlaneseq
        %v12044 = vshrl.u32 %v12043, 7
        %v12045 = vsub.s32 %v12042, %v12044
        %v12046 = vrot.slane %v12039, %v12045
        %v12048 = vlaneseq
        %vm12049 = vcmp.ge.s32.totalorder %v12048, 0
        %vm12050 = vcmp.lt.s32.totalorder %v12048, 256
        %vm12051 = vmand %vm12049, %vm12050
        %12052 = vst.msk [vmem:[%s298] sm:$0x3] %vm12051, %v12046
        %s12053 = sand.u32 %s186, 1
        %s12054 = scalar_lea.sflag [#allocation6], %s12053
        %s12055 = sand.u32 %s186, 1
        %s12056 = smul.addr %s12055, 2
        %s12057 = scalar_lea.vmem [#allocation7], %s12056
        // Predicated region
        $region53: #{tpu_custom_call.1} parent=47 // pred_check
          %p12058 = pneg %p196
        $region54: #{tpu_custom_call.1} parent=47 // pred_check_branch
          %12060 = sbr.rel (%p12058) target = $region56
        $region55: #{tpu_custom_call.1} parent=47 // pred_region
          %s12062 = ssub.s32 32, 32
          %12063 = vsyncadd %s12054, %s12062
          %s12064 = smul.addr %s26, 2
          %s12065 = smul.addr %s12064, 16
          %s12066 = scalar_lea.hbm %s7, %s12065
          %s12068 = sshll.u32 %s12057, 4
          %s12069 = int_to_ptr.vmem [resolvable:$true] %s12068
          %12071 = dma.vmem_to_hbm [thread:$0]  %s12069, 32, %s12066, %s12054
        $region56: #{tpu_custom_call.1} parent=47 // pred_fallthru
          _
      $region48: #{tpu_custom_call.1} parent=5 // pred_fallthru
        _
      %p12072 = scmp.le.s32.totalorder 2, %s21
      // Predicated region
      $region57: #{tpu_custom_call.1} parent=5 // pred_check
        %p12073 = pneg %p12072
      $region58: #{tpu_custom_call.1} parent=5 // pred_check_branch
        %12075 = sbr.rel (%p12073) target = $region60
      $region59: #{tpu_custom_call.1} parent=5 // pred_region
        %s12076 = ssub.s32 %s21, 2
        // Predicated region
        $region61: #{tpu_custom_call.1} parent=59 // pred_check
          %p12077 = pneg %p202
        $region62: #{tpu_custom_call.1} parent=59 // pred_check_branch
          %12079 = sbr.rel (%p12077) target = $region64
        $region63: #{tpu_custom_call.1} parent=59 // pred_region
          %s12080 = sand.u32 %s187, 1
          %s12081 = scalar_lea.sflag [#allocation6], %s12080
          %s12082 = sand.u32 %s187, 1
          %s12083 = smul.addr %s12082, 2
          %s12084 = scalar_lea.vmem [#allocation7], %s12083
          %12085 = dma.done %s12081, 32
        $region64: #{tpu_custom_call.1} parent=59 // pred_fallthru
          _
      $region60: #{tpu_custom_call.1} parent=5 // pred_fallthru
        _
    $region6: #{tpu_custom_call.1} parent=1 // loop_footer
      %s25 = sadd.s32 1, %s21
    $region7: #{tpu_custom_call.1} parent=1 // loop_footer_branch
      %20 = sbr.rel target = $region3
    $region8: #{tpu_custom_call.1} parent=1 // loop_exit
      _
    %12086 = vsyncpa [#allocation5], 1
    %s12087 = scalar_lea.sflag [#allocation5], 1
    %12088 = vsyncpa %s12087, 1
    %12089 = vsyncpa [#allocation6], 1
    %s12090 = scalar_lea.sflag [#allocation6], 1
    %12091 = vsyncpa %s12090, 1

</llo_original>
